<compile_context>
chip_gen: v5e
topology: v5e:2x2
jax: 0.10.0
libtpu: 0.0.40
codegen_flags: <defaults>
</compile_context>

<pallas_src>
import jax
import jax.numpy as jnp
from jax import lax
from jax.experimental import pallas as pl
from jax.experimental.pallas import tpu as pltpu

EPS = 1e-5
_VMEM = pl.BlockSpec(memory_space=pltpu.MemorySpace.VMEM)


# ---------------------------------------------------------------------------
# Fused kernel factory
# ---------------------------------------------------------------------------
def _make_residual_kernel(N, H, W, Cin, C, use_1x1conv, cdt):
    M = N * H * W
    inv_m = 1.0 / M

    def conv3x3(src_ref, w_ref):
        """3x3 'same' conv via im2col + one MXU matmul.

        src_ref: zero-padded (N, H+2, W+2, Cs) VMEM scratch (dtype cdt)
        w_ref:   (9*Cs, C) weights (dtype cdt), rows ordered (ky, kx, cin)
        returns: (N*H*W, C) float32
        """
        Cs = src_ref.shape[-1]
        taps = []
        for dy in range(3):
            for dx in range(3):
                taps.append(src_ref[:, pl.ds(dy, H), pl.ds(dx, W), :].reshape(M, Cs))
        patches = jnp.concatenate(taps, axis=-1)                # (M, 9*Cs)
        return jnp.dot(patches, w_ref[...], preferred_element_type=jnp.float32)

    def bn(y, g_ref, b_ref):
        """Training-mode BatchNorm, single pass (sum & sum-of-squares), f32."""
        s = jnp.sum(y, axis=0, keepdims=True)
        ss = jnp.sum(y * y, axis=0, keepdims=True)
        mean = s * inv_m
        var = ss * inv_m - mean * mean                          # biased variance
        return (y - mean) * lax.rsqrt(var + EPS) * g_ref[...] + b_ref[...]

    def kernel(x_ref, w1_ref, w2_ref, g1_ref, be1_ref, g2_ref, be2_ref, *rest):
        if use_1x1conv:
            w3_ref, b3_ref, o_ref, xp_s, y1p_s = rest
        else:
            o_ref, xp_s, y1p_s = rest

        xv = x_ref[...]                                         # (N, H, W, Cin), cdt

        # ---- halo-pad X into VMEM scratch (no XLA pad / HBM round trip) ----
        xp_s[...] = jnp.zeros_like(xp_s)
        xp_s[:, pl.ds(1, H), pl.ds(1, W), :] = xv

        # ---- branch: Y = relu(bn1(conv1(X)))  (conv bias cancelled by BN) ----
        y1 = jnp.maximum(bn(conv3x3(xp_s, w1_ref), g1_ref, be1_ref), 0.0)   # (M,C) f32

        # ---- halo-pad Y into scratch, then bn2(conv2(Y)) ----
        y1p_s[...] = jnp.zeros_like(y1p_s)
        y1p_s[:, pl.ds(1, H), pl.ds(1, W), :] = y1.reshape(N, H, W, C).astype(cdt)
        y2 = bn(conv3x3(y1p_s, w2_ref), g2_ref, be2_ref)                    # (M,C) f32

        # ---- shortcut (fused: 1x1 projection or identity) ----
        if use_1x1conv:
            res = jnp.dot(xv.reshape(M, Cin), w3_ref[...],
                          preferred_element_type=jnp.float32) + b3_ref[...]
        else:
            res = xv.reshape(M, Cin).astype(jnp.float32)        # Cin == C here

        # ---- residual add + final ReLU ----
        o_ref[...] = jnp.maximum(y2 + res, 0.0).reshape(N, H, W, C)

    return kernel


# ---------------------------------------------------------------------------
# Parameters (deterministic, shapes from the module __init__)
# ---------------------------------------------------------------------------
def init_residual_params(key, input_channels, num_channels, use_1x1conv=False):
    ks = jax.random.split(key, 6)
    p = {
        "w1": 0.1 * jax.random.normal(ks[0], (num_channels, input_channels, 3, 3), jnp.float32),
        "b1": 0.1 * jax.random.normal(ks[1], (num_channels,), jnp.float32),
        "w2": 0.1 * jax.random.normal(ks[2], (num_channels, num_channels, 3, 3), jnp.float32),
        "b2": 0.1 * jax.random.normal(ks[3], (num_channels,), jnp.float32),
        # BatchNorm2d default init: weight=1, bias=0
        "g1": jnp.ones((num_channels,), jnp.float32),
        "be1": jnp.zeros((num_channels,), jnp.float32),
        "g2": jnp.ones((num_channels,), jnp.float32),
        "be2": jnp.zeros((num_channels,), jnp.float32),
    }
    if use_1x1conv:
        p["w3"] = 0.1 * jax.random.normal(ks[4], (num_channels, input_channels, 1, 1), jnp.float32)
        p["b3"] = 0.1 * jax.random.normal(ks[5], (num_channels,), jnp.float32)
    return p


# ---------------------------------------------------------------------------
# Forward pass (wrapper; NCHW in / NCHW out like the PyTorch module)
# ---------------------------------------------------------------------------
def residual_forward(x_nchw, params, use_1x1conv=False, strides=1,
                     compute_dtype=jnp.float32):
    # TODO(synk): strides > 1 not implemented; module default strides=1 is used.
    assert strides == 1, "only strides=1 supported"
    cdt = jnp.dtype(compute_dtype)
    x = jnp.transpose(x_nchw, (0, 2, 3, 1)).astype(cdt)          # NCHW -> NHWC
    N, H, W, Cin = x.shape
    C = params["w1"].shape[0]
    f32 = jnp.float32

    def prep3x3(w_oihw):   # (Cout, Cin, 3, 3) -> (9*Cin, Cout), im2col (ky,kx,ci) order
        cout, cin = w_oihw.shape[0], w_oihw.shape[1]
        return jnp.transpose(w_oihw, (2, 3, 1, 0)).reshape(9 * cin, cout).astype(cdt)

    # NOTE: conv biases b1/b2 are intentionally NOT passed: a bias immediately
    # followed by training-mode BatchNorm is cancelled exactly by the mean
    # subtraction (the pure-JAX reference keeps them and matches within fp tol).
    inputs = [
        x,
        prep3x3(params["w1"]), prep3x3(params["w2"]),
        params["g1"].reshape(1, C).astype(f32), params["be1"].reshape(1, C).astype(f32),
        params["g2"].reshape(1, C).astype(f32), params["be2"].reshape(1, C).astype(f32),
    ]
    if use_1x1conv:
        inputs.append(jnp.transpose(params["w3"][:, :, 0, 0], (1, 0)).astype(cdt))  # (Cin, C)
        inputs.append(params["b3"].reshape(1, C).astype(f32))

    kernel = _make_residual_kernel(N, H, W, Cin, C, use_1x1conv, cdt)
    out_nhwc = pl.pallas_call(
        kernel,
        out_shape=jax.ShapeDtypeStruct((N, H, W, C), jnp.float32),
        in_specs=[_VMEM] * len(inputs),
        out_specs=_VMEM,
        scratch_shapes=[pltpu.VMEM((N, H + 2, W + 2, Cin), cdt),   # padded X
                        pltpu.VMEM((N, H + 2, W + 2, C), cdt)],    # padded Y1
        compiler_params=pltpu.CompilerParams(vmem_limit_bytes=32 * 1024 * 1024),
    )(*inputs)
    return jnp.transpose(out_nhwc, (0, 3, 1, 2))                   # NHWC -> NCHW


residual_forward_jit = jax.jit(
    residual_forward, static_argnames=("use_1x1conv", "strides", "compute_dtype"))


# ---------------------------------------------------------------------------
# Pure-JAX reference (matches the PyTorch forward in training mode)
# ---------------------------------------------------------------------------
def residual_reference(x, params, use_1x1conv=False, strides=1):
    def conv(x, w, b, stride, pad):
        y = lax.conv_general_dilated(x, w, (stride, stride),
                                     [(pad, pad), (pad, pad)],
                                     dimension_numbers=("NCHW", "OIHW", "NCHW"))
        return y + b[None, :, None, None]

    def bn(y, g, beta):
        mean = jnp.mean(y, axis=(0, 2, 3), keepdims=True)
        var = jnp.mean((y - mean) ** 2, axis=(0, 2, 3), keepdims=True)
        return (y - mean) / jnp.sqrt(var + EPS) * g[None, :, None, None] \
            + beta[None, :, None, None]

    Y = jax.nn.relu(bn(conv(x, params["w1"], params["b1"], strides, 1),
                       params["g1"], params["be1"]))
    Y = bn(conv(Y, params["w2"], params["b2"], 1, 1), params["g2"], params["be2"])
    X = conv(x, params["w3"], params["b3"], strides, 0) if use_1x1conv else x
    return jax.nn.relu(Y + X)


if __name__ == "__main__":
    key = jax.random.PRNGKey(0)
    kx, kp1, kp2 = jax.random.split(key, 3)

    # Config 1: identity shortcut (input_channels == num_channels)
    x1 = jax.random.uniform(kx, (2, 8, 16, 16), jnp.float32)
    p1 = init_residual_params(kp1, 8, 8, use_1x1conv=False)
    out1 = jax.block_until_ready(residual_forward_jit(x1, p1, use_1x1conv=False))
    ref1 = residual_reference(x1, p1, use_1x1conv=False)
    assert out1.shape == (2, 8, 16, 16)
    assert jnp.allclose(out1, ref1, atol=1e-3, rtol=1e-3), "identity-shortcut mismatch"

    # Config 2: projection shortcut via 1x1 conv (input_channels != num_channels)
    x2 = jax.random.uniform(kx, (2, 4, 16, 16), jnp.float32)
    p2 = init_residual_params(kp2, 4, 8, use_1x1conv=True)
    out2 = jax.block_until_ready(residual_forward_jit(x2, p2, use_1x1conv=True))
    ref2 = residual_reference(x2, p2, use_1x1conv=True)
    assert out2.shape == (2, 8, 16, 16)
    assert jnp.allclose(out2, ref2, atol=1e-3, rtol=1e-3), "projection-shortcut mismatch"

    # bf16 MXU-input path (v6e/v7x perf path): bf16 activations/weights, f32 accumulate.
    out2_bf16 = jax.block_until_ready(
        residual_forward_jit(x2, p2, use_1x1conv=True, compute_dtype=jnp.bfloat16))
    assert out2_bf16.shape == (2, 8, 16, 16)
    assert bool(jnp.all(jnp.isfinite(out2_bf16)))
    assert float(jnp.max(jnp.abs(out2_bf16 - ref2))) < 0.3, "bf16 path sanity mismatch"

    print("KERNEL_OK")
</pallas_src>

<mosaic_0001>
module attributes {stable_mosaic.version = 11 : i64} {
  func.func @kernel(%arg0: memref<2x16x16x8xf32, #tpu.memory_space<vmem>>, %arg1: memref<72x8xf32, #tpu.memory_space<vmem>>, %arg2: memref<72x8xf32, #tpu.memory_space<vmem>>, %arg3: memref<1x8xf32, #tpu.memory_space<vmem>>, %arg4: memref<1x8xf32, #tpu.memory_space<vmem>>, %arg5: memref<1x8xf32, #tpu.memory_space<vmem>>, %arg6: memref<1x8xf32, #tpu.memory_space<vmem>>, %arg7: memref<2x16x16x8xf32, #tpu.memory_space<vmem>>, %arg8: memref<2x18x18x8xf32, #tpu.memory_space<vmem>>, %arg9: memref<2x18x18x8xf32, #tpu.memory_space<vmem>>) attributes {dimension_semantics = [], scalar_prefetch = 0 : i64, scratch_operands = 2 : i64, tpu.core_type = #tpu.core_type<tc>} {
    %c0 = arith.constant 0 : index
    %c0_0 = arith.constant 0 : index
    %c0_1 = arith.constant 0 : index
    %c0_2 = arith.constant 0 : index
    %0 = vector.load %arg0[%c0, %c0_0, %c0_1, %c0_2] : memref<2x16x16x8xf32, #tpu.memory_space<vmem>>, vector<2x16x16x8xf32>
    %cst = arith.constant 0.000000e+00 : f32
    %1 = vector.broadcast %cst : f32 to vector<2x18x18x8xf32>
    %c0_3 = arith.constant 0 : index
    %c0_4 = arith.constant 0 : index
    %c0_5 = arith.constant 0 : index
    %c0_6 = arith.constant 0 : index
    %2 = vector.load %arg8[%c0_3, %c0_4, %c0_5, %c0_6] : memref<2x18x18x8xf32, #tpu.memory_space<vmem>>, vector<2x18x18x8xf32>
    tpu.vector_store %arg8[%c0_3, %c0_4, %c0_5, %c0_6], %1 {strides = array<i32>} : memref<2x18x18x8xf32, #tpu.memory_space<vmem>>, vector<2x18x18x8xf32>,
    %c0_7 = arith.constant 0 : index
    %c1 = arith.constant 1 : index
    %c1_8 = arith.constant 1 : index
    %c0_9 = arith.constant 0 : index
    %3 = vector.load %arg8[%c0_7, %c1, %c1_8, %c0_9] : memref<2x18x18x8xf32, #tpu.memory_space<vmem>>, vector<2x16x16x8xf32>
    tpu.vector_store %arg8[%c0_7, %c1, %c1_8, %c0_9], %0 {strides = array<i32>} : memref<2x18x18x8xf32, #tpu.memory_space<vmem>>, vector<2x16x16x8xf32>,
    %c0_10 = arith.constant 0 : index
    %c0_11 = arith.constant 0 : index
    %c0_12 = arith.constant 0 : index
    %c0_13 = arith.constant 0 : index
    %4 = vector.load %arg8[%c0_10, %c0_11, %c0_12, %c0_13] : memref<2x18x18x8xf32, #tpu.memory_space<vmem>>, vector<2x16x16x8xf32>
    %5 = vector.shape_cast %4 : vector<2x16x16x8xf32> to vector<512x8xf32>
    %c0_14 = arith.constant 0 : index
    %c0_15 = arith.constant 0 : index
    %c1_16 = arith.constant 1 : index
    %c0_17 = arith.constant 0 : index
    %6 = vector.load %arg8[%c0_14, %c0_15, %c1_16, %c0_17] : memref<2x18x18x8xf32, #tpu.memory_space<vmem>>, vector<2x16x16x8xf32>
    %7 = vector.shape_cast %6 : vector<2x16x16x8xf32> to vector<512x8xf32>
    %c0_18 = arith.constant 0 : index
    %c0_19 = arith.constant 0 : index
    %c2 = arith.constant 2 : index
    %c0_20 = arith.constant 0 : index
    %8 = vector.load %arg8[%c0_18, %c0_19, %c2, %c0_20] : memref<2x18x18x8xf32, #tpu.memory_space<vmem>>, vector<2x16x16x8xf32>
    %9 = vector.shape_cast %8 : vector<2x16x16x8xf32> to vector<512x8xf32>
    %c0_21 = arith.constant 0 : index
    %c1_22 = arith.constant 1 : index
    %c0_23 = arith.constant 0 : index
    %c0_24 = arith.constant 0 : index
    %10 = vector.load %arg8[%c0_21, %c1_22, %c0_23, %c0_24] : memref<2x18x18x8xf32, #tpu.memory_space<vmem>>, vector<2x16x16x8xf32>
    %11 = vector.shape_cast %10 : vector<2x16x16x8xf32> to vector<512x8xf32>
    %c0_25 = arith.constant 0 : index
    %c1_26 = arith.constant 1 : index
    %c1_27 = arith.constant 1 : index
    %c0_28 = arith.constant 0 : index
    %12 = vector.load %arg8[%c0_25, %c1_26, %c1_27, %c0_28] : memref<2x18x18x8xf32, #tpu.memory_space<vmem>>, vector<2x16x16x8xf32>
    %13 = vector.shape_cast %12 : vector<2x16x16x8xf32> to vector<512x8xf32>
    %c0_29 = arith.constant 0 : index
    %c1_30 = arith.constant 1 : index
    %c2_31 = arith.constant 2 : index
    %c0_32 = arith.constant 0 : index
    %14 = vector.load %arg8[%c0_29, %c1_30, %c2_31, %c0_32] : memref<2x18x18x8xf32, #tpu.memory_space<vmem>>, vector<2x16x16x8xf32>
    %15 = vector.shape_cast %14 : vector<2x16x16x8xf32> to vector<512x8xf32>
    %c0_33 = arith.constant 0 : index
    %c2_34 = arith.constant 2 : index
    %c0_35 = arith.constant 0 : index
    %c0_36 = arith.constant 0 : index
    %16 = vector.load %arg8[%c0_33, %c2_34, %c0_35, %c0_36] : memref<2x18x18x8xf32, #tpu.memory_space<vmem>>, vector<2x16x16x8xf32>
    %17 = vector.shape_cast %16 : vector<2x16x16x8xf32> to vector<512x8xf32>
    %c0_37 = arith.constant 0 : index
    %c2_38 = arith.constant 2 : index
    %c1_39 = arith.constant 1 : index
    %c0_40 = arith.constant 0 : index
    %18 = vector.load %arg8[%c0_37, %c2_38, %c1_39, %c0_40] : memref<2x18x18x8xf32, #tpu.memory_space<vmem>>, vector<2x16x16x8xf32>
    %19 = vector.shape_cast %18 : vector<2x16x16x8xf32> to vector<512x8xf32>
    %c0_41 = arith.constant 0 : index
    %c2_42 = arith.constant 2 : index
    %c2_43 = arith.constant 2 : index
    %c0_44 = arith.constant 0 : index
    %20 = vector.load %arg8[%c0_41, %c2_42, %c2_43, %c0_44] : memref<2x18x18x8xf32, #tpu.memory_space<vmem>>, vector<2x16x16x8xf32>
    %21 = vector.shape_cast %20 : vector<2x16x16x8xf32> to vector<512x8xf32>
    %22 = tpu.concatenate %5, %7, %9, %11, %13, %15, %17, %19, %21 in 1 : vector<512x8xf32>, vector<512x8xf32>, vector<512x8xf32>, vector<512x8xf32>, vector<512x8xf32>, vector<512x8xf32>, vector<512x8xf32>, vector<512x8xf32>, vector<512x8xf32> -> vector<512x72xf32>
    %c0_45 = arith.constant 0 : index
    %c0_46 = arith.constant 0 : index
    %23 = vector.load %arg1[%c0_45, %c0_46] : memref<72x8xf32, #tpu.memory_space<vmem>>, vector<72x8xf32>
    %cst_47 = arith.constant dense<0.000000e+00> : vector<512x8xf32>
    %24 = tpu.matmul %22, %23, %cst_47 {dimension_numbers = #tpu.dot_dimension_numbers<[1], [0], [0], [1], [0, 0, 1, 1], [], []>} : vector<512x72xf32>, vector<72x8xf32>, vector<512x8xf32> -> vector<512x8xf32>
    %cst_48 = arith.constant dense<0.000000e+00> : vector<8xf32>
    %25 = vector.multi_reduction <add>, %24, %cst_48 [0] : vector<512x8xf32> to vector<8xf32>
    %26 = vector.shape_cast %25 : vector<8xf32> to vector<1x8xf32>
    %27 = arith.mulf %24, %24 : vector<512x8xf32>
    %cst_49 = arith.constant dense<0.000000e+00> : vector<8xf32>
    %28 = vector.multi_reduction <add>, %27, %cst_49 [0] : vector<512x8xf32> to vector<8xf32>
    %29 = vector.shape_cast %28 : vector<8xf32> to vector<1x8xf32>
    %cst_50 = arith.constant 0.001953125 : f32
    %30 = vector.broadcast %cst_50 : f32 to vector<1x8xf32>
    %31 = arith.mulf %26, %30 : vector<1x8xf32>
    %cst_51 = arith.constant 0.001953125 : f32
    %32 = vector.broadcast %cst_51 : f32 to vector<1x8xf32>
    %33 = arith.mulf %29, %32 : vector<1x8xf32>
    %34 = arith.mulf %31, %31 : vector<1x8xf32>
    %35 = arith.subf %33, %34 : vector<1x8xf32>
    %36 = vector.broadcast %31 : vector<1x8xf32> to vector<512x8xf32>
    %37 = arith.subf %24, %36 : vector<512x8xf32>
    %cst_52 = arith.constant 9.99999974E-6 : f32
    %38 = vector.broadcast %cst_52 : f32 to vector<1x8xf32>
    %39 = arith.addf %35, %38 : vector<1x8xf32>
    %40 = math.rsqrt %39 : vector<1x8xf32>
    %41 = vector.broadcast %40 : vector<1x8xf32> to vector<512x8xf32>
    %42 = arith.mulf %37, %41 : vector<512x8xf32>
    %c0_53 = arith.constant 0 : index
    %c0_54 = arith.constant 0 : index
    %43 = vector.load %arg3[%c0_53, %c0_54] : memref<1x8xf32, #tpu.memory_space<vmem>>, vector<1x8xf32>
    %44 = vector.broadcast %43 : vector<1x8xf32> to vector<512x8xf32>
    %45 = arith.mulf %42, %44 : vector<512x8xf32>
    %c0_55 = arith.constant 0 : index
    %c0_56 = arith.constant 0 : index
    %46 = vector.load %arg4[%c0_55, %c0_56] : memref<1x8xf32, #tpu.memory_space<vmem>>, vector<1x8xf32>
    %47 = vector.broadcast %46 : vector<1x8xf32> to vector<512x8xf32>
    %48 = arith.addf %45, %47 : vector<512x8xf32>
    %cst_57 = arith.constant 0.000000e+00 : f32
    %49 = vector.broadcast %cst_57 : f32 to vector<512x8xf32>
    %50 = arith.maximumf %48, %49 : vector<512x8xf32>
    %cst_58 = arith.constant 0.000000e+00 : f32
    %51 = vector.broadcast %cst_58 : f32 to vector<2x18x18x8xf32>
    %c0_59 = arith.constant 0 : index
    %c0_60 = arith.constant 0 : index
    %c0_61 = arith.constant 0 : index
    %c0_62 = arith.constant 0 : index
    %52 = vector.load %arg9[%c0_59, %c0_60, %c0_61, %c0_62] : memref<2x18x18x8xf32, #tpu.memory_space<vmem>>, vector<2x18x18x8xf32>
    tpu.vector_store %arg9[%c0_59, %c0_60, %c0_61, %c0_62], %51 {strides = array<i32>} : memref<2x18x18x8xf32, #tpu.memory_space<vmem>>, vector<2x18x18x8xf32>,
    %53 = vector.shape_cast %50 : vector<512x8xf32> to vector<2x16x16x8xf32>
    %c0_63 = arith.constant 0 : index
    %c1_64 = arith.constant 1 : index
    %c1_65 = arith.constant 1 : index
    %c0_66 = arith.constant 0 : index
    %54 = vector.load %arg9[%c0_63, %c1_64, %c1_65, %c0_66] : memref<2x18x18x8xf32, #tpu.memory_space<vmem>>, vector<2x16x16x8xf32>
    tpu.vector_store %arg9[%c0_63, %c1_64, %c1_65, %c0_66], %53 {strides = array<i32>} : memref<2x18x18x8xf32, #tpu.memory_space<vmem>>, vector<2x16x16x8xf32>,
    %c0_67 = arith.constant 0 : index
    %c0_68 = arith.constant 0 : index
    %c0_69 = arith.constant 0 : index
    %c0_70 = arith.constant 0 : index
    %55 = vector.load %arg9[%c0_67, %c0_68, %c0_69, %c0_70] : memref<2x18x18x8xf32, #tpu.memory_space<vmem>>, vector<2x16x16x8xf32>
    %56 = vector.shape_cast %55 : vector<2x16x16x8xf32> to vector<512x8xf32>
    %c0_71 = arith.constant 0 : index
    %c0_72 = arith.constant 0 : index
    %c1_73 = arith.constant 1 : index
    %c0_74 = arith.constant 0 : index
    %57 = vector.load %arg9[%c0_71, %c0_72, %c1_73, %c0_74] : memref<2x18x18x8xf32, #tpu.memory_space<vmem>>, vector<2x16x16x8xf32>
    %58 = vector.shape_cast %57 : vector<2x16x16x8xf32> to vector<512x8xf32>
    %c0_75 = arith.constant 0 : index
    %c0_76 = arith.constant 0 : index
    %c2_77 = arith.constant 2 : index
    %c0_78 = arith.constant 0 : index
    %59 = vector.load %arg9[%c0_75, %c0_76, %c2_77, %c0_78] : memref<2x18x18x8xf32, #tpu.memory_space<vmem>>, vector<2x16x16x8xf32>
    %60 = vector.shape_cast %59 : vector<2x16x16x8xf32> to vector<512x8xf32>
    %c0_79 = arith.constant 0 : index
    %c1_80 = arith.constant 1 : index
    %c0_81 = arith.constant 0 : index
    %c0_82 = arith.constant 0 : index
    %61 = vector.load %arg9[%c0_79, %c1_80, %c0_81, %c0_82] : memref<2x18x18x8xf32, #tpu.memory_space<vmem>>, vector<2x16x16x8xf32>
    %62 = vector.shape_cast %61 : vector<2x16x16x8xf32> to vector<512x8xf32>
    %c0_83 = arith.constant 0 : index
    %c1_84 = arith.constant 1 : index
    %c1_85 = arith.constant 1 : index
    %c0_86 = arith.constant 0 : index
    %63 = vector.load %arg9[%c0_83, %c1_84, %c1_85, %c0_86] : memref<2x18x18x8xf32, #tpu.memory_space<vmem>>, vector<2x16x16x8xf32>
    %64 = vector.shape_cast %63 : vector<2x16x16x8xf32> to vector<512x8xf32>
    %c0_87 = arith.constant 0 : index
    %c1_88 = arith.constant 1 : index
    %c2_89 = arith.constant 2 : index
    %c0_90 = arith.constant 0 : index
    %65 = vector.load %arg9[%c0_87, %c1_88, %c2_89, %c0_90] : memref<2x18x18x8xf32, #tpu.memory_space<vmem>>, vector<2x16x16x8xf32>
    %66 = vector.shape_cast %65 : vector<2x16x16x8xf32> to vector<512x8xf32>
    %c0_91 = arith.constant 0 : index
    %c2_92 = arith.constant 2 : index
    %c0_93 = arith.constant 0 : index
    %c0_94 = arith.constant 0 : index
    %67 = vector.load %arg9[%c0_91, %c2_92, %c0_93, %c0_94] : memref<2x18x18x8xf32, #tpu.memory_space<vmem>>, vector<2x16x16x8xf32>
    %68 = vector.shape_cast %67 : vector<2x16x16x8xf32> to vector<512x8xf32>
    %c0_95 = arith.constant 0 : index
    %c2_96 = arith.constant 2 : index
    %c1_97 = arith.constant 1 : index
    %c0_98 = arith.constant 0 : index
    %69 = vector.load %arg9[%c0_95, %c2_96, %c1_97, %c0_98] : memref<2x18x18x8xf32, #tpu.memory_space<vmem>>, vector<2x16x16x8xf32>
    %70 = vector.shape_cast %69 : vector<2x16x16x8xf32> to vector<512x8xf32>
    %c0_99 = arith.constant 0 : index
    %c2_100 = arith.constant 2 : index
    %c2_101 = arith.constant 2 : index
    %c0_102 = arith.constant 0 : index
    %71 = vector.load %arg9[%c0_99, %c2_100, %c2_101, %c0_102] : memref<2x18x18x8xf32, #tpu.memory_space<vmem>>, vector<2x16x16x8xf32>
    %72 = vector.shape_cast %71 : vector<2x16x16x8xf32> to vector<512x8xf32>
    %73 = tpu.concatenate %56, %58, %60, %62, %64, %66, %68, %70, %72 in 1 : vector<512x8xf32>, vector<512x8xf32>, vector<512x8xf32>, vector<512x8xf32>, vector<512x8xf32>, vector<512x8xf32>, vector<512x8xf32>, vector<512x8xf32>, vector<512x8xf32> -> vector<512x72xf32>
    %c0_103 = arith.constant 0 : index
    %c0_104 = arith.constant 0 : index
    %74 = vector.load %arg2[%c0_103, %c0_104] : memref<72x8xf32, #tpu.memory_space<vmem>>, vector<72x8xf32>
    %cst_105 = arith.constant dense<0.000000e+00> : vector<512x8xf32>
    %75 = tpu.matmul %73, %74, %cst_105 {dimension_numbers = #tpu.dot_dimension_numbers<[1], [0], [0], [1], [0, 0, 1, 1], [], []>} : vector<512x72xf32>, vector<72x8xf32>, vector<512x8xf32> -> vector<512x8xf32>
    %cst_106 = arith.constant dense<0.000000e+00> : vector<8xf32>
    %76 = vector.multi_reduction <add>, %75, %cst_106 [0] : vector<512x8xf32> to vector<8xf32>
    %77 = vector.shape_cast %76 : vector<8xf32> to vector<1x8xf32>
    %78 = arith.mulf %75, %75 : vector<512x8xf32>
    %cst_107 = arith.constant dense<0.000000e+00> : vector<8xf32>
    %79 = vector.multi_reduction <add>, %78, %cst_107 [0] : vector<512x8xf32> to vector<8xf32>
    %80 = vector.shape_cast %79 : vector<8xf32> to vector<1x8xf32>
    %cst_108 = arith.constant 0.001953125 : f32
    %81 = vector.broadcast %cst_108 : f32 to vector<1x8xf32>
    %82 = arith.mulf %77, %81 : vector<1x8xf32>
    %cst_109 = arith.constant 0.001953125 : f32
    %83 = vector.broadcast %cst_109 : f32 to vector<1x8xf32>
    %84 = arith.mulf %80, %83 : vector<1x8xf32>
    %85 = arith.mulf %82, %82 : vector<1x8xf32>
    %86 = arith.subf %84, %85 : vector<1x8xf32>
    %87 = vector.broadcast %82 : vector<1x8xf32> to vector<512x8xf32>
    %88 = arith.subf %75, %87 : vector<512x8xf32>
    %cst_110 = arith.constant 9.99999974E-6 : f32
    %89 = vector.broadcast %cst_110 : f32 to vector<1x8xf32>
    %90 = arith.addf %86, %89 : vector<1x8xf32>
    %91 = math.rsqrt %90 : vector<1x8xf32>
    %92 = vector.broadcast %91 : vector<1x8xf32> to vector<512x8xf32>
    %93 = arith.mulf %88, %92 : vector<512x8xf32>
    %c0_111 = arith.constant 0 : index
    %c0_112 = arith.constant 0 : index
    %94 = vector.load %arg5[%c0_111, %c0_112] : memref<1x8xf32, #tpu.memory_space<vmem>>, vector<1x8xf32>
    %95 = vector.broadcast %94 : vector<1x8xf32> to vector<512x8xf32>
    %96 = arith.mulf %93, %95 : vector<512x8xf32>
    %c0_113 = arith.constant 0 : index
    %c0_114 = arith.constant 0 : index
    %97 = vector.load %arg6[%c0_113, %c0_114] : memref<1x8xf32, #tpu.memory_space<vmem>>, vector<1x8xf32>
    %98 = vector.broadcast %97 : vector<1x8xf32> to vector<512x8xf32>
    %99 = arith.addf %96, %98 : vector<512x8xf32>
    %100 = vector.shape_cast %0 : vector<2x16x16x8xf32> to vector<512x8xf32>
    %101 = arith.addf %99, %100 : vector<512x8xf32>
    %cst_115 = arith.constant 0.000000e+00 : f32
    %102 = vector.broadcast %cst_115 : f32 to vector<512x8xf32>
    %103 = arith.maximumf %101, %102 : vector<512x8xf32>
    %104 = vector.shape_cast %103 : vector<512x8xf32> to vector<2x16x16x8xf32>
    %c0_116 = arith.constant 0 : index
    %c0_117 = arith.constant 0 : index
    %c0_118 = arith.constant 0 : index
    %c0_119 = arith.constant 0 : index
    %105 = vector.load %arg7[%c0_116, %c0_117, %c0_118, %c0_119] : memref<2x16x16x8xf32, #tpu.memory_space<vmem>>, vector<2x16x16x8xf32>
    tpu.vector_store %arg7[%c0_116, %c0_117, %c0_118, %c0_119], %104 {strides = array<i32>} : memref<2x16x16x8xf32, #tpu.memory_space<vmem>>, vector<2x16x16x8xf32>,
    return
  }
}

</mosaic_0001>

<llo_original>
// kernel: residual_forward.1
$region0: #{residual_forward.1}
  #allocation0 [shape = 'u32[]', space=smem, size = 0x4, offset = 0x4, fixed_abs, tag = 'smem constant byte address 0x4 - core index']
  #allocation1 [shape = 'u32[72,128]{1,0:T(1,128)}', space=vmem, size = 0x9000, scoped, tag = 'internal scratch']
  #allocation2 [shape = 'f32[2,18,18,8]{3,2,1,0:T(8,128)}', space=vmem, size = 0x6c000, scoped, tag = 'scratch operand']
  #allocation3 [shape = 'f32[2,18,18,8]{3,2,1,0:T(8,128)}', space=vmem, size = 0x6c000, scoped, tag = 'scratch operand']
  %s0 = inlined_call_operand.vmem [shape: f32[2,16,16,8], index: 0, kind: input, shape index: {}]
  %s1 = inlined_call_operand.vmem [shape: f32[72,8], index: 1, kind: input, shape index: {}]
  %s2 = inlined_call_operand.vmem [shape: f32[72,8], index: 2, kind: input, shape index: {}]
  %s3 = inlined_call_operand.vmem [shape: f32[1,8], index: 3, kind: input, shape index: {}]
  %s4 = inlined_call_operand.vmem [shape: f32[1,8], index: 4, kind: input, shape index: {}]
  %s5 = inlined_call_operand.vmem [shape: f32[1,8], index: 5, kind: input, shape index: {}]
  %s6 = inlined_call_operand.vmem [shape: f32[1,8], index: 6, kind: input, shape index: {}]
  %s7 = inlined_call_operand.vmem [shape: f32[2,16,16,8], index: 7, kind: output, shape index: {}]
  %s8 = sld [smem:[#allocation0]]
  $region38: #{residual_forward.1} parent=0
    _
  %s10 = ssub.s32 1, %s8
  %s11 = scalar_select 0, %s10, %s8
  // Predicated region
  $region2: #{residual_forward.1} parent=0 // pred_check
    _
  $region3: #{residual_forward.1} parent=0 // pred_check_branch
    %13 = sbr.rel (0) target = $region5
  $region4: #{residual_forward.1} parent=0 // pred_region
    _
  $region5: #{residual_forward.1} parent=0 // pred_fallthru
    _
  // Predicated region
  $region6: #{residual_forward.1} parent=0 // pred_check
    _
  $region7: #{residual_forward.1} parent=0 // pred_check_branch
    %15 = sbr.rel (0) target = $region9
  $region8: #{residual_forward.1} parent=0 // pred_region
    _
  $region9: #{residual_forward.1} parent=0 // pred_fallthru
    _
  // Predicated region
  $region10: #{residual_forward.1} parent=0 // pred_check
    _
  $region11: #{residual_forward.1} parent=0 // pred_check_branch
    %17 = sbr.rel (0) target = $region13
  $region12: #{residual_forward.1} parent=0 // pred_region
    _
  $region13: #{residual_forward.1} parent=0 // pred_fallthru
    _
  // Predicated region
  $region14: #{residual_forward.1} parent=0 // pred_check
    _
  $region15: #{residual_forward.1} parent=0 // pred_check_branch
    %19 = sbr.rel (0) target = $region17
  $region16: #{residual_forward.1} parent=0 // pred_region
    _
  $region17: #{residual_forward.1} parent=0 // pred_fallthru
    _
  // Predicated region
  $region18: #{residual_forward.1} parent=0 // pred_check
    _
  $region19: #{residual_forward.1} parent=0 // pred_check_branch
    %21 = sbr.rel (0) target = $region21
  $region20: #{residual_forward.1} parent=0 // pred_region
    _
  $region21: #{residual_forward.1} parent=0 // pred_fallthru
    _
  // Predicated region
  $region22: #{residual_forward.1} parent=0 // pred_check
    _
  $region23: #{residual_forward.1} parent=0 // pred_check_branch
    %23 = sbr.rel (0) target = $region25
  $region24: #{residual_forward.1} parent=0 // pred_region
    _
  $region25: #{residual_forward.1} parent=0 // pred_fallthru
    _
  // Predicated region
  $region26: #{residual_forward.1} parent=0 // pred_check
    _
  $region27: #{residual_forward.1} parent=0 // pred_check_branch
    %25 = sbr.rel (0) target = $region29
  $region28: #{residual_forward.1} parent=0 // pred_region
    _
  $region29: #{residual_forward.1} parent=0 // pred_fallthru
    _
  %v26 = vld [vmem:[%s0] sm:$0xff]
  %v27 = vld [vmem:[%s0 + $0x8] sm:$0xff]
  %v28 = vld [vmem:[%s0 + $0x10] sm:$0xff]
  %v29 = vld [vmem:[%s0 + $0x18] sm:$0xff]
  %v30 = vld [vmem:[%s0 + $0x20] sm:$0xff]
  %v31 = vld [vmem:[%s0 + $0x28] sm:$0xff]
  %v32 = vld [vmem:[%s0 + $0x30] sm:$0xff]
  %v33 = vld [vmem:[%s0 + $0x38] sm:$0xff]
  %v34 = vld [vmem:[%s0 + $0x40] sm:$0xff]
  %v35 = vld [vmem:[%s0 + $0x48] sm:$0xff]
  %v36 = vld [vmem:[%s0 + $0x50] sm:$0xff]
  %v37 = vld [vmem:[%s0 + $0x58] sm:$0xff]
  %v38 = vld [vmem:[%s0 + $0x60] sm:$0xff]
  %v39 = vld [vmem:[%s0 + $0x68] sm:$0xff]
  %v40 = vld [vmem:[%s0 + $0x70] sm:$0xff]
  %v41 = vld [vmem:[%s0 + $0x78] sm:$0xff]
  %v42 = vld [vmem:[%s0 + $0x80] sm:$0xff]
  %v43 = vld [vmem:[%s0 + $0x88] sm:$0xff]
  %v44 = vld [vmem:[%s0 + $0x90] sm:$0xff]
  %v45 = vld [vmem:[%s0 + $0x98] sm:$0xff]
  %v46 = vld [vmem:[%s0 + $0xa0] sm:$0xff]
  %v47 = vld [vmem:[%s0 + $0xa8] sm:$0xff]
  %v48 = vld [vmem:[%s0 + $0xb0] sm:$0xff]
  %v49 = vld [vmem:[%s0 + $0xb8] sm:$0xff]
  %v50 = vld [vmem:[%s0 + $0xc0] sm:$0xff]
  %v51 = vld [vmem:[%s0 + $0xc8] sm:$0xff]
  %v52 = vld [vmem:[%s0 + $0xd0] sm:$0xff]
  %v53 = vld [vmem:[%s0 + $0xd8] sm:$0xff]
  %v54 = vld [vmem:[%s0 + $0xe0] sm:$0xff]
  %v55 = vld [vmem:[%s0 + $0xe8] sm:$0xff]
  %v56 = vld [vmem:[%s0 + $0xf0] sm:$0xff]
  %v57 = vld [vmem:[%s0 + $0xf8] sm:$0xff]
  %v58 = vld [vmem:[%s0 + $0x100] sm:$0xff]
  %v59 = vld [vmem:[%s0 + $0x108] sm:$0xff]
  %v60 = vld [vmem:[%s0 + $0x110] sm:$0xff]
  %v61 = vld [vmem:[%s0 + $0x118] sm:$0xff]
  %v62 = vld [vmem:[%s0 + $0x120] sm:$0xff]
  %v63 = vld [vmem:[%s0 + $0x128] sm:$0xff]
  %v64 = vld [vmem:[%s0 + $0x130] sm:$0xff]
  %v65 = vld [vmem:[%s0 + $0x138] sm:$0xff]
  %v66 = vld [vmem:[%s0 + $0x140] sm:$0xff]
  %v67 = vld [vmem:[%s0 + $0x148] sm:$0xff]
  %v68 = vld [vmem:[%s0 + $0x150] sm:$0xff]
  %v69 = vld [vmem:[%s0 + $0x158] sm:$0xff]
  %v70 = vld [vmem:[%s0 + $0x160] sm:$0xff]
  %v71 = vld [vmem:[%s0 + $0x168] sm:$0xff]
  %v72 = vld [vmem:[%s0 + $0x170] sm:$0xff]
  %v73 = vld [vmem:[%s0 + $0x178] sm:$0xff]
  %v74 = vld [vmem:[%s0 + $0x180] sm:$0xff]
  %v75 = vld [vmem:[%s0 + $0x188] sm:$0xff]
  %v76 = vld [vmem:[%s0 + $0x190] sm:$0xff]
  %v77 = vld [vmem:[%s0 + $0x198] sm:$0xff]
  %v78 = vld [vmem:[%s0 + $0x1a0] sm:$0xff]
  %v79 = vld [vmem:[%s0 + $0x1a8] sm:$0xff]
  %v80 = vld [vmem:[%s0 + $0x1b0] sm:$0xff]
  %v81 = vld [vmem:[%s0 + $0x1b8] sm:$0xff]
  %v82 = vld [vmem:[%s0 + $0x1c0] sm:$0xff]
  %v83 = vld [vmem:[%s0 + $0x1c8] sm:$0xff]
  %v84 = vld [vmem:[%s0 + $0x1d0] sm:$0xff]
  %v85 = vld [vmem:[%s0 + $0x1d8] sm:$0xff]
  %v86 = vld [vmem:[%s0 + $0x1e0] sm:$0xff]
  %v87 = vld [vmem:[%s0 + $0x1e8] sm:$0xff]
  %v88 = vld [vmem:[%s0 + $0x1f0] sm:$0xff]
  %v89 = vld [vmem:[%s0 + $0x1f8] sm:$0xff]
  %vm90 = vcmask 64512
  %91 = vst.msk [vmem:[#allocation2] sm:$0xff] %vm90, 0.0
  %92 = vst.msk [vmem:[#allocation2 + $0x8] sm:$0xff] %vm90, 0.0
  %vm93 = vcmask 58368
  %94 = vst.msk [vmem:[#allocation2 + $0x10] sm:$0x3] %vm93, 0.0
  %95 = vst.msk [vmem:[#allocation2 + $0x18] sm:$0xff] %vm90, 0.0
  %96 = vst.msk [vmem:[#allocation2 + $0x20] sm:$0xff] %vm90, 0.0
  %97 = vst.msk [vmem:[#allocation2 + $0x28] sm:$0x3] %vm93, 0.0
  %98 = vst.msk [vmem:[#allocation2 + $0x30] sm:$0xff] %vm90, 0.0
  %99 = vst.msk [vmem:[#allocation2 + $0x38] sm:$0xff] %vm90, 0.0
  %100 = vst.msk [vmem:[#allocation2 + $0x40] sm:$0x3] %vm93, 0.0
  %101 = vst.msk [vmem:[#allocation2 + $0x48] sm:$0xff] %vm90, 0.0
  %102 = vst.msk [vmem:[#allocation2 + $0x50] sm:$0xff] %vm90, 0.0
  %103 = vst.msk [vmem:[#allocation2 + $0x58] sm:$0x3] %vm93, 0.0
  %104 = vst.msk [vmem:[#allocation2 + $0x60] sm:$0xff] %vm90, 0.0
  %105 = vst.msk [vmem:[#allocation2 + $0x68] sm:$0xff] %vm90, 0.0
  %106 = vst.msk [vmem:[#allocation2 + $0x70] sm:$0x3] %vm93, 0.0
  %107 = vst.msk [vmem:[#allocation2 + $0x78] sm:$0xff] %vm90, 0.0
  %108 = vst.msk [vmem:[#allocation2 + $0x80] sm:$0xff] %vm90, 0.0
  %109 = vst.msk [vmem:[#allocation2 + $0x88] sm:$0x3] %vm93, 0.0
  %110 = vst.msk [vmem:[#allocation2 + $0x90] sm:$0xff] %vm90, 0.0
  %111 = vst.msk [vmem:[#allocation2 + $0x98] sm:$0xff] %vm90, 0.0
  %112 = vst.msk [vmem:[#allocation2 + $0xa0] sm:$0x3] %vm93, 0.0
  %113 = vst.msk [vmem:[#allocation2 + $0xa8] sm:$0xff] %vm90, 0.0
  %114 = vst.msk [vmem:[#allocation2 + $0xb0] sm:$0xff] %vm90, 0.0
  %115 = vst.msk [vmem:[#allocation2 + $0xb8] sm:$0x3] %vm93, 0.0
  %116 = vst.msk [vmem:[#allocation2 + $0xc0] sm:$0xff] %vm90, 0.0
  %117 = vst.msk [vmem:[#allocation2 + $0xc8] sm:$0xff] %vm90, 0.0
  %118 = vst.msk [vmem:[#allocation2 + $0xd0] sm:$0x3] %vm93, 0.0
  %119 = vst.msk [vmem:[#allocation2 + $0xd8] sm:$0xff] %vm90, 0.0
  %120 = vst.msk [vmem:[#allocation2 + $0xe0] sm:$0xff] %vm90, 0.0
  %121 = vst.msk [vmem:[#allocation2 + $0xe8] sm:$0x3] %vm93, 0.0
  %122 = vst.msk [vmem:[#allocation2 + $0xf0] sm:$0xff] %vm90, 0.0
  %123 = vst.msk [vmem:[#allocation2 + $0xf8] sm:$0xff] %vm90, 0.0
  %124 = vst.msk [vmem:[#allocation2 + $0x100] sm:$0x3] %vm93, 0.0
  %125 = vst.msk [vmem:[#allocation2 + $0x108] sm:$0xff] %vm90, 0.0
  %126 = vst.msk [vmem:[#allocation2 + $0x110] sm:$0xff] %vm90, 0.0
  %127 = vst.msk [vmem:[#allocation2 + $0x118] sm:$0x3] %vm93, 0.0
  %128 = vst.msk [vmem:[#allocation2 + $0x120] sm:$0xff] %vm90, 0.0
  %129 = vst.msk [vmem:[#allocation2 + $0x128] sm:$0xff] %vm90, 0.0
  %130 = vst.msk [vmem:[#allocation2 + $0x130] sm:$0x3] %vm93, 0.0
  %131 = vst.msk [vmem:[#allocation2 + $0x138] sm:$0xff] %vm90, 0.0
  %132 = vst.msk [vmem:[#allocation2 + $0x140] sm:$0xff] %vm90, 0.0
  %133 = vst.msk [vmem:[#allocation2 + $0x148] sm:$0x3] %vm93, 0.0
  %134 = vst.msk [vmem:[#allocation2 + $0x150] sm:$0xff] %vm90, 0.0
  %135 = vst.msk [vmem:[#allocation2 + $0x158] sm:$0xff] %vm90, 0.0
  %136 = vst.msk [vmem:[#allocation2 + $0x160] sm:$0x3] %vm93, 0.0
  %137 = vst.msk [vmem:[#allocation2 + $0x168] sm:$0xff] %vm90, 0.0
  %138 = vst.msk [vmem:[#allocation2 + $0x170] sm:$0xff] %vm90, 0.0
  %139 = vst.msk [vmem:[#allocation2 + $0x178] sm:$0x3] %vm93, 0.0
  %140 = vst.msk [vmem:[#allocation2 + $0x180] sm:$0xff] %vm90, 0.0
  %141 = vst.msk [vmem:[#allocation2 + $0x188] sm:$0xff] %vm90, 0.0
  %142 = vst.msk [vmem:[#allocation2 + $0x190] sm:$0x3] %vm93, 0.0
  %143 = vst.msk [vmem:[#allocation2 + $0x198] sm:$0xff] %vm90, 0.0
  %144 = vst.msk [vmem:[#allocation2 + $0x1a0] sm:$0xff] %vm90, 0.0
  %145 = vst.msk [vmem:[#allocation2 + $0x1a8] sm:$0x3] %vm93, 0.0
  %146 = vst.msk [vmem:[#allocation2 + $0x1b0] sm:$0xff] %vm90, 0.0
  %147 = vst.msk [vmem:[#allocation2 + $0x1b8] sm:$0xff] %vm90, 0.0
  %148 = vst.msk [vmem:[#allocation2 + $0x1c0] sm:$0x3] %vm93, 0.0
  %149 = vst.msk [vmem:[#allocation2 + $0x1c8] sm:$0xff] %vm90, 0.0
  %150 = vst.msk [vmem:[#allocation2 + $0x1d0] sm:$0xff] %vm90, 0.0
  %151 = vst.msk [vmem:[#allocation2 + $0x1d8] sm:$0x3] %vm93, 0.0
  %152 = vst.msk [vmem:[#allocation2 + $0x1e0] sm:$0xff] %vm90, 0.0
  %153 = vst.msk [vmem:[#allocation2 + $0x1e8] sm:$0xff] %vm90, 0.0
  %154 = vst.msk [vmem:[#allocation2 + $0x1f0] sm:$0x3] %vm93, 0.0
  %155 = vst.msk [vmem:[#allocation2 + $0x1f8] sm:$0xff] %vm90, 0.0
  %156 = vst.msk [vmem:[#allocation2 + $0x200] sm:$0xff] %vm90, 0.0
  %157 = vst.msk [vmem:[#allocation2 + $0x208] sm:$0x3] %vm93, 0.0
  %158 = vst.msk [vmem:[#allocation2 + $0x210] sm:$0xff] %vm90, 0.0
  %159 = vst.msk [vmem:[#allocation2 + $0x218] sm:$0xff] %vm90, 0.0
  %160 = vst.msk [vmem:[#allocation2 + $0x220] sm:$0x3] %vm93, 0.0
  %161 = vst.msk [vmem:[#allocation2 + $0x228] sm:$0xff] %vm90, 0.0
  %162 = vst.msk [vmem:[#allocation2 + $0x230] sm:$0xff] %vm90, 0.0
  %163 = vst.msk [vmem:[#allocation2 + $0x238] sm:$0x3] %vm93, 0.0
  %164 = vst.msk [vmem:[#allocation2 + $0x240] sm:$0xff] %vm90, 0.0
  %165 = vst.msk [vmem:[#allocation2 + $0x248] sm:$0xff] %vm90, 0.0
  %166 = vst.msk [vmem:[#allocation2 + $0x250] sm:$0x3] %vm93, 0.0
  %167 = vst.msk [vmem:[#allocation2 + $0x258] sm:$0xff] %vm90, 0.0
  %168 = vst.msk [vmem:[#allocation2 + $0x260] sm:$0xff] %vm90, 0.0
  %169 = vst.msk [vmem:[#allocation2 + $0x268] sm:$0x3] %vm93, 0.0
  %170 = vst.msk [vmem:[#allocation2 + $0x270] sm:$0xff] %vm90, 0.0
  %171 = vst.msk [vmem:[#allocation2 + $0x278] sm:$0xff] %vm90, 0.0
  %172 = vst.msk [vmem:[#allocation2 + $0x280] sm:$0x3] %vm93, 0.0
  %173 = vst.msk [vmem:[#allocation2 + $0x288] sm:$0xff] %vm90, 0.0
  %174 = vst.msk [vmem:[#allocation2 + $0x290] sm:$0xff] %vm90, 0.0
  %175 = vst.msk [vmem:[#allocation2 + $0x298] sm:$0x3] %vm93, 0.0
  %176 = vst.msk [vmem:[#allocation2 + $0x2a0] sm:$0xff] %vm90, 0.0
  %177 = vst.msk [vmem:[#allocation2 + $0x2a8] sm:$0xff] %vm90, 0.0
  %178 = vst.msk [vmem:[#allocation2 + $0x2b0] sm:$0x3] %vm93, 0.0
  %179 = vst.msk [vmem:[#allocation2 + $0x2b8] sm:$0xff] %vm90, 0.0
  %180 = vst.msk [vmem:[#allocation2 + $0x2c0] sm:$0xff] %vm90, 0.0
  %181 = vst.msk [vmem:[#allocation2 + $0x2c8] sm:$0x3] %vm93, 0.0
  %182 = vst.msk [vmem:[#allocation2 + $0x2d0] sm:$0xff] %vm90, 0.0
  %183 = vst.msk [vmem:[#allocation2 + $0x2d8] sm:$0xff] %vm90, 0.0
  %184 = vst.msk [vmem:[#allocation2 + $0x2e0] sm:$0x3] %vm93, 0.0
  %185 = vst.msk [vmem:[#allocation2 + $0x2e8] sm:$0xff] %vm90, 0.0
  %186 = vst.msk [vmem:[#allocation2 + $0x2f0] sm:$0xff] %vm90, 0.0
  %187 = vst.msk [vmem:[#allocation2 + $0x2f8] sm:$0x3] %vm93, 0.0
  %188 = vst.msk [vmem:[#allocation2 + $0x300] sm:$0xff] %vm90, 0.0
  %189 = vst.msk [vmem:[#allocation2 + $0x308] sm:$0xff] %vm90, 0.0
  %190 = vst.msk [vmem:[#allocation2 + $0x310] sm:$0x3] %vm93, 0.0
  %191 = vst.msk [vmem:[#allocation2 + $0x318] sm:$0xff] %vm90, 0.0
  %192 = vst.msk [vmem:[#allocation2 + $0x320] sm:$0xff] %vm90, 0.0
  %193 = vst.msk [vmem:[#allocation2 + $0x328] sm:$0x3] %vm93, 0.0
  %194 = vst.msk [vmem:[#allocation2 + $0x330] sm:$0xff] %vm90, 0.0
  %195 = vst.msk [vmem:[#allocation2 + $0x338] sm:$0xff] %vm90, 0.0
  %196 = vst.msk [vmem:[#allocation2 + $0x340] sm:$0x3] %vm93, 0.0
  %197 = vst.msk [vmem:[#allocation2 + $0x348] sm:$0xff] %vm90, 0.0
  %198 = vst.msk [vmem:[#allocation2 + $0x350] sm:$0xff] %vm90, 0.0
  %199 = vst.msk [vmem:[#allocation2 + $0x358] sm:$0x3] %vm93, 0.0
  %s200 = scalar_lea.vmem [#allocation2], 24
  %201 = vst.msk [vmem:[%s200 + $0x1] sm:$0xff] %vm90, %v26
  %202 = vst.msk [vmem:[%s200 + $0x9] sm:$0xff] %vm90, %v27
  %203 = vst.msk [vmem:[%s200 + $0x19] sm:$0xff] %vm90, %v28
  %204 = vst.msk [vmem:[%s200 + $0x21] sm:$0xff] %vm90, %v29
  %205 = vst.msk [vmem:[%s200 + $0x31] sm:$0xff] %vm90, %v30
  %206 = vst.msk [vmem:[%s200 + $0x39] sm:$0xff] %vm90, %v31
  %207 = vst.msk [vmem:[%s200 + $0x49] sm:$0xff] %vm90, %v32
  %208 = vst.msk [vmem:[%s200 + $0x51] sm:$0xff] %vm90, %v33
  %209 = vst.msk [vmem:[%s200 + $0x61] sm:$0xff] %vm90, %v34
  %210 = vst.msk [vmem:[%s200 + $0x69] sm:$0xff] %vm90, %v35
  %211 = vst.msk [vmem:[%s200 + $0x79] sm:$0xff] %vm90, %v36
  %212 = vst.msk [vmem:[%s200 + $0x81] sm:$0xff] %vm90, %v37
  %213 = vst.msk [vmem:[%s200 + $0x91] sm:$0xff] %vm90, %v38
  %214 = vst.msk [vmem:[%s200 + $0x99] sm:$0xff] %vm90, %v39
  %215 = vst.msk [vmem:[%s200 + $0xa9] sm:$0xff] %vm90, %v40
  %216 = vst.msk [vmem:[%s200 + $0xb1] sm:$0xff] %vm90, %v41
  %217 = vst.msk [vmem:[%s200 + $0xc1] sm:$0xff] %vm90, %v42
  %218 = vst.msk [vmem:[%s200 + $0xc9] sm:$0xff] %vm90, %v43
  %219 = vst.msk [vmem:[%s200 + $0xd9] sm:$0xff] %vm90, %v44
  %220 = vst.msk [vmem:[%s200 + $0xe1] sm:$0xff] %vm90, %v45
  %221 = vst.msk [vmem:[%s200 + $0xf1] sm:$0xff] %vm90, %v46
  %222 = vst.msk [vmem:[%s200 + $0xf9] sm:$0xff] %vm90, %v47
  %223 = vst.msk [vmem:[%s200 + $0x109] sm:$0xff] %vm90, %v48
  %224 = vst.msk [vmem:[%s200 + $0x111] sm:$0xff] %vm90, %v49
  %225 = vst.msk [vmem:[%s200 + $0x121] sm:$0xff] %vm90, %v50
  %226 = vst.msk [vmem:[%s200 + $0x129] sm:$0xff] %vm90, %v51
  %227 = vst.msk [vmem:[%s200 + $0x139] sm:$0xff] %vm90, %v52
  %228 = vst.msk [vmem:[%s200 + $0x141] sm:$0xff] %vm90, %v53
  %229 = vst.msk [vmem:[%s200 + $0x151] sm:$0xff] %vm90, %v54
  %230 = vst.msk [vmem:[%s200 + $0x159] sm:$0xff] %vm90, %v55
  %231 = vst.msk [vmem:[%s200 + $0x169] sm:$0xff] %vm90, %v56
  %232 = vst.msk [vmem:[%s200 + $0x171] sm:$0xff] %vm90, %v57
  %233 = vst.msk [vmem:[%s200 + $0x1b1] sm:$0xff] %vm90, %v58
  %234 = vst.msk [vmem:[%s200 + $0x1b9] sm:$0xff] %vm90, %v59
  %235 = vst.msk [vmem:[%s200 + $0x1c9] sm:$0xff] %vm90, %v60
  %236 = vst.msk [vmem:[%s200 + $0x1d1] sm:$0xff] %vm90, %v61
  %237 = vst.msk [vmem:[%s200 + $0x1e1] sm:$0xff] %vm90, %v62
  %238 = vst.msk [vmem:[%s200 + $0x1e9] sm:$0xff] %vm90, %v63
  %239 = vst.msk [vmem:[%s200 + $0x1f9] sm:$0xff] %vm90, %v64
  %240 = vst.msk [vmem:[%s200 + $0x201] sm:$0xff] %vm90, %v65
  %241 = vst.msk [vmem:[%s200 + $0x211] sm:$0xff] %vm90, %v66
  %242 = vst.msk [vmem:[%s200 + $0x219] sm:$0xff] %vm90, %v67
  %243 = vst.msk [vmem:[%s200 + $0x229] sm:$0xff] %vm90, %v68
  %244 = vst.msk [vmem:[%s200 + $0x231] sm:$0xff] %vm90, %v69
  %245 = vst.msk [vmem:[%s200 + $0x241] sm:$0xff] %vm90, %v70
  %246 = vst.msk [vmem:[%s200 + $0x249] sm:$0xff] %vm90, %v71
  %247 = vst.msk [vmem:[%s200 + $0x259] sm:$0xff] %vm90, %v72
  %248 = vst.msk [vmem:[%s200 + $0x261] sm:$0xff] %vm90, %v73
  %249 = vst.msk [vmem:[%s200 + $0x271] sm:$0xff] %vm90, %v74
  %250 = vst.msk [vmem:[%s200 + $0x279] sm:$0xff] %vm90, %v75
  %251 = vst.msk [vmem:[%s200 + $0x289] sm:$0xff] %vm90, %v76
  %252 = vst.msk [vmem:[%s200 + $0x291] sm:$0xff] %vm90, %v77
  %253 = vst.msk [vmem:[%s200 + $0x2a1] sm:$0xff] %vm90, %v78
  %254 = vst.msk [vmem:[%s200 + $0x2a9] sm:$0xff] %vm90, %v79
  %255 = vst.msk [vmem:[%s200 + $0x2b9] sm:$0xff] %vm90, %v80
  %256 = vst.msk [vmem:[%s200 + $0x2c1] sm:$0xff] %vm90, %v81
  %257 = vst.msk [vmem:[%s200 + $0x2d1] sm:$0xff] %vm90, %v82
  %258 = vst.msk [vmem:[%s200 + $0x2d9] sm:$0xff] %vm90, %v83
  %259 = vst.msk [vmem:[%s200 + $0x2e9] sm:$0xff] %vm90, %v84
  %260 = vst.msk [vmem:[%s200 + $0x2f1] sm:$0xff] %vm90, %v85
  %261 = vst.msk [vmem:[%s200 + $0x301] sm:$0xff] %vm90, %v86
  %262 = vst.msk [vmem:[%s200 + $0x309] sm:$0xff] %vm90, %v87
  %263 = vst.msk [vmem:[%s200 + $0x319] sm:$0xff] %vm90, %v88
  %264 = vst.msk [vmem:[%s200 + $0x321] sm:$0xff] %vm90, %v89
  %v265 = vld [vmem:[#allocation2] sm:$0xff]
  %v266 = vld [vmem:[#allocation2 + $0x8] sm:$0xff]
  %v267 = vld [vmem:[#allocation2 + $0x18] sm:$0xff]
  %v268 = vld [vmem:[#allocation2 + $0x20] sm:$0xff]
  %v269 = vld [vmem:[#allocation2 + $0x30] sm:$0xff]
  %v270 = vld [vmem:[#allocation2 + $0x38] sm:$0xff]
  %v271 = vld [vmem:[#allocation2 + $0x48] sm:$0xff]
  %v272 = vld [vmem:[#allocation2 + $0x50] sm:$0xff]
  %v273 = vld [vmem:[#allocation2 + $0x60] sm:$0xff]
  %v274 = vld [vmem:[#allocation2 + $0x68] sm:$0xff]
  %v275 = vld [vmem:[#allocation2 + $0x78] sm:$0xff]
  %v276 = vld [vmem:[#allocation2 + $0x80] sm:$0xff]
  %v277 = vld [vmem:[#allocation2 + $0x90] sm:$0xff]
  %v278 = vld [vmem:[#allocation2 + $0x98] sm:$0xff]
  %v279 = vld [vmem:[#allocation2 + $0xa8] sm:$0xff]
  %v280 = vld [vmem:[#allocation2 + $0xb0] sm:$0xff]
  %v281 = vld [vmem:[#allocation2 + $0xc0] sm:$0xff]
  %v282 = vld [vmem:[#allocation2 + $0xc8] sm:$0xff]
  %v283 = vld [vmem:[#allocation2 + $0xd8] sm:$0xff]
  %v284 = vld [vmem:[#allocation2 + $0xe0] sm:$0xff]
  %v285 = vld [vmem:[#allocation2 + $0xf0] sm:$0xff]
  %v286 = vld [vmem:[#allocation2 + $0xf8] sm:$0xff]
  %v287 = vld [vmem:[#allocation2 + $0x108] sm:$0xff]
  %v288 = vld [vmem:[#allocation2 + $0x110] sm:$0xff]
  %v289 = vld [vmem:[#allocation2 + $0x120] sm:$0xff]
  %v290 = vld [vmem:[#allocation2 + $0x128] sm:$0xff]
  %v291 = vld [vmem:[#allocation2 + $0x138] sm:$0xff]
  %v292 = vld [vmem:[#allocation2 + $0x140] sm:$0xff]
  %v293 = vld [vmem:[#allocation2 + $0x150] sm:$0xff]
  %v294 = vld [vmem:[#allocation2 + $0x158] sm:$0xff]
  %v295 = vld [vmem:[#allocation2 + $0x168] sm:$0xff]
  %v296 = vld [vmem:[#allocation2 + $0x170] sm:$0xff]
  %v297 = vld [vmem:[#allocation2 + $0x1b0] sm:$0xff]
  %v298 = vld [vmem:[#allocation2 + $0x1b8] sm:$0xff]
  %v299 = vld [vmem:[#allocation2 + $0x1c8] sm:$0xff]
  %v300 = vld [vmem:[#allocation2 + $0x1d0] sm:$0xff]
  %v301 = vld [vmem:[#allocation2 + $0x1e0] sm:$0xff]
  %v302 = vld [vmem:[#allocation2 + $0x1e8] sm:$0xff]
  %v303 = vld [vmem:[#allocation2 + $0x1f8] sm:$0xff]
  %v304 = vld [vmem:[#allocation2 + $0x200] sm:$0xff]
  %v305 = vld [vmem:[#allocation2 + $0x210] sm:$0xff]
  %v306 = vld [vmem:[#allocation2 + $0x218] sm:$0xff]
  %v307 = vld [vmem:[#allocation2 + $0x228] sm:$0xff]
  %v308 = vld [vmem:[#allocation2 + $0x230] sm:$0xff]
  %v309 = vld [vmem:[#allocation2 + $0x240] sm:$0xff]
  %v310 = vld [vmem:[#allocation2 + $0x248] sm:$0xff]
  %v311 = vld [vmem:[#allocation2 + $0x258] sm:$0xff]
  %v312 = vld [vmem:[#allocation2 + $0x260] sm:$0xff]
  %v313 = vld [vmem:[#allocation2 + $0x270] sm:$0xff]
  %v314 = vld [vmem:[#allocation2 + $0x278] sm:$0xff]
  %v315 = vld [vmem:[#allocation2 + $0x288] sm:$0xff]
  %v316 = vld [vmem:[#allocation2 + $0x290] sm:$0xff]
  %v317 = vld [vmem:[#allocation2 + $0x2a0] sm:$0xff]
  %v318 = vld [vmem:[#allocation2 + $0x2a8] sm:$0xff]
  %v319 = vld [vmem:[#allocation2 + $0x2b8] sm:$0xff]
  %v320 = vld [vmem:[#allocation2 + $0x2c0] sm:$0xff]
  %v321 = vld [vmem:[#allocation2 + $0x2d0] sm:$0xff]
  %v322 = vld [vmem:[#allocation2 + $0x2d8] sm:$0xff]
  %v323 = vld [vmem:[#allocation2 + $0x2e8] sm:$0xff]
  %v324 = vld [vmem:[#allocation2 + $0x2f0] sm:$0xff]
  %v325 = vld [vmem:[#allocation2 + $0x300] sm:$0xff]
  %v326 = vld [vmem:[#allocation2 + $0x308] sm:$0xff]
  %v327 = vld [vmem:[#allocation2 + $0x318] sm:$0xff]
  %v328 = vld [vmem:[#allocation2 + $0x320] sm:$0xff]
  %v329 = vld [vmem:[#allocation2 + $0x1] sm:$0xff]
  %v330 = vld [vmem:[#allocation2 + $0x9] sm:$0xff]
  %v331 = vld [vmem:[#allocation2 + $0x19] sm:$0xff]
  %v332 = vld [vmem:[#allocation2 + $0x21] sm:$0xff]
  %v333 = vld [vmem:[#allocation2 + $0x31] sm:$0xff]
  %v334 = vld [vmem:[#allocation2 + $0x39] sm:$0xff]
  %v335 = vld [vmem:[#allocation2 + $0x49] sm:$0xff]
  %v336 = vld [vmem:[#allocation2 + $0x51] sm:$0xff]
  %v337 = vld [vmem:[#allocation2 + $0x61] sm:$0xff]
  %v338 = vld [vmem:[#allocation2 + $0x69] sm:$0xff]
  %v339 = vld [vmem:[#allocation2 + $0x79] sm:$0xff]
  %v340 = vld [vmem:[#allocation2 + $0x81] sm:$0xff]
  %v341 = vld [vmem:[#allocation2 + $0x91] sm:$0xff]
  %v342 = vld [vmem:[#allocation2 + $0x99] sm:$0xff]
  %v343 = vld [vmem:[#allocation2 + $0xa9] sm:$0xff]
  %v344 = vld [vmem:[#allocation2 + $0xb1] sm:$0xff]
  %v345 = vld [vmem:[#allocation2 + $0xc1] sm:$0xff]
  %v346 = vld [vmem:[#allocation2 + $0xc9] sm:$0xff]
  %v347 = vld [vmem:[#allocation2 + $0xd9] sm:$0xff]
  %v348 = vld [vmem:[#allocation2 + $0xe1] sm:$0xff]
  %v349 = vld [vmem:[#allocation2 + $0xf1] sm:$0xff]
  %v350 = vld [vmem:[#allocation2 + $0xf9] sm:$0xff]
  %v351 = vld [vmem:[#allocation2 + $0x109] sm:$0xff]
  %v352 = vld [vmem:[#allocation2 + $0x111] sm:$0xff]
  %v353 = vld [vmem:[#allocation2 + $0x121] sm:$0xff]
  %v354 = vld [vmem:[#allocation2 + $0x129] sm:$0xff]
  %v355 = vld [vmem:[#allocation2 + $0x139] sm:$0xff]
  %v356 = vld [vmem:[#allocation2 + $0x141] sm:$0xff]
  %v357 = vld [vmem:[#allocation2 + $0x151] sm:$0xff]
  %v358 = vld [vmem:[#allocation2 + $0x159] sm:$0xff]
  %v359 = vld [vmem:[#allocation2 + $0x169] sm:$0xff]
  %v360 = vld [vmem:[#allocation2 + $0x171] sm:$0xff]
  %v361 = vld [vmem:[#allocation2 + $0x1b1] sm:$0xff]
  %v362 = vld [vmem:[#allocation2 + $0x1b9] sm:$0xff]
  %v363 = vld [vmem:[#allocation2 + $0x1c9] sm:$0xff]
  %v364 = vld [vmem:[#allocation2 + $0x1d1] sm:$0xff]
  %v365 = vld [vmem:[#allocation2 + $0x1e1] sm:$0xff]
  %v366 = vld [vmem:[#allocation2 + $0x1e9] sm:$0xff]
  %v367 = vld [vmem:[#allocation2 + $0x1f9] sm:$0xff]
  %v368 = vld [vmem:[#allocation2 + $0x201] sm:$0xff]
  %v369 = vld [vmem:[#allocation2 + $0x211] sm:$0xff]
  %v370 = vld [vmem:[#allocation2 + $0x219] sm:$0xff]
  %v371 = vld [vmem:[#allocation2 + $0x229] sm:$0xff]
  %v372 = vld [vmem:[#allocation2 + $0x231] sm:$0xff]
  %v373 = vld [vmem:[#allocation2 + $0x241] sm:$0xff]
  %v374 = vld [vmem:[#allocation2 + $0x249] sm:$0xff]
  %v375 = vld [vmem:[#allocation2 + $0x259] sm:$0xff]
  %v376 = vld [vmem:[#allocation2 + $0x261] sm:$0xff]
  %v377 = vld [vmem:[#allocation2 + $0x271] sm:$0xff]
  %v378 = vld [vmem:[#allocation2 + $0x279] sm:$0xff]
  %v379 = vld [vmem:[#allocation2 + $0x289] sm:$0xff]
  %v380 = vld [vmem:[#allocation2 + $0x291] sm:$0xff]
  %v381 = vld [vmem:[#allocation2 + $0x2a1] sm:$0xff]
  %v382 = vld [vmem:[#allocation2 + $0x2a9] sm:$0xff]
  %v383 = vld [vmem:[#allocation2 + $0x2b9] sm:$0xff]
  %v384 = vld [vmem:[#allocation2 + $0x2c1] sm:$0xff]
  %v385 = vld [vmem:[#allocation2 + $0x2d1] sm:$0xff]
  %v386 = vld [vmem:[#allocation2 + $0x2d9] sm:$0xff]
  %v387 = vld [vmem:[#allocation2 + $0x2e9] sm:$0xff]
  %v388 = vld [vmem:[#allocation2 + $0x2f1] sm:$0xff]
  %v389 = vld [vmem:[#allocation2 + $0x301] sm:$0xff]
  %v390 = vld [vmem:[#allocation2 + $0x309] sm:$0xff]
  %v391 = vld [vmem:[#allocation2 + $0x319] sm:$0xff]
  %v392 = vld [vmem:[#allocation2 + $0x321] sm:$0xff]
  %v393 = vld [vmem:[#allocation2 + $0x2] sm:$0xff]
  %v394 = vld [vmem:[#allocation2 + $0xa] sm:$0xff]
  %v395 = vld [vmem:[#allocation2 + $0x1a] sm:$0xff]
  %v396 = vld [vmem:[#allocation2 + $0x22] sm:$0xff]
  %v397 = vld [vmem:[#allocation2 + $0x32] sm:$0xff]
  %v398 = vld [vmem:[#allocation2 + $0x3a] sm:$0xff]
  %v399 = vld [vmem:[#allocation2 + $0x4a] sm:$0xff]
  %v400 = vld [vmem:[#allocation2 + $0x52] sm:$0xff]
  %v401 = vld [vmem:[#allocation2 + $0x62] sm:$0xff]
  %v402 = vld [vmem:[#allocation2 + $0x6a] sm:$0xff]
  %v403 = vld [vmem:[#allocation2 + $0x7a] sm:$0xff]
  %v404 = vld [vmem:[#allocation2 + $0x82] sm:$0xff]
  %v405 = vld [vmem:[#allocation2 + $0x92] sm:$0xff]
  %v406 = vld [vmem:[#allocation2 + $0x9a] sm:$0xff]
  %v407 = vld [vmem:[#allocation2 + $0xaa] sm:$0xff]
  %v408 = vld [vmem:[#allocation2 + $0xb2] sm:$0xff]
  %v409 = vld [vmem:[#allocation2 + $0xc2] sm:$0xff]
  %v410 = vld [vmem:[#allocation2 + $0xca] sm:$0xff]
  %v411 = vld [vmem:[#allocation2 + $0xda] sm:$0xff]
  %v412 = vld [vmem:[#allocation2 + $0xe2] sm:$0xff]
  %v413 = vld [vmem:[#allocation2 + $0xf2] sm:$0xff]
  %v414 = vld [vmem:[#allocation2 + $0xfa] sm:$0xff]
  %v415 = vld [vmem:[#allocation2 + $0x10a] sm:$0xff]
  %v416 = vld [vmem:[#allocation2 + $0x112] sm:$0xff]
  %v417 = vld [vmem:[#allocation2 + $0x122] sm:$0xff]
  %v418 = vld [vmem:[#allocation2 + $0x12a] sm:$0xff]
  %v419 = vld [vmem:[#allocation2 + $0x13a] sm:$0xff]
  %v420 = vld [vmem:[#allocation2 + $0x142] sm:$0xff]
  %v421 = vld [vmem:[#allocation2 + $0x152] sm:$0xff]
  %v422 = vld [vmem:[#allocation2 + $0x15a] sm:$0xff]
  %v423 = vld [vmem:[#allocation2 + $0x16a] sm:$0xff]
  %v424 = vld [vmem:[#allocation2 + $0x172] sm:$0xff]
  %v425 = vld [vmem:[#allocation2 + $0x1b2] sm:$0xff]
  %v426 = vld [vmem:[#allocation2 + $0x1ba] sm:$0xff]
  %v427 = vld [vmem:[#allocation2 + $0x1ca] sm:$0xff]
  %v428 = vld [vmem:[#allocation2 + $0x1d2] sm:$0xff]
  %v429 = vld [vmem:[#allocation2 + $0x1e2] sm:$0xff]
  %v430 = vld [vmem:[#allocation2 + $0x1ea] sm:$0xff]
  %v431 = vld [vmem:[#allocation2 + $0x1fa] sm:$0xff]
  %v432 = vld [vmem:[#allocation2 + $0x202] sm:$0xff]
  %v433 = vld [vmem:[#allocation2 + $0x212] sm:$0xff]
  %v434 = vld [vmem:[#allocation2 + $0x21a] sm:$0xff]
  %v435 = vld [vmem:[#allocation2 + $0x22a] sm:$0xff]
  %v436 = vld [vmem:[#allocation2 + $0x232] sm:$0xff]
  %v437 = vld [vmem:[#allocation2 + $0x242] sm:$0xff]
  %v438 = vld [vmem:[#allocation2 + $0x24a] sm:$0xff]
  %v439 = vld [vmem:[#allocation2 + $0x25a] sm:$0xff]
  %v440 = vld [vmem:[#allocation2 + $0x262] sm:$0xff]
  %v441 = vld [vmem:[#allocation2 + $0x272] sm:$0xff]
  %v442 = vld [vmem:[#allocation2 + $0x27a] sm:$0xff]
  %v443 = vld [vmem:[#allocation2 + $0x28a] sm:$0xff]
  %v444 = vld [vmem:[#allocation2 + $0x292] sm:$0xff]
  %v445 = vld [vmem:[#allocation2 + $0x2a2] sm:$0xff]
  %v446 = vld [vmem:[#allocation2 + $0x2aa] sm:$0xff]
  %v447 = vld [vmem:[#allocation2 + $0x2ba] sm:$0xff]
  %v448 = vld [vmem:[#allocation2 + $0x2c2] sm:$0xff]
  %v449 = vld [vmem:[#allocation2 + $0x2d2] sm:$0xff]
  %v450 = vld [vmem:[#allocation2 + $0x2da] sm:$0xff]
  %v451 = vld [vmem:[#allocation2 + $0x2ea] sm:$0xff]
  %v452 = vld [vmem:[#allocation2 + $0x2f2] sm:$0xff]
  %v453 = vld [vmem:[#allocation2 + $0x302] sm:$0xff]
  %v454 = vld [vmem:[#allocation2 + $0x30a] sm:$0xff]
  %v455 = vld [vmem:[#allocation2 + $0x31a] sm:$0xff]
  %v456 = vld [vmem:[#allocation2 + $0x322] sm:$0xff]
  %v457 = vld [vmem:[%s200] sm:$0xff]
  %v458 = vld [vmem:[%s200 + $0x8] sm:$0xff]
  %v459 = vld [vmem:[%s200 + $0x18] sm:$0xff]
  %v460 = vld [vmem:[%s200 + $0x20] sm:$0xff]
  %v461 = vld [vmem:[%s200 + $0x30] sm:$0xff]
  %v462 = vld [vmem:[%s200 + $0x38] sm:$0xff]
  %v463 = vld [vmem:[%s200 + $0x48] sm:$0xff]
  %v464 = vld [vmem:[%s200 + $0x50] sm:$0xff]
  %v465 = vld [vmem:[%s200 + $0x60] sm:$0xff]
  %v466 = vld [vmem:[%s200 + $0x68] sm:$0xff]
  %v467 = vld [vmem:[%s200 + $0x78] sm:$0xff]
  %v468 = vld [vmem:[%s200 + $0x80] sm:$0xff]
  %v469 = vld [vmem:[%s200 + $0x90] sm:$0xff]
  %v470 = vld [vmem:[%s200 + $0x98] sm:$0xff]
  %v471 = vld [vmem:[%s200 + $0xa8] sm:$0xff]
  %v472 = vld [vmem:[%s200 + $0xb0] sm:$0xff]
  %v473 = vld [vmem:[%s200 + $0xc0] sm:$0xff]
  %v474 = vld [vmem:[%s200 + $0xc8] sm:$0xff]
  %v475 = vld [vmem:[%s200 + $0xd8] sm:$0xff]
  %v476 = vld [vmem:[%s200 + $0xe0] sm:$0xff]
  %v477 = vld [vmem:[%s200 + $0xf0] sm:$0xff]
  %v478 = vld [vmem:[%s200 + $0xf8] sm:$0xff]
  %v479 = vld [vmem:[%s200 + $0x108] sm:$0xff]
  %v480 = vld [vmem:[%s200 + $0x110] sm:$0xff]
  %v481 = vld [vmem:[%s200 + $0x120] sm:$0xff]
  %v482 = vld [vmem:[%s200 + $0x128] sm:$0xff]
  %v483 = vld [vmem:[%s200 + $0x138] sm:$0xff]
  %v484 = vld [vmem:[%s200 + $0x140] sm:$0xff]
  %v485 = vld [vmem:[%s200 + $0x150] sm:$0xff]
  %v486 = vld [vmem:[%s200 + $0x158] sm:$0xff]
  %v487 = vld [vmem:[%s200 + $0x168] sm:$0xff]
  %v488 = vld [vmem:[%s200 + $0x170] sm:$0xff]
  %v489 = vld [vmem:[%s200 + $0x1b0] sm:$0xff]
  %v490 = vld [vmem:[%s200 + $0x1b8] sm:$0xff]
  %v491 = vld [vmem:[%s200 + $0x1c8] sm:$0xff]
  %v492 = vld [vmem:[%s200 + $0x1d0] sm:$0xff]
  %v493 = vld [vmem:[%s200 + $0x1e0] sm:$0xff]
  %v494 = vld [vmem:[%s200 + $0x1e8] sm:$0xff]
  %v495 = vld [vmem:[%s200 + $0x1f8] sm:$0xff]
  %v496 = vld [vmem:[%s200 + $0x200] sm:$0xff]
  %v497 = vld [vmem:[%s200 + $0x210] sm:$0xff]
  %v498 = vld [vmem:[%s200 + $0x218] sm:$0xff]
  %v499 = vld [vmem:[%s200 + $0x228] sm:$0xff]
  %v500 = vld [vmem:[%s200 + $0x230] sm:$0xff]
  %v501 = vld [vmem:[%s200 + $0x240] sm:$0xff]
  %v502 = vld [vmem:[%s200 + $0x248] sm:$0xff]
  %v503 = vld [vmem:[%s200 + $0x258] sm:$0xff]
  %v504 = vld [vmem:[%s200 + $0x260] sm:$0xff]
  %v505 = vld [vmem:[%s200 + $0x270] sm:$0xff]
  %v506 = vld [vmem:[%s200 + $0x278] sm:$0xff]
  %v507 = vld [vmem:[%s200 + $0x288] sm:$0xff]
  %v508 = vld [vmem:[%s200 + $0x290] sm:$0xff]
  %v509 = vld [vmem:[%s200 + $0x2a0] sm:$0xff]
  %v510 = vld [vmem:[%s200 + $0x2a8] sm:$0xff]
  %v511 = vld [vmem:[%s200 + $0x2b8] sm:$0xff]
  %v512 = vld [vmem:[%s200 + $0x2c0] sm:$0xff]
  %v513 = vld [vmem:[%s200 + $0x2d0] sm:$0xff]
  %v514 = vld [vmem:[%s200 + $0x2d8] sm:$0xff]
  %v515 = vld [vmem:[%s200 + $0x2e8] sm:$0xff]
  %v516 = vld [vmem:[%s200 + $0x2f0] sm:$0xff]
  %v517 = vld [vmem:[%s200 + $0x300] sm:$0xff]
  %v518 = vld [vmem:[%s200 + $0x308] sm:$0xff]
  %v519 = vld [vmem:[%s200 + $0x318] sm:$0xff]
  %v520 = vld [vmem:[%s200 + $0x320] sm:$0xff]
  %v521 = vld [vmem:[%s200 + $0x1] sm:$0xff]
  %v522 = vld [vmem:[%s200 + $0x9] sm:$0xff]
  %v523 = vld [vmem:[%s200 + $0x19] sm:$0xff]
  %v524 = vld [vmem:[%s200 + $0x21] sm:$0xff]
  %v525 = vld [vmem:[%s200 + $0x31] sm:$0xff]
  %v526 = vld [vmem:[%s200 + $0x39] sm:$0xff]
  %v527 = vld [vmem:[%s200 + $0x49] sm:$0xff]
  %v528 = vld [vmem:[%s200 + $0x51] sm:$0xff]
  %v529 = vld [vmem:[%s200 + $0x61] sm:$0xff]
  %v530 = vld [vmem:[%s200 + $0x69] sm:$0xff]
  %v531 = vld [vmem:[%s200 + $0x79] sm:$0xff]
  %v532 = vld [vmem:[%s200 + $0x81] sm:$0xff]
  %v533 = vld [vmem:[%s200 + $0x91] sm:$0xff]
  %v534 = vld [vmem:[%s200 + $0x99] sm:$0xff]
  %v535 = vld [vmem:[%s200 + $0xa9] sm:$0xff]
  %v536 = vld [vmem:[%s200 + $0xb1] sm:$0xff]
  %v537 = vld [vmem:[%s200 + $0xc1] sm:$0xff]
  %v538 = vld [vmem:[%s200 + $0xc9] sm:$0xff]
  %v539 = vld [vmem:[%s200 + $0xd9] sm:$0xff]
  %v540 = vld [vmem:[%s200 + $0xe1] sm:$0xff]
  %v541 = vld [vmem:[%s200 + $0xf1] sm:$0xff]
  %v542 = vld [vmem:[%s200 + $0xf9] sm:$0xff]
  %v543 = vld [vmem:[%s200 + $0x109] sm:$0xff]
  %v544 = vld [vmem:[%s200 + $0x111] sm:$0xff]
  %v545 = vld [vmem:[%s200 + $0x121] sm:$0xff]
  %v546 = vld [vmem:[%s200 + $0x129] sm:$0xff]
  %v547 = vld [vmem:[%s200 + $0x139] sm:$0xff]
  %v548 = vld [vmem:[%s200 + $0x141] sm:$0xff]
  %v549 = vld [vmem:[%s200 + $0x151] sm:$0xff]
  %v550 = vld [vmem:[%s200 + $0x159] sm:$0xff]
  %v551 = vld [vmem:[%s200 + $0x169] sm:$0xff]
  %v552 = vld [vmem:[%s200 + $0x171] sm:$0xff]
  %v553 = vld [vmem:[%s200 + $0x1b1] sm:$0xff]
  %v554 = vld [vmem:[%s200 + $0x1b9] sm:$0xff]
  %v555 = vld [vmem:[%s200 + $0x1c9] sm:$0xff]
  %v556 = vld [vmem:[%s200 + $0x1d1] sm:$0xff]
  %v557 = vld [vmem:[%s200 + $0x1e1] sm:$0xff]
  %v558 = vld [vmem:[%s200 + $0x1e9] sm:$0xff]
  %v559 = vld [vmem:[%s200 + $0x1f9] sm:$0xff]
  %v560 = vld [vmem:[%s200 + $0x201] sm:$0xff]
  %v561 = vld [vmem:[%s200 + $0x211] sm:$0xff]
  %v562 = vld [vmem:[%s200 + $0x219] sm:$0xff]
  %v563 = vld [vmem:[%s200 + $0x229] sm:$0xff]
  %v564 = vld [vmem:[%s200 + $0x231] sm:$0xff]
  %v565 = vld [vmem:[%s200 + $0x241] sm:$0xff]
  %v566 = vld [vmem:[%s200 + $0x249] sm:$0xff]
  %v567 = vld [vmem:[%s200 + $0x259] sm:$0xff]
  %v568 = vld [vmem:[%s200 + $0x261] sm:$0xff]
  %v569 = vld [vmem:[%s200 + $0x271] sm:$0xff]
  %v570 = vld [vmem:[%s200 + $0x279] sm:$0xff]
  %v571 = vld [vmem:[%s200 + $0x289] sm:$0xff]
  %v572 = vld [vmem:[%s200 + $0x291] sm:$0xff]
  %v573 = vld [vmem:[%s200 + $0x2a1] sm:$0xff]
  %v574 = vld [vmem:[%s200 + $0x2a9] sm:$0xff]
  %v575 = vld [vmem:[%s200 + $0x2b9] sm:$0xff]
  %v576 = vld [vmem:[%s200 + $0x2c1] sm:$0xff]
  %v577 = vld [vmem:[%s200 + $0x2d1] sm:$0xff]
  %v578 = vld [vmem:[%s200 + $0x2d9] sm:$0xff]
  %v579 = vld [vmem:[%s200 + $0x2e9] sm:$0xff]
  %v580 = vld [vmem:[%s200 + $0x2f1] sm:$0xff]
  %v581 = vld [vmem:[%s200 + $0x301] sm:$0xff]
  %v582 = vld [vmem:[%s200 + $0x309] sm:$0xff]
  %v583 = vld [vmem:[%s200 + $0x319] sm:$0xff]
  %v584 = vld [vmem:[%s200 + $0x321] sm:$0xff]
  %v585 = vld [vmem:[%s200 + $0x2] sm:$0xff]
  %v586 = vld [vmem:[%s200 + $0xa] sm:$0xff]
  %v587 = vld [vmem:[%s200 + $0x1a] sm:$0xff]
  %v588 = vld [vmem:[%s200 + $0x22] sm:$0xff]
  %v589 = vld [vmem:[%s200 + $0x32] sm:$0xff]
  %v590 = vld [vmem:[%s200 + $0x3a] sm:$0xff]
  %v591 = vld [vmem:[%s200 + $0x4a] sm:$0xff]
  %v592 = vld [vmem:[%s200 + $0x52] sm:$0xff]
  %v593 = vld [vmem:[%s200 + $0x62] sm:$0xff]
  %v594 = vld [vmem:[%s200 + $0x6a] sm:$0xff]
  %v595 = vld [vmem:[%s200 + $0x7a] sm:$0xff]
  %v596 = vld [vmem:[%s200 + $0x82] sm:$0xff]
  %v597 = vld [vmem:[%s200 + $0x92] sm:$0xff]
  %v598 = vld [vmem:[%s200 + $0x9a] sm:$0xff]
  %v599 = vld [vmem:[%s200 + $0xaa] sm:$0xff]
  %v600 = vld [vmem:[%s200 + $0xb2] sm:$0xff]
  %v601 = vld [vmem:[%s200 + $0xc2] sm:$0xff]
  %v602 = vld [vmem:[%s200 + $0xca] sm:$0xff]
  %v603 = vld [vmem:[%s200 + $0xda] sm:$0xff]
  %v604 = vld [vmem:[%s200 + $0xe2] sm:$0xff]
  %v605 = vld [vmem:[%s200 + $0xf2] sm:$0xff]
  %v606 = vld [vmem:[%s200 + $0xfa] sm:$0xff]
  %v607 = vld [vmem:[%s200 + $0x10a] sm:$0xff]
  %v608 = vld [vmem:[%s200 + $0x112] sm:$0xff]
  %v609 = vld [vmem:[%s200 + $0x122] sm:$0xff]
  %v610 = vld [vmem:[%s200 + $0x12a] sm:$0xff]
  %v611 = vld [vmem:[%s200 + $0x13a] sm:$0xff]
  %v612 = vld [vmem:[%s200 + $0x142] sm:$0xff]
  %v613 = vld [vmem:[%s200 + $0x152] sm:$0xff]
  %v614 = vld [vmem:[%s200 + $0x15a] sm:$0xff]
  %v615 = vld [vmem:[%s200 + $0x16a] sm:$0xff]
  %v616 = vld [vmem:[%s200 + $0x172] sm:$0xff]
  %v617 = vld [vmem:[%s200 + $0x1b2] sm:$0xff]
  %v618 = vld [vmem:[%s200 + $0x1ba] sm:$0xff]
  %v619 = vld [vmem:[%s200 + $0x1ca] sm:$0xff]
  %v620 = vld [vmem:[%s200 + $0x1d2] sm:$0xff]
  %v621 = vld [vmem:[%s200 + $0x1e2] sm:$0xff]
  %v622 = vld [vmem:[%s200 + $0x1ea] sm:$0xff]
  %v623 = vld [vmem:[%s200 + $0x1fa] sm:$0xff]
  %v624 = vld [vmem:[%s200 + $0x202] sm:$0xff]
  %v625 = vld [vmem:[%s200 + $0x212] sm:$0xff]
  %v626 = vld [vmem:[%s200 + $0x21a] sm:$0xff]
  %v627 = vld [vmem:[%s200 + $0x22a] sm:$0xff]
  %v628 = vld [vmem:[%s200 + $0x232] sm:$0xff]
  %v629 = vld [vmem:[%s200 + $0x242] sm:$0xff]
  %v630 = vld [vmem:[%s200 + $0x24a] sm:$0xff]
  %v631 = vld [vmem:[%s200 + $0x25a] sm:$0xff]
  %v632 = vld [vmem:[%s200 + $0x262] sm:$0xff]
  %v633 = vld [vmem:[%s200 + $0x272] sm:$0xff]
  %v634 = vld [vmem:[%s200 + $0x27a] sm:$0xff]
  %v635 = vld [vmem:[%s200 + $0x28a] sm:$0xff]
  %v636 = vld [vmem:[%s200 + $0x292] sm:$0xff]
  %v637 = vld [vmem:[%s200 + $0x2a2] sm:$0xff]
  %v638 = vld [vmem:[%s200 + $0x2aa] sm:$0xff]
  %v639 = vld [vmem:[%s200 + $0x2ba] sm:$0xff]
  %v640 = vld [vmem:[%s200 + $0x2c2] sm:$0xff]
  %v641 = vld [vmem:[%s200 + $0x2d2] sm:$0xff]
  %v642 = vld [vmem:[%s200 + $0x2da] sm:$0xff]
  %v643 = vld [vmem:[%s200 + $0x2ea] sm:$0xff]
  %v644 = vld [vmem:[%s200 + $0x2f2] sm:$0xff]
  %v645 = vld [vmem:[%s200 + $0x302] sm:$0xff]
  %v646 = vld [vmem:[%s200 + $0x30a] sm:$0xff]
  %v647 = vld [vmem:[%s200 + $0x31a] sm:$0xff]
  %v648 = vld [vmem:[%s200 + $0x322] sm:$0xff]
  %s649 = scalar_lea.vmem [#allocation2], 48
  %v650 = vld [vmem:[%s649] sm:$0xff]
  %v651 = vld [vmem:[%s649 + $0x8] sm:$0xff]
  %v652 = vld [vmem:[%s649 + $0x18] sm:$0xff]
  %v653 = vld [vmem:[%s649 + $0x20] sm:$0xff]
  %v654 = vld [vmem:[%s649 + $0x30] sm:$0xff]
  %v655 = vld [vmem:[%s649 + $0x38] sm:$0xff]
  %v656 = vld [vmem:[%s649 + $0x48] sm:$0xff]
  %v657 = vld [vmem:[%s649 + $0x50] sm:$0xff]
  %v658 = vld [vmem:[%s649 + $0x60] sm:$0xff]
  %v659 = vld [vmem:[%s649 + $0x68] sm:$0xff]
  %v660 = vld [vmem:[%s649 + $0x78] sm:$0xff]
  %v661 = vld [vmem:[%s649 + $0x80] sm:$0xff]
  %v662 = vld [vmem:[%s649 + $0x90] sm:$0xff]
  %v663 = vld [vmem:[%s649 + $0x98] sm:$0xff]
  %v664 = vld [vmem:[%s649 + $0xa8] sm:$0xff]
  %v665 = vld [vmem:[%s649 + $0xb0] sm:$0xff]
  %v666 = vld [vmem:[%s649 + $0xc0] sm:$0xff]
  %v667 = vld [vmem:[%s649 + $0xc8] sm:$0xff]
  %v668 = vld [vmem:[%s649 + $0xd8] sm:$0xff]
  %v669 = vld [vmem:[%s649 + $0xe0] sm:$0xff]
  %v670 = vld [vmem:[%s649 + $0xf0] sm:$0xff]
  %v671 = vld [vmem:[%s649 + $0xf8] sm:$0xff]
  %v672 = vld [vmem:[%s649 + $0x108] sm:$0xff]
  %v673 = vld [vmem:[%s649 + $0x110] sm:$0xff]
  %v674 = vld [vmem:[%s649 + $0x120] sm:$0xff]
  %v675 = vld [vmem:[%s649 + $0x128] sm:$0xff]
  %v676 = vld [vmem:[%s649 + $0x138] sm:$0xff]
  %v677 = vld [vmem:[%s649 + $0x140] sm:$0xff]
  %v678 = vld [vmem:[%s649 + $0x150] sm:$0xff]
  %v679 = vld [vmem:[%s649 + $0x158] sm:$0xff]
  %v680 = vld [vmem:[%s649 + $0x168] sm:$0xff]
  %v681 = vld [vmem:[%s649 + $0x170] sm:$0xff]
  %v682 = vld [vmem:[%s649 + $0x1b0] sm:$0xff]
  %v683 = vld [vmem:[%s649 + $0x1b8] sm:$0xff]
  %v684 = vld [vmem:[%s649 + $0x1c8] sm:$0xff]
  %v685 = vld [vmem:[%s649 + $0x1d0] sm:$0xff]
  %v686 = vld [vmem:[%s649 + $0x1e0] sm:$0xff]
  %v687 = vld [vmem:[%s649 + $0x1e8] sm:$0xff]
  %v688 = vld [vmem:[%s649 + $0x1f8] sm:$0xff]
  %v689 = vld [vmem:[%s649 + $0x200] sm:$0xff]
  %v690 = vld [vmem:[%s649 + $0x210] sm:$0xff]
  %v691 = vld [vmem:[%s649 + $0x218] sm:$0xff]
  %v692 = vld [vmem:[%s649 + $0x228] sm:$0xff]
  %v693 = vld [vmem:[%s649 + $0x230] sm:$0xff]
  %v694 = vld [vmem:[%s649 + $0x240] sm:$0xff]
  %v695 = vld [vmem:[%s649 + $0x248] sm:$0xff]
  %v696 = vld [vmem:[%s649 + $0x258] sm:$0xff]
  %v697 = vld [vmem:[%s649 + $0x260] sm:$0xff]
  %v698 = vld [vmem:[%s649 + $0x270] sm:$0xff]
  %v699 = vld [vmem:[%s649 + $0x278] sm:$0xff]
  %v700 = vld [vmem:[%s649 + $0x288] sm:$0xff]
  %v701 = vld [vmem:[%s649 + $0x290] sm:$0xff]
  %v702 = vld [vmem:[%s649 + $0x2a0] sm:$0xff]
  %v703 = vld [vmem:[%s649 + $0x2a8] sm:$0xff]
  %v704 = vld [vmem:[%s649 + $0x2b8] sm:$0xff]
  %v705 = vld [vmem:[%s649 + $0x2c0] sm:$0xff]
  %v706 = vld [vmem:[%s649 + $0x2d0] sm:$0xff]
  %v707 = vld [vmem:[%s649 + $0x2d8] sm:$0xff]
  %v708 = vld [vmem:[%s649 + $0x2e8] sm:$0xff]
  %v709 = vld [vmem:[%s649 + $0x2f0] sm:$0xff]
  %v710 = vld [vmem:[%s649 + $0x300] sm:$0xff]
  %v711 = vld [vmem:[%s649 + $0x308] sm:$0xff]
  %v712 = vld [vmem:[%s649 + $0x318] sm:$0xff]
  %v713 = vld [vmem:[%s649 + $0x320] sm:$0xff]
  %v714 = vld [vmem:[%s649 + $0x1] sm:$0xff]
  %v715 = vld [vmem:[%s649 + $0x9] sm:$0xff]
  %v716 = vld [vmem:[%s649 + $0x19] sm:$0xff]
  %v717 = vld [vmem:[%s649 + $0x21] sm:$0xff]
  %v718 = vld [vmem:[%s649 + $0x31] sm:$0xff]
  %v719 = vld [vmem:[%s649 + $0x39] sm:$0xff]
  %v720 = vld [vmem:[%s649 + $0x49] sm:$0xff]
  %v721 = vld [vmem:[%s649 + $0x51] sm:$0xff]
  %v722 = vld [vmem:[%s649 + $0x61] sm:$0xff]
  %v723 = vld [vmem:[%s649 + $0x69] sm:$0xff]
  %v724 = vld [vmem:[%s649 + $0x79] sm:$0xff]
  %v725 = vld [vmem:[%s649 + $0x81] sm:$0xff]
  %v726 = vld [vmem:[%s649 + $0x91] sm:$0xff]
  %v727 = vld [vmem:[%s649 + $0x99] sm:$0xff]
  %v728 = vld [vmem:[%s649 + $0xa9] sm:$0xff]
  %v729 = vld [vmem:[%s649 + $0xb1] sm:$0xff]
  %v730 = vld [vmem:[%s649 + $0xc1] sm:$0xff]
  %v731 = vld [vmem:[%s649 + $0xc9] sm:$0xff]
  %v732 = vld [vmem:[%s649 + $0xd9] sm:$0xff]
  %v733 = vld [vmem:[%s649 + $0xe1] sm:$0xff]
  %v734 = vld [vmem:[%s649 + $0xf1] sm:$0xff]
  %v735 = vld [vmem:[%s649 + $0xf9] sm:$0xff]
  %v736 = vld [vmem:[%s649 + $0x109] sm:$0xff]
  %v737 = vld [vmem:[%s649 + $0x111] sm:$0xff]
  %v738 = vld [vmem:[%s649 + $0x121] sm:$0xff]
  %v739 = vld [vmem:[%s649 + $0x129] sm:$0xff]
  %v740 = vld [vmem:[%s649 + $0x139] sm:$0xff]
  %v741 = vld [vmem:[%s649 + $0x141] sm:$0xff]
  %v742 = vld [vmem:[%s649 + $0x151] sm:$0xff]
  %v743 = vld [vmem:[%s649 + $0x159] sm:$0xff]
  %v744 = vld [vmem:[%s649 + $0x169] sm:$0xff]
  %v745 = vld [vmem:[%s649 + $0x171] sm:$0xff]
  %v746 = vld [vmem:[%s649 + $0x1b1] sm:$0xff]
  %v747 = vld [vmem:[%s649 + $0x1b9] sm:$0xff]
  %v748 = vld [vmem:[%s649 + $0x1c9] sm:$0xff]
  %v749 = vld [vmem:[%s649 + $0x1d1] sm:$0xff]
  %v750 = vld [vmem:[%s649 + $0x1e1] sm:$0xff]
  %v751 = vld [vmem:[%s649 + $0x1e9] sm:$0xff]
  %v752 = vld [vmem:[%s649 + $0x1f9] sm:$0xff]
  %v753 = vld [vmem:[%s649 + $0x201] sm:$0xff]
  %v754 = vld [vmem:[%s649 + $0x211] sm:$0xff]
  %v755 = vld [vmem:[%s649 + $0x219] sm:$0xff]
  %v756 = vld [vmem:[%s649 + $0x229] sm:$0xff]
  %v757 = vld [vmem:[%s649 + $0x231] sm:$0xff]
  %v758 = vld [vmem:[%s649 + $0x241] sm:$0xff]
  %v759 = vld [vmem:[%s649 + $0x249] sm:$0xff]
  %v760 = vld [vmem:[%s649 + $0x259] sm:$0xff]
  %v761 = vld [vmem:[%s649 + $0x261] sm:$0xff]
  %v762 = vld [vmem:[%s649 + $0x271] sm:$0xff]
  %v763 = vld [vmem:[%s649 + $0x279] sm:$0xff]
  %v764 = vld [vmem:[%s649 + $0x289] sm:$0xff]
  %v765 = vld [vmem:[%s649 + $0x291] sm:$0xff]
  %v766 = vld [vmem:[%s649 + $0x2a1] sm:$0xff]
  %v767 = vld [vmem:[%s649 + $0x2a9] sm:$0xff]
  %v768 = vld [vmem:[%s649 + $0x2b9] sm:$0xff]
  %v769 = vld [vmem:[%s649 + $0x2c1] sm:$0xff]
  %v770 = vld [vmem:[%s649 + $0x2d1] sm:$0xff]
  %v771 = vld [vmem:[%s649 + $0x2d9] sm:$0xff]
  %v772 = vld [vmem:[%s649 + $0x2e9] sm:$0xff]
  %v773 = vld [vmem:[%s649 + $0x2f1] sm:$0xff]
  %v774 = vld [vmem:[%s649 + $0x301] sm:$0xff]
  %v775 = vld [vmem:[%s649 + $0x309] sm:$0xff]
  %v776 = vld [vmem:[%s649 + $0x319] sm:$0xff]
  %v777 = vld [vmem:[%s649 + $0x321] sm:$0xff]
  %v778 = vld [vmem:[%s649 + $0x2] sm:$0xff]
  %v779 = vld [vmem:[%s649 + $0xa] sm:$0xff]
  %v780 = vld [vmem:[%s649 + $0x1a] sm:$0xff]
  %v781 = vld [vmem:[%s649 + $0x22] sm:$0xff]
  %v782 = vld [vmem:[%s649 + $0x32] sm:$0xff]
  %v783 = vld [vmem:[%s649 + $0x3a] sm:$0xff]
  %v784 = vld [vmem:[%s649 + $0x4a] sm:$0xff]
  %v785 = vld [vmem:[%s649 + $0x52] sm:$0xff]
  %v786 = vld [vmem:[%s649 + $0x62] sm:$0xff]
  %v787 = vld [vmem:[%s649 + $0x6a] sm:$0xff]
  %v788 = vld [vmem:[%s649 + $0x7a] sm:$0xff]
  %v789 = vld [vmem:[%s649 + $0x82] sm:$0xff]
  %v790 = vld [vmem:[%s649 + $0x92] sm:$0xff]
  %v791 = vld [vmem:[%s649 + $0x9a] sm:$0xff]
  %v792 = vld [vmem:[%s649 + $0xaa] sm:$0xff]
  %v793 = vld [vmem:[%s649 + $0xb2] sm:$0xff]
  %v794 = vld [vmem:[%s649 + $0xc2] sm:$0xff]
  %v795 = vld [vmem:[%s649 + $0xca] sm:$0xff]
  %v796 = vld [vmem:[%s649 + $0xda] sm:$0xff]
  %v797 = vld [vmem:[%s649 + $0xe2] sm:$0xff]
  %v798 = vld [vmem:[%s649 + $0xf2] sm:$0xff]
  %v799 = vld [vmem:[%s649 + $0xfa] sm:$0xff]
  %v800 = vld [vmem:[%s649 + $0x10a] sm:$0xff]
  %v801 = vld [vmem:[%s649 + $0x112] sm:$0xff]
  %v802 = vld [vmem:[%s649 + $0x122] sm:$0xff]
  %v803 = vld [vmem:[%s649 + $0x12a] sm:$0xff]
  %v804 = vld [vmem:[%s649 + $0x13a] sm:$0xff]
  %v805 = vld [vmem:[%s649 + $0x142] sm:$0xff]
  %v806 = vld [vmem:[%s649 + $0x152] sm:$0xff]
  %v807 = vld [vmem:[%s649 + $0x15a] sm:$0xff]
  %v808 = vld [vmem:[%s649 + $0x16a] sm:$0xff]
  %v809 = vld [vmem:[%s649 + $0x172] sm:$0xff]
  %v810 = vld [vmem:[%s649 + $0x1b2] sm:$0xff]
  %v811 = vld [vmem:[%s649 + $0x1ba] sm:$0xff]
  %v812 = vld [vmem:[%s649 + $0x1ca] sm:$0xff]
  %v813 = vld [vmem:[%s649 + $0x1d2] sm:$0xff]
  %v814 = vld [vmem:[%s649 + $0x1e2] sm:$0xff]
  %v815 = vld [vmem:[%s649 + $0x1ea] sm:$0xff]
  %v816 = vld [vmem:[%s649 + $0x1fa] sm:$0xff]
  %v817 = vld [vmem:[%s649 + $0x202] sm:$0xff]
  %v818 = vld [vmem:[%s649 + $0x212] sm:$0xff]
  %v819 = vld [vmem:[%s649 + $0x21a] sm:$0xff]
  %v820 = vld [vmem:[%s649 + $0x22a] sm:$0xff]
  %v821 = vld [vmem:[%s649 + $0x232] sm:$0xff]
  %v822 = vld [vmem:[%s649 + $0x242] sm:$0xff]
  %v823 = vld [vmem:[%s649 + $0x24a] sm:$0xff]
  %v824 = vld [vmem:[%s649 + $0x25a] sm:$0xff]
  %v825 = vld [vmem:[%s649 + $0x262] sm:$0xff]
  %v826 = vld [vmem:[%s649 + $0x272] sm:$0xff]
  %v827 = vld [vmem:[%s649 + $0x27a] sm:$0xff]
  %v828 = vld [vmem:[%s649 + $0x28a] sm:$0xff]
  %v829 = vld [vmem:[%s649 + $0x292] sm:$0xff]
  %v830 = vld [vmem:[%s649 + $0x2a2] sm:$0xff]
  %v831 = vld [vmem:[%s649 + $0x2aa] sm:$0xff]
  %v832 = vld [vmem:[%s649 + $0x2ba] sm:$0xff]
  %v833 = vld [vmem:[%s649 + $0x2c2] sm:$0xff]
  %v834 = vld [vmem:[%s649 + $0x2d2] sm:$0xff]
  %v835 = vld [vmem:[%s649 + $0x2da] sm:$0xff]
  %v836 = vld [vmem:[%s649 + $0x2ea] sm:$0xff]
  %v837 = vld [vmem:[%s649 + $0x2f2] sm:$0xff]
  %v838 = vld [vmem:[%s649 + $0x302] sm:$0xff]
  %v839 = vld [vmem:[%s649 + $0x30a] sm:$0xff]
  %v840 = vld [vmem:[%s649 + $0x31a] sm:$0xff]
  %v841 = vld [vmem:[%s649 + $0x322] sm:$0xff]
  %906 = vrot.lane.b32.xlu0 %v329, 8
  %v907 = vpop.permute.xlu0 %906
  %908 = vrot.lane.b32.xlu0 %v330, 8
  %v909 = vpop.permute.xlu0 %908
  %910 = vrot.lane.b32.xlu0 %v331, 8
  %v911 = vpop.permute.xlu0 %910
  %912 = vrot.lane.b32.xlu0 %v332, 8
  %v913 = vpop.permute.xlu0 %912
  %914 = vrot.lane.b32.xlu0 %v333, 8
  %v915 = vpop.permute.xlu0 %914
  %916 = vrot.lane.b32.xlu0 %v334, 8
  %v917 = vpop.permute.xlu0 %916
  %918 = vrot.lane.b32.xlu0 %v335, 8
  %v919 = vpop.permute.xlu0 %918
  %920 = vrot.lane.b32.xlu0 %v336, 8
  %v921 = vpop.permute.xlu0 %920
  %922 = vrot.lane.b32.xlu0 %v337, 8
  %v923 = vpop.permute.xlu0 %922
  %924 = vrot.lane.b32.xlu0 %v338, 8
  %v925 = vpop.permute.xlu0 %924
  %926 = vrot.lane.b32.xlu0 %v339, 8
  %v927 = vpop.permute.xlu0 %926
  %928 = vrot.lane.b32.xlu0 %v340, 8
  %v929 = vpop.permute.xlu0 %928
  %930 = vrot.lane.b32.xlu0 %v341, 8
  %v931 = vpop.permute.xlu0 %930
  %932 = vrot.lane.b32.xlu0 %v342, 8
  %v933 = vpop.permute.xlu0 %932
  %934 = vrot.lane.b32.xlu0 %v343, 8
  %v935 = vpop.permute.xlu0 %934
  %936 = vrot.lane.b32.xlu0 %v344, 8
  %v937 = vpop.permute.xlu0 %936
  %938 = vrot.lane.b32.xlu0 %v345, 8
  %v939 = vpop.permute.xlu0 %938
  %940 = vrot.lane.b32.xlu0 %v346, 8
  %v941 = vpop.permute.xlu0 %940
  %942 = vrot.lane.b32.xlu0 %v347, 8
  %v943 = vpop.permute.xlu0 %942
  %944 = vrot.lane.b32.xlu0 %v348, 8
  %v945 = vpop.permute.xlu0 %944
  %946 = vrot.lane.b32.xlu0 %v349, 8
  %v947 = vpop.permute.xlu0 %946
  %948 = vrot.lane.b32.xlu0 %v350, 8
  %v949 = vpop.permute.xlu0 %948
  %950 = vrot.lane.b32.xlu0 %v351, 8
  %v951 = vpop.permute.xlu0 %950
  %952 = vrot.lane.b32.xlu0 %v352, 8
  %v953 = vpop.permute.xlu0 %952
  %954 = vrot.lane.b32.xlu0 %v353, 8
  %v955 = vpop.permute.xlu0 %954
  %956 = vrot.lane.b32.xlu0 %v354, 8
  %v957 = vpop.permute.xlu0 %956
  %958 = vrot.lane.b32.xlu0 %v355, 8
  %v959 = vpop.permute.xlu0 %958
  %960 = vrot.lane.b32.xlu0 %v356, 8
  %v961 = vpop.permute.xlu0 %960
  %962 = vrot.lane.b32.xlu0 %v357, 8
  %v963 = vpop.permute.xlu0 %962
  %964 = vrot.lane.b32.xlu0 %v358, 8
  %v965 = vpop.permute.xlu0 %964
  %966 = vrot.lane.b32.xlu0 %v359, 8
  %v967 = vpop.permute.xlu0 %966
  %968 = vrot.lane.b32.xlu0 %v360, 8
  %v969 = vpop.permute.xlu0 %968
  %970 = vrot.lane.b32.xlu0 %v361, 8
  %v971 = vpop.permute.xlu0 %970
  %972 = vrot.lane.b32.xlu0 %v362, 8
  %v973 = vpop.permute.xlu0 %972
  %974 = vrot.lane.b32.xlu0 %v363, 8
  %v975 = vpop.permute.xlu0 %974
  %976 = vrot.lane.b32.xlu0 %v364, 8
  %v977 = vpop.permute.xlu0 %976
  %978 = vrot.lane.b32.xlu0 %v365, 8
  %v979 = vpop.permute.xlu0 %978
  %980 = vrot.lane.b32.xlu0 %v366, 8
  %v981 = vpop.permute.xlu0 %980
  %982 = vrot.lane.b32.xlu0 %v367, 8
  %v983 = vpop.permute.xlu0 %982
  %984 = vrot.lane.b32.xlu0 %v368, 8
  %v985 = vpop.permute.xlu0 %984
  %986 = vrot.lane.b32.xlu0 %v369, 8
  %v987 = vpop.permute.xlu0 %986
  %988 = vrot.lane.b32.xlu0 %v370, 8
  %v989 = vpop.permute.xlu0 %988
  %990 = vrot.lane.b32.xlu0 %v371, 8
  %v991 = vpop.permute.xlu0 %990
  %992 = vrot.lane.b32.xlu0 %v372, 8
  %v993 = vpop.permute.xlu0 %992
  %994 = vrot.lane.b32.xlu0 %v373, 8
  %v995 = vpop.permute.xlu0 %994
  %996 = vrot.lane.b32.xlu0 %v374, 8
  %v997 = vpop.permute.xlu0 %996
  %998 = vrot.lane.b32.xlu0 %v375, 8
  %v999 = vpop.permute.xlu0 %998
  %1000 = vrot.lane.b32.xlu0 %v376, 8
  %v1001 = vpop.permute.xlu0 %1000
  %1002 = vrot.lane.b32.xlu0 %v377, 8
  %v1003 = vpop.permute.xlu0 %1002
  %1004 = vrot.lane.b32.xlu0 %v378, 8
  %v1005 = vpop.permute.xlu0 %1004
  %1006 = vrot.lane.b32.xlu0 %v379, 8
  %v1007 = vpop.permute.xlu0 %1006
  %1008 = vrot.lane.b32.xlu0 %v380, 8
  %v1009 = vpop.permute.xlu0 %1008
  %1010 = vrot.lane.b32.xlu0 %v381, 8
  %v1011 = vpop.permute.xlu0 %1010
  %1012 = vrot.lane.b32.xlu0 %v382, 8
  %v1013 = vpop.permute.xlu0 %1012
  %1014 = vrot.lane.b32.xlu0 %v383, 8
  %v1015 = vpop.permute.xlu0 %1014
  %1016 = vrot.lane.b32.xlu0 %v384, 8
  %v1017 = vpop.permute.xlu0 %1016
  %1018 = vrot.lane.b32.xlu0 %v385, 8
  %v1019 = vpop.permute.xlu0 %1018
  %1020 = vrot.lane.b32.xlu0 %v386, 8
  %v1021 = vpop.permute.xlu0 %1020
  %1022 = vrot.lane.b32.xlu0 %v387, 8
  %v1023 = vpop.permute.xlu0 %1022
  %1024 = vrot.lane.b32.xlu0 %v388, 8
  %v1025 = vpop.permute.xlu0 %1024
  %1026 = vrot.lane.b32.xlu0 %v389, 8
  %v1027 = vpop.permute.xlu0 %1026
  %1028 = vrot.lane.b32.xlu0 %v390, 8
  %v1029 = vpop.permute.xlu0 %1028
  %1030 = vrot.lane.b32.xlu0 %v391, 8
  %v1031 = vpop.permute.xlu0 %1030
  %1032 = vrot.lane.b32.xlu0 %v392, 8
  %v1033 = vpop.permute.xlu0 %1032
  %1162 = vrot.lane.b32.xlu0 %v393, 16
  %v1163 = vpop.permute.xlu0 %1162
  %1164 = vrot.lane.b32.xlu0 %v394, 16
  %v1165 = vpop.permute.xlu0 %1164
  %1166 = vrot.lane.b32.xlu0 %v395, 16
  %v1167 = vpop.permute.xlu0 %1166
  %1168 = vrot.lane.b32.xlu0 %v396, 16
  %v1169 = vpop.permute.xlu0 %1168
  %1170 = vrot.lane.b32.xlu0 %v397, 16
  %v1171 = vpop.permute.xlu0 %1170
  %1172 = vrot.lane.b32.xlu0 %v398, 16
  %v1173 = vpop.permute.xlu0 %1172
  %1174 = vrot.lane.b32.xlu0 %v399, 16
  %v1175 = vpop.permute.xlu0 %1174
  %1176 = vrot.lane.b32.xlu0 %v400, 16
  %v1177 = vpop.permute.xlu0 %1176
  %1178 = vrot.lane.b32.xlu0 %v401, 16
  %v1179 = vpop.permute.xlu0 %1178
  %1180 = vrot.lane.b32.xlu0 %v402, 16
  %v1181 = vpop.permute.xlu0 %1180
  %1182 = vrot.lane.b32.xlu0 %v403, 16
  %v1183 = vpop.permute.xlu0 %1182
  %1184 = vrot.lane.b32.xlu0 %v404, 16
  %v1185 = vpop.permute.xlu0 %1184
  %1186 = vrot.lane.b32.xlu0 %v405, 16
  %v1187 = vpop.permute.xlu0 %1186
  %1188 = vrot.lane.b32.xlu0 %v406, 16
  %v1189 = vpop.permute.xlu0 %1188
  %1190 = vrot.lane.b32.xlu0 %v407, 16
  %v1191 = vpop.permute.xlu0 %1190
  %1192 = vrot.lane.b32.xlu0 %v408, 16
  %v1193 = vpop.permute.xlu0 %1192
  %1194 = vrot.lane.b32.xlu0 %v409, 16
  %v1195 = vpop.permute.xlu0 %1194
  %1196 = vrot.lane.b32.xlu0 %v410, 16
  %v1197 = vpop.permute.xlu0 %1196
  %1198 = vrot.lane.b32.xlu0 %v411, 16
  %v1199 = vpop.permute.xlu0 %1198
  %1200 = vrot.lane.b32.xlu0 %v412, 16
  %v1201 = vpop.permute.xlu0 %1200
  %1202 = vrot.lane.b32.xlu0 %v413, 16
  %v1203 = vpop.permute.xlu0 %1202
  %1204 = vrot.lane.b32.xlu0 %v414, 16
  %v1205 = vpop.permute.xlu0 %1204
  %1206 = vrot.lane.b32.xlu0 %v415, 16
  %v1207 = vpop.permute.xlu0 %1206
  %1208 = vrot.lane.b32.xlu0 %v416, 16
  %v1209 = vpop.permute.xlu0 %1208
  %1210 = vrot.lane.b32.xlu0 %v417, 16
  %v1211 = vpop.permute.xlu0 %1210
  %1212 = vrot.lane.b32.xlu0 %v418, 16
  %v1213 = vpop.permute.xlu0 %1212
  %1214 = vrot.lane.b32.xlu0 %v419, 16
  %v1215 = vpop.permute.xlu0 %1214
  %1216 = vrot.lane.b32.xlu0 %v420, 16
  %v1217 = vpop.permute.xlu0 %1216
  %1218 = vrot.lane.b32.xlu0 %v421, 16
  %v1219 = vpop.permute.xlu0 %1218
  %1220 = vrot.lane.b32.xlu0 %v422, 16
  %v1221 = vpop.permute.xlu0 %1220
  %1222 = vrot.lane.b32.xlu0 %v423, 16
  %v1223 = vpop.permute.xlu0 %1222
  %1224 = vrot.lane.b32.xlu0 %v424, 16
  %v1225 = vpop.permute.xlu0 %1224
  %1226 = vrot.lane.b32.xlu0 %v425, 16
  %v1227 = vpop.permute.xlu0 %1226
  %1228 = vrot.lane.b32.xlu0 %v426, 16
  %v1229 = vpop.permute.xlu0 %1228
  %1230 = vrot.lane.b32.xlu0 %v427, 16
  %v1231 = vpop.permute.xlu0 %1230
  %1232 = vrot.lane.b32.xlu0 %v428, 16
  %v1233 = vpop.permute.xlu0 %1232
  %1234 = vrot.lane.b32.xlu0 %v429, 16
  %v1235 = vpop.permute.xlu0 %1234
  %1236 = vrot.lane.b32.xlu0 %v430, 16
  %v1237 = vpop.permute.xlu0 %1236
  %1238 = vrot.lane.b32.xlu0 %v431, 16
  %v1239 = vpop.permute.xlu0 %1238
  %1240 = vrot.lane.b32.xlu0 %v432, 16
  %v1241 = vpop.permute.xlu0 %1240
  %1242 = vrot.lane.b32.xlu0 %v433, 16
  %v1243 = vpop.permute.xlu0 %1242
  %1244 = vrot.lane.b32.xlu0 %v434, 16
  %v1245 = vpop.permute.xlu0 %1244
  %1246 = vrot.lane.b32.xlu0 %v435, 16
  %v1247 = vpop.permute.xlu0 %1246
  %1248 = vrot.lane.b32.xlu0 %v436, 16
  %v1249 = vpop.permute.xlu0 %1248
  %1250 = vrot.lane.b32.xlu0 %v437, 16
  %v1251 = vpop.permute.xlu0 %1250
  %1252 = vrot.lane.b32.xlu0 %v438, 16
  %v1253 = vpop.permute.xlu0 %1252
  %1254 = vrot.lane.b32.xlu0 %v439, 16
  %v1255 = vpop.permute.xlu0 %1254
  %1256 = vrot.lane.b32.xlu0 %v440, 16
  %v1257 = vpop.permute.xlu0 %1256
  %1258 = vrot.lane.b32.xlu0 %v441, 16
  %v1259 = vpop.permute.xlu0 %1258
  %1260 = vrot.lane.b32.xlu0 %v442, 16
  %v1261 = vpop.permute.xlu0 %1260
  %1262 = vrot.lane.b32.xlu0 %v443, 16
  %v1263 = vpop.permute.xlu0 %1262
  %1264 = vrot.lane.b32.xlu0 %v444, 16
  %v1265 = vpop.permute.xlu0 %1264
  %1266 = vrot.lane.b32.xlu0 %v445, 16
  %v1267 = vpop.permute.xlu0 %1266
  %1268 = vrot.lane.b32.xlu0 %v446, 16
  %v1269 = vpop.permute.xlu0 %1268
  %1270 = vrot.lane.b32.xlu0 %v447, 16
  %v1271 = vpop.permute.xlu0 %1270
  %1272 = vrot.lane.b32.xlu0 %v448, 16
  %v1273 = vpop.permute.xlu0 %1272
  %1274 = vrot.lane.b32.xlu0 %v449, 16
  %v1275 = vpop.permute.xlu0 %1274
  %1276 = vrot.lane.b32.xlu0 %v450, 16
  %v1277 = vpop.permute.xlu0 %1276
  %1278 = vrot.lane.b32.xlu0 %v451, 16
  %v1279 = vpop.permute.xlu0 %1278
  %1280 = vrot.lane.b32.xlu0 %v452, 16
  %v1281 = vpop.permute.xlu0 %1280
  %1282 = vrot.lane.b32.xlu0 %v453, 16
  %v1283 = vpop.permute.xlu0 %1282
  %1284 = vrot.lane.b32.xlu0 %v454, 16
  %v1285 = vpop.permute.xlu0 %1284
  %1286 = vrot.lane.b32.xlu0 %v455, 16
  %v1287 = vpop.permute.xlu0 %1286
  %1288 = vrot.lane.b32.xlu0 %v456, 16
  %v1289 = vpop.permute.xlu0 %1288
  %1418 = vrot.lane.b32.xlu0 %v457, 24
  %v1419 = vpop.permute.xlu0 %1418
  %1420 = vrot.lane.b32.xlu0 %v458, 24
  %v1421 = vpop.permute.xlu0 %1420
  %1422 = vrot.lane.b32.xlu0 %v459, 24
  %v1423 = vpop.permute.xlu0 %1422
  %1424 = vrot.lane.b32.xlu0 %v460, 24
  %v1425 = vpop.permute.xlu0 %1424
  %1426 = vrot.lane.b32.xlu0 %v461, 24
  %v1427 = vpop.permute.xlu0 %1426
  %1428 = vrot.lane.b32.xlu0 %v462, 24
  %v1429 = vpop.permute.xlu0 %1428
  %1430 = vrot.lane.b32.xlu0 %v463, 24
  %v1431 = vpop.permute.xlu0 %1430
  %1432 = vrot.lane.b32.xlu0 %v464, 24
  %v1433 = vpop.permute.xlu0 %1432
  %1434 = vrot.lane.b32.xlu0 %v465, 24
  %v1435 = vpop.permute.xlu0 %1434
  %1436 = vrot.lane.b32.xlu0 %v466, 24
  %v1437 = vpop.permute.xlu0 %1436
  %1438 = vrot.lane.b32.xlu0 %v467, 24
  %v1439 = vpop.permute.xlu0 %1438
  %1440 = vrot.lane.b32.xlu0 %v468, 24
  %v1441 = vpop.permute.xlu0 %1440
  %1442 = vrot.lane.b32.xlu0 %v469, 24
  %v1443 = vpop.permute.xlu0 %1442
  %1444 = vrot.lane.b32.xlu0 %v470, 24
  %v1445 = vpop.permute.xlu0 %1444
  %1446 = vrot.lane.b32.xlu0 %v471, 24
  %v1447 = vpop.permute.xlu0 %1446
  %1448 = vrot.lane.b32.xlu0 %v472, 24
  %v1449 = vpop.permute.xlu0 %1448
  %1450 = vrot.lane.b32.xlu0 %v473, 24
  %v1451 = vpop.permute.xlu0 %1450
  %1452 = vrot.lane.b32.xlu0 %v474, 24
  %v1453 = vpop.permute.xlu0 %1452
  %1454 = vrot.lane.b32.xlu0 %v475, 24
  %v1455 = vpop.permute.xlu0 %1454
  %1456 = vrot.lane.b32.xlu0 %v476, 24
  %v1457 = vpop.permute.xlu0 %1456
  %1458 = vrot.lane.b32.xlu0 %v477, 24
  %v1459 = vpop.permute.xlu0 %1458
  %1460 = vrot.lane.b32.xlu0 %v478, 24
  %v1461 = vpop.permute.xlu0 %1460
  %1462 = vrot.lane.b32.xlu0 %v479, 24
  %v1463 = vpop.permute.xlu0 %1462
  %1464 = vrot.lane.b32.xlu0 %v480, 24
  %v1465 = vpop.permute.xlu0 %1464
  %1466 = vrot.lane.b32.xlu0 %v481, 24
  %v1467 = vpop.permute.xlu0 %1466
  %1468 = vrot.lane.b32.xlu0 %v482, 24
  %v1469 = vpop.permute.xlu0 %1468
  %1470 = vrot.lane.b32.xlu0 %v483, 24
  %v1471 = vpop.permute.xlu0 %1470
  %1472 = vrot.lane.b32.xlu0 %v484, 24
  %v1473 = vpop.permute.xlu0 %1472
  %1474 = vrot.lane.b32.xlu0 %v485, 24
  %v1475 = vpop.permute.xlu0 %1474
  %1476 = vrot.lane.b32.xlu0 %v486, 24
  %v1477 = vpop.permute.xlu0 %1476
  %1478 = vrot.lane.b32.xlu0 %v487, 24
  %v1479 = vpop.permute.xlu0 %1478
  %1480 = vrot.lane.b32.xlu0 %v488, 24
  %v1481 = vpop.permute.xlu0 %1480
  %1482 = vrot.lane.b32.xlu0 %v489, 24
  %v1483 = vpop.permute.xlu0 %1482
  %1484 = vrot.lane.b32.xlu0 %v490, 24
  %v1485 = vpop.permute.xlu0 %1484
  %1486 = vrot.lane.b32.xlu0 %v491, 24
  %v1487 = vpop.permute.xlu0 %1486
  %1488 = vrot.lane.b32.xlu0 %v492, 24
  %v1489 = vpop.permute.xlu0 %1488
  %1490 = vrot.lane.b32.xlu0 %v493, 24
  %v1491 = vpop.permute.xlu0 %1490
  %1492 = vrot.lane.b32.xlu0 %v494, 24
  %v1493 = vpop.permute.xlu0 %1492
  %1494 = vrot.lane.b32.xlu0 %v495, 24
  %v1495 = vpop.permute.xlu0 %1494
  %1496 = vrot.lane.b32.xlu0 %v496, 24
  %v1497 = vpop.permute.xlu0 %1496
  %1498 = vrot.lane.b32.xlu0 %v497, 24
  %v1499 = vpop.permute.xlu0 %1498
  %1500 = vrot.lane.b32.xlu0 %v498, 24
  %v1501 = vpop.permute.xlu0 %1500
  %1502 = vrot.lane.b32.xlu0 %v499, 24
  %v1503 = vpop.permute.xlu0 %1502
  %1504 = vrot.lane.b32.xlu0 %v500, 24
  %v1505 = vpop.permute.xlu0 %1504
  %1506 = vrot.lane.b32.xlu0 %v501, 24
  %v1507 = vpop.permute.xlu0 %1506
  %1508 = vrot.lane.b32.xlu0 %v502, 24
  %v1509 = vpop.permute.xlu0 %1508
  %1510 = vrot.lane.b32.xlu0 %v503, 24
  %v1511 = vpop.permute.xlu0 %1510
  %1512 = vrot.lane.b32.xlu0 %v504, 24
  %v1513 = vpop.permute.xlu0 %1512
  %1514 = vrot.lane.b32.xlu0 %v505, 24
  %v1515 = vpop.permute.xlu0 %1514
  %1516 = vrot.lane.b32.xlu0 %v506, 24
  %v1517 = vpop.permute.xlu0 %1516
  %1518 = vrot.lane.b32.xlu0 %v507, 24
  %v1519 = vpop.permute.xlu0 %1518
  %1520 = vrot.lane.b32.xlu0 %v508, 24
  %v1521 = vpop.permute.xlu0 %1520
  %1522 = vrot.lane.b32.xlu0 %v509, 24
  %v1523 = vpop.permute.xlu0 %1522
  %1524 = vrot.lane.b32.xlu0 %v510, 24
  %v1525 = vpop.permute.xlu0 %1524
  %1526 = vrot.lane.b32.xlu0 %v511, 24
  %v1527 = vpop.permute.xlu0 %1526
  %1528 = vrot.lane.b32.xlu0 %v512, 24
  %v1529 = vpop.permute.xlu0 %1528
  %1530 = vrot.lane.b32.xlu0 %v513, 24
  %v1531 = vpop.permute.xlu0 %1530
  %1532 = vrot.lane.b32.xlu0 %v514, 24
  %v1533 = vpop.permute.xlu0 %1532
  %1534 = vrot.lane.b32.xlu0 %v515, 24
  %v1535 = vpop.permute.xlu0 %1534
  %1536 = vrot.lane.b32.xlu0 %v516, 24
  %v1537 = vpop.permute.xlu0 %1536
  %1538 = vrot.lane.b32.xlu0 %v517, 24
  %v1539 = vpop.permute.xlu0 %1538
  %1540 = vrot.lane.b32.xlu0 %v518, 24
  %v1541 = vpop.permute.xlu0 %1540
  %1542 = vrot.lane.b32.xlu0 %v519, 24
  %v1543 = vpop.permute.xlu0 %1542
  %1544 = vrot.lane.b32.xlu0 %v520, 24
  %v1545 = vpop.permute.xlu0 %1544
  %1674 = vrot.lane.b32.xlu0 %v521, 32
  %v1675 = vpop.permute.xlu0 %1674
  %1676 = vrot.lane.b32.xlu0 %v522, 32
  %v1677 = vpop.permute.xlu0 %1676
  %1678 = vrot.lane.b32.xlu0 %v523, 32
  %v1679 = vpop.permute.xlu0 %1678
  %1680 = vrot.lane.b32.xlu0 %v524, 32
  %v1681 = vpop.permute.xlu0 %1680
  %1682 = vrot.lane.b32.xlu0 %v525, 32
  %v1683 = vpop.permute.xlu0 %1682
  %1684 = vrot.lane.b32.xlu0 %v526, 32
  %v1685 = vpop.permute.xlu0 %1684
  %1686 = vrot.lane.b32.xlu0 %v527, 32
  %v1687 = vpop.permute.xlu0 %1686
  %1688 = vrot.lane.b32.xlu0 %v528, 32
  %v1689 = vpop.permute.xlu0 %1688
  %1690 = vrot.lane.b32.xlu0 %v529, 32
  %v1691 = vpop.permute.xlu0 %1690
  %1692 = vrot.lane.b32.xlu0 %v530, 32
  %v1693 = vpop.permute.xlu0 %1692
  %1694 = vrot.lane.b32.xlu0 %v531, 32
  %v1695 = vpop.permute.xlu0 %1694
  %1696 = vrot.lane.b32.xlu0 %v532, 32
  %v1697 = vpop.permute.xlu0 %1696
  %1698 = vrot.lane.b32.xlu0 %v533, 32
  %v1699 = vpop.permute.xlu0 %1698
  %1700 = vrot.lane.b32.xlu0 %v534, 32
  %v1701 = vpop.permute.xlu0 %1700
  %1702 = vrot.lane.b32.xlu0 %v535, 32
  %v1703 = vpop.permute.xlu0 %1702
  %1704 = vrot.lane.b32.xlu0 %v536, 32
  %v1705 = vpop.permute.xlu0 %1704
  %1706 = vrot.lane.b32.xlu0 %v537, 32
  %v1707 = vpop.permute.xlu0 %1706
  %1708 = vrot.lane.b32.xlu0 %v538, 32
  %v1709 = vpop.permute.xlu0 %1708
  %1710 = vrot.lane.b32.xlu0 %v539, 32
  %v1711 = vpop.permute.xlu0 %1710
  %1712 = vrot.lane.b32.xlu0 %v540, 32
  %v1713 = vpop.permute.xlu0 %1712
  %1714 = vrot.lane.b32.xlu0 %v541, 32
  %v1715 = vpop.permute.xlu0 %1714
  %1716 = vrot.lane.b32.xlu0 %v542, 32
  %v1717 = vpop.permute.xlu0 %1716
  %1718 = vrot.lane.b32.xlu0 %v543, 32
  %v1719 = vpop.permute.xlu0 %1718
  %1720 = vrot.lane.b32.xlu0 %v544, 32
  %v1721 = vpop.permute.xlu0 %1720
  %1722 = vrot.lane.b32.xlu0 %v545, 32
  %v1723 = vpop.permute.xlu0 %1722
  %1724 = vrot.lane.b32.xlu0 %v546, 32
  %v1725 = vpop.permute.xlu0 %1724
  %1726 = vrot.lane.b32.xlu0 %v547, 32
  %v1727 = vpop.permute.xlu0 %1726
  %1728 = vrot.lane.b32.xlu0 %v548, 32
  %v1729 = vpop.permute.xlu0 %1728
  %1730 = vrot.lane.b32.xlu0 %v549, 32
  %v1731 = vpop.permute.xlu0 %1730
  %1732 = vrot.lane.b32.xlu0 %v550, 32
  %v1733 = vpop.permute.xlu0 %1732
  %1734 = vrot.lane.b32.xlu0 %v551, 32
  %v1735 = vpop.permute.xlu0 %1734
  %1736 = vrot.lane.b32.xlu0 %v552, 32
  %v1737 = vpop.permute.xlu0 %1736
  %1738 = vrot.lane.b32.xlu0 %v553, 32
  %v1739 = vpop.permute.xlu0 %1738
  %1740 = vrot.lane.b32.xlu0 %v554, 32
  %v1741 = vpop.permute.xlu0 %1740
  %1742 = vrot.lane.b32.xlu0 %v555, 32
  %v1743 = vpop.permute.xlu0 %1742
  %1744 = vrot.lane.b32.xlu0 %v556, 32
  %v1745 = vpop.permute.xlu0 %1744
  %1746 = vrot.lane.b32.xlu0 %v557, 32
  %v1747 = vpop.permute.xlu0 %1746
  %1748 = vrot.lane.b32.xlu0 %v558, 32
  %v1749 = vpop.permute.xlu0 %1748
  %1750 = vrot.lane.b32.xlu0 %v559, 32
  %v1751 = vpop.permute.xlu0 %1750
  %1752 = vrot.lane.b32.xlu0 %v560, 32
  %v1753 = vpop.permute.xlu0 %1752
  %1754 = vrot.lane.b32.xlu0 %v561, 32
  %v1755 = vpop.permute.xlu0 %1754
  %1756 = vrot.lane.b32.xlu0 %v562, 32
  %v1757 = vpop.permute.xlu0 %1756
  %1758 = vrot.lane.b32.xlu0 %v563, 32
  %v1759 = vpop.permute.xlu0 %1758
  %1760 = vrot.lane.b32.xlu0 %v564, 32
  %v1761 = vpop.permute.xlu0 %1760
  %1762 = vrot.lane.b32.xlu0 %v565, 32
  %v1763 = vpop.permute.xlu0 %1762
  %1764 = vrot.lane.b32.xlu0 %v566, 32
  %v1765 = vpop.permute.xlu0 %1764
  %1766 = vrot.lane.b32.xlu0 %v567, 32
  %v1767 = vpop.permute.xlu0 %1766
  %1768 = vrot.lane.b32.xlu0 %v568, 32
  %v1769 = vpop.permute.xlu0 %1768
  %1770 = vrot.lane.b32.xlu0 %v569, 32
  %v1771 = vpop.permute.xlu0 %1770
  %1772 = vrot.lane.b32.xlu0 %v570, 32
  %v1773 = vpop.permute.xlu0 %1772
  %1774 = vrot.lane.b32.xlu0 %v571, 32
  %v1775 = vpop.permute.xlu0 %1774
  %1776 = vrot.lane.b32.xlu0 %v572, 32
  %v1777 = vpop.permute.xlu0 %1776
  %1778 = vrot.lane.b32.xlu0 %v573, 32
  %v1779 = vpop.permute.xlu0 %1778
  %1780 = vrot.lane.b32.xlu0 %v574, 32
  %v1781 = vpop.permute.xlu0 %1780
  %1782 = vrot.lane.b32.xlu0 %v575, 32
  %v1783 = vpop.permute.xlu0 %1782
  %1784 = vrot.lane.b32.xlu0 %v576, 32
  %v1785 = vpop.permute.xlu0 %1784
  %1786 = vrot.lane.b32.xlu0 %v577, 32
  %v1787 = vpop.permute.xlu0 %1786
  %1788 = vrot.lane.b32.xlu0 %v578, 32
  %v1789 = vpop.permute.xlu0 %1788
  %1790 = vrot.lane.b32.xlu0 %v579, 32
  %v1791 = vpop.permute.xlu0 %1790
  %1792 = vrot.lane.b32.xlu0 %v580, 32
  %v1793 = vpop.permute.xlu0 %1792
  %1794 = vrot.lane.b32.xlu0 %v581, 32
  %v1795 = vpop.permute.xlu0 %1794
  %1796 = vrot.lane.b32.xlu0 %v582, 32
  %v1797 = vpop.permute.xlu0 %1796
  %1798 = vrot.lane.b32.xlu0 %v583, 32
  %v1799 = vpop.permute.xlu0 %1798
  %1800 = vrot.lane.b32.xlu0 %v584, 32
  %v1801 = vpop.permute.xlu0 %1800
  %1930 = vrot.lane.b32.xlu0 %v585, 40
  %v1931 = vpop.permute.xlu0 %1930
  %1932 = vrot.lane.b32.xlu0 %v586, 40
  %v1933 = vpop.permute.xlu0 %1932
  %1934 = vrot.lane.b32.xlu0 %v587, 40
  %v1935 = vpop.permute.xlu0 %1934
  %1936 = vrot.lane.b32.xlu0 %v588, 40
  %v1937 = vpop.permute.xlu0 %1936
  %1938 = vrot.lane.b32.xlu0 %v589, 40
  %v1939 = vpop.permute.xlu0 %1938
  %1940 = vrot.lane.b32.xlu0 %v590, 40
  %v1941 = vpop.permute.xlu0 %1940
  %1942 = vrot.lane.b32.xlu0 %v591, 40
  %v1943 = vpop.permute.xlu0 %1942
  %1944 = vrot.lane.b32.xlu0 %v592, 40
  %v1945 = vpop.permute.xlu0 %1944
  %1946 = vrot.lane.b32.xlu0 %v593, 40
  %v1947 = vpop.permute.xlu0 %1946
  %1948 = vrot.lane.b32.xlu0 %v594, 40
  %v1949 = vpop.permute.xlu0 %1948
  %1950 = vrot.lane.b32.xlu0 %v595, 40
  %v1951 = vpop.permute.xlu0 %1950
  %1952 = vrot.lane.b32.xlu0 %v596, 40
  %v1953 = vpop.permute.xlu0 %1952
  %1954 = vrot.lane.b32.xlu0 %v597, 40
  %v1955 = vpop.permute.xlu0 %1954
  %1956 = vrot.lane.b32.xlu0 %v598, 40
  %v1957 = vpop.permute.xlu0 %1956
  %1958 = vrot.lane.b32.xlu0 %v599, 40
  %v1959 = vpop.permute.xlu0 %1958
  %1960 = vrot.lane.b32.xlu0 %v600, 40
  %v1961 = vpop.permute.xlu0 %1960
  %1962 = vrot.lane.b32.xlu0 %v601, 40
  %v1963 = vpop.permute.xlu0 %1962
  %1964 = vrot.lane.b32.xlu0 %v602, 40
  %v1965 = vpop.permute.xlu0 %1964
  %1966 = vrot.lane.b32.xlu0 %v603, 40
  %v1967 = vpop.permute.xlu0 %1966
  %1968 = vrot.lane.b32.xlu0 %v604, 40
  %v1969 = vpop.permute.xlu0 %1968
  %1970 = vrot.lane.b32.xlu0 %v605, 40
  %v1971 = vpop.permute.xlu0 %1970
  %1972 = vrot.lane.b32.xlu0 %v606, 40
  %v1973 = vpop.permute.xlu0 %1972
  %1974 = vrot.lane.b32.xlu0 %v607, 40
  %v1975 = vpop.permute.xlu0 %1974
  %1976 = vrot.lane.b32.xlu0 %v608, 40
  %v1977 = vpop.permute.xlu0 %1976
  %1978 = vrot.lane.b32.xlu0 %v609, 40
  %v1979 = vpop.permute.xlu0 %1978
  %1980 = vrot.lane.b32.xlu0 %v610, 40
  %v1981 = vpop.permute.xlu0 %1980
  %1982 = vrot.lane.b32.xlu0 %v611, 40
  %v1983 = vpop.permute.xlu0 %1982
  %1984 = vrot.lane.b32.xlu0 %v612, 40
  %v1985 = vpop.permute.xlu0 %1984
  %1986 = vrot.lane.b32.xlu0 %v613, 40
  %v1987 = vpop.permute.xlu0 %1986
  %1988 = vrot.lane.b32.xlu0 %v614, 40
  %v1989 = vpop.permute.xlu0 %1988
  %1990 = vrot.lane.b32.xlu0 %v615, 40
  %v1991 = vpop.permute.xlu0 %1990
  %1992 = vrot.lane.b32.xlu0 %v616, 40
  %v1993 = vpop.permute.xlu0 %1992
  %1994 = vrot.lane.b32.xlu0 %v617, 40
  %v1995 = vpop.permute.xlu0 %1994
  %1996 = vrot.lane.b32.xlu0 %v618, 40
  %v1997 = vpop.permute.xlu0 %1996
  %1998 = vrot.lane.b32.xlu0 %v619, 40
  %v1999 = vpop.permute.xlu0 %1998
  %2000 = vrot.lane.b32.xlu0 %v620, 40
  %v2001 = vpop.permute.xlu0 %2000
  %2002 = vrot.lane.b32.xlu0 %v621, 40
  %v2003 = vpop.permute.xlu0 %2002
  %2004 = vrot.lane.b32.xlu0 %v622, 40
  %v2005 = vpop.permute.xlu0 %2004
  %2006 = vrot.lane.b32.xlu0 %v623, 40
  %v2007 = vpop.permute.xlu0 %2006
  %2008 = vrot.lane.b32.xlu0 %v624, 40
  %v2009 = vpop.permute.xlu0 %2008
  %2010 = vrot.lane.b32.xlu0 %v625, 40
  %v2011 = vpop.permute.xlu0 %2010
  %2012 = vrot.lane.b32.xlu0 %v626, 40
  %v2013 = vpop.permute.xlu0 %2012
  %2014 = vrot.lane.b32.xlu0 %v627, 40
  %v2015 = vpop.permute.xlu0 %2014
  %2016 = vrot.lane.b32.xlu0 %v628, 40
  %v2017 = vpop.permute.xlu0 %2016
  %2018 = vrot.lane.b32.xlu0 %v629, 40
  %v2019 = vpop.permute.xlu0 %2018
  %2020 = vrot.lane.b32.xlu0 %v630, 40
  %v2021 = vpop.permute.xlu0 %2020
  %2022 = vrot.lane.b32.xlu0 %v631, 40
  %v2023 = vpop.permute.xlu0 %2022
  %2024 = vrot.lane.b32.xlu0 %v632, 40
  %v2025 = vpop.permute.xlu0 %2024
  %2026 = vrot.lane.b32.xlu0 %v633, 40
  %v2027 = vpop.permute.xlu0 %2026
  %2028 = vrot.lane.b32.xlu0 %v634, 40
  %v2029 = vpop.permute.xlu0 %2028
  %2030 = vrot.lane.b32.xlu0 %v635, 40
  %v2031 = vpop.permute.xlu0 %2030
  %2032 = vrot.lane.b32.xlu0 %v636, 40
  %v2033 = vpop.permute.xlu0 %2032
  %2034 = vrot.lane.b32.xlu0 %v637, 40
  %v2035 = vpop.permute.xlu0 %2034
  %2036 = vrot.lane.b32.xlu0 %v638, 40
  %v2037 = vpop.permute.xlu0 %2036
  %2038 = vrot.lane.b32.xlu0 %v639, 40
  %v2039 = vpop.permute.xlu0 %2038
  %2040 = vrot.lane.b32.xlu0 %v640, 40
  %v2041 = vpop.permute.xlu0 %2040
  %2042 = vrot.lane.b32.xlu0 %v641, 40
  %v2043 = vpop.permute.xlu0 %2042
  %2044 = vrot.lane.b32.xlu0 %v642, 40
  %v2045 = vpop.permute.xlu0 %2044
  %2046 = vrot.lane.b32.xlu0 %v643, 40
  %v2047 = vpop.permute.xlu0 %2046
  %2048 = vrot.lane.b32.xlu0 %v644, 40
  %v2049 = vpop.permute.xlu0 %2048
  %2050 = vrot.lane.b32.xlu0 %v645, 40
  %v2051 = vpop.permute.xlu0 %2050
  %2052 = vrot.lane.b32.xlu0 %v646, 40
  %v2053 = vpop.permute.xlu0 %2052
  %2054 = vrot.lane.b32.xlu0 %v647, 40
  %v2055 = vpop.permute.xlu0 %2054
  %2056 = vrot.lane.b32.xlu0 %v648, 40
  %v2057 = vpop.permute.xlu0 %2056
  %2186 = vrot.lane.b32.xlu0 %v650, 48
  %v2187 = vpop.permute.xlu0 %2186
  %2188 = vrot.lane.b32.xlu0 %v651, 48
  %v2189 = vpop.permute.xlu0 %2188
  %2190 = vrot.lane.b32.xlu0 %v652, 48
  %v2191 = vpop.permute.xlu0 %2190
  %2192 = vrot.lane.b32.xlu0 %v653, 48
  %v2193 = vpop.permute.xlu0 %2192
  %2194 = vrot.lane.b32.xlu0 %v654, 48
  %v2195 = vpop.permute.xlu0 %2194
  %2196 = vrot.lane.b32.xlu0 %v655, 48
  %v2197 = vpop.permute.xlu0 %2196
  %2198 = vrot.lane.b32.xlu0 %v656, 48
  %v2199 = vpop.permute.xlu0 %2198
  %2200 = vrot.lane.b32.xlu0 %v657, 48
  %v2201 = vpop.permute.xlu0 %2200
  %2202 = vrot.lane.b32.xlu0 %v658, 48
  %v2203 = vpop.permute.xlu0 %2202
  %2204 = vrot.lane.b32.xlu0 %v659, 48
  %v2205 = vpop.permute.xlu0 %2204
  %2206 = vrot.lane.b32.xlu0 %v660, 48
  %v2207 = vpop.permute.xlu0 %2206
  %2208 = vrot.lane.b32.xlu0 %v661, 48
  %v2209 = vpop.permute.xlu0 %2208
  %2210 = vrot.lane.b32.xlu0 %v662, 48
  %v2211 = vpop.permute.xlu0 %2210
  %2212 = vrot.lane.b32.xlu0 %v663, 48
  %v2213 = vpop.permute.xlu0 %2212
  %2214 = vrot.lane.b32.xlu0 %v664, 48
  %v2215 = vpop.permute.xlu0 %2214
  %2216 = vrot.lane.b32.xlu0 %v665, 48
  %v2217 = vpop.permute.xlu0 %2216
  %2218 = vrot.lane.b32.xlu0 %v666, 48
  %v2219 = vpop.permute.xlu0 %2218
  %2220 = vrot.lane.b32.xlu0 %v667, 48
  %v2221 = vpop.permute.xlu0 %2220
  %2222 = vrot.lane.b32.xlu0 %v668, 48
  %v2223 = vpop.permute.xlu0 %2222
  %2224 = vrot.lane.b32.xlu0 %v669, 48
  %v2225 = vpop.permute.xlu0 %2224
  %2226 = vrot.lane.b32.xlu0 %v670, 48
  %v2227 = vpop.permute.xlu0 %2226
  %2228 = vrot.lane.b32.xlu0 %v671, 48
  %v2229 = vpop.permute.xlu0 %2228
  %2230 = vrot.lane.b32.xlu0 %v672, 48
  %v2231 = vpop.permute.xlu0 %2230
  %2232 = vrot.lane.b32.xlu0 %v673, 48
  %v2233 = vpop.permute.xlu0 %2232
  %2234 = vrot.lane.b32.xlu0 %v674, 48
  %v2235 = vpop.permute.xlu0 %2234
  %2236 = vrot.lane.b32.xlu0 %v675, 48
  %v2237 = vpop.permute.xlu0 %2236
  %2238 = vrot.lane.b32.xlu0 %v676, 48
  %v2239 = vpop.permute.xlu0 %2238
  %2240 = vrot.lane.b32.xlu0 %v677, 48
  %v2241 = vpop.permute.xlu0 %2240
  %2242 = vrot.lane.b32.xlu0 %v678, 48
  %v2243 = vpop.permute.xlu0 %2242
  %2244 = vrot.lane.b32.xlu0 %v679, 48
  %v2245 = vpop.permute.xlu0 %2244
  %2246 = vrot.lane.b32.xlu0 %v680, 48
  %v2247 = vpop.permute.xlu0 %2246
  %2248 = vrot.lane.b32.xlu0 %v681, 48
  %v2249 = vpop.permute.xlu0 %2248
  %2250 = vrot.lane.b32.xlu0 %v682, 48
  %v2251 = vpop.permute.xlu0 %2250
  %2252 = vrot.lane.b32.xlu0 %v683, 48
  %v2253 = vpop.permute.xlu0 %2252
  %2254 = vrot.lane.b32.xlu0 %v684, 48
  %v2255 = vpop.permute.xlu0 %2254
  %2256 = vrot.lane.b32.xlu0 %v685, 48
  %v2257 = vpop.permute.xlu0 %2256
  %2258 = vrot.lane.b32.xlu0 %v686, 48
  %v2259 = vpop.permute.xlu0 %2258
  %2260 = vrot.lane.b32.xlu0 %v687, 48
  %v2261 = vpop.permute.xlu0 %2260
  %2262 = vrot.lane.b32.xlu0 %v688, 48
  %v2263 = vpop.permute.xlu0 %2262
  %2264 = vrot.lane.b32.xlu0 %v689, 48
  %v2265 = vpop.permute.xlu0 %2264
  %2266 = vrot.lane.b32.xlu0 %v690, 48
  %v2267 = vpop.permute.xlu0 %2266
  %2268 = vrot.lane.b32.xlu0 %v691, 48
  %v2269 = vpop.permute.xlu0 %2268
  %2270 = vrot.lane.b32.xlu0 %v692, 48
  %v2271 = vpop.permute.xlu0 %2270
  %2272 = vrot.lane.b32.xlu0 %v693, 48
  %v2273 = vpop.permute.xlu0 %2272
  %2274 = vrot.lane.b32.xlu0 %v694, 48
  %v2275 = vpop.permute.xlu0 %2274
  %2276 = vrot.lane.b32.xlu0 %v695, 48
  %v2277 = vpop.permute.xlu0 %2276
  %2278 = vrot.lane.b32.xlu0 %v696, 48
  %v2279 = vpop.permute.xlu0 %2278
  %2280 = vrot.lane.b32.xlu0 %v697, 48
  %v2281 = vpop.permute.xlu0 %2280
  %2282 = vrot.lane.b32.xlu0 %v698, 48
  %v2283 = vpop.permute.xlu0 %2282
  %2284 = vrot.lane.b32.xlu0 %v699, 48
  %v2285 = vpop.permute.xlu0 %2284
  %2286 = vrot.lane.b32.xlu0 %v700, 48
  %v2287 = vpop.permute.xlu0 %2286
  %2288 = vrot.lane.b32.xlu0 %v701, 48
  %v2289 = vpop.permute.xlu0 %2288
  %2290 = vrot.lane.b32.xlu0 %v702, 48
  %v2291 = vpop.permute.xlu0 %2290
  %2292 = vrot.lane.b32.xlu0 %v703, 48
  %v2293 = vpop.permute.xlu0 %2292
  %2294 = vrot.lane.b32.xlu0 %v704, 48
  %v2295 = vpop.permute.xlu0 %2294
  %2296 = vrot.lane.b32.xlu0 %v705, 48
  %v2297 = vpop.permute.xlu0 %2296
  %2298 = vrot.lane.b32.xlu0 %v706, 48
  %v2299 = vpop.permute.xlu0 %2298
  %2300 = vrot.lane.b32.xlu0 %v707, 48
  %v2301 = vpop.permute.xlu0 %2300
  %2302 = vrot.lane.b32.xlu0 %v708, 48
  %v2303 = vpop.permute.xlu0 %2302
  %2304 = vrot.lane.b32.xlu0 %v709, 48
  %v2305 = vpop.permute.xlu0 %2304
  %2306 = vrot.lane.b32.xlu0 %v710, 48
  %v2307 = vpop.permute.xlu0 %2306
  %2308 = vrot.lane.b32.xlu0 %v711, 48
  %v2309 = vpop.permute.xlu0 %2308
  %2310 = vrot.lane.b32.xlu0 %v712, 48
  %v2311 = vpop.permute.xlu0 %2310
  %2312 = vrot.lane.b32.xlu0 %v713, 48
  %v2313 = vpop.permute.xlu0 %2312
  %2442 = vrot.lane.b32.xlu0 %v714, 56
  %v2443 = vpop.permute.xlu0 %2442
  %2444 = vrot.lane.b32.xlu0 %v715, 56
  %v2445 = vpop.permute.xlu0 %2444
  %2446 = vrot.lane.b32.xlu0 %v716, 56
  %v2447 = vpop.permute.xlu0 %2446
  %2448 = vrot.lane.b32.xlu0 %v717, 56
  %v2449 = vpop.permute.xlu0 %2448
  %2450 = vrot.lane.b32.xlu0 %v718, 56
  %v2451 = vpop.permute.xlu0 %2450
  %2452 = vrot.lane.b32.xlu0 %v719, 56
  %v2453 = vpop.permute.xlu0 %2452
  %2454 = vrot.lane.b32.xlu0 %v720, 56
  %v2455 = vpop.permute.xlu0 %2454
  %2456 = vrot.lane.b32.xlu0 %v721, 56
  %v2457 = vpop.permute.xlu0 %2456
  %2458 = vrot.lane.b32.xlu0 %v722, 56
  %v2459 = vpop.permute.xlu0 %2458
  %2460 = vrot.lane.b32.xlu0 %v723, 56
  %v2461 = vpop.permute.xlu0 %2460
  %2462 = vrot.lane.b32.xlu0 %v724, 56
  %v2463 = vpop.permute.xlu0 %2462
  %2464 = vrot.lane.b32.xlu0 %v725, 56
  %v2465 = vpop.permute.xlu0 %2464
  %2466 = vrot.lane.b32.xlu0 %v726, 56
  %v2467 = vpop.permute.xlu0 %2466
  %2468 = vrot.lane.b32.xlu0 %v727, 56
  %v2469 = vpop.permute.xlu0 %2468
  %2470 = vrot.lane.b32.xlu0 %v728, 56
  %v2471 = vpop.permute.xlu0 %2470
  %2472 = vrot.lane.b32.xlu0 %v729, 56
  %v2473 = vpop.permute.xlu0 %2472
  %2474 = vrot.lane.b32.xlu0 %v730, 56
  %v2475 = vpop.permute.xlu0 %2474
  %2476 = vrot.lane.b32.xlu0 %v731, 56
  %v2477 = vpop.permute.xlu0 %2476
  %2478 = vrot.lane.b32.xlu0 %v732, 56
  %v2479 = vpop.permute.xlu0 %2478
  %2480 = vrot.lane.b32.xlu0 %v733, 56
  %v2481 = vpop.permute.xlu0 %2480
  %2482 = vrot.lane.b32.xlu0 %v734, 56
  %v2483 = vpop.permute.xlu0 %2482
  %2484 = vrot.lane.b32.xlu0 %v735, 56
  %v2485 = vpop.permute.xlu0 %2484
  %2486 = vrot.lane.b32.xlu0 %v736, 56
  %v2487 = vpop.permute.xlu0 %2486
  %2488 = vrot.lane.b32.xlu0 %v737, 56
  %v2489 = vpop.permute.xlu0 %2488
  %2490 = vrot.lane.b32.xlu0 %v738, 56
  %v2491 = vpop.permute.xlu0 %2490
  %2492 = vrot.lane.b32.xlu0 %v739, 56
  %v2493 = vpop.permute.xlu0 %2492
  %2494 = vrot.lane.b32.xlu0 %v740, 56
  %v2495 = vpop.permute.xlu0 %2494
  %2496 = vrot.lane.b32.xlu0 %v741, 56
  %v2497 = vpop.permute.xlu0 %2496
  %2498 = vrot.lane.b32.xlu0 %v742, 56
  %v2499 = vpop.permute.xlu0 %2498
  %2500 = vrot.lane.b32.xlu0 %v743, 56
  %v2501 = vpop.permute.xlu0 %2500
  %2502 = vrot.lane.b32.xlu0 %v744, 56
  %v2503 = vpop.permute.xlu0 %2502
  %2504 = vrot.lane.b32.xlu0 %v745, 56
  %v2505 = vpop.permute.xlu0 %2504
  %2506 = vrot.lane.b32.xlu0 %v746, 56
  %v2507 = vpop.permute.xlu0 %2506
  %2508 = vrot.lane.b32.xlu0 %v747, 56
  %v2509 = vpop.permute.xlu0 %2508
  %2510 = vrot.lane.b32.xlu0 %v748, 56
  %v2511 = vpop.permute.xlu0 %2510
  %2512 = vrot.lane.b32.xlu0 %v749, 56
  %v2513 = vpop.permute.xlu0 %2512
  %2514 = vrot.lane.b32.xlu0 %v750, 56
  %v2515 = vpop.permute.xlu0 %2514
  %2516 = vrot.lane.b32.xlu0 %v751, 56
  %v2517 = vpop.permute.xlu0 %2516
  %2518 = vrot.lane.b32.xlu0 %v752, 56
  %v2519 = vpop.permute.xlu0 %2518
  %2520 = vrot.lane.b32.xlu0 %v753, 56
  %v2521 = vpop.permute.xlu0 %2520
  %2522 = vrot.lane.b32.xlu0 %v754, 56
  %v2523 = vpop.permute.xlu0 %2522
  %2524 = vrot.lane.b32.xlu0 %v755, 56
  %v2525 = vpop.permute.xlu0 %2524
  %2526 = vrot.lane.b32.xlu0 %v756, 56
  %v2527 = vpop.permute.xlu0 %2526
  %2528 = vrot.lane.b32.xlu0 %v757, 56
  %v2529 = vpop.permute.xlu0 %2528
  %2530 = vrot.lane.b32.xlu0 %v758, 56
  %v2531 = vpop.permute.xlu0 %2530
  %2532 = vrot.lane.b32.xlu0 %v759, 56
  %v2533 = vpop.permute.xlu0 %2532
  %2534 = vrot.lane.b32.xlu0 %v760, 56
  %v2535 = vpop.permute.xlu0 %2534
  %2536 = vrot.lane.b32.xlu0 %v761, 56
  %v2537 = vpop.permute.xlu0 %2536
  %2538 = vrot.lane.b32.xlu0 %v762, 56
  %v2539 = vpop.permute.xlu0 %2538
  %2540 = vrot.lane.b32.xlu0 %v763, 56
  %v2541 = vpop.permute.xlu0 %2540
  %2542 = vrot.lane.b32.xlu0 %v764, 56
  %v2543 = vpop.permute.xlu0 %2542
  %2544 = vrot.lane.b32.xlu0 %v765, 56
  %v2545 = vpop.permute.xlu0 %2544
  %2546 = vrot.lane.b32.xlu0 %v766, 56
  %v2547 = vpop.permute.xlu0 %2546
  %2548 = vrot.lane.b32.xlu0 %v767, 56
  %v2549 = vpop.permute.xlu0 %2548
  %2550 = vrot.lane.b32.xlu0 %v768, 56
  %v2551 = vpop.permute.xlu0 %2550
  %2552 = vrot.lane.b32.xlu0 %v769, 56
  %v2553 = vpop.permute.xlu0 %2552
  %2554 = vrot.lane.b32.xlu0 %v770, 56
  %v2555 = vpop.permute.xlu0 %2554
  %2556 = vrot.lane.b32.xlu0 %v771, 56
  %v2557 = vpop.permute.xlu0 %2556
  %2558 = vrot.lane.b32.xlu0 %v772, 56
  %v2559 = vpop.permute.xlu0 %2558
  %2560 = vrot.lane.b32.xlu0 %v773, 56
  %v2561 = vpop.permute.xlu0 %2560
  %2562 = vrot.lane.b32.xlu0 %v774, 56
  %v2563 = vpop.permute.xlu0 %2562
  %2564 = vrot.lane.b32.xlu0 %v775, 56
  %v2565 = vpop.permute.xlu0 %2564
  %2566 = vrot.lane.b32.xlu0 %v776, 56
  %v2567 = vpop.permute.xlu0 %2566
  %2568 = vrot.lane.b32.xlu0 %v777, 56
  %v2569 = vpop.permute.xlu0 %2568
  %2698 = vrot.lane.b32.xlu0 %v778, 64
  %v2699 = vpop.permute.xlu0 %2698
  %2700 = vrot.lane.b32.xlu0 %v779, 64
  %v2701 = vpop.permute.xlu0 %2700
  %2702 = vrot.lane.b32.xlu0 %v780, 64
  %v2703 = vpop.permute.xlu0 %2702
  %2704 = vrot.lane.b32.xlu0 %v781, 64
  %v2705 = vpop.permute.xlu0 %2704
  %2706 = vrot.lane.b32.xlu0 %v782, 64
  %v2707 = vpop.permute.xlu0 %2706
  %2708 = vrot.lane.b32.xlu0 %v783, 64
  %v2709 = vpop.permute.xlu0 %2708
  %2710 = vrot.lane.b32.xlu0 %v784, 64
  %v2711 = vpop.permute.xlu0 %2710
  %2712 = vrot.lane.b32.xlu0 %v785, 64
  %v2713 = vpop.permute.xlu0 %2712
  %2714 = vrot.lane.b32.xlu0 %v786, 64
  %v2715 = vpop.permute.xlu0 %2714
  %2716 = vrot.lane.b32.xlu0 %v787, 64
  %v2717 = vpop.permute.xlu0 %2716
  %2718 = vrot.lane.b32.xlu0 %v788, 64
  %v2719 = vpop.permute.xlu0 %2718
  %2720 = vrot.lane.b32.xlu0 %v789, 64
  %v2721 = vpop.permute.xlu0 %2720
  %2722 = vrot.lane.b32.xlu0 %v790, 64
  %v2723 = vpop.permute.xlu0 %2722
  %2724 = vrot.lane.b32.xlu0 %v791, 64
  %v2725 = vpop.permute.xlu0 %2724
  %2726 = vrot.lane.b32.xlu0 %v792, 64
  %v2727 = vpop.permute.xlu0 %2726
  %2728 = vrot.lane.b32.xlu0 %v793, 64
  %v2729 = vpop.permute.xlu0 %2728
  %2730 = vrot.lane.b32.xlu0 %v794, 64
  %v2731 = vpop.permute.xlu0 %2730
  %2732 = vrot.lane.b32.xlu0 %v795, 64
  %v2733 = vpop.permute.xlu0 %2732
  %2734 = vrot.lane.b32.xlu0 %v796, 64
  %v2735 = vpop.permute.xlu0 %2734
  %2736 = vrot.lane.b32.xlu0 %v797, 64
  %v2737 = vpop.permute.xlu0 %2736
  %2738 = vrot.lane.b32.xlu0 %v798, 64
  %v2739 = vpop.permute.xlu0 %2738
  %2740 = vrot.lane.b32.xlu0 %v799, 64
  %v2741 = vpop.permute.xlu0 %2740
  %2742 = vrot.lane.b32.xlu0 %v800, 64
  %v2743 = vpop.permute.xlu0 %2742
  %2744 = vrot.lane.b32.xlu0 %v801, 64
  %v2745 = vpop.permute.xlu0 %2744
  %2746 = vrot.lane.b32.xlu0 %v802, 64
  %v2747 = vpop.permute.xlu0 %2746
  %2748 = vrot.lane.b32.xlu0 %v803, 64
  %v2749 = vpop.permute.xlu0 %2748
  %2750 = vrot.lane.b32.xlu0 %v804, 64
  %v2751 = vpop.permute.xlu0 %2750
  %2752 = vrot.lane.b32.xlu0 %v805, 64
  %v2753 = vpop.permute.xlu0 %2752
  %2754 = vrot.lane.b32.xlu0 %v806, 64
  %v2755 = vpop.permute.xlu0 %2754
  %2756 = vrot.lane.b32.xlu0 %v807, 64
  %v2757 = vpop.permute.xlu0 %2756
  %2758 = vrot.lane.b32.xlu0 %v808, 64
  %v2759 = vpop.permute.xlu0 %2758
  %2760 = vrot.lane.b32.xlu0 %v809, 64
  %v2761 = vpop.permute.xlu0 %2760
  %2762 = vrot.lane.b32.xlu0 %v810, 64
  %v2763 = vpop.permute.xlu0 %2762
  %2764 = vrot.lane.b32.xlu0 %v811, 64
  %v2765 = vpop.permute.xlu0 %2764
  %2766 = vrot.lane.b32.xlu0 %v812, 64
  %v2767 = vpop.permute.xlu0 %2766
  %2768 = vrot.lane.b32.xlu0 %v813, 64
  %v2769 = vpop.permute.xlu0 %2768
  %2770 = vrot.lane.b32.xlu0 %v814, 64
  %v2771 = vpop.permute.xlu0 %2770
  %2772 = vrot.lane.b32.xlu0 %v815, 64
  %v2773 = vpop.permute.xlu0 %2772
  %2774 = vrot.lane.b32.xlu0 %v816, 64
  %v2775 = vpop.permute.xlu0 %2774
  %2776 = vrot.lane.b32.xlu0 %v817, 64
  %v2777 = vpop.permute.xlu0 %2776
  %2778 = vrot.lane.b32.xlu0 %v818, 64
  %v2779 = vpop.permute.xlu0 %2778
  %2780 = vrot.lane.b32.xlu0 %v819, 64
  %v2781 = vpop.permute.xlu0 %2780
  %2782 = vrot.lane.b32.xlu0 %v820, 64
  %v2783 = vpop.permute.xlu0 %2782
  %2784 = vrot.lane.b32.xlu0 %v821, 64
  %v2785 = vpop.permute.xlu0 %2784
  %2786 = vrot.lane.b32.xlu0 %v822, 64
  %v2787 = vpop.permute.xlu0 %2786
  %2788 = vrot.lane.b32.xlu0 %v823, 64
  %v2789 = vpop.permute.xlu0 %2788
  %2790 = vrot.lane.b32.xlu0 %v824, 64
  %v2791 = vpop.permute.xlu0 %2790
  %2792 = vrot.lane.b32.xlu0 %v825, 64
  %v2793 = vpop.permute.xlu0 %2792
  %2794 = vrot.lane.b32.xlu0 %v826, 64
  %v2795 = vpop.permute.xlu0 %2794
  %2796 = vrot.lane.b32.xlu0 %v827, 64
  %v2797 = vpop.permute.xlu0 %2796
  %2798 = vrot.lane.b32.xlu0 %v828, 64
  %v2799 = vpop.permute.xlu0 %2798
  %2800 = vrot.lane.b32.xlu0 %v829, 64
  %v2801 = vpop.permute.xlu0 %2800
  %2802 = vrot.lane.b32.xlu0 %v830, 64
  %v2803 = vpop.permute.xlu0 %2802
  %2804 = vrot.lane.b32.xlu0 %v831, 64
  %v2805 = vpop.permute.xlu0 %2804
  %2806 = vrot.lane.b32.xlu0 %v832, 64
  %v2807 = vpop.permute.xlu0 %2806
  %2808 = vrot.lane.b32.xlu0 %v833, 64
  %v2809 = vpop.permute.xlu0 %2808
  %2810 = vrot.lane.b32.xlu0 %v834, 64
  %v2811 = vpop.permute.xlu0 %2810
  %2812 = vrot.lane.b32.xlu0 %v835, 64
  %v2813 = vpop.permute.xlu0 %2812
  %2814 = vrot.lane.b32.xlu0 %v836, 64
  %v2815 = vpop.permute.xlu0 %2814
  %2816 = vrot.lane.b32.xlu0 %v837, 64
  %v2817 = vpop.permute.xlu0 %2816
  %2818 = vrot.lane.b32.xlu0 %v838, 64
  %v2819 = vpop.permute.xlu0 %2818
  %2820 = vrot.lane.b32.xlu0 %v839, 64
  %v2821 = vpop.permute.xlu0 %2820
  %2822 = vrot.lane.b32.xlu0 %v840, 64
  %v2823 = vpop.permute.xlu0 %2822
  %2824 = vrot.lane.b32.xlu0 %v841, 64
  %v2825 = vpop.permute.xlu0 %2824
  %v2890 = vsel %vm90, %v265, %v907
  %v2891 = vsel %vm90, %v266, %v909
  %v2892 = vsel %vm90, %v267, %v911
  %v2893 = vsel %vm90, %v268, %v913
  %v2894 = vsel %vm90, %v269, %v915
  %v2895 = vsel %vm90, %v270, %v917
  %v2896 = vsel %vm90, %v271, %v919
  %v2897 = vsel %vm90, %v272, %v921
  %v2898 = vsel %vm90, %v273, %v923
  %v2899 = vsel %vm90, %v274, %v925
  %v2900 = vsel %vm90, %v275, %v927
  %v2901 = vsel %vm90, %v276, %v929
  %v2902 = vsel %vm90, %v277, %v931
  %v2903 = vsel %vm90, %v278, %v933
  %v2904 = vsel %vm90, %v279, %v935
  %v2905 = vsel %vm90, %v280, %v937
  %v2906 = vsel %vm90, %v281, %v939
  %v2907 = vsel %vm90, %v282, %v941
  %v2908 = vsel %vm90, %v283, %v943
  %v2909 = vsel %vm90, %v284, %v945
  %v2910 = vsel %vm90, %v285, %v947
  %v2911 = vsel %vm90, %v286, %v949
  %v2912 = vsel %vm90, %v287, %v951
  %v2913 = vsel %vm90, %v288, %v953
  %v2914 = vsel %vm90, %v289, %v955
  %v2915 = vsel %vm90, %v290, %v957
  %v2916 = vsel %vm90, %v291, %v959
  %v2917 = vsel %vm90, %v292, %v961
  %v2918 = vsel %vm90, %v293, %v963
  %v2919 = vsel %vm90, %v294, %v965
  %v2920 = vsel %vm90, %v295, %v967
  %v2921 = vsel %vm90, %v296, %v969
  %v2922 = vsel %vm90, %v297, %v971
  %v2923 = vsel %vm90, %v298, %v973
  %v2924 = vsel %vm90, %v299, %v975
  %v2925 = vsel %vm90, %v300, %v977
  %v2926 = vsel %vm90, %v301, %v979
  %v2927 = vsel %vm90, %v302, %v981
  %v2928 = vsel %vm90, %v303, %v983
  %v2929 = vsel %vm90, %v304, %v985
  %v2930 = vsel %vm90, %v305, %v987
  %v2931 = vsel %vm90, %v306, %v989
  %v2932 = vsel %vm90, %v307, %v991
  %v2933 = vsel %vm90, %v308, %v993
  %v2934 = vsel %vm90, %v309, %v995
  %v2935 = vsel %vm90, %v310, %v997
  %v2936 = vsel %vm90, %v311, %v999
  %v2937 = vsel %vm90, %v312, %v1001
  %v2938 = vsel %vm90, %v313, %v1003
  %v2939 = vsel %vm90, %v314, %v1005
  %v2940 = vsel %vm90, %v315, %v1007
  %v2941 = vsel %vm90, %v316, %v1009
  %v2942 = vsel %vm90, %v317, %v1011
  %v2943 = vsel %vm90, %v318, %v1013
  %v2944 = vsel %vm90, %v319, %v1015
  %v2945 = vsel %vm90, %v320, %v1017
  %v2946 = vsel %vm90, %v321, %v1019
  %v2947 = vsel %vm90, %v322, %v1021
  %v2948 = vsel %vm90, %v323, %v1023
  %v2949 = vsel %vm90, %v324, %v1025
  %v2950 = vsel %vm90, %v325, %v1027
  %v2951 = vsel %vm90, %v326, %v1029
  %v2952 = vsel %vm90, %v327, %v1031
  %v2953 = vsel %vm90, %v328, %v1033
  %vm2954 = vcmask 130048
  %v2955 = vsel %vm2954, %v2890, %v1163
  %v2956 = vsel %vm2954, %v2891, %v1165
  %v2957 = vsel %vm2954, %v2892, %v1167
  %v2958 = vsel %vm2954, %v2893, %v1169
  %v2959 = vsel %vm2954, %v2894, %v1171
  %v2960 = vsel %vm2954, %v2895, %v1173
  %v2961 = vsel %vm2954, %v2896, %v1175
  %v2962 = vsel %vm2954, %v2897, %v1177
  %v2963 = vsel %vm2954, %v2898, %v1179
  %v2964 = vsel %vm2954, %v2899, %v1181
  %v2965 = vsel %vm2954, %v2900, %v1183
  %v2966 = vsel %vm2954, %v2901, %v1185
  %v2967 = vsel %vm2954, %v2902, %v1187
  %v2968 = vsel %vm2954, %v2903, %v1189
  %v2969 = vsel %vm2954, %v2904, %v1191
  %v2970 = vsel %vm2954, %v2905, %v1193
  %v2971 = vsel %vm2954, %v2906, %v1195
  %v2972 = vsel %vm2954, %v2907, %v1197
  %v2973 = vsel %vm2954, %v2908, %v1199
  %v2974 = vsel %vm2954, %v2909, %v1201
  %v2975 = vsel %vm2954, %v2910, %v1203
  %v2976 = vsel %vm2954, %v2911, %v1205
  %v2977 = vsel %vm2954, %v2912, %v1207
  %v2978 = vsel %vm2954, %v2913, %v1209
  %v2979 = vsel %vm2954, %v2914, %v1211
  %v2980 = vsel %vm2954, %v2915, %v1213
  %v2981 = vsel %vm2954, %v2916, %v1215
  %v2982 = vsel %vm2954, %v2917, %v1217
  %v2983 = vsel %vm2954, %v2918, %v1219
  %v2984 = vsel %vm2954, %v2919, %v1221
  %v2985 = vsel %vm2954, %v2920, %v1223
  %v2986 = vsel %vm2954, %v2921, %v1225
  %v2987 = vsel %vm2954, %v2922, %v1227
  %v2988 = vsel %vm2954, %v2923, %v1229
  %v2989 = vsel %vm2954, %v2924, %v1231
  %v2990 = vsel %vm2954, %v2925, %v1233
  %v2991 = vsel %vm2954, %v2926, %v1235
  %v2992 = vsel %vm2954, %v2927, %v1237
  %v2993 = vsel %vm2954, %v2928, %v1239
  %v2994 = vsel %vm2954, %v2929, %v1241
  %v2995 = vsel %vm2954, %v2930, %v1243
  %v2996 = vsel %vm2954, %v2931, %v1245
  %v2997 = vsel %vm2954, %v2932, %v1247
  %v2998 = vsel %vm2954, %v2933, %v1249
  %v2999 = vsel %vm2954, %v2934, %v1251
  %v3000 = vsel %vm2954, %v2935, %v1253
  %v3001 = vsel %vm2954, %v2936, %v1255
  %v3002 = vsel %vm2954, %v2937, %v1257
  %v3003 = vsel %vm2954, %v2938, %v1259
  %v3004 = vsel %vm2954, %v2939, %v1261
  %v3005 = vsel %vm2954, %v2940, %v1263
  %v3006 = vsel %vm2954, %v2941, %v1265
  %v3007 = vsel %vm2954, %v2942, %v1267
  %v3008 = vsel %vm2954, %v2943, %v1269
  %v3009 = vsel %vm2954, %v2944, %v1271
  %v3010 = vsel %vm2954, %v2945, %v1273
  %v3011 = vsel %vm2954, %v2946, %v1275
  %v3012 = vsel %vm2954, %v2947, %v1277
  %v3013 = vsel %vm2954, %v2948, %v1279
  %v3014 = vsel %vm2954, %v2949, %v1281
  %v3015 = vsel %vm2954, %v2950, %v1283
  %v3016 = vsel %vm2954, %v2951, %v1285
  %v3017 = vsel %vm2954, %v2952, %v1287
  %v3018 = vsel %vm2954, %v2953, %v1289
  %vm3019 = vcmask 195584
  %v3020 = vsel %vm3019, %v2955, %v1419
  %v3021 = vsel %vm3019, %v2956, %v1421
  %v3022 = vsel %vm3019, %v2957, %v1423
  %v3023 = vsel %vm3019, %v2958, %v1425
  %v3024 = vsel %vm3019, %v2959, %v1427
  %v3025 = vsel %vm3019, %v2960, %v1429
  %v3026 = vsel %vm3019, %v2961, %v1431
  %v3027 = vsel %vm3019, %v2962, %v1433
  %v3028 = vsel %vm3019, %v2963, %v1435
  %v3029 = vsel %vm3019, %v2964, %v1437
  %v3030 = vsel %vm3019, %v2965, %v1439
  %v3031 = vsel %vm3019, %v2966, %v1441
  %v3032 = vsel %vm3019, %v2967, %v1443
  %v3033 = vsel %vm3019, %v2968, %v1445
  %v3034 = vsel %vm3019, %v2969, %v1447
  %v3035 = vsel %vm3019, %v2970, %v1449
  %v3036 = vsel %vm3019, %v2971, %v1451
  %v3037 = vsel %vm3019, %v2972, %v1453
  %v3038 = vsel %vm3019, %v2973, %v1455
  %v3039 = vsel %vm3019, %v2974, %v1457
  %v3040 = vsel %vm3019, %v2975, %v1459
  %v3041 = vsel %vm3019, %v2976, %v1461
  %v3042 = vsel %vm3019, %v2977, %v1463
  %v3043 = vsel %vm3019, %v2978, %v1465
  %v3044 = vsel %vm3019, %v2979, %v1467
  %v3045 = vsel %vm3019, %v2980, %v1469
  %v3046 = vsel %vm3019, %v2981, %v1471
  %v3047 = vsel %vm3019, %v2982, %v1473
  %v3048 = vsel %vm3019, %v2983, %v1475
  %v3049 = vsel %vm3019, %v2984, %v1477
  %v3050 = vsel %vm3019, %v2985, %v1479
  %v3051 = vsel %vm3019, %v2986, %v1481
  %v3052 = vsel %vm3019, %v2987, %v1483
  %v3053 = vsel %vm3019, %v2988, %v1485
  %v3054 = vsel %vm3019, %v2989, %v1487
  %v3055 = vsel %vm3019, %v2990, %v1489
  %v3056 = vsel %vm3019, %v2991, %v1491
  %v3057 = vsel %vm3019, %v2992, %v1493
  %v3058 = vsel %vm3019, %v2993, %v1495
  %v3059 = vsel %vm3019, %v2994, %v1497
  %v3060 = vsel %vm3019, %v2995, %v1499
  %v3061 = vsel %vm3019, %v2996, %v1501
  %v3062 = vsel %vm3019, %v2997, %v1503
  %v3063 = vsel %vm3019, %v2998, %v1505
  %v3064 = vsel %vm3019, %v2999, %v1507
  %v3065 = vsel %vm3019, %v3000, %v1509
  %v3066 = vsel %vm3019, %v3001, %v1511
  %v3067 = vsel %vm3019, %v3002, %v1513
  %v3068 = vsel %vm3019, %v3003, %v1515
  %v3069 = vsel %vm3019, %v3004, %v1517
  %v3070 = vsel %vm3019, %v3005, %v1519
  %v3071 = vsel %vm3019, %v3006, %v1521
  %v3072 = vsel %vm3019, %v3007, %v1523
  %v3073 = vsel %vm3019, %v3008, %v1525
  %v3074 = vsel %vm3019, %v3009, %v1527
  %v3075 = vsel %vm3019, %v3010, %v1529
  %v3076 = vsel %vm3019, %v3011, %v1531
  %v3077 = vsel %vm3019, %v3012, %v1533
  %v3078 = vsel %vm3019, %v3013, %v1535
  %v3079 = vsel %vm3019, %v3014, %v1537
  %v3080 = vsel %vm3019, %v3015, %v1539
  %v3081 = vsel %vm3019, %v3016, %v1541
  %v3082 = vsel %vm3019, %v3017, %v1543
  %v3083 = vsel %vm3019, %v3018, %v1545
  %vm3084 = vcmask 261120
  %v3085 = vsel %vm3084, %v3020, %v1675
  %v3086 = vsel %vm3084, %v3021, %v1677
  %v3087 = vsel %vm3084, %v3022, %v1679
  %v3088 = vsel %vm3084, %v3023, %v1681
  %v3089 = vsel %vm3084, %v3024, %v1683
  %v3090 = vsel %vm3084, %v3025, %v1685
  %v3091 = vsel %vm3084, %v3026, %v1687
  %v3092 = vsel %vm3084, %v3027, %v1689
  %v3093 = vsel %vm3084, %v3028, %v1691
  %v3094 = vsel %vm3084, %v3029, %v1693
  %v3095 = vsel %vm3084, %v3030, %v1695
  %v3096 = vsel %vm3084, %v3031, %v1697
  %v3097 = vsel %vm3084, %v3032, %v1699
  %v3098 = vsel %vm3084, %v3033, %v1701
  %v3099 = vsel %vm3084, %v3034, %v1703
  %v3100 = vsel %vm3084, %v3035, %v1705
  %v3101 = vsel %vm3084, %v3036, %v1707
  %v3102 = vsel %vm3084, %v3037, %v1709
  %v3103 = vsel %vm3084, %v3038, %v1711
  %v3104 = vsel %vm3084, %v3039, %v1713
  %v3105 = vsel %vm3084, %v3040, %v1715
  %v3106 = vsel %vm3084, %v3041, %v1717
  %v3107 = vsel %vm3084, %v3042, %v1719
  %v3108 = vsel %vm3084, %v3043, %v1721
  %v3109 = vsel %vm3084, %v3044, %v1723
  %v3110 = vsel %vm3084, %v3045, %v1725
  %v3111 = vsel %vm3084, %v3046, %v1727
  %v3112 = vsel %vm3084, %v3047, %v1729
  %v3113 = vsel %vm3084, %v3048, %v1731
  %v3114 = vsel %vm3084, %v3049, %v1733
  %v3115 = vsel %vm3084, %v3050, %v1735
  %v3116 = vsel %vm3084, %v3051, %v1737
  %v3117 = vsel %vm3084, %v3052, %v1739
  %v3118 = vsel %vm3084, %v3053, %v1741
  %v3119 = vsel %vm3084, %v3054, %v1743
  %v3120 = vsel %vm3084, %v3055, %v1745
  %v3121 = vsel %vm3084, %v3056, %v1747
  %v3122 = vsel %vm3084, %v3057, %v1749
  %v3123 = vsel %vm3084, %v3058, %v1751
  %v3124 = vsel %vm3084, %v3059, %v1753
  %v3125 = vsel %vm3084, %v3060, %v1755
  %v3126 = vsel %vm3084, %v3061, %v1757
  %v3127 = vsel %vm3084, %v3062, %v1759
  %v3128 = vsel %vm3084, %v3063, %v1761
  %v3129 = vsel %vm3084, %v3064, %v1763
  %v3130 = vsel %vm3084, %v3065, %v1765
  %v3131 = vsel %vm3084, %v3066, %v1767
  %v3132 = vsel %vm3084, %v3067, %v1769
  %v3133 = vsel %vm3084, %v3068, %v1771
  %v3134 = vsel %vm3084, %v3069, %v1773
  %v3135 = vsel %vm3084, %v3070, %v1775
  %v3136 = vsel %vm3084, %v3071, %v1777
  %v3137 = vsel %vm3084, %v3072, %v1779
  %v3138 = vsel %vm3084, %v3073, %v1781
  %v3139 = vsel %vm3084, %v3074, %v1783
  %v3140 = vsel %vm3084, %v3075, %v1785
  %v3141 = vsel %vm3084, %v3076, %v1787
  %v3142 = vsel %vm3084, %v3077, %v1789
  %v3143 = vsel %vm3084, %v3078, %v1791
  %v3144 = vsel %vm3084, %v3079, %v1793
  %v3145 = vsel %vm3084, %v3080, %v1795
  %v3146 = vsel %vm3084, %v3081, %v1797
  %v3147 = vsel %vm3084, %v3082, %v1799
  %v3148 = vsel %vm3084, %v3083, %v1801
  %vm3149 = vcmask 326656
  %v3150 = vsel %vm3149, %v3085, %v1931
  %v3151 = vsel %vm3149, %v3086, %v1933
  %v3152 = vsel %vm3149, %v3087, %v1935
  %v3153 = vsel %vm3149, %v3088, %v1937
  %v3154 = vsel %vm3149, %v3089, %v1939
  %v3155 = vsel %vm3149, %v3090, %v1941
  %v3156 = vsel %vm3149, %v3091, %v1943
  %v3157 = vsel %vm3149, %v3092, %v1945
  %v3158 = vsel %vm3149, %v3093, %v1947
  %v3159 = vsel %vm3149, %v3094, %v1949
  %v3160 = vsel %vm3149, %v3095, %v1951
  %v3161 = vsel %vm3149, %v3096, %v1953
  %v3162 = vsel %vm3149, %v3097, %v1955
  %v3163 = vsel %vm3149, %v3098, %v1957
  %v3164 = vsel %vm3149, %v3099, %v1959
  %v3165 = vsel %vm3149, %v3100, %v1961
  %v3166 = vsel %vm3149, %v3101, %v1963
  %v3167 = vsel %vm3149, %v3102, %v1965
  %v3168 = vsel %vm3149, %v3103, %v1967
  %v3169 = vsel %vm3149, %v3104, %v1969
  %v3170 = vsel %vm3149, %v3105, %v1971
  %v3171 = vsel %vm3149, %v3106, %v1973
  %v3172 = vsel %vm3149, %v3107, %v1975
  %v3173 = vsel %vm3149, %v3108, %v1977
  %v3174 = vsel %vm3149, %v3109, %v1979
  %v3175 = vsel %vm3149, %v3110, %v1981
  %v3176 = vsel %vm3149, %v3111, %v1983
  %v3177 = vsel %vm3149, %v3112, %v1985
  %v3178 = vsel %vm3149, %v3113, %v1987
  %v3179 = vsel %vm3149, %v3114, %v1989
  %v3180 = vsel %vm3149, %v3115, %v1991
  %v3181 = vsel %vm3149, %v3116, %v1993
  %v3182 = vsel %vm3149, %v3117, %v1995
  %v3183 = vsel %vm3149, %v3118, %v1997
  %v3184 = vsel %vm3149, %v3119, %v1999
  %v3185 = vsel %vm3149, %v3120, %v2001
  %v3186 = vsel %vm3149, %v3121, %v2003
  %v3187 = vsel %vm3149, %v3122, %v2005
  %v3188 = vsel %vm3149, %v3123, %v2007
  %v3189 = vsel %vm3149, %v3124, %v2009
  %v3190 = vsel %vm3149, %v3125, %v2011
  %v3191 = vsel %vm3149, %v3126, %v2013
  %v3192 = vsel %vm3149, %v3127, %v2015
  %v3193 = vsel %vm3149, %v3128, %v2017
  %v3194 = vsel %vm3149, %v3129, %v2019
  %v3195 = vsel %vm3149, %v3130, %v2021
  %v3196 = vsel %vm3149, %v3131, %v2023
  %v3197 = vsel %vm3149, %v3132, %v2025
  %v3198 = vsel %vm3149, %v3133, %v2027
  %v3199 = vsel %vm3149, %v3134, %v2029
  %v3200 = vsel %vm3149, %v3135, %v2031
  %v3201 = vsel %vm3149, %v3136, %v2033
  %v3202 = vsel %vm3149, %v3137, %v2035
  %v3203 = vsel %vm3149, %v3138, %v2037
  %v3204 = vsel %vm3149, %v3139, %v2039
  %v3205 = vsel %vm3149, %v3140, %v2041
  %v3206 = vsel %vm3149, %v3141, %v2043
  %v3207 = vsel %vm3149, %v3142, %v2045
  %v3208 = vsel %vm3149, %v3143, %v2047
  %v3209 = vsel %vm3149, %v3144, %v2049
  %v3210 = vsel %vm3149, %v3145, %v2051
  %v3211 = vsel %vm3149, %v3146, %v2053
  %v3212 = vsel %vm3149, %v3147, %v2055
  %v3213 = vsel %vm3149, %v3148, %v2057
  %vm3214 = vcmask 392192
  %v3215 = vsel %vm3214, %v3150, %v2187
  %v3216 = vsel %vm3214, %v3151, %v2189
  %v3217 = vsel %vm3214, %v3152, %v2191
  %v3218 = vsel %vm3214, %v3153, %v2193
  %v3219 = vsel %vm3214, %v3154, %v2195
  %v3220 = vsel %vm3214, %v3155, %v2197
  %v3221 = vsel %vm3214, %v3156, %v2199
  %v3222 = vsel %vm3214, %v3157, %v2201
  %v3223 = vsel %vm3214, %v3158, %v2203
  %v3224 = vsel %vm3214, %v3159, %v2205
  %v3225 = vsel %vm3214, %v3160, %v2207
  %v3226 = vsel %vm3214, %v3161, %v2209
  %v3227 = vsel %vm3214, %v3162, %v2211
  %v3228 = vsel %vm3214, %v3163, %v2213
  %v3229 = vsel %vm3214, %v3164, %v2215
  %v3230 = vsel %vm3214, %v3165, %v2217
  %v3231 = vsel %vm3214, %v3166, %v2219
  %v3232 = vsel %vm3214, %v3167, %v2221
  %v3233 = vsel %vm3214, %v3168, %v2223
  %v3234 = vsel %vm3214, %v3169, %v2225
  %v3235 = vsel %vm3214, %v3170, %v2227
  %v3236 = vsel %vm3214, %v3171, %v2229
  %v3237 = vsel %vm3214, %v3172, %v2231
  %v3238 = vsel %vm3214, %v3173, %v2233
  %v3239 = vsel %vm3214, %v3174, %v2235
  %v3240 = vsel %vm3214, %v3175, %v2237
  %v3241 = vsel %vm3214, %v3176, %v2239
  %v3242 = vsel %vm3214, %v3177, %v2241
  %v3243 = vsel %vm3214, %v3178, %v2243
  %v3244 = vsel %vm3214, %v3179, %v2245
  %v3245 = vsel %vm3214, %v3180, %v2247
  %v3246 = vsel %vm3214, %v3181, %v2249
  %v3247 = vsel %vm3214, %v3182, %v2251
  %v3248 = vsel %vm3214, %v3183, %v2253
  %v3249 = vsel %vm3214, %v3184, %v2255
  %v3250 = vsel %vm3214, %v3185, %v2257
  %v3251 = vsel %vm3214, %v3186, %v2259
  %v3252 = vsel %vm3214, %v3187, %v2261
  %v3253 = vsel %vm3214, %v3188, %v2263
  %v3254 = vsel %vm3214, %v3189, %v2265
  %v3255 = vsel %vm3214, %v3190, %v2267
  %v3256 = vsel %vm3214, %v3191, %v2269
  %v3257 = vsel %vm3214, %v3192, %v2271
  %v3258 = vsel %vm3214, %v3193, %v2273
  %v3259 = vsel %vm3214, %v3194, %v2275
  %v3260 = vsel %vm3214, %v3195, %v2277
  %v3261 = vsel %vm3214, %v3196, %v2279
  %v3262 = vsel %vm3214, %v3197, %v2281
  %v3263 = vsel %vm3214, %v3198, %v2283
  %v3264 = vsel %vm3214, %v3199, %v2285
  %v3265 = vsel %vm3214, %v3200, %v2287
  %v3266 = vsel %vm3214, %v3201, %v2289
  %v3267 = vsel %vm3214, %v3202, %v2291
  %v3268 = vsel %vm3214, %v3203, %v2293
  %v3269 = vsel %vm3214, %v3204, %v2295
  %v3270 = vsel %vm3214, %v3205, %v2297
  %v3271 = vsel %vm3214, %v3206, %v2299
  %v3272 = vsel %vm3214, %v3207, %v2301
  %v3273 = vsel %vm3214, %v3208, %v2303
  %v3274 = vsel %vm3214, %v3209, %v2305
  %v3275 = vsel %vm3214, %v3210, %v2307
  %v3276 = vsel %vm3214, %v3211, %v2309
  %v3277 = vsel %vm3214, %v3212, %v2311
  %v3278 = vsel %vm3214, %v3213, %v2313
  %vm3279 = vcmask 457728
  %v3280 = vsel %vm3279, %v3215, %v2443
  %v3281 = vsel %vm3279, %v3216, %v2445
  %v3282 = vsel %vm3279, %v3217, %v2447
  %v3283 = vsel %vm3279, %v3218, %v2449
  %v3284 = vsel %vm3279, %v3219, %v2451
  %v3285 = vsel %vm3279, %v3220, %v2453
  %v3286 = vsel %vm3279, %v3221, %v2455
  %v3287 = vsel %vm3279, %v3222, %v2457
  %v3288 = vsel %vm3279, %v3223, %v2459
  %v3289 = vsel %vm3279, %v3224, %v2461
  %v3290 = vsel %vm3279, %v3225, %v2463
  %v3291 = vsel %vm3279, %v3226, %v2465
  %v3292 = vsel %vm3279, %v3227, %v2467
  %v3293 = vsel %vm3279, %v3228, %v2469
  %v3294 = vsel %vm3279, %v3229, %v2471
  %v3295 = vsel %vm3279, %v3230, %v2473
  %v3296 = vsel %vm3279, %v3231, %v2475
  %v3297 = vsel %vm3279, %v3232, %v2477
  %v3298 = vsel %vm3279, %v3233, %v2479
  %v3299 = vsel %vm3279, %v3234, %v2481
  %v3300 = vsel %vm3279, %v3235, %v2483
  %v3301 = vsel %vm3279, %v3236, %v2485
  %v3302 = vsel %vm3279, %v3237, %v2487
  %v3303 = vsel %vm3279, %v3238, %v2489
  %v3304 = vsel %vm3279, %v3239, %v2491
  %v3305 = vsel %vm3279, %v3240, %v2493
  %v3306 = vsel %vm3279, %v3241, %v2495
  %v3307 = vsel %vm3279, %v3242, %v2497
  %v3308 = vsel %vm3279, %v3243, %v2499
  %v3309 = vsel %vm3279, %v3244, %v2501
  %v3310 = vsel %vm3279, %v3245, %v2503
  %v3311 = vsel %vm3279, %v3246, %v2505
  %v3312 = vsel %vm3279, %v3247, %v2507
  %v3313 = vsel %vm3279, %v3248, %v2509
  %v3314 = vsel %vm3279, %v3249, %v2511
  %v3315 = vsel %vm3279, %v3250, %v2513
  %v3316 = vsel %vm3279, %v3251, %v2515
  %v3317 = vsel %vm3279, %v3252, %v2517
  %v3318 = vsel %vm3279, %v3253, %v2519
  %v3319 = vsel %vm3279, %v3254, %v2521
  %v3320 = vsel %vm3279, %v3255, %v2523
  %v3321 = vsel %vm3279, %v3256, %v2525
  %v3322 = vsel %vm3279, %v3257, %v2527
  %v3323 = vsel %vm3279, %v3258, %v2529
  %v3324 = vsel %vm3279, %v3259, %v2531
  %v3325 = vsel %vm3279, %v3260, %v2533
  %v3326 = vsel %vm3279, %v3261, %v2535
  %v3327 = vsel %vm3279, %v3262, %v2537
  %v3328 = vsel %vm3279, %v3263, %v2539
  %v3329 = vsel %vm3279, %v3264, %v2541
  %v3330 = vsel %vm3279, %v3265, %v2543
  %v3331 = vsel %vm3279, %v3266, %v2545
  %v3332 = vsel %vm3279, %v3267, %v2547
  %v3333 = vsel %vm3279, %v3268, %v2549
  %v3334 = vsel %vm3279, %v3269, %v2551
  %v3335 = vsel %vm3279, %v3270, %v2553
  %v3336 = vsel %vm3279, %v3271, %v2555
  %v3337 = vsel %vm3279, %v3272, %v2557
  %v3338 = vsel %vm3279, %v3273, %v2559
  %v3339 = vsel %vm3279, %v3274, %v2561
  %v3340 = vsel %vm3279, %v3275, %v2563
  %v3341 = vsel %vm3279, %v3276, %v2565
  %v3342 = vsel %vm3279, %v3277, %v2567
  %v3343 = vsel %vm3279, %v3278, %v2569
  %vm3344 = vcmask 523264
  %v3345 = vsel %vm3344, %v3280, %v2699
  %v3346 = vsel %vm3344, %v3281, %v2701
  %v3347 = vsel %vm3344, %v3282, %v2703
  %v3348 = vsel %vm3344, %v3283, %v2705
  %v3349 = vsel %vm3344, %v3284, %v2707
  %v3350 = vsel %vm3344, %v3285, %v2709
  %v3351 = vsel %vm3344, %v3286, %v2711
  %v3352 = vsel %vm3344, %v3287, %v2713
  %v3353 = vsel %vm3344, %v3288, %v2715
  %v3354 = vsel %vm3344, %v3289, %v2717
  %v3355 = vsel %vm3344, %v3290, %v2719
  %v3356 = vsel %vm3344, %v3291, %v2721
  %v3357 = vsel %vm3344, %v3292, %v2723
  %v3358 = vsel %vm3344, %v3293, %v2725
  %v3359 = vsel %vm3344, %v3294, %v2727
  %v3360 = vsel %vm3344, %v3295, %v2729
  %v3361 = vsel %vm3344, %v3296, %v2731
  %v3362 = vsel %vm3344, %v3297, %v2733
  %v3363 = vsel %vm3344, %v3298, %v2735
  %v3364 = vsel %vm3344, %v3299, %v2737
  %v3365 = vsel %vm3344, %v3300, %v2739
  %v3366 = vsel %vm3344, %v3301, %v2741
  %v3367 = vsel %vm3344, %v3302, %v2743
  %v3368 = vsel %vm3344, %v3303, %v2745
  %v3369 = vsel %vm3344, %v3304, %v2747
  %v3370 = vsel %vm3344, %v3305, %v2749
  %v3371 = vsel %vm3344, %v3306, %v2751
  %v3372 = vsel %vm3344, %v3307, %v2753
  %v3373 = vsel %vm3344, %v3308, %v2755
  %v3374 = vsel %vm3344, %v3309, %v2757
  %v3375 = vsel %vm3344, %v3310, %v2759
  %v3376 = vsel %vm3344, %v3311, %v2761
  %v3377 = vsel %vm3344, %v3312, %v2763
  %v3378 = vsel %vm3344, %v3313, %v2765
  %v3379 = vsel %vm3344, %v3314, %v2767
  %v3380 = vsel %vm3344, %v3315, %v2769
  %v3381 = vsel %vm3344, %v3316, %v2771
  %v3382 = vsel %vm3344, %v3317, %v2773
  %v3383 = vsel %vm3344, %v3318, %v2775
  %v3384 = vsel %vm3344, %v3319, %v2777
  %v3385 = vsel %vm3344, %v3320, %v2779
  %v3386 = vsel %vm3344, %v3321, %v2781
  %v3387 = vsel %vm3344, %v3322, %v2783
  %v3388 = vsel %vm3344, %v3323, %v2785
  %v3389 = vsel %vm3344, %v3324, %v2787
  %v3390 = vsel %vm3344, %v3325, %v2789
  %v3391 = vsel %vm3344, %v3326, %v2791
  %v3392 = vsel %vm3344, %v3327, %v2793
  %v3393 = vsel %vm3344, %v3328, %v2795
  %v3394 = vsel %vm3344, %v3329, %v2797
  %v3395 = vsel %vm3344, %v3330, %v2799
  %v3396 = vsel %vm3344, %v3331, %v2801
  %v3397 = vsel %vm3344, %v3332, %v2803
  %v3398 = vsel %vm3344, %v3333, %v2805
  %v3399 = vsel %vm3344, %v3334, %v2807
  %v3400 = vsel %vm3344, %v3335, %v2809
  %v3401 = vsel %vm3344, %v3336, %v2811
  %v3402 = vsel %vm3344, %v3337, %v2813
  %v3403 = vsel %vm3344, %v3338, %v2815
  %v3404 = vsel %vm3344, %v3339, %v2817
  %v3405 = vsel %vm3344, %v3340, %v2819
  %v3406 = vsel %vm3344, %v3341, %v2821
  %v3407 = vsel %vm3344, %v3342, %v2823
  %v3408 = vsel %vm3344, %v3343, %v2825
  %v3409 = vld [vmem:[%s1] sm:$0xff]
  %v3410 = vld [vmem:[%s1 + $0x8] sm:$0xff]
  %v3411 = vld [vmem:[%s1 + $0x10] sm:$0xff]
  %v3412 = vld [vmem:[%s1 + $0x18] sm:$0xff]
  %v3413 = vld [vmem:[%s1 + $0x20] sm:$0xff]
  %v3414 = vld [vmem:[%s1 + $0x28] sm:$0xff]
  %v3415 = vld [vmem:[%s1 + $0x30] sm:$0xff]
  %v3416 = vld [vmem:[%s1 + $0x38] sm:$0xff]
  %v3417 = vld [vmem:[%s1 + $0x40] sm:$0xff]
  %vm3418 = vcmask 588800
  %v3420 = vsel %vm3418, %v3345, 0
  %v3423 = vsel %vm3418, %v3346, 0
  %v3426 = vsel %vm3418, %v3347, 0
  %v3429 = vsel %vm3418, %v3348, 0
  %v3432 = vsel %vm3418, %v3349, 0
  %v3435 = vsel %vm3418, %v3350, 0
  %v3438 = vsel %vm3418, %v3351, 0
  %v3441 = vsel %vm3418, %v3352, 0
  %v3444 = vsel %vm3418, %v3353, 0
  %v3447 = vsel %vm3418, %v3354, 0
  %v3450 = vsel %vm3418, %v3355, 0
  %v3453 = vsel %vm3418, %v3356, 0
  %v3456 = vsel %vm3418, %v3357, 0
  %v3459 = vsel %vm3418, %v3358, 0
  %v3462 = vsel %vm3418, %v3359, 0
  %v3465 = vsel %vm3418, %v3360, 0
  %v3468 = vsel %vm3418, %v3361, 0
  %v3471 = vsel %vm3418, %v3362, 0
  %v3474 = vsel %vm3418, %v3363, 0
  %v3477 = vsel %vm3418, %v3364, 0
  %v3480 = vsel %vm3418, %v3365, 0
  %v3483 = vsel %vm3418, %v3366, 0
  %v3486 = vsel %vm3418, %v3367, 0
  %v3489 = vsel %vm3418, %v3368, 0
  %v3492 = vsel %vm3418, %v3369, 0
  %v3495 = vsel %vm3418, %v3370, 0
  %v3498 = vsel %vm3418, %v3371, 0
  %v3501 = vsel %vm3418, %v3372, 0
  %v3504 = vsel %vm3418, %v3373, 0
  %v3507 = vsel %vm3418, %v3374, 0
  %v3510 = vsel %vm3418, %v3375, 0
  %v3513 = vsel %vm3418, %v3376, 0
  %v3516 = vsel %vm3418, %v3377, 0
  %v3519 = vsel %vm3418, %v3378, 0
  %v3522 = vsel %vm3418, %v3379, 0
  %v3525 = vsel %vm3418, %v3380, 0
  %v3528 = vsel %vm3418, %v3381, 0
  %v3531 = vsel %vm3418, %v3382, 0
  %v3534 = vsel %vm3418, %v3383, 0
  %v3537 = vsel %vm3418, %v3384, 0
  %v3540 = vsel %vm3418, %v3385, 0
  %v3543 = vsel %vm3418, %v3386, 0
  %v3546 = vsel %vm3418, %v3387, 0
  %v3549 = vsel %vm3418, %v3388, 0
  %v3552 = vsel %vm3418, %v3389, 0
  %v3555 = vsel %vm3418, %v3390, 0
  %v3558 = vsel %vm3418, %v3391, 0
  %v3561 = vsel %vm3418, %v3392, 0
  %v3564 = vsel %vm3418, %v3393, 0
  %v3567 = vsel %vm3418, %v3394, 0
  %v3570 = vsel %vm3418, %v3395, 0
  %v3573 = vsel %vm3418, %v3396, 0
  %v3576 = vsel %vm3418, %v3397, 0
  %v3579 = vsel %vm3418, %v3398, 0
  %v3582 = vsel %vm3418, %v3399, 0
  %v3585 = vsel %vm3418, %v3400, 0
  %v3588 = vsel %vm3418, %v3401, 0
  %v3591 = vsel %vm3418, %v3402, 0
  %v3594 = vsel %vm3418, %v3403, 0
  %v3597 = vsel %vm3418, %v3404, 0
  %v3600 = vsel %vm3418, %v3405, 0
  %v3603 = vsel %vm3418, %v3406, 0
  %v3606 = vsel %vm3418, %v3407, 0
  %v3609 = vsel %vm3418, %v3408, 0
  %3611 = vmatpush.msra.mxu0 0.0
  %3612 = vmatpush.msra.mxu0 0.0
  %3613 = vmatpush.msra.mxu0 0.0
  %3614 = vmatpush.msra.mxu0 0.0
  %3615 = vmatpush.msra.mxu0 0.0
  %3616 = vmatpush.msra.mxu0 0.0
  %3617 = vmatpush.msra.mxu0 0.0
  %3618 = vmatpush.msra.mxu0 %v3417
  %3619 = vmatpush.msra.mxu0 %v3416
  %3620 = vmatpush.msra.mxu0 %v3415
  %3621 = vmatpush.msra.mxu0 %v3414
  %3622 = vmatpush.msra.mxu0 %v3413
  %3623 = vmatpush.msra.mxu0 %v3412
  %3624 = vmatpush.msra.mxu0 %v3411
  %3625 = vmatpush.msra.mxu0 %v3410
  %3626 = vmatpush.msra.mxu0 %v3409
  %3627 = vmatmul.f32.gmra.mxu0 %v3420
  %v3628 = vpop.f32.mrf.mxu0
  %v3629 = vadd.f32 0.0, %v3628
  %3630 = vmatmul.f32.gmra.mxu0 %v3423
  %v3631 = vpop.f32.mrf.mxu0
  %v3632 = vadd.f32 0.0, %v3631
  %3633 = vmatmul.f32.gmra.mxu0 %v3426
  %v3634 = vpop.f32.mrf.mxu0
  %v3635 = vadd.f32 0.0, %v3634
  %3636 = vmatmul.f32.gmra.mxu0 %v3429
  %v3637 = vpop.f32.mrf.mxu0
  %v3638 = vadd.f32 0.0, %v3637
  %3639 = vmatmul.f32.gmra.mxu0 %v3432
  %v3640 = vpop.f32.mrf.mxu0
  %v3641 = vadd.f32 0.0, %v3640
  %3642 = vmatmul.f32.gmra.mxu0 %v3435
  %v3643 = vpop.f32.mrf.mxu0
  %v3644 = vadd.f32 0.0, %v3643
  %3645 = vmatmul.f32.gmra.mxu0 %v3438
  %v3646 = vpop.f32.mrf.mxu0
  %v3647 = vadd.f32 0.0, %v3646
  %3648 = vmatmul.f32.gmra.mxu0 %v3441
  %v3649 = vpop.f32.mrf.mxu0
  %v3650 = vadd.f32 0.0, %v3649
  %3651 = vmatmul.f32.gmra.mxu0 %v3444
  %v3652 = vpop.f32.mrf.mxu0
  %v3653 = vadd.f32 0.0, %v3652
  %3654 = vmatmul.f32.gmra.mxu0 %v3447
  %v3655 = vpop.f32.mrf.mxu0
  %v3656 = vadd.f32 0.0, %v3655
  %3657 = vmatmul.f32.gmra.mxu0 %v3450
  %v3658 = vpop.f32.mrf.mxu0
  %v3659 = vadd.f32 0.0, %v3658
  %3660 = vmatmul.f32.gmra.mxu0 %v3453
  %v3661 = vpop.f32.mrf.mxu0
  %v3662 = vadd.f32 0.0, %v3661
  %3663 = vmatmul.f32.gmra.mxu0 %v3456
  %v3664 = vpop.f32.mrf.mxu0
  %v3665 = vadd.f32 0.0, %v3664
  %3666 = vmatmul.f32.gmra.mxu0 %v3459
  %v3667 = vpop.f32.mrf.mxu0
  %v3668 = vadd.f32 0.0, %v3667
  %3669 = vmatmul.f32.gmra.mxu0 %v3462
  %v3670 = vpop.f32.mrf.mxu0
  %v3671 = vadd.f32 0.0, %v3670
  %3672 = vmatmul.f32.gmra.mxu0 %v3465
  %v3673 = vpop.f32.mrf.mxu0
  %v3674 = vadd.f32 0.0, %v3673
  %3675 = vmatmul.f32.gmra.mxu0 %v3468
  %v3676 = vpop.f32.mrf.mxu0
  %v3677 = vadd.f32 0.0, %v3676
  %3678 = vmatmul.f32.gmra.mxu0 %v3471
  %v3679 = vpop.f32.mrf.mxu0
  %v3680 = vadd.f32 0.0, %v3679
  %3681 = vmatmul.f32.gmra.mxu0 %v3474
  %v3682 = vpop.f32.mrf.mxu0
  %v3683 = vadd.f32 0.0, %v3682
  %3684 = vmatmul.f32.gmra.mxu0 %v3477
  %v3685 = vpop.f32.mrf.mxu0
  %v3686 = vadd.f32 0.0, %v3685
  %3687 = vmatmul.f32.gmra.mxu0 %v3480
  %v3688 = vpop.f32.mrf.mxu0
  %v3689 = vadd.f32 0.0, %v3688
  %3690 = vmatmul.f32.gmra.mxu0 %v3483
  %v3691 = vpop.f32.mrf.mxu0
  %v3692 = vadd.f32 0.0, %v3691
  %3693 = vmatmul.f32.gmra.mxu0 %v3486
  %v3694 = vpop.f32.mrf.mxu0
  %v3695 = vadd.f32 0.0, %v3694
  %3696 = vmatmul.f32.gmra.mxu0 %v3489
  %v3697 = vpop.f32.mrf.mxu0
  %v3698 = vadd.f32 0.0, %v3697
  %3699 = vmatmul.f32.gmra.mxu0 %v3492
  %v3700 = vpop.f32.mrf.mxu0
  %v3701 = vadd.f32 0.0, %v3700
  %3702 = vmatmul.f32.gmra.mxu0 %v3495
  %v3703 = vpop.f32.mrf.mxu0
  %v3704 = vadd.f32 0.0, %v3703
  %3705 = vmatmul.f32.gmra.mxu0 %v3498
  %v3706 = vpop.f32.mrf.mxu0
  %v3707 = vadd.f32 0.0, %v3706
  %3708 = vmatmul.f32.gmra.mxu0 %v3501
  %v3709 = vpop.f32.mrf.mxu0
  %v3710 = vadd.f32 0.0, %v3709
  %3711 = vmatmul.f32.gmra.mxu0 %v3504
  %v3712 = vpop.f32.mrf.mxu0
  %v3713 = vadd.f32 0.0, %v3712
  %3714 = vmatmul.f32.gmra.mxu0 %v3507
  %v3715 = vpop.f32.mrf.mxu0
  %v3716 = vadd.f32 0.0, %v3715
  %3717 = vmatmul.f32.gmra.mxu0 %v3510
  %v3718 = vpop.f32.mrf.mxu0
  %v3719 = vadd.f32 0.0, %v3718
  %3720 = vmatmul.f32.gmra.mxu0 %v3513
  %v3721 = vpop.f32.mrf.mxu0
  %v3722 = vadd.f32 0.0, %v3721
  %3723 = vmatmul.f32.gmra.mxu0 %v3516
  %v3724 = vpop.f32.mrf.mxu0
  %v3725 = vadd.f32 0.0, %v3724
  %3726 = vmatmul.f32.gmra.mxu0 %v3519
  %v3727 = vpop.f32.mrf.mxu0
  %v3728 = vadd.f32 0.0, %v3727
  %3729 = vmatmul.f32.gmra.mxu0 %v3522
  %v3730 = vpop.f32.mrf.mxu0
  %v3731 = vadd.f32 0.0, %v3730
  %3732 = vmatmul.f32.gmra.mxu0 %v3525
  %v3733 = vpop.f32.mrf.mxu0
  %v3734 = vadd.f32 0.0, %v3733
  %3735 = vmatmul.f32.gmra.mxu0 %v3528
  %v3736 = vpop.f32.mrf.mxu0
  %v3737 = vadd.f32 0.0, %v3736
  %3738 = vmatmul.f32.gmra.mxu0 %v3531
  %v3739 = vpop.f32.mrf.mxu0
  %v3740 = vadd.f32 0.0, %v3739
  %3741 = vmatmul.f32.gmra.mxu0 %v3534
  %v3742 = vpop.f32.mrf.mxu0
  %v3743 = vadd.f32 0.0, %v3742
  %3744 = vmatmul.f32.gmra.mxu0 %v3537
  %v3745 = vpop.f32.mrf.mxu0
  %v3746 = vadd.f32 0.0, %v3745
  %3747 = vmatmul.f32.gmra.mxu0 %v3540
  %v3748 = vpop.f32.mrf.mxu0
  %v3749 = vadd.f32 0.0, %v3748
  %3750 = vmatmul.f32.gmra.mxu0 %v3543
  %v3751 = vpop.f32.mrf.mxu0
  %v3752 = vadd.f32 0.0, %v3751
  %3753 = vmatmul.f32.gmra.mxu0 %v3546
  %v3754 = vpop.f32.mrf.mxu0
  %v3755 = vadd.f32 0.0, %v3754
  %3756 = vmatmul.f32.gmra.mxu0 %v3549
  %v3757 = vpop.f32.mrf.mxu0
  %v3758 = vadd.f32 0.0, %v3757
  %3759 = vmatmul.f32.gmra.mxu0 %v3552
  %v3760 = vpop.f32.mrf.mxu0
  %v3761 = vadd.f32 0.0, %v3760
  %3762 = vmatmul.f32.gmra.mxu0 %v3555
  %v3763 = vpop.f32.mrf.mxu0
  %v3764 = vadd.f32 0.0, %v3763
  %3765 = vmatmul.f32.gmra.mxu0 %v3558
  %v3766 = vpop.f32.mrf.mxu0
  %v3767 = vadd.f32 0.0, %v3766
  %3768 = vmatmul.f32.gmra.mxu0 %v3561
  %v3769 = vpop.f32.mrf.mxu0
  %v3770 = vadd.f32 0.0, %v3769
  %3771 = vmatmul.f32.gmra.mxu0 %v3564
  %v3772 = vpop.f32.mrf.mxu0
  %v3773 = vadd.f32 0.0, %v3772
  %3774 = vmatmul.f32.gmra.mxu0 %v3567
  %v3775 = vpop.f32.mrf.mxu0
  %v3776 = vadd.f32 0.0, %v3775
  %3777 = vmatmul.f32.gmra.mxu0 %v3570
  %v3778 = vpop.f32.mrf.mxu0
  %v3779 = vadd.f32 0.0, %v3778
  %3780 = vmatmul.f32.gmra.mxu0 %v3573
  %v3781 = vpop.f32.mrf.mxu0
  %v3782 = vadd.f32 0.0, %v3781
  %3783 = vmatmul.f32.gmra.mxu0 %v3576
  %v3784 = vpop.f32.mrf.mxu0
  %v3785 = vadd.f32 0.0, %v3784
  %3786 = vmatmul.f32.gmra.mxu0 %v3579
  %v3787 = vpop.f32.mrf.mxu0
  %v3788 = vadd.f32 0.0, %v3787
  %3789 = vmatmul.f32.gmra.mxu0 %v3582
  %v3790 = vpop.f32.mrf.mxu0
  %v3791 = vadd.f32 0.0, %v3790
  %3792 = vmatmul.f32.gmra.mxu0 %v3585
  %v3793 = vpop.f32.mrf.mxu0
  %v3794 = vadd.f32 0.0, %v3793
  %3795 = vmatmul.f32.gmra.mxu0 %v3588
  %v3796 = vpop.f32.mrf.mxu0
  %v3797 = vadd.f32 0.0, %v3796
  %3798 = vmatmul.f32.gmra.mxu0 %v3591
  %v3799 = vpop.f32.mrf.mxu0
  %v3800 = vadd.f32 0.0, %v3799
  %3801 = vmatmul.f32.gmra.mxu0 %v3594
  %v3802 = vpop.f32.mrf.mxu0
  %v3803 = vadd.f32 0.0, %v3802
  %3804 = vmatmul.f32.gmra.mxu0 %v3597
  %v3805 = vpop.f32.mrf.mxu0
  %v3806 = vadd.f32 0.0, %v3805
  %3807 = vmatmul.f32.gmra.mxu0 %v3600
  %v3808 = vpop.f32.mrf.mxu0
  %v3809 = vadd.f32 0.0, %v3808
  %3810 = vmatmul.f32.gmra.mxu0 %v3603
  %v3811 = vpop.f32.mrf.mxu0
  %v3812 = vadd.f32 0.0, %v3811
  %3813 = vmatmul.f32.gmra.mxu0 %v3606
  %v3814 = vpop.f32.mrf.mxu0
  %v3815 = vadd.f32 0.0, %v3814
  %3816 = vmatmul.f32.gmra.mxu0 %v3609
  %v3817 = vpop.f32.mrf.mxu0
  %v3818 = vadd.f32 0.0, %v3817
  %3819 = vdwg.mxu0
  %v3820 = vsel %vm90, %v3629, 0.0
  %v3821 = vsel %vm90, %v3632, 0.0
  %v3822 = vadd.f32 %v3820, %v3821
  %v3823 = vsel %vm90, %v3635, 0.0
  %v3824 = vadd.f32 %v3822, %v3823
  %v3825 = vsel %vm90, %v3638, 0.0
  %v3826 = vadd.f32 %v3824, %v3825
  %v3827 = vsel %vm90, %v3641, 0.0
  %v3828 = vadd.f32 %v3826, %v3827
  %v3829 = vsel %vm90, %v3644, 0.0
  %v3830 = vadd.f32 %v3828, %v3829
  %v3831 = vsel %vm90, %v3647, 0.0
  %v3832 = vadd.f32 %v3830, %v3831
  %v3833 = vsel %vm90, %v3650, 0.0
  %v3834 = vadd.f32 %v3832, %v3833
  %v3835 = vsel %vm90, %v3653, 0.0
  %v3836 = vadd.f32 %v3834, %v3835
  %v3837 = vsel %vm90, %v3656, 0.0
  %v3838 = vadd.f32 %v3836, %v3837
  %v3839 = vsel %vm90, %v3659, 0.0
  %v3840 = vadd.f32 %v3838, %v3839
  %v3841 = vsel %vm90, %v3662, 0.0
  %v3842 = vadd.f32 %v3840, %v3841
  %v3843 = vsel %vm90, %v3665, 0.0
  %v3844 = vadd.f32 %v3842, %v3843
  %v3845 = vsel %vm90, %v3668, 0.0
  %v3846 = vadd.f32 %v3844, %v3845
  %v3847 = vsel %vm90, %v3671, 0.0
  %v3848 = vadd.f32 %v3846, %v3847
  %v3849 = vsel %vm90, %v3674, 0.0
  %v3850 = vadd.f32 %v3848, %v3849
  %v3851 = vsel %vm90, %v3677, 0.0
  %v3852 = vadd.f32 %v3850, %v3851
  %v3853 = vsel %vm90, %v3680, 0.0
  %v3854 = vadd.f32 %v3852, %v3853
  %v3855 = vsel %vm90, %v3683, 0.0
  %v3856 = vadd.f32 %v3854, %v3855
  %v3857 = vsel %vm90, %v3686, 0.0
  %v3858 = vadd.f32 %v3856, %v3857
  %v3859 = vsel %vm90, %v3689, 0.0
  %v3860 = vadd.f32 %v3858, %v3859
  %v3861 = vsel %vm90, %v3692, 0.0
  %v3862 = vadd.f32 %v3860, %v3861
  %v3863 = vsel %vm90, %v3695, 0.0
  %v3864 = vadd.f32 %v3862, %v3863
  %v3865 = vsel %vm90, %v3698, 0.0
  %v3866 = vadd.f32 %v3864, %v3865
  %v3867 = vsel %vm90, %v3701, 0.0
  %v3868 = vadd.f32 %v3866, %v3867
  %v3869 = vsel %vm90, %v3704, 0.0
  %v3870 = vadd.f32 %v3868, %v3869
  %v3871 = vsel %vm90, %v3707, 0.0
  %v3872 = vadd.f32 %v3870, %v3871
  %v3873 = vsel %vm90, %v3710, 0.0
  %v3874 = vadd.f32 %v3872, %v3873
  %v3875 = vsel %vm90, %v3713, 0.0
  %v3876 = vadd.f32 %v3874, %v3875
  %v3877 = vsel %vm90, %v3716, 0.0
  %v3878 = vadd.f32 %v3876, %v3877
  %v3879 = vsel %vm90, %v3719, 0.0
  %v3880 = vadd.f32 %v3878, %v3879
  %v3881 = vsel %vm90, %v3722, 0.0
  %v3882 = vadd.f32 %v3880, %v3881
  %v3883 = vsel %vm90, %v3725, 0.0
  %v3884 = vadd.f32 %v3882, %v3883
  %v3885 = vsel %vm90, %v3728, 0.0
  %v3886 = vadd.f32 %v3884, %v3885
  %v3887 = vsel %vm90, %v3731, 0.0
  %v3888 = vadd.f32 %v3886, %v3887
  %v3889 = vsel %vm90, %v3734, 0.0
  %v3890 = vadd.f32 %v3888, %v3889
  %v3891 = vsel %vm90, %v3737, 0.0
  %v3892 = vadd.f32 %v3890, %v3891
  %v3893 = vsel %vm90, %v3740, 0.0
  %v3894 = vadd.f32 %v3892, %v3893
  %v3895 = vsel %vm90, %v3743, 0.0
  %v3896 = vadd.f32 %v3894, %v3895
  %v3897 = vsel %vm90, %v3746, 0.0
  %v3898 = vadd.f32 %v3896, %v3897
  %v3899 = vsel %vm90, %v3749, 0.0
  %v3900 = vadd.f32 %v3898, %v3899
  %v3901 = vsel %vm90, %v3752, 0.0
  %v3902 = vadd.f32 %v3900, %v3901
  %v3903 = vsel %vm90, %v3755, 0.0
  %v3904 = vadd.f32 %v3902, %v3903
  %v3905 = vsel %vm90, %v3758, 0.0
  %v3906 = vadd.f32 %v3904, %v3905
  %v3907 = vsel %vm90, %v3761, 0.0
  %v3908 = vadd.f32 %v3906, %v3907
  %v3909 = vsel %vm90, %v3764, 0.0
  %v3910 = vadd.f32 %v3908, %v3909
  %v3911 = vsel %vm90, %v3767, 0.0
  %v3912 = vadd.f32 %v3910, %v3911
  %v3913 = vsel %vm90, %v3770, 0.0
  %v3914 = vadd.f32 %v3912, %v3913
  %v3915 = vsel %vm90, %v3773, 0.0
  %v3916 = vadd.f32 %v3914, %v3915
  %v3917 = vsel %vm90, %v3776, 0.0
  %v3918 = vadd.f32 %v3916, %v3917
  %v3919 = vsel %vm90, %v3779, 0.0
  %v3920 = vadd.f32 %v3918, %v3919
  %v3921 = vsel %vm90, %v3782, 0.0
  %v3922 = vadd.f32 %v3920, %v3921
  %v3923 = vsel %vm90, %v3785, 0.0
  %v3924 = vadd.f32 %v3922, %v3923
  %v3925 = vsel %vm90, %v3788, 0.0
  %v3926 = vadd.f32 %v3924, %v3925
  %v3927 = vsel %vm90, %v3791, 0.0
  %v3928 = vadd.f32 %v3926, %v3927
  %v3929 = vsel %vm90, %v3794, 0.0
  %v3930 = vadd.f32 %v3928, %v3929
  %v3931 = vsel %vm90, %v3797, 0.0
  %v3932 = vadd.f32 %v3930, %v3931
  %v3933 = vsel %vm90, %v3800, 0.0
  %v3934 = vadd.f32 %v3932, %v3933
  %v3935 = vsel %vm90, %v3803, 0.0
  %v3936 = vadd.f32 %v3934, %v3935
  %v3937 = vsel %vm90, %v3806, 0.0
  %v3938 = vadd.f32 %v3936, %v3937
  %v3939 = vsel %vm90, %v3809, 0.0
  %v3940 = vadd.f32 %v3938, %v3939
  %v3941 = vsel %vm90, %v3812, 0.0
  %v3942 = vadd.f32 %v3940, %v3941
  %v3943 = vsel %vm90, %v3815, 0.0
  %v3944 = vadd.f32 %v3942, %v3943
  %v3945 = vsel %vm90, %v3818, 0.0
  %v3946 = vadd.f32 %v3944, %v3945
  %v3947 = vrot.slane %v3946, 4
  %v3948 = vadd.f32 %v3946, %v3947
  %v3949 = vrot.slane %v3948, 2
  %v3950 = vadd.f32 %v3948, %v3949
  %v3951 = vrot.slane %v3950, 1
  %v3952 = vadd.f32 %v3950, %v3951
  %v3953 = vmul.f32 %v3629, %v3629
  %v3954 = vmul.f32 %v3632, %v3632
  %v3955 = vmul.f32 %v3635, %v3635
  %v3956 = vmul.f32 %v3638, %v3638
  %v3957 = vmul.f32 %v3641, %v3641
  %v3958 = vmul.f32 %v3644, %v3644
  %v3959 = vmul.f32 %v3647, %v3647
  %v3960 = vmul.f32 %v3650, %v3650
  %v3961 = vmul.f32 %v3653, %v3653
  %v3962 = vmul.f32 %v3656, %v3656
  %v3963 = vmul.f32 %v3659, %v3659
  %v3964 = vmul.f32 %v3662, %v3662
  %v3965 = vmul.f32 %v3665, %v3665
  %v3966 = vmul.f32 %v3668, %v3668
  %v3967 = vmul.f32 %v3671, %v3671
  %v3968 = vmul.f32 %v3674, %v3674
  %v3969 = vmul.f32 %v3677, %v3677
  %v3970 = vmul.f32 %v3680, %v3680
  %v3971 = vmul.f32 %v3683, %v3683
  %v3972 = vmul.f32 %v3686, %v3686
  %v3973 = vmul.f32 %v3689, %v3689
  %v3974 = vmul.f32 %v3692, %v3692
  %v3975 = vmul.f32 %v3695, %v3695
  %v3976 = vmul.f32 %v3698, %v3698
  %v3977 = vmul.f32 %v3701, %v3701
  %v3978 = vmul.f32 %v3704, %v3704
  %v3979 = vmul.f32 %v3707, %v3707
  %v3980 = vmul.f32 %v3710, %v3710
  %v3981 = vmul.f32 %v3713, %v3713
  %v3982 = vmul.f32 %v3716, %v3716
  %v3983 = vmul.f32 %v3719, %v3719
  %v3984 = vmul.f32 %v3722, %v3722
  %v3985 = vmul.f32 %v3725, %v3725
  %v3986 = vmul.f32 %v3728, %v3728
  %v3987 = vmul.f32 %v3731, %v3731
  %v3988 = vmul.f32 %v3734, %v3734
  %v3989 = vmul.f32 %v3737, %v3737
  %v3990 = vmul.f32 %v3740, %v3740
  %v3991 = vmul.f32 %v3743, %v3743
  %v3992 = vmul.f32 %v3746, %v3746
  %v3993 = vmul.f32 %v3749, %v3749
  %v3994 = vmul.f32 %v3752, %v3752
  %v3995 = vmul.f32 %v3755, %v3755
  %v3996 = vmul.f32 %v3758, %v3758
  %v3997 = vmul.f32 %v3761, %v3761
  %v3998 = vmul.f32 %v3764, %v3764
  %v3999 = vmul.f32 %v3767, %v3767
  %v4000 = vmul.f32 %v3770, %v3770
  %v4001 = vmul.f32 %v3773, %v3773
  %v4002 = vmul.f32 %v3776, %v3776
  %v4003 = vmul.f32 %v3779, %v3779
  %v4004 = vmul.f32 %v3782, %v3782
  %v4005 = vmul.f32 %v3785, %v3785
  %v4006 = vmul.f32 %v3788, %v3788
  %v4007 = vmul.f32 %v3791, %v3791
  %v4008 = vmul.f32 %v3794, %v3794
  %v4009 = vmul.f32 %v3797, %v3797
  %v4010 = vmul.f32 %v3800, %v3800
  %v4011 = vmul.f32 %v3803, %v3803
  %v4012 = vmul.f32 %v3806, %v3806
  %v4013 = vmul.f32 %v3809, %v3809
  %v4014 = vmul.f32 %v3812, %v3812
  %v4015 = vmul.f32 %v3815, %v3815
  %v4016 = vmul.f32 %v3818, %v3818
  %v4017 = vsel %vm90, %v3953, 0.0
  %v4018 = vsel %vm90, %v3954, 0.0
  %v4019 = vadd.f32 %v4017, %v4018
  %v4020 = vsel %vm90, %v3955, 0.0
  %v4021 = vadd.f32 %v4019, %v4020
  %v4022 = vsel %vm90, %v3956, 0.0
  %v4023 = vadd.f32 %v4021, %v4022
  %v4024 = vsel %vm90, %v3957, 0.0
  %v4025 = vadd.f32 %v4023, %v4024
  %v4026 = vsel %vm90, %v3958, 0.0
  %v4027 = vadd.f32 %v4025, %v4026
  %v4028 = vsel %vm90, %v3959, 0.0
  %v4029 = vadd.f32 %v4027, %v4028
  %v4030 = vsel %vm90, %v3960, 0.0
  %v4031 = vadd.f32 %v4029, %v4030
  %v4032 = vsel %vm90, %v3961, 0.0
  %v4033 = vadd.f32 %v4031, %v4032
  %v4034 = vsel %vm90, %v3962, 0.0
  %v4035 = vadd.f32 %v4033, %v4034
  %v4036 = vsel %vm90, %v3963, 0.0
  %v4037 = vadd.f32 %v4035, %v4036
  %v4038 = vsel %vm90, %v3964, 0.0
  %v4039 = vadd.f32 %v4037, %v4038
  %v4040 = vsel %vm90, %v3965, 0.0
  %v4041 = vadd.f32 %v4039, %v4040
  %v4042 = vsel %vm90, %v3966, 0.0
  %v4043 = vadd.f32 %v4041, %v4042
  %v4044 = vsel %vm90, %v3967, 0.0
  %v4045 = vadd.f32 %v4043, %v4044
  %v4046 = vsel %vm90, %v3968, 0.0
  %v4047 = vadd.f32 %v4045, %v4046
  %v4048 = vsel %vm90, %v3969, 0.0
  %v4049 = vadd.f32 %v4047, %v4048
  %v4050 = vsel %vm90, %v3970, 0.0
  %v4051 = vadd.f32 %v4049, %v4050
  %v4052 = vsel %vm90, %v3971, 0.0
  %v4053 = vadd.f32 %v4051, %v4052
  %v4054 = vsel %vm90, %v3972, 0.0
  %v4055 = vadd.f32 %v4053, %v4054
  %v4056 = vsel %vm90, %v3973, 0.0
  %v4057 = vadd.f32 %v4055, %v4056
  %v4058 = vsel %vm90, %v3974, 0.0
  %v4059 = vadd.f32 %v4057, %v4058
  %v4060 = vsel %vm90, %v3975, 0.0
  %v4061 = vadd.f32 %v4059, %v4060
  %v4062 = vsel %vm90, %v3976, 0.0
  %v4063 = vadd.f32 %v4061, %v4062
  %v4064 = vsel %vm90, %v3977, 0.0
  %v4065 = vadd.f32 %v4063, %v4064
  %v4066 = vsel %vm90, %v3978, 0.0
  %v4067 = vadd.f32 %v4065, %v4066
  %v4068 = vsel %vm90, %v3979, 0.0
  %v4069 = vadd.f32 %v4067, %v4068
  %v4070 = vsel %vm90, %v3980, 0.0
  %v4071 = vadd.f32 %v4069, %v4070
  %v4072 = vsel %vm90, %v3981, 0.0
  %v4073 = vadd.f32 %v4071, %v4072
  %v4074 = vsel %vm90, %v3982, 0.0
  %v4075 = vadd.f32 %v4073, %v4074
  %v4076 = vsel %vm90, %v3983, 0.0
  %v4077 = vadd.f32 %v4075, %v4076
  %v4078 = vsel %vm90, %v3984, 0.0
  %v4079 = vadd.f32 %v4077, %v4078
  %v4080 = vsel %vm90, %v3985, 0.0
  %v4081 = vadd.f32 %v4079, %v4080
  %v4082 = vsel %vm90, %v3986, 0.0
  %v4083 = vadd.f32 %v4081, %v4082
  %v4084 = vsel %vm90, %v3987, 0.0
  %v4085 = vadd.f32 %v4083, %v4084
  %v4086 = vsel %vm90, %v3988, 0.0
  %v4087 = vadd.f32 %v4085, %v4086
  %v4088 = vsel %vm90, %v3989, 0.0
  %v4089 = vadd.f32 %v4087, %v4088
  %v4090 = vsel %vm90, %v3990, 0.0
  %v4091 = vadd.f32 %v4089, %v4090
  %v4092 = vsel %vm90, %v3991, 0.0
  %v4093 = vadd.f32 %v4091, %v4092
  %v4094 = vsel %vm90, %v3992, 0.0
  %v4095 = vadd.f32 %v4093, %v4094
  %v4096 = vsel %vm90, %v3993, 0.0
  %v4097 = vadd.f32 %v4095, %v4096
  %v4098 = vsel %vm90, %v3994, 0.0
  %v4099 = vadd.f32 %v4097, %v4098
  %v4100 = vsel %vm90, %v3995, 0.0
  %v4101 = vadd.f32 %v4099, %v4100
  %v4102 = vsel %vm90, %v3996, 0.0
  %v4103 = vadd.f32 %v4101, %v4102
  %v4104 = vsel %vm90, %v3997, 0.0
  %v4105 = vadd.f32 %v4103, %v4104
  %v4106 = vsel %vm90, %v3998, 0.0
  %v4107 = vadd.f32 %v4105, %v4106
  %v4108 = vsel %vm90, %v3999, 0.0
  %v4109 = vadd.f32 %v4107, %v4108
  %v4110 = vsel %vm90, %v4000, 0.0
  %v4111 = vadd.f32 %v4109, %v4110
  %v4112 = vsel %vm90, %v4001, 0.0
  %v4113 = vadd.f32 %v4111, %v4112
  %v4114 = vsel %vm90, %v4002, 0.0
  %v4115 = vadd.f32 %v4113, %v4114
  %v4116 = vsel %vm90, %v4003, 0.0
  %v4117 = vadd.f32 %v4115, %v4116
  %v4118 = vsel %vm90, %v4004, 0.0
  %v4119 = vadd.f32 %v4117, %v4118
  %v4120 = vsel %vm90, %v4005, 0.0
  %v4121 = vadd.f32 %v4119, %v4120
  %v4122 = vsel %vm90, %v4006, 0.0
  %v4123 = vadd.f32 %v4121, %v4122
  %v4124 = vsel %vm90, %v4007, 0.0
  %v4125 = vadd.f32 %v4123, %v4124
  %v4126 = vsel %vm90, %v4008, 0.0
  %v4127 = vadd.f32 %v4125, %v4126
  %v4128 = vsel %vm90, %v4009, 0.0
  %v4129 = vadd.f32 %v4127, %v4128
  %v4130 = vsel %vm90, %v4010, 0.0
  %v4131 = vadd.f32 %v4129, %v4130
  %v4132 = vsel %vm90, %v4011, 0.0
  %v4133 = vadd.f32 %v4131, %v4132
  %v4134 = vsel %vm90, %v4012, 0.0
  %v4135 = vadd.f32 %v4133, %v4134
  %v4136 = vsel %vm90, %v4013, 0.0
  %v4137 = vadd.f32 %v4135, %v4136
  %v4138 = vsel %vm90, %v4014, 0.0
  %v4139 = vadd.f32 %v4137, %v4138
  %v4140 = vsel %vm90, %v4015, 0.0
  %v4141 = vadd.f32 %v4139, %v4140
  %v4142 = vsel %vm90, %v4016, 0.0
  %v4143 = vadd.f32 %v4141, %v4142
  %v4144 = vrot.slane %v4143, 4
  %v4145 = vadd.f32 %v4143, %v4144
  %v4146 = vrot.slane %v4145, 2
  %v4147 = vadd.f32 %v4145, %v4146
  %v4148 = vrot.slane %v4147, 1
  %v4149 = vadd.f32 %v4147, %v4148
  %v4150 = vmul.f32 %v3952, 0.001953125
  %v4151 = vmul.f32 %v4149, 0.001953125
  %v4152 = vmul.f32 %v4150, %v4150
  %v4153 = vsub.f32 %v4151, %v4152
  %v4154 = vsub.f32 %v3629, %v4150
  %v4155 = vsub.f32 %v3632, %v4150
  %v4156 = vsub.f32 %v3635, %v4150
  %v4157 = vsub.f32 %v3638, %v4150
  %v4158 = vsub.f32 %v3641, %v4150
  %v4159 = vsub.f32 %v3644, %v4150
  %v4160 = vsub.f32 %v3647, %v4150
  %v4161 = vsub.f32 %v3650, %v4150
  %v4162 = vsub.f32 %v3653, %v4150
  %v4163 = vsub.f32 %v3656, %v4150
  %v4164 = vsub.f32 %v3659, %v4150
  %v4165 = vsub.f32 %v3662, %v4150
  %v4166 = vsub.f32 %v3665, %v4150
  %v4167 = vsub.f32 %v3668, %v4150
  %v4168 = vsub.f32 %v3671, %v4150
  %v4169 = vsub.f32 %v3674, %v4150
  %v4170 = vsub.f32 %v3677, %v4150
  %v4171 = vsub.f32 %v3680, %v4150
  %v4172 = vsub.f32 %v3683, %v4150
  %v4173 = vsub.f32 %v3686, %v4150
  %v4174 = vsub.f32 %v3689, %v4150
  %v4175 = vsub.f32 %v3692, %v4150
  %v4176 = vsub.f32 %v3695, %v4150
  %v4177 = vsub.f32 %v3698, %v4150
  %v4178 = vsub.f32 %v3701, %v4150
  %v4179 = vsub.f32 %v3704, %v4150
  %v4180 = vsub.f32 %v3707, %v4150
  %v4181 = vsub.f32 %v3710, %v4150
  %v4182 = vsub.f32 %v3713, %v4150
  %v4183 = vsub.f32 %v3716, %v4150
  %v4184 = vsub.f32 %v3719, %v4150
  %v4185 = vsub.f32 %v3722, %v4150
  %v4186 = vsub.f32 %v3725, %v4150
  %v4187 = vsub.f32 %v3728, %v4150
  %v4188 = vsub.f32 %v3731, %v4150
  %v4189 = vsub.f32 %v3734, %v4150
  %v4190 = vsub.f32 %v3737, %v4150
  %v4191 = vsub.f32 %v3740, %v4150
  %v4192 = vsub.f32 %v3743, %v4150
  %v4193 = vsub.f32 %v3746, %v4150
  %v4194 = vsub.f32 %v3749, %v4150
  %v4195 = vsub.f32 %v3752, %v4150
  %v4196 = vsub.f32 %v3755, %v4150
  %v4197 = vsub.f32 %v3758, %v4150
  %v4198 = vsub.f32 %v3761, %v4150
  %v4199 = vsub.f32 %v3764, %v4150
  %v4200 = vsub.f32 %v3767, %v4150
  %v4201 = vsub.f32 %v3770, %v4150
  %v4202 = vsub.f32 %v3773, %v4150
  %v4203 = vsub.f32 %v3776, %v4150
  %v4204 = vsub.f32 %v3779, %v4150
  %v4205 = vsub.f32 %v3782, %v4150
  %v4206 = vsub.f32 %v3785, %v4150
  %v4207 = vsub.f32 %v3788, %v4150
  %v4208 = vsub.f32 %v3791, %v4150
  %v4209 = vsub.f32 %v3794, %v4150
  %v4210 = vsub.f32 %v3797, %v4150
  %v4211 = vsub.f32 %v3800, %v4150
  %v4212 = vsub.f32 %v3803, %v4150
  %v4213 = vsub.f32 %v3806, %v4150
  %v4214 = vsub.f32 %v3809, %v4150
  %v4215 = vsub.f32 %v3812, %v4150
  %v4216 = vsub.f32 %v3815, %v4150
  %v4217 = vsub.f32 %v3818, %v4150
  %v4218 = vadd.f32 %v4153, 1e-05
  %v4219 = vrsqrt.pop %v4218
  %v4220 = vmul.f32 %v4219, %v4218
  %v4221 = vmul.f32 %v4220, %v4219
  %v4222 = vmul.f32 0.5, %v4221
  %v4223 = vsub.f32 1.5, %v4222
  %v4224 = vmul.f32 %v4219, %v4223
  %vm4225 = vweird.f32 %v4218
  %vm4226 = vweird.f32 %v4219
  %vm4227 = vmor %vm4225, %vm4226
  %v4228 = vsel %vm4227, %v4219, %v4224
  %v4229 = vmul.f32 %v4154, %v4228
  %v4230 = vmul.f32 %v4155, %v4228
  %v4231 = vmul.f32 %v4156, %v4228
  %v4232 = vmul.f32 %v4157, %v4228
  %v4233 = vmul.f32 %v4158, %v4228
  %v4234 = vmul.f32 %v4159, %v4228
  %v4235 = vmul.f32 %v4160, %v4228
  %v4236 = vmul.f32 %v4161, %v4228
  %v4237 = vmul.f32 %v4162, %v4228
  %v4238 = vmul.f32 %v4163, %v4228
  %v4239 = vmul.f32 %v4164, %v4228
  %v4240 = vmul.f32 %v4165, %v4228
  %v4241 = vmul.f32 %v4166, %v4228
  %v4242 = vmul.f32 %v4167, %v4228
  %v4243 = vmul.f32 %v4168, %v4228
  %v4244 = vmul.f32 %v4169, %v4228
  %v4245 = vmul.f32 %v4170, %v4228
  %v4246 = vmul.f32 %v4171, %v4228
  %v4247 = vmul.f32 %v4172, %v4228
  %v4248 = vmul.f32 %v4173, %v4228
  %v4249 = vmul.f32 %v4174, %v4228
  %v4250 = vmul.f32 %v4175, %v4228
  %v4251 = vmul.f32 %v4176, %v4228
  %v4252 = vmul.f32 %v4177, %v4228
  %v4253 = vmul.f32 %v4178, %v4228
  %v4254 = vmul.f32 %v4179, %v4228
  %v4255 = vmul.f32 %v4180, %v4228
  %v4256 = vmul.f32 %v4181, %v4228
  %v4257 = vmul.f32 %v4182, %v4228
  %v4258 = vmul.f32 %v4183, %v4228
  %v4259 = vmul.f32 %v4184, %v4228
  %v4260 = vmul.f32 %v4185, %v4228
  %v4261 = vmul.f32 %v4186, %v4228
  %v4262 = vmul.f32 %v4187, %v4228
  %v4263 = vmul.f32 %v4188, %v4228
  %v4264 = vmul.f32 %v4189, %v4228
  %v4265 = vmul.f32 %v4190, %v4228
  %v4266 = vmul.f32 %v4191, %v4228
  %v4267 = vmul.f32 %v4192, %v4228
  %v4268 = vmul.f32 %v4193, %v4228
  %v4269 = vmul.f32 %v4194, %v4228
  %v4270 = vmul.f32 %v4195, %v4228
  %v4271 = vmul.f32 %v4196, %v4228
  %v4272 = vmul.f32 %v4197, %v4228
  %v4273 = vmul.f32 %v4198, %v4228
  %v4274 = vmul.f32 %v4199, %v4228
  %v4275 = vmul.f32 %v4200, %v4228
  %v4276 = vmul.f32 %v4201, %v4228
  %v4277 = vmul.f32 %v4202, %v4228
  %v4278 = vmul.f32 %v4203, %v4228
  %v4279 = vmul.f32 %v4204, %v4228
  %v4280 = vmul.f32 %v4205, %v4228
  %v4281 = vmul.f32 %v4206, %v4228
  %v4282 = vmul.f32 %v4207, %v4228
  %v4283 = vmul.f32 %v4208, %v4228
  %v4284 = vmul.f32 %v4209, %v4228
  %v4285 = vmul.f32 %v4210, %v4228
  %v4286 = vmul.f32 %v4211, %v4228
  %v4287 = vmul.f32 %v4212, %v4228
  %v4288 = vmul.f32 %v4213, %v4228
  %v4289 = vmul.f32 %v4214, %v4228
  %v4290 = vmul.f32 %v4215, %v4228
  %v4291 = vmul.f32 %v4216, %v4228
  %v4292 = vmul.f32 %v4217, %v4228
  %v4293 = vld [vmem:[%s3] sm:$0x1]
  %v4295 = vperm.slane %v4293, 0
  %v4297 = vmul.f32 %v4229, %v4295
  %v4298 = vmul.f32 %v4230, %v4295
  %v4299 = vmul.f32 %v4231, %v4295
  %v4300 = vmul.f32 %v4232, %v4295
  %v4301 = vmul.f32 %v4233, %v4295
  %v4302 = vmul.f32 %v4234, %v4295
  %v4303 = vmul.f32 %v4235, %v4295
  %v4304 = vmul.f32 %v4236, %v4295
  %v4305 = vmul.f32 %v4237, %v4295
  %v4306 = vmul.f32 %v4238, %v4295
  %v4307 = vmul.f32 %v4239, %v4295
  %v4308 = vmul.f32 %v4240, %v4295
  %v4309 = vmul.f32 %v4241, %v4295
  %v4310 = vmul.f32 %v4242, %v4295
  %v4311 = vmul.f32 %v4243, %v4295
  %v4312 = vmul.f32 %v4244, %v4295
  %v4313 = vmul.f32 %v4245, %v4295
  %v4314 = vmul.f32 %v4246, %v4295
  %v4315 = vmul.f32 %v4247, %v4295
  %v4316 = vmul.f32 %v4248, %v4295
  %v4317 = vmul.f32 %v4249, %v4295
  %v4318 = vmul.f32 %v4250, %v4295
  %v4319 = vmul.f32 %v4251, %v4295
  %v4320 = vmul.f32 %v4252, %v4295
  %v4321 = vmul.f32 %v4253, %v4295
  %v4322 = vmul.f32 %v4254, %v4295
  %v4323 = vmul.f32 %v4255, %v4295
  %v4324 = vmul.f32 %v4256, %v4295
  %v4325 = vmul.f32 %v4257, %v4295
  %v4326 = vmul.f32 %v4258, %v4295
  %v4327 = vmul.f32 %v4259, %v4295
  %v4328 = vmul.f32 %v4260, %v4295
  %v4329 = vmul.f32 %v4261, %v4295
  %v4330 = vmul.f32 %v4262, %v4295
  %v4331 = vmul.f32 %v4263, %v4295
  %v4332 = vmul.f32 %v4264, %v4295
  %v4333 = vmul.f32 %v4265, %v4295
  %v4334 = vmul.f32 %v4266, %v4295
  %v4335 = vmul.f32 %v4267, %v4295
  %v4336 = vmul.f32 %v4268, %v4295
  %v4337 = vmul.f32 %v4269, %v4295
  %v4338 = vmul.f32 %v4270, %v4295
  %v4339 = vmul.f32 %v4271, %v4295
  %v4340 = vmul.f32 %v4272, %v4295
  %v4341 = vmul.f32 %v4273, %v4295
  %v4342 = vmul.f32 %v4274, %v4295
  %v4343 = vmul.f32 %v4275, %v4295
  %v4344 = vmul.f32 %v4276, %v4295
  %v4345 = vmul.f32 %v4277, %v4295
  %v4346 = vmul.f32 %v4278, %v4295
  %v4347 = vmul.f32 %v4279, %v4295
  %v4348 = vmul.f32 %v4280, %v4295
  %v4349 = vmul.f32 %v4281, %v4295
  %v4350 = vmul.f32 %v4282, %v4295
  %v4351 = vmul.f32 %v4283, %v4295
  %v4352 = vmul.f32 %v4284, %v4295
  %v4353 = vmul.f32 %v4285, %v4295
  %v4354 = vmul.f32 %v4286, %v4295
  %v4355 = vmul.f32 %v4287, %v4295
  %v4356 = vmul.f32 %v4288, %v4295
  %v4357 = vmul.f32 %v4289, %v4295
  %v4358 = vmul.f32 %v4290, %v4295
  %v4359 = vmul.f32 %v4291, %v4295
  %v4360 = vmul.f32 %v4292, %v4295
  %v4361 = vld [vmem:[%s4] sm:$0x1]
  %v4363 = vperm.slane %v4361, 0
  %v4365 = vadd.f32 %v4297, %v4363
  %v4366 = vadd.f32 %v4298, %v4363
  %v4367 = vadd.f32 %v4299, %v4363
  %v4368 = vadd.f32 %v4300, %v4363
  %v4369 = vadd.f32 %v4301, %v4363
  %v4370 = vadd.f32 %v4302, %v4363
  %v4371 = vadd.f32 %v4303, %v4363
  %v4372 = vadd.f32 %v4304, %v4363
  %v4373 = vadd.f32 %v4305, %v4363
  %v4374 = vadd.f32 %v4306, %v4363
  %v4375 = vadd.f32 %v4307, %v4363
  %v4376 = vadd.f32 %v4308, %v4363
  %v4377 = vadd.f32 %v4309, %v4363
  %v4378 = vadd.f32 %v4310, %v4363
  %v4379 = vadd.f32 %v4311, %v4363
  %v4380 = vadd.f32 %v4312, %v4363
  %v4381 = vadd.f32 %v4313, %v4363
  %v4382 = vadd.f32 %v4314, %v4363
  %v4383 = vadd.f32 %v4315, %v4363
  %v4384 = vadd.f32 %v4316, %v4363
  %v4385 = vadd.f32 %v4317, %v4363
  %v4386 = vadd.f32 %v4318, %v4363
  %v4387 = vadd.f32 %v4319, %v4363
  %v4388 = vadd.f32 %v4320, %v4363
  %v4389 = vadd.f32 %v4321, %v4363
  %v4390 = vadd.f32 %v4322, %v4363
  %v4391 = vadd.f32 %v4323, %v4363
  %v4392 = vadd.f32 %v4324, %v4363
  %v4393 = vadd.f32 %v4325, %v4363
  %v4394 = vadd.f32 %v4326, %v4363
  %v4395 = vadd.f32 %v4327, %v4363
  %v4396 = vadd.f32 %v4328, %v4363
  %v4397 = vadd.f32 %v4329, %v4363
  %v4398 = vadd.f32 %v4330, %v4363
  %v4399 = vadd.f32 %v4331, %v4363
  %v4400 = vadd.f32 %v4332, %v4363
  %v4401 = vadd.f32 %v4333, %v4363
  %v4402 = vadd.f32 %v4334, %v4363
  %v4403 = vadd.f32 %v4335, %v4363
  %v4404 = vadd.f32 %v4336, %v4363
  %v4405 = vadd.f32 %v4337, %v4363
  %v4406 = vadd.f32 %v4338, %v4363
  %v4407 = vadd.f32 %v4339, %v4363
  %v4408 = vadd.f32 %v4340, %v4363
  %v4409 = vadd.f32 %v4341, %v4363
  %v4410 = vadd.f32 %v4342, %v4363
  %v4411 = vadd.f32 %v4343, %v4363
  %v4412 = vadd.f32 %v4344, %v4363
  %v4413 = vadd.f32 %v4345, %v4363
  %v4414 = vadd.f32 %v4346, %v4363
  %v4415 = vadd.f32 %v4347, %v4363
  %v4416 = vadd.f32 %v4348, %v4363
  %v4417 = vadd.f32 %v4349, %v4363
  %v4418 = vadd.f32 %v4350, %v4363
  %v4419 = vadd.f32 %v4351, %v4363
  %v4420 = vadd.f32 %v4352, %v4363
  %v4421 = vadd.f32 %v4353, %v4363
  %v4422 = vadd.f32 %v4354, %v4363
  %v4423 = vadd.f32 %v4355, %v4363
  %v4424 = vadd.f32 %v4356, %v4363
  %v4425 = vadd.f32 %v4357, %v4363
  %v4426 = vadd.f32 %v4358, %v4363
  %v4427 = vadd.f32 %v4359, %v4363
  %v4428 = vadd.f32 %v4360, %v4363
  %v4429 = vmax.f32 %v4365, 0.0
  %v4430 = vmax.f32 %v4366, 0.0
  %v4431 = vmax.f32 %v4367, 0.0
  %v4432 = vmax.f32 %v4368, 0.0
  %v4433 = vmax.f32 %v4369, 0.0
  %v4434 = vmax.f32 %v4370, 0.0
  %v4435 = vmax.f32 %v4371, 0.0
  %v4436 = vmax.f32 %v4372, 0.0
  %v4437 = vmax.f32 %v4373, 0.0
  %v4438 = vmax.f32 %v4374, 0.0
  %v4439 = vmax.f32 %v4375, 0.0
  %v4440 = vmax.f32 %v4376, 0.0
  %v4441 = vmax.f32 %v4377, 0.0
  %v4442 = vmax.f32 %v4378, 0.0
  %v4443 = vmax.f32 %v4379, 0.0
  %v4444 = vmax.f32 %v4380, 0.0
  %v4445 = vmax.f32 %v4381, 0.0
  %v4446 = vmax.f32 %v4382, 0.0
  %v4447 = vmax.f32 %v4383, 0.0
  %v4448 = vmax.f32 %v4384, 0.0
  %v4449 = vmax.f32 %v4385, 0.0
  %v4450 = vmax.f32 %v4386, 0.0
  %v4451 = vmax.f32 %v4387, 0.0
  %v4452 = vmax.f32 %v4388, 0.0
  %v4453 = vmax.f32 %v4389, 0.0
  %v4454 = vmax.f32 %v4390, 0.0
  %v4455 = vmax.f32 %v4391, 0.0
  %v4456 = vmax.f32 %v4392, 0.0
  %v4457 = vmax.f32 %v4393, 0.0
  %v4458 = vmax.f32 %v4394, 0.0
  %v4459 = vmax.f32 %v4395, 0.0
  %v4460 = vmax.f32 %v4396, 0.0
  %v4461 = vmax.f32 %v4397, 0.0
  %v4462 = vmax.f32 %v4398, 0.0
  %v4463 = vmax.f32 %v4399, 0.0
  %v4464 = vmax.f32 %v4400, 0.0
  %v4465 = vmax.f32 %v4401, 0.0
  %v4466 = vmax.f32 %v4402, 0.0
  %v4467 = vmax.f32 %v4403, 0.0
  %v4468 = vmax.f32 %v4404, 0.0
  %v4469 = vmax.f32 %v4405, 0.0
  %v4470 = vmax.f32 %v4406, 0.0
  %v4471 = vmax.f32 %v4407, 0.0
  %v4472 = vmax.f32 %v4408, 0.0
  %v4473 = vmax.f32 %v4409, 0.0
  %v4474 = vmax.f32 %v4410, 0.0
  %v4475 = vmax.f32 %v4411, 0.0
  %v4476 = vmax.f32 %v4412, 0.0
  %v4477 = vmax.f32 %v4413, 0.0
  %v4478 = vmax.f32 %v4414, 0.0
  %v4479 = vmax.f32 %v4415, 0.0
  %v4480 = vmax.f32 %v4416, 0.0
  %v4481 = vmax.f32 %v4417, 0.0
  %v4482 = vmax.f32 %v4418, 0.0
  %v4483 = vmax.f32 %v4419, 0.0
  %v4484 = vmax.f32 %v4420, 0.0
  %v4485 = vmax.f32 %v4421, 0.0
  %v4486 = vmax.f32 %v4422, 0.0
  %v4487 = vmax.f32 %v4423, 0.0
  %v4488 = vmax.f32 %v4424, 0.0
  %v4489 = vmax.f32 %v4425, 0.0
  %v4490 = vmax.f32 %v4426, 0.0
  %v4491 = vmax.f32 %v4427, 0.0
  %v4492 = vmax.f32 %v4428, 0.0
  %4493 = vst.msk [vmem:[#allocation3] sm:$0xff] %vm90, 0.0
  %4494 = vst.msk [vmem:[#allocation3 + $0x8] sm:$0xff] %vm90, 0.0
  %4495 = vst.msk [vmem:[#allocation3 + $0x10] sm:$0x3] %vm93, 0.0
  %4496 = vst.msk [vmem:[#allocation3 + $0x18] sm:$0xff] %vm90, 0.0
  %4497 = vst.msk [vmem:[#allocation3 + $0x20] sm:$0xff] %vm90, 0.0
  %4498 = vst.msk [vmem:[#allocation3 + $0x28] sm:$0x3] %vm93, 0.0
  %4499 = vst.msk [vmem:[#allocation3 + $0x30] sm:$0xff] %vm90, 0.0
  %4500 = vst.msk [vmem:[#allocation3 + $0x38] sm:$0xff] %vm90, 0.0
  %4501 = vst.msk [vmem:[#allocation3 + $0x40] sm:$0x3] %vm93, 0.0
  %4502 = vst.msk [vmem:[#allocation3 + $0x48] sm:$0xff] %vm90, 0.0
  %4503 = vst.msk [vmem:[#allocation3 + $0x50] sm:$0xff] %vm90, 0.0
  %4504 = vst.msk [vmem:[#allocation3 + $0x58] sm:$0x3] %vm93, 0.0
  %4505 = vst.msk [vmem:[#allocation3 + $0x60] sm:$0xff] %vm90, 0.0
  %4506 = vst.msk [vmem:[#allocation3 + $0x68] sm:$0xff] %vm90, 0.0
  %4507 = vst.msk [vmem:[#allocation3 + $0x70] sm:$0x3] %vm93, 0.0
  %4508 = vst.msk [vmem:[#allocation3 + $0x78] sm:$0xff] %vm90, 0.0
  %4509 = vst.msk [vmem:[#allocation3 + $0x80] sm:$0xff] %vm90, 0.0
  %4510 = vst.msk [vmem:[#allocation3 + $0x88] sm:$0x3] %vm93, 0.0
  %4511 = vst.msk [vmem:[#allocation3 + $0x90] sm:$0xff] %vm90, 0.0
  %4512 = vst.msk [vmem:[#allocation3 + $0x98] sm:$0xff] %vm90, 0.0
  %4513 = vst.msk [vmem:[#allocation3 + $0xa0] sm:$0x3] %vm93, 0.0
  %4514 = vst.msk [vmem:[#allocation3 + $0xa8] sm:$0xff] %vm90, 0.0
  %4515 = vst.msk [vmem:[#allocation3 + $0xb0] sm:$0xff] %vm90, 0.0
  %4516 = vst.msk [vmem:[#allocation3 + $0xb8] sm:$0x3] %vm93, 0.0
  %4517 = vst.msk [vmem:[#allocation3 + $0xc0] sm:$0xff] %vm90, 0.0
  %4518 = vst.msk [vmem:[#allocation3 + $0xc8] sm:$0xff] %vm90, 0.0
  %4519 = vst.msk [vmem:[#allocation3 + $0xd0] sm:$0x3] %vm93, 0.0
  %4520 = vst.msk [vmem:[#allocation3 + $0xd8] sm:$0xff] %vm90, 0.0
  %4521 = vst.msk [vmem:[#allocation3 + $0xe0] sm:$0xff] %vm90, 0.0
  %4522 = vst.msk [vmem:[#allocation3 + $0xe8] sm:$0x3] %vm93, 0.0
  %4523 = vst.msk [vmem:[#allocation3 + $0xf0] sm:$0xff] %vm90, 0.0
  %4524 = vst.msk [vmem:[#allocation3 + $0xf8] sm:$0xff] %vm90, 0.0
  %4525 = vst.msk [vmem:[#allocation3 + $0x100] sm:$0x3] %vm93, 0.0
  %4526 = vst.msk [vmem:[#allocation3 + $0x108] sm:$0xff] %vm90, 0.0
  %4527 = vst.msk [vmem:[#allocation3 + $0x110] sm:$0xff] %vm90, 0.0
  %4528 = vst.msk [vmem:[#allocation3 + $0x118] sm:$0x3] %vm93, 0.0
  %4529 = vst.msk [vmem:[#allocation3 + $0x120] sm:$0xff] %vm90, 0.0
  %4530 = vst.msk [vmem:[#allocation3 + $0x128] sm:$0xff] %vm90, 0.0
  %4531 = vst.msk [vmem:[#allocation3 + $0x130] sm:$0x3] %vm93, 0.0
  %4532 = vst.msk [vmem:[#allocation3 + $0x138] sm:$0xff] %vm90, 0.0
  %4533 = vst.msk [vmem:[#allocation3 + $0x140] sm:$0xff] %vm90, 0.0
  %4534 = vst.msk [vmem:[#allocation3 + $0x148] sm:$0x3] %vm93, 0.0
  %4535 = vst.msk [vmem:[#allocation3 + $0x150] sm:$0xff] %vm90, 0.0
  %4536 = vst.msk [vmem:[#allocation3 + $0x158] sm:$0xff] %vm90, 0.0
  %4537 = vst.msk [vmem:[#allocation3 + $0x160] sm:$0x3] %vm93, 0.0
  %4538 = vst.msk [vmem:[#allocation3 + $0x168] sm:$0xff] %vm90, 0.0
  %4539 = vst.msk [vmem:[#allocation3 + $0x170] sm:$0xff] %vm90, 0.0
  %4540 = vst.msk [vmem:[#allocation3 + $0x178] sm:$0x3] %vm93, 0.0
  %4541 = vst.msk [vmem:[#allocation3 + $0x180] sm:$0xff] %vm90, 0.0
  %4542 = vst.msk [vmem:[#allocation3 + $0x188] sm:$0xff] %vm90, 0.0
  %4543 = vst.msk [vmem:[#allocation3 + $0x190] sm:$0x3] %vm93, 0.0
  %4544 = vst.msk [vmem:[#allocation3 + $0x198] sm:$0xff] %vm90, 0.0
  %4545 = vst.msk [vmem:[#allocation3 + $0x1a0] sm:$0xff] %vm90, 0.0
  %4546 = vst.msk [vmem:[#allocation3 + $0x1a8] sm:$0x3] %vm93, 0.0
  %4547 = vst.msk [vmem:[#allocation3 + $0x1b0] sm:$0xff] %vm90, 0.0
  %4548 = vst.msk [vmem:[#allocation3 + $0x1b8] sm:$0xff] %vm90, 0.0
  %4549 = vst.msk [vmem:[#allocation3 + $0x1c0] sm:$0x3] %vm93, 0.0
  %4550 = vst.msk [vmem:[#allocation3 + $0x1c8] sm:$0xff] %vm90, 0.0
  %4551 = vst.msk [vmem:[#allocation3 + $0x1d0] sm:$0xff] %vm90, 0.0
  %4552 = vst.msk [vmem:[#allocation3 + $0x1d8] sm:$0x3] %vm93, 0.0
  %4553 = vst.msk [vmem:[#allocation3 + $0x1e0] sm:$0xff] %vm90, 0.0
  %4554 = vst.msk [vmem:[#allocation3 + $0x1e8] sm:$0xff] %vm90, 0.0
  %4555 = vst.msk [vmem:[#allocation3 + $0x1f0] sm:$0x3] %vm93, 0.0
  %4556 = vst.msk [vmem:[#allocation3 + $0x1f8] sm:$0xff] %vm90, 0.0
  %4557 = vst.msk [vmem:[#allocation3 + $0x200] sm:$0xff] %vm90, 0.0
  %4558 = vst.msk [vmem:[#allocation3 + $0x208] sm:$0x3] %vm93, 0.0
  %4559 = vst.msk [vmem:[#allocation3 + $0x210] sm:$0xff] %vm90, 0.0
  %4560 = vst.msk [vmem:[#allocation3 + $0x218] sm:$0xff] %vm90, 0.0
  %4561 = vst.msk [vmem:[#allocation3 + $0x220] sm:$0x3] %vm93, 0.0
  %4562 = vst.msk [vmem:[#allocation3 + $0x228] sm:$0xff] %vm90, 0.0
  %4563 = vst.msk [vmem:[#allocation3 + $0x230] sm:$0xff] %vm90, 0.0
  %4564 = vst.msk [vmem:[#allocation3 + $0x238] sm:$0x3] %vm93, 0.0
  %4565 = vst.msk [vmem:[#allocation3 + $0x240] sm:$0xff] %vm90, 0.0
  %4566 = vst.msk [vmem:[#allocation3 + $0x248] sm:$0xff] %vm90, 0.0
  %4567 = vst.msk [vmem:[#allocation3 + $0x250] sm:$0x3] %vm93, 0.0
  %4568 = vst.msk [vmem:[#allocation3 + $0x258] sm:$0xff] %vm90, 0.0
  %4569 = vst.msk [vmem:[#allocation3 + $0x260] sm:$0xff] %vm90, 0.0
  %4570 = vst.msk [vmem:[#allocation3 + $0x268] sm:$0x3] %vm93, 0.0
  %4571 = vst.msk [vmem:[#allocation3 + $0x270] sm:$0xff] %vm90, 0.0
  %4572 = vst.msk [vmem:[#allocation3 + $0x278] sm:$0xff] %vm90, 0.0
  %4573 = vst.msk [vmem:[#allocation3 + $0x280] sm:$0x3] %vm93, 0.0
  %4574 = vst.msk [vmem:[#allocation3 + $0x288] sm:$0xff] %vm90, 0.0
  %4575 = vst.msk [vmem:[#allocation3 + $0x290] sm:$0xff] %vm90, 0.0
  %4576 = vst.msk [vmem:[#allocation3 + $0x298] sm:$0x3] %vm93, 0.0
  %4577 = vst.msk [vmem:[#allocation3 + $0x2a0] sm:$0xff] %vm90, 0.0
  %4578 = vst.msk [vmem:[#allocation3 + $0x2a8] sm:$0xff] %vm90, 0.0
  %4579 = vst.msk [vmem:[#allocation3 + $0x2b0] sm:$0x3] %vm93, 0.0
  %4580 = vst.msk [vmem:[#allocation3 + $0x2b8] sm:$0xff] %vm90, 0.0
  %4581 = vst.msk [vmem:[#allocation3 + $0x2c0] sm:$0xff] %vm90, 0.0
  %4582 = vst.msk [vmem:[#allocation3 + $0x2c8] sm:$0x3] %vm93, 0.0
  %4583 = vst.msk [vmem:[#allocation3 + $0x2d0] sm:$0xff] %vm90, 0.0
  %4584 = vst.msk [vmem:[#allocation3 + $0x2d8] sm:$0xff] %vm90, 0.0
  %4585 = vst.msk [vmem:[#allocation3 + $0x2e0] sm:$0x3] %vm93, 0.0
  %4586 = vst.msk [vmem:[#allocation3 + $0x2e8] sm:$0xff] %vm90, 0.0
  %4587 = vst.msk [vmem:[#allocation3 + $0x2f0] sm:$0xff] %vm90, 0.0
  %4588 = vst.msk [vmem:[#allocation3 + $0x2f8] sm:$0x3] %vm93, 0.0
  %4589 = vst.msk [vmem:[#allocation3 + $0x300] sm:$0xff] %vm90, 0.0
  %4590 = vst.msk [vmem:[#allocation3 + $0x308] sm:$0xff] %vm90, 0.0
  %4591 = vst.msk [vmem:[#allocation3 + $0x310] sm:$0x3] %vm93, 0.0
  %4592 = vst.msk [vmem:[#allocation3 + $0x318] sm:$0xff] %vm90, 0.0
  %4593 = vst.msk [vmem:[#allocation3 + $0x320] sm:$0xff] %vm90, 0.0
  %4594 = vst.msk [vmem:[#allocation3 + $0x328] sm:$0x3] %vm93, 0.0
  %4595 = vst.msk [vmem:[#allocation3 + $0x330] sm:$0xff] %vm90, 0.0
  %4596 = vst.msk [vmem:[#allocation3 + $0x338] sm:$0xff] %vm90, 0.0
  %4597 = vst.msk [vmem:[#allocation3 + $0x340] sm:$0x3] %vm93, 0.0
  %4598 = vst.msk [vmem:[#allocation3 + $0x348] sm:$0xff] %vm90, 0.0
  %4599 = vst.msk [vmem:[#allocation3 + $0x350] sm:$0xff] %vm90, 0.0
  %4600 = vst.msk [vmem:[#allocation3 + $0x358] sm:$0x3] %vm93, 0.0
  %s4601 = scalar_lea.vmem [#allocation3], 24
  %4602 = vst.msk [vmem:[%s4601 + $0x1] sm:$0xff] %vm90, %v4429
  %4603 = vst.msk [vmem:[%s4601 + $0x9] sm:$0xff] %vm90, %v4430
  %4604 = vst.msk [vmem:[%s4601 + $0x19] sm:$0xff] %vm90, %v4431
  %4605 = vst.msk [vmem:[%s4601 + $0x21] sm:$0xff] %vm90, %v4432
  %4606 = vst.msk [vmem:[%s4601 + $0x31] sm:$0xff] %vm90, %v4433
  %4607 = vst.msk [vmem:[%s4601 + $0x39] sm:$0xff] %vm90, %v4434
  %4608 = vst.msk [vmem:[%s4601 + $0x49] sm:$0xff] %vm90, %v4435
  %4609 = vst.msk [vmem:[%s4601 + $0x51] sm:$0xff] %vm90, %v4436
  %4610 = vst.msk [vmem:[%s4601 + $0x61] sm:$0xff] %vm90, %v4437
  %4611 = vst.msk [vmem:[%s4601 + $0x69] sm:$0xff] %vm90, %v4438
  %4612 = vst.msk [vmem:[%s4601 + $0x79] sm:$0xff] %vm90, %v4439
  %4613 = vst.msk [vmem:[%s4601 + $0x81] sm:$0xff] %vm90, %v4440
  %4614 = vst.msk [vmem:[%s4601 + $0x91] sm:$0xff] %vm90, %v4441
  %4615 = vst.msk [vmem:[%s4601 + $0x99] sm:$0xff] %vm90, %v4442
  %4616 = vst.msk [vmem:[%s4601 + $0xa9] sm:$0xff] %vm90, %v4443
  %4617 = vst.msk [vmem:[%s4601 + $0xb1] sm:$0xff] %vm90, %v4444
  %4618 = vst.msk [vmem:[%s4601 + $0xc1] sm:$0xff] %vm90, %v4445
  %4619 = vst.msk [vmem:[%s4601 + $0xc9] sm:$0xff] %vm90, %v4446
  %4620 = vst.msk [vmem:[%s4601 + $0xd9] sm:$0xff] %vm90, %v4447
  %4621 = vst.msk [vmem:[%s4601 + $0xe1] sm:$0xff] %vm90, %v4448
  %4622 = vst.msk [vmem:[%s4601 + $0xf1] sm:$0xff] %vm90, %v4449
  %4623 = vst.msk [vmem:[%s4601 + $0xf9] sm:$0xff] %vm90, %v4450
  %4624 = vst.msk [vmem:[%s4601 + $0x109] sm:$0xff] %vm90, %v4451
  %4625 = vst.msk [vmem:[%s4601 + $0x111] sm:$0xff] %vm90, %v4452
  %4626 = vst.msk [vmem:[%s4601 + $0x121] sm:$0xff] %vm90, %v4453
  %4627 = vst.msk [vmem:[%s4601 + $0x129] sm:$0xff] %vm90, %v4454
  %4628 = vst.msk [vmem:[%s4601 + $0x139] sm:$0xff] %vm90, %v4455
  %4629 = vst.msk [vmem:[%s4601 + $0x141] sm:$0xff] %vm90, %v4456
  %4630 = vst.msk [vmem:[%s4601 + $0x151] sm:$0xff] %vm90, %v4457
  %4631 = vst.msk [vmem:[%s4601 + $0x159] sm:$0xff] %vm90, %v4458
  %4632 = vst.msk [vmem:[%s4601 + $0x169] sm:$0xff] %vm90, %v4459
  %4633 = vst.msk [vmem:[%s4601 + $0x171] sm:$0xff] %vm90, %v4460
  %4634 = vst.msk [vmem:[%s4601 + $0x1b1] sm:$0xff] %vm90, %v4461
  %4635 = vst.msk [vmem:[%s4601 + $0x1b9] sm:$0xff] %vm90, %v4462
  %4636 = vst.msk [vmem:[%s4601 + $0x1c9] sm:$0xff] %vm90, %v4463
  %4637 = vst.msk [vmem:[%s4601 + $0x1d1] sm:$0xff] %vm90, %v4464
  %4638 = vst.msk [vmem:[%s4601 + $0x1e1] sm:$0xff] %vm90, %v4465
  %4639 = vst.msk [vmem:[%s4601 + $0x1e9] sm:$0xff] %vm90, %v4466
  %4640 = vst.msk [vmem:[%s4601 + $0x1f9] sm:$0xff] %vm90, %v4467
  %4641 = vst.msk [vmem:[%s4601 + $0x201] sm:$0xff] %vm90, %v4468
  %4642 = vst.msk [vmem:[%s4601 + $0x211] sm:$0xff] %vm90, %v4469
  %4643 = vst.msk [vmem:[%s4601 + $0x219] sm:$0xff] %vm90, %v4470
  %4644 = vst.msk [vmem:[%s4601 + $0x229] sm:$0xff] %vm90, %v4471
  %4645 = vst.msk [vmem:[%s4601 + $0x231] sm:$0xff] %vm90, %v4472
  %4646 = vst.msk [vmem:[%s4601 + $0x241] sm:$0xff] %vm90, %v4473
  %4647 = vst.msk [vmem:[%s4601 + $0x249] sm:$0xff] %vm90, %v4474
  %4648 = vst.msk [vmem:[%s4601 + $0x259] sm:$0xff] %vm90, %v4475
  %4649 = vst.msk [vmem:[%s4601 + $0x261] sm:$0xff] %vm90, %v4476
  %4650 = vst.msk [vmem:[%s4601 + $0x271] sm:$0xff] %vm90, %v4477
  %4651 = vst.msk [vmem:[%s4601 + $0x279] sm:$0xff] %vm90, %v4478
  %4652 = vst.msk [vmem:[%s4601 + $0x289] sm:$0xff] %vm90, %v4479
  %4653 = vst.msk [vmem:[%s4601 + $0x291] sm:$0xff] %vm90, %v4480
  %4654 = vst.msk [vmem:[%s4601 + $0x2a1] sm:$0xff] %vm90, %v4481
  %4655 = vst.msk [vmem:[%s4601 + $0x2a9] sm:$0xff] %vm90, %v4482
  %4656 = vst.msk [vmem:[%s4601 + $0x2b9] sm:$0xff] %vm90, %v4483
  %4657 = vst.msk [vmem:[%s4601 + $0x2c1] sm:$0xff] %vm90, %v4484
  %4658 = vst.msk [vmem:[%s4601 + $0x2d1] sm:$0xff] %vm90, %v4485
  %4659 = vst.msk [vmem:[%s4601 + $0x2d9] sm:$0xff] %vm90, %v4486
  %4660 = vst.msk [vmem:[%s4601 + $0x2e9] sm:$0xff] %vm90, %v4487
  %4661 = vst.msk [vmem:[%s4601 + $0x2f1] sm:$0xff] %vm90, %v4488
  %4662 = vst.msk [vmem:[%s4601 + $0x301] sm:$0xff] %vm90, %v4489
  %4663 = vst.msk [vmem:[%s4601 + $0x309] sm:$0xff] %vm90, %v4490
  %4664 = vst.msk [vmem:[%s4601 + $0x319] sm:$0xff] %vm90, %v4491
  %4665 = vst.msk [vmem:[%s4601 + $0x321] sm:$0xff] %vm90, %v4492
  %v4666 = vld [vmem:[#allocation3] sm:$0xff]
  %v4667 = vld [vmem:[#allocation3 + $0x8] sm:$0xff]
  %v4668 = vld [vmem:[#allocation3 + $0x18] sm:$0xff]
  %v4669 = vld [vmem:[#allocation3 + $0x20] sm:$0xff]
  %v4670 = vld [vmem:[#allocation3 + $0x30] sm:$0xff]
  %v4671 = vld [vmem:[#allocation3 + $0x38] sm:$0xff]
  %v4672 = vld [vmem:[#allocation3 + $0x48] sm:$0xff]
  %v4673 = vld [vmem:[#allocation3 + $0x50] sm:$0xff]
  %v4674 = vld [vmem:[#allocation3 + $0x60] sm:$0xff]
  %v4675 = vld [vmem:[#allocation3 + $0x68] sm:$0xff]
  %v4676 = vld [vmem:[#allocation3 + $0x78] sm:$0xff]
  %v4677 = vld [vmem:[#allocation3 + $0x80] sm:$0xff]
  %v4678 = vld [vmem:[#allocation3 + $0x90] sm:$0xff]
  %v4679 = vld [vmem:[#allocation3 + $0x98] sm:$0xff]
  %v4680 = vld [vmem:[#allocation3 + $0xa8] sm:$0xff]
  %v4681 = vld [vmem:[#allocation3 + $0xb0] sm:$0xff]
  %v4682 = vld [vmem:[#allocation3 + $0xc0] sm:$0xff]
  %v4683 = vld [vmem:[#allocation3 + $0xc8] sm:$0xff]
  %v4684 = vld [vmem:[#allocation3 + $0xd8] sm:$0xff]
  %v4685 = vld [vmem:[#allocation3 + $0xe0] sm:$0xff]
  %v4686 = vld [vmem:[#allocation3 + $0xf0] sm:$0xff]
  %v4687 = vld [vmem:[#allocation3 + $0xf8] sm:$0xff]
  %v4688 = vld [vmem:[#allocation3 + $0x108] sm:$0xff]
  %v4689 = vld [vmem:[#allocation3 + $0x110] sm:$0xff]
  %v4690 = vld [vmem:[#allocation3 + $0x120] sm:$0xff]
  %v4691 = vld [vmem:[#allocation3 + $0x128] sm:$0xff]
  %v4692 = vld [vmem:[#allocation3 + $0x138] sm:$0xff]
  %v4693 = vld [vmem:[#allocation3 + $0x140] sm:$0xff]
  %v4694 = vld [vmem:[#allocation3 + $0x150] sm:$0xff]
  %v4695 = vld [vmem:[#allocation3 + $0x158] sm:$0xff]
  %v4696 = vld [vmem:[#allocation3 + $0x168] sm:$0xff]
  %v4697 = vld [vmem:[#allocation3 + $0x170] sm:$0xff]
  %v4698 = vld [vmem:[#allocation3 + $0x1b0] sm:$0xff]
  %v4699 = vld [vmem:[#allocation3 + $0x1b8] sm:$0xff]
  %v4700 = vld [vmem:[#allocation3 + $0x1c8] sm:$0xff]
  %v4701 = vld [vmem:[#allocation3 + $0x1d0] sm:$0xff]
  %v4702 = vld [vmem:[#allocation3 + $0x1e0] sm:$0xff]
  %v4703 = vld [vmem:[#allocation3 + $0x1e8] sm:$0xff]
  %v4704 = vld [vmem:[#allocation3 + $0x1f8] sm:$0xff]
  %v4705 = vld [vmem:[#allocation3 + $0x200] sm:$0xff]
  %v4706 = vld [vmem:[#allocation3 + $0x210] sm:$0xff]
  %v4707 = vld [vmem:[#allocation3 + $0x218] sm:$0xff]
  %v4708 = vld [vmem:[#allocation3 + $0x228] sm:$0xff]
  %v4709 = vld [vmem:[#allocation3 + $0x230] sm:$0xff]
  %v4710 = vld [vmem:[#allocation3 + $0x240] sm:$0xff]
  %v4711 = vld [vmem:[#allocation3 + $0x248] sm:$0xff]
  %v4712 = vld [vmem:[#allocation3 + $0x258] sm:$0xff]
  %v4713 = vld [vmem:[#allocation3 + $0x260] sm:$0xff]
  %v4714 = vld [vmem:[#allocation3 + $0x270] sm:$0xff]
  %v4715 = vld [vmem:[#allocation3 + $0x278] sm:$0xff]
  %v4716 = vld [vmem:[#allocation3 + $0x288] sm:$0xff]
  %v4717 = vld [vmem:[#allocation3 + $0x290] sm:$0xff]
  %v4718 = vld [vmem:[#allocation3 + $0x2a0] sm:$0xff]
  %v4719 = vld [vmem:[#allocation3 + $0x2a8] sm:$0xff]
  %v4720 = vld [vmem:[#allocation3 + $0x2b8] sm:$0xff]
  %v4721 = vld [vmem:[#allocation3 + $0x2c0] sm:$0xff]
  %v4722 = vld [vmem:[#allocation3 + $0x2d0] sm:$0xff]
  %v4723 = vld [vmem:[#allocation3 + $0x2d8] sm:$0xff]
  %v4724 = vld [vmem:[#allocation3 + $0x2e8] sm:$0xff]
  %v4725 = vld [vmem:[#allocation3 + $0x2f0] sm:$0xff]
  %v4726 = vld [vmem:[#allocation3 + $0x300] sm:$0xff]
  %v4727 = vld [vmem:[#allocation3 + $0x308] sm:$0xff]
  %v4728 = vld [vmem:[#allocation3 + $0x318] sm:$0xff]
  %v4729 = vld [vmem:[#allocation3 + $0x320] sm:$0xff]
  %v4730 = vld [vmem:[#allocation3 + $0x1] sm:$0xff]
  %v4731 = vld [vmem:[#allocation3 + $0x9] sm:$0xff]
  %v4732 = vld [vmem:[#allocation3 + $0x19] sm:$0xff]
  %v4733 = vld [vmem:[#allocation3 + $0x21] sm:$0xff]
  %v4734 = vld [vmem:[#allocation3 + $0x31] sm:$0xff]
  %v4735 = vld [vmem:[#allocation3 + $0x39] sm:$0xff]
  %v4736 = vld [vmem:[#allocation3 + $0x49] sm:$0xff]
  %v4737 = vld [vmem:[#allocation3 + $0x51] sm:$0xff]
  %v4738 = vld [vmem:[#allocation3 + $0x61] sm:$0xff]
  %v4739 = vld [vmem:[#allocation3 + $0x69] sm:$0xff]
  %v4740 = vld [vmem:[#allocation3 + $0x79] sm:$0xff]
  %v4741 = vld [vmem:[#allocation3 + $0x81] sm:$0xff]
  %v4742 = vld [vmem:[#allocation3 + $0x91] sm:$0xff]
  %v4743 = vld [vmem:[#allocation3 + $0x99] sm:$0xff]
  %v4744 = vld [vmem:[#allocation3 + $0xa9] sm:$0xff]
  %v4745 = vld [vmem:[#allocation3 + $0xb1] sm:$0xff]
  %v4746 = vld [vmem:[#allocation3 + $0xc1] sm:$0xff]
  %v4747 = vld [vmem:[#allocation3 + $0xc9] sm:$0xff]
  %v4748 = vld [vmem:[#allocation3 + $0xd9] sm:$0xff]
  %v4749 = vld [vmem:[#allocation3 + $0xe1] sm:$0xff]
  %v4750 = vld [vmem:[#allocation3 + $0xf1] sm:$0xff]
  %v4751 = vld [vmem:[#allocation3 + $0xf9] sm:$0xff]
  %v4752 = vld [vmem:[#allocation3 + $0x109] sm:$0xff]
  %v4753 = vld [vmem:[#allocation3 + $0x111] sm:$0xff]
  %v4754 = vld [vmem:[#allocation3 + $0x121] sm:$0xff]
  %v4755 = vld [vmem:[#allocation3 + $0x129] sm:$0xff]
  %v4756 = vld [vmem:[#allocation3 + $0x139] sm:$0xff]
  %v4757 = vld [vmem:[#allocation3 + $0x141] sm:$0xff]
  %v4758 = vld [vmem:[#allocation3 + $0x151] sm:$0xff]
  %v4759 = vld [vmem:[#allocation3 + $0x159] sm:$0xff]
  %v4760 = vld [vmem:[#allocation3 + $0x169] sm:$0xff]
  %v4761 = vld [vmem:[#allocation3 + $0x171] sm:$0xff]
  %v4762 = vld [vmem:[#allocation3 + $0x1b1] sm:$0xff]
  %v4763 = vld [vmem:[#allocation3 + $0x1b9] sm:$0xff]
  %v4764 = vld [vmem:[#allocation3 + $0x1c9] sm:$0xff]
  %v4765 = vld [vmem:[#allocation3 + $0x1d1] sm:$0xff]
  %v4766 = vld [vmem:[#allocation3 + $0x1e1] sm:$0xff]
  %v4767 = vld [vmem:[#allocation3 + $0x1e9] sm:$0xff]
  %v4768 = vld [vmem:[#allocation3 + $0x1f9] sm:$0xff]
  %v4769 = vld [vmem:[#allocation3 + $0x201] sm:$0xff]
  %v4770 = vld [vmem:[#allocation3 + $0x211] sm:$0xff]
  %v4771 = vld [vmem:[#allocation3 + $0x219] sm:$0xff]
  %v4772 = vld [vmem:[#allocation3 + $0x229] sm:$0xff]
  %v4773 = vld [vmem:[#allocation3 + $0x231] sm:$0xff]
  %v4774 = vld [vmem:[#allocation3 + $0x241] sm:$0xff]
  %v4775 = vld [vmem:[#allocation3 + $0x249] sm:$0xff]
  %v4776 = vld [vmem:[#allocation3 + $0x259] sm:$0xff]
  %v4777 = vld [vmem:[#allocation3 + $0x261] sm:$0xff]
  %v4778 = vld [vmem:[#allocation3 + $0x271] sm:$0xff]
  %v4779 = vld [vmem:[#allocation3 + $0x279] sm:$0xff]
  %v4780 = vld [vmem:[#allocation3 + $0x289] sm:$0xff]
  %v4781 = vld [vmem:[#allocation3 + $0x291] sm:$0xff]
  %v4782 = vld [vmem:[#allocation3 + $0x2a1] sm:$0xff]
  %v4783 = vld [vmem:[#allocation3 + $0x2a9] sm:$0xff]
  %v4784 = vld [vmem:[#allocation3 + $0x2b9] sm:$0xff]
  %v4785 = vld [vmem:[#allocation3 + $0x2c1] sm:$0xff]
  %v4786 = vld [vmem:[#allocation3 + $0x2d1] sm:$0xff]
  %v4787 = vld [vmem:[#allocation3 + $0x2d9] sm:$0xff]
  %v4788 = vld [vmem:[#allocation3 + $0x2e9] sm:$0xff]
  %v4789 = vld [vmem:[#allocation3 + $0x2f1] sm:$0xff]
  %v4790 = vld [vmem:[#allocation3 + $0x301] sm:$0xff]
  %v4791 = vld [vmem:[#allocation3 + $0x309] sm:$0xff]
  %v4792 = vld [vmem:[#allocation3 + $0x319] sm:$0xff]
  %v4793 = vld [vmem:[#allocation3 + $0x321] sm:$0xff]
  %v4794 = vld [vmem:[#allocation3 + $0x2] sm:$0xff]
  %v4795 = vld [vmem:[#allocation3 + $0xa] sm:$0xff]
  %v4796 = vld [vmem:[#allocation3 + $0x1a] sm:$0xff]
  %v4797 = vld [vmem:[#allocation3 + $0x22] sm:$0xff]
  %v4798 = vld [vmem:[#allocation3 + $0x32] sm:$0xff]
  %v4799 = vld [vmem:[#allocation3 + $0x3a] sm:$0xff]
  %v4800 = vld [vmem:[#allocation3 + $0x4a] sm:$0xff]
  %v4801 = vld [vmem:[#allocation3 + $0x52] sm:$0xff]
  %v4802 = vld [vmem:[#allocation3 + $0x62] sm:$0xff]
  %v4803 = vld [vmem:[#allocation3 + $0x6a] sm:$0xff]
  %v4804 = vld [vmem:[#allocation3 + $0x7a] sm:$0xff]
  %v4805 = vld [vmem:[#allocation3 + $0x82] sm:$0xff]
  %v4806 = vld [vmem:[#allocation3 + $0x92] sm:$0xff]
  %v4807 = vld [vmem:[#allocation3 + $0x9a] sm:$0xff]
  %v4808 = vld [vmem:[#allocation3 + $0xaa] sm:$0xff]
  %v4809 = vld [vmem:[#allocation3 + $0xb2] sm:$0xff]
  %v4810 = vld [vmem:[#allocation3 + $0xc2] sm:$0xff]
  %v4811 = vld [vmem:[#allocation3 + $0xca] sm:$0xff]
  %v4812 = vld [vmem:[#allocation3 + $0xda] sm:$0xff]
  %v4813 = vld [vmem:[#allocation3 + $0xe2] sm:$0xff]
  %v4814 = vld [vmem:[#allocation3 + $0xf2] sm:$0xff]
  %v4815 = vld [vmem:[#allocation3 + $0xfa] sm:$0xff]
  %v4816 = vld [vmem:[#allocation3 + $0x10a] sm:$0xff]
  %v4817 = vld [vmem:[#allocation3 + $0x112] sm:$0xff]
  %v4818 = vld [vmem:[#allocation3 + $0x122] sm:$0xff]
  %v4819 = vld [vmem:[#allocation3 + $0x12a] sm:$0xff]
  %v4820 = vld [vmem:[#allocation3 + $0x13a] sm:$0xff]
  %v4821 = vld [vmem:[#allocation3 + $0x142] sm:$0xff]
  %v4822 = vld [vmem:[#allocation3 + $0x152] sm:$0xff]
  %v4823 = vld [vmem:[#allocation3 + $0x15a] sm:$0xff]
  %v4824 = vld [vmem:[#allocation3 + $0x16a] sm:$0xff]
  %v4825 = vld [vmem:[#allocation3 + $0x172] sm:$0xff]
  %v4826 = vld [vmem:[#allocation3 + $0x1b2] sm:$0xff]
  %v4827 = vld [vmem:[#allocation3 + $0x1ba] sm:$0xff]
  %v4828 = vld [vmem:[#allocation3 + $0x1ca] sm:$0xff]
  %v4829 = vld [vmem:[#allocation3 + $0x1d2] sm:$0xff]
  %v4830 = vld [vmem:[#allocation3 + $0x1e2] sm:$0xff]
  %v4831 = vld [vmem:[#allocation3 + $0x1ea] sm:$0xff]
  %v4832 = vld [vmem:[#allocation3 + $0x1fa] sm:$0xff]
  %v4833 = vld [vmem:[#allocation3 + $0x202] sm:$0xff]
  %v4834 = vld [vmem:[#allocation3 + $0x212] sm:$0xff]
  %v4835 = vld [vmem:[#allocation3 + $0x21a] sm:$0xff]
  %v4836 = vld [vmem:[#allocation3 + $0x22a] sm:$0xff]
  %v4837 = vld [vmem:[#allocation3 + $0x232] sm:$0xff]
  %v4838 = vld [vmem:[#allocation3 + $0x242] sm:$0xff]
  %v4839 = vld [vmem:[#allocation3 + $0x24a] sm:$0xff]
  %v4840 = vld [vmem:[#allocation3 + $0x25a] sm:$0xff]
  %v4841 = vld [vmem:[#allocation3 + $0x262] sm:$0xff]
  %v4842 = vld [vmem:[#allocation3 + $0x272] sm:$0xff]
  %v4843 = vld [vmem:[#allocation3 + $0x27a] sm:$0xff]
  %v4844 = vld [vmem:[#allocation3 + $0x28a] sm:$0xff]
  %v4845 = vld [vmem:[#allocation3 + $0x292] sm:$0xff]
  %v4846 = vld [vmem:[#allocation3 + $0x2a2] sm:$0xff]
  %v4847 = vld [vmem:[#allocation3 + $0x2aa] sm:$0xff]
  %v4848 = vld [vmem:[#allocation3 + $0x2ba] sm:$0xff]
  %v4849 = vld [vmem:[#allocation3 + $0x2c2] sm:$0xff]
  %v4850 = vld [vmem:[#allocation3 + $0x2d2] sm:$0xff]
  %v4851 = vld [vmem:[#allocation3 + $0x2da] sm:$0xff]
  %v4852 = vld [vmem:[#allocation3 + $0x2ea] sm:$0xff]
  %v4853 = vld [vmem:[#allocation3 + $0x2f2] sm:$0xff]
  %v4854 = vld [vmem:[#allocation3 + $0x302] sm:$0xff]
  %v4855 = vld [vmem:[#allocation3 + $0x30a] sm:$0xff]
  %v4856 = vld [vmem:[#allocation3 + $0x31a] sm:$0xff]
  %v4857 = vld [vmem:[#allocation3 + $0x322] sm:$0xff]
  %v4858 = vld [vmem:[%s4601] sm:$0xff]
  %v4859 = vld [vmem:[%s4601 + $0x8] sm:$0xff]
  %v4860 = vld [vmem:[%s4601 + $0x18] sm:$0xff]
  %v4861 = vld [vmem:[%s4601 + $0x20] sm:$0xff]
  %v4862 = vld [vmem:[%s4601 + $0x30] sm:$0xff]
  %v4863 = vld [vmem:[%s4601 + $0x38] sm:$0xff]
  %v4864 = vld [vmem:[%s4601 + $0x48] sm:$0xff]
  %v4865 = vld [vmem:[%s4601 + $0x50] sm:$0xff]
  %v4866 = vld [vmem:[%s4601 + $0x60] sm:$0xff]
  %v4867 = vld [vmem:[%s4601 + $0x68] sm:$0xff]
  %v4868 = vld [vmem:[%s4601 + $0x78] sm:$0xff]
  %v4869 = vld [vmem:[%s4601 + $0x80] sm:$0xff]
  %v4870 = vld [vmem:[%s4601 + $0x90] sm:$0xff]
  %v4871 = vld [vmem:[%s4601 + $0x98] sm:$0xff]
  %v4872 = vld [vmem:[%s4601 + $0xa8] sm:$0xff]
  %v4873 = vld [vmem:[%s4601 + $0xb0] sm:$0xff]
  %v4874 = vld [vmem:[%s4601 + $0xc0] sm:$0xff]
  %v4875 = vld [vmem:[%s4601 + $0xc8] sm:$0xff]
  %v4876 = vld [vmem:[%s4601 + $0xd8] sm:$0xff]
  %v4877 = vld [vmem:[%s4601 + $0xe0] sm:$0xff]
  %v4878 = vld [vmem:[%s4601 + $0xf0] sm:$0xff]
  %v4879 = vld [vmem:[%s4601 + $0xf8] sm:$0xff]
  %v4880 = vld [vmem:[%s4601 + $0x108] sm:$0xff]
  %v4881 = vld [vmem:[%s4601 + $0x110] sm:$0xff]
  %v4882 = vld [vmem:[%s4601 + $0x120] sm:$0xff]
  %v4883 = vld [vmem:[%s4601 + $0x128] sm:$0xff]
  %v4884 = vld [vmem:[%s4601 + $0x138] sm:$0xff]
  %v4885 = vld [vmem:[%s4601 + $0x140] sm:$0xff]
  %v4886 = vld [vmem:[%s4601 + $0x150] sm:$0xff]
  %v4887 = vld [vmem:[%s4601 + $0x158] sm:$0xff]
  %v4888 = vld [vmem:[%s4601 + $0x168] sm:$0xff]
  %v4889 = vld [vmem:[%s4601 + $0x170] sm:$0xff]
  %v4890 = vld [vmem:[%s4601 + $0x1b0] sm:$0xff]
  %v4891 = vld [vmem:[%s4601 + $0x1b8] sm:$0xff]
  %v4892 = vld [vmem:[%s4601 + $0x1c8] sm:$0xff]
  %v4893 = vld [vmem:[%s4601 + $0x1d0] sm:$0xff]
  %v4894 = vld [vmem:[%s4601 + $0x1e0] sm:$0xff]
  %v4895 = vld [vmem:[%s4601 + $0x1e8] sm:$0xff]
  %v4896 = vld [vmem:[%s4601 + $0x1f8] sm:$0xff]
  %v4897 = vld [vmem:[%s4601 + $0x200] sm:$0xff]
  %v4898 = vld [vmem:[%s4601 + $0x210] sm:$0xff]
  %v4899 = vld [vmem:[%s4601 + $0x218] sm:$0xff]
  %v4900 = vld [vmem:[%s4601 + $0x228] sm:$0xff]
  %v4901 = vld [vmem:[%s4601 + $0x230] sm:$0xff]
  %v4902 = vld [vmem:[%s4601 + $0x240] sm:$0xff]
  %v4903 = vld [vmem:[%s4601 + $0x248] sm:$0xff]
  %v4904 = vld [vmem:[%s4601 + $0x258] sm:$0xff]
  %v4905 = vld [vmem:[%s4601 + $0x260] sm:$0xff]
  %v4906 = vld [vmem:[%s4601 + $0x270] sm:$0xff]
  %v4907 = vld [vmem:[%s4601 + $0x278] sm:$0xff]
  %v4908 = vld [vmem:[%s4601 + $0x288] sm:$0xff]
  %v4909 = vld [vmem:[%s4601 + $0x290] sm:$0xff]
  %v4910 = vld [vmem:[%s4601 + $0x2a0] sm:$0xff]
  %v4911 = vld [vmem:[%s4601 + $0x2a8] sm:$0xff]
  %v4912 = vld [vmem:[%s4601 + $0x2b8] sm:$0xff]
  %v4913 = vld [vmem:[%s4601 + $0x2c0] sm:$0xff]
  %v4914 = vld [vmem:[%s4601 + $0x2d0] sm:$0xff]
  %v4915 = vld [vmem:[%s4601 + $0x2d8] sm:$0xff]
  %v4916 = vld [vmem:[%s4601 + $0x2e8] sm:$0xff]
  %v4917 = vld [vmem:[%s4601 + $0x2f0] sm:$0xff]
  %v4918 = vld [vmem:[%s4601 + $0x300] sm:$0xff]
  %v4919 = vld [vmem:[%s4601 + $0x308] sm:$0xff]
  %v4920 = vld [vmem:[%s4601 + $0x318] sm:$0xff]
  %v4921 = vld [vmem:[%s4601 + $0x320] sm:$0xff]
  %v4922 = vld [vmem:[%s4601 + $0x1] sm:$0xff]
  %v4923 = vld [vmem:[%s4601 + $0x9] sm:$0xff]
  %v4924 = vld [vmem:[%s4601 + $0x19] sm:$0xff]
  %v4925 = vld [vmem:[%s4601 + $0x21] sm:$0xff]
  %v4926 = vld [vmem:[%s4601 + $0x31] sm:$0xff]
  %v4927 = vld [vmem:[%s4601 + $0x39] sm:$0xff]
  %v4928 = vld [vmem:[%s4601 + $0x49] sm:$0xff]
  %v4929 = vld [vmem:[%s4601 + $0x51] sm:$0xff]
  %v4930 = vld [vmem:[%s4601 + $0x61] sm:$0xff]
  %v4931 = vld [vmem:[%s4601 + $0x69] sm:$0xff]
  %v4932 = vld [vmem:[%s4601 + $0x79] sm:$0xff]
  %v4933 = vld [vmem:[%s4601 + $0x81] sm:$0xff]
  %v4934 = vld [vmem:[%s4601 + $0x91] sm:$0xff]
  %v4935 = vld [vmem:[%s4601 + $0x99] sm:$0xff]
  %v4936 = vld [vmem:[%s4601 + $0xa9] sm:$0xff]
  %v4937 = vld [vmem:[%s4601 + $0xb1] sm:$0xff]
  %v4938 = vld [vmem:[%s4601 + $0xc1] sm:$0xff]
  %v4939 = vld [vmem:[%s4601 + $0xc9] sm:$0xff]
  %v4940 = vld [vmem:[%s4601 + $0xd9] sm:$0xff]
  %v4941 = vld [vmem:[%s4601 + $0xe1] sm:$0xff]
  %v4942 = vld [vmem:[%s4601 + $0xf1] sm:$0xff]
  %v4943 = vld [vmem:[%s4601 + $0xf9] sm:$0xff]
  %v4944 = vld [vmem:[%s4601 + $0x109] sm:$0xff]
  %v4945 = vld [vmem:[%s4601 + $0x111] sm:$0xff]
  %v4946 = vld [vmem:[%s4601 + $0x121] sm:$0xff]
  %v4947 = vld [vmem:[%s4601 + $0x129] sm:$0xff]
  %v4948 = vld [vmem:[%s4601 + $0x139] sm:$0xff]
  %v4949 = vld [vmem:[%s4601 + $0x141] sm:$0xff]
  %v4950 = vld [vmem:[%s4601 + $0x151] sm:$0xff]
  %v4951 = vld [vmem:[%s4601 + $0x159] sm:$0xff]
  %v4952 = vld [vmem:[%s4601 + $0x169] sm:$0xff]
  %v4953 = vld [vmem:[%s4601 + $0x171] sm:$0xff]
  %v4954 = vld [vmem:[%s4601 + $0x1b1] sm:$0xff]
  %v4955 = vld [vmem:[%s4601 + $0x1b9] sm:$0xff]
  %v4956 = vld [vmem:[%s4601 + $0x1c9] sm:$0xff]
  %v4957 = vld [vmem:[%s4601 + $0x1d1] sm:$0xff]
  %v4958 = vld [vmem:[%s4601 + $0x1e1] sm:$0xff]
  %v4959 = vld [vmem:[%s4601 + $0x1e9] sm:$0xff]
  %v4960 = vld [vmem:[%s4601 + $0x1f9] sm:$0xff]
  %v4961 = vld [vmem:[%s4601 + $0x201] sm:$0xff]
  %v4962 = vld [vmem:[%s4601 + $0x211] sm:$0xff]
  %v4963 = vld [vmem:[%s4601 + $0x219] sm:$0xff]
  %v4964 = vld [vmem:[%s4601 + $0x229] sm:$0xff]
  %v4965 = vld [vmem:[%s4601 + $0x231] sm:$0xff]
  %v4966 = vld [vmem:[%s4601 + $0x241] sm:$0xff]
  %v4967 = vld [vmem:[%s4601 + $0x249] sm:$0xff]
  %v4968 = vld [vmem:[%s4601 + $0x259] sm:$0xff]
  %v4969 = vld [vmem:[%s4601 + $0x261] sm:$0xff]
  %v4970 = vld [vmem:[%s4601 + $0x271] sm:$0xff]
  %v4971 = vld [vmem:[%s4601 + $0x279] sm:$0xff]
  %v4972 = vld [vmem:[%s4601 + $0x289] sm:$0xff]
  %v4973 = vld [vmem:[%s4601 + $0x291] sm:$0xff]
  %v4974 = vld [vmem:[%s4601 + $0x2a1] sm:$0xff]
  %v4975 = vld [vmem:[%s4601 + $0x2a9] sm:$0xff]
  %v4976 = vld [vmem:[%s4601 + $0x2b9] sm:$0xff]
  %v4977 = vld [vmem:[%s4601 + $0x2c1] sm:$0xff]
  %v4978 = vld [vmem:[%s4601 + $0x2d1] sm:$0xff]
  %v4979 = vld [vmem:[%s4601 + $0x2d9] sm:$0xff]
  %v4980 = vld [vmem:[%s4601 + $0x2e9] sm:$0xff]
  %v4981 = vld [vmem:[%s4601 + $0x2f1] sm:$0xff]
  %v4982 = vld [vmem:[%s4601 + $0x301] sm:$0xff]
  %v4983 = vld [vmem:[%s4601 + $0x309] sm:$0xff]
  %v4984 = vld [vmem:[%s4601 + $0x319] sm:$0xff]
  %v4985 = vld [vmem:[%s4601 + $0x321] sm:$0xff]
  %v4986 = vld [vmem:[%s4601 + $0x2] sm:$0xff]
  %v4987 = vld [vmem:[%s4601 + $0xa] sm:$0xff]
  %v4988 = vld [vmem:[%s4601 + $0x1a] sm:$0xff]
  %v4989 = vld [vmem:[%s4601 + $0x22] sm:$0xff]
  %v4990 = vld [vmem:[%s4601 + $0x32] sm:$0xff]
  %v4991 = vld [vmem:[%s4601 + $0x3a] sm:$0xff]
  %v4992 = vld [vmem:[%s4601 + $0x4a] sm:$0xff]
  %v4993 = vld [vmem:[%s4601 + $0x52] sm:$0xff]
  %v4994 = vld [vmem:[%s4601 + $0x62] sm:$0xff]
  %v4995 = vld [vmem:[%s4601 + $0x6a] sm:$0xff]
  %v4996 = vld [vmem:[%s4601 + $0x7a] sm:$0xff]
  %v4997 = vld [vmem:[%s4601 + $0x82] sm:$0xff]
  %v4998 = vld [vmem:[%s4601 + $0x92] sm:$0xff]
  %v4999 = vld [vmem:[%s4601 + $0x9a] sm:$0xff]
  %v5000 = vld [vmem:[%s4601 + $0xaa] sm:$0xff]
  %v5001 = vld [vmem:[%s4601 + $0xb2] sm:$0xff]
  %v5002 = vld [vmem:[%s4601 + $0xc2] sm:$0xff]
  %v5003 = vld [vmem:[%s4601 + $0xca] sm:$0xff]
  %v5004 = vld [vmem:[%s4601 + $0xda] sm:$0xff]
  %v5005 = vld [vmem:[%s4601 + $0xe2] sm:$0xff]
  %v5006 = vld [vmem:[%s4601 + $0xf2] sm:$0xff]
  %v5007 = vld [vmem:[%s4601 + $0xfa] sm:$0xff]
  %v5008 = vld [vmem:[%s4601 + $0x10a] sm:$0xff]
  %v5009 = vld [vmem:[%s4601 + $0x112] sm:$0xff]
  %v5010 = vld [vmem:[%s4601 + $0x122] sm:$0xff]
  %v5011 = vld [vmem:[%s4601 + $0x12a] sm:$0xff]
  %v5012 = vld [vmem:[%s4601 + $0x13a] sm:$0xff]
  %v5013 = vld [vmem:[%s4601 + $0x142] sm:$0xff]
  %v5014 = vld [vmem:[%s4601 + $0x152] sm:$0xff]
  %v5015 = vld [vmem:[%s4601 + $0x15a] sm:$0xff]
  %v5016 = vld [vmem:[%s4601 + $0x16a] sm:$0xff]
  %v5017 = vld [vmem:[%s4601 + $0x172] sm:$0xff]
  %v5018 = vld [vmem:[%s4601 + $0x1b2] sm:$0xff]
  %v5019 = vld [vmem:[%s4601 + $0x1ba] sm:$0xff]
  %v5020 = vld [vmem:[%s4601 + $0x1ca] sm:$0xff]
  %v5021 = vld [vmem:[%s4601 + $0x1d2] sm:$0xff]
  %v5022 = vld [vmem:[%s4601 + $0x1e2] sm:$0xff]
  %v5023 = vld [vmem:[%s4601 + $0x1ea] sm:$0xff]
  %v5024 = vld [vmem:[%s4601 + $0x1fa] sm:$0xff]
  %v5025 = vld [vmem:[%s4601 + $0x202] sm:$0xff]
  %v5026 = vld [vmem:[%s4601 + $0x212] sm:$0xff]
  %v5027 = vld [vmem:[%s4601 + $0x21a] sm:$0xff]
  %v5028 = vld [vmem:[%s4601 + $0x22a] sm:$0xff]
  %v5029 = vld [vmem:[%s4601 + $0x232] sm:$0xff]
  %v5030 = vld [vmem:[%s4601 + $0x242] sm:$0xff]
  %v5031 = vld [vmem:[%s4601 + $0x24a] sm:$0xff]
  %v5032 = vld [vmem:[%s4601 + $0x25a] sm:$0xff]
  %v5033 = vld [vmem:[%s4601 + $0x262] sm:$0xff]
  %v5034 = vld [vmem:[%s4601 + $0x272] sm:$0xff]
  %v5035 = vld [vmem:[%s4601 + $0x27a] sm:$0xff]
  %v5036 = vld [vmem:[%s4601 + $0x28a] sm:$0xff]
  %v5037 = vld [vmem:[%s4601 + $0x292] sm:$0xff]
  %v5038 = vld [vmem:[%s4601 + $0x2a2] sm:$0xff]
  %v5039 = vld [vmem:[%s4601 + $0x2aa] sm:$0xff]
  %v5040 = vld [vmem:[%s4601 + $0x2ba] sm:$0xff]
  %v5041 = vld [vmem:[%s4601 + $0x2c2] sm:$0xff]
  %v5042 = vld [vmem:[%s4601 + $0x2d2] sm:$0xff]
  %v5043 = vld [vmem:[%s4601 + $0x2da] sm:$0xff]
  %v5044 = vld [vmem:[%s4601 + $0x2ea] sm:$0xff]
  %v5045 = vld [vmem:[%s4601 + $0x2f2] sm:$0xff]
  %v5046 = vld [vmem:[%s4601 + $0x302] sm:$0xff]
  %v5047 = vld [vmem:[%s4601 + $0x30a] sm:$0xff]
  %v5048 = vld [vmem:[%s4601 + $0x31a] sm:$0xff]
  %v5049 = vld [vmem:[%s4601 + $0x322] sm:$0xff]
  %s5050 = scalar_lea.vmem [#allocation3], 48
  %v5051 = vld [vmem:[%s5050] sm:$0xff]
  %v5052 = vld [vmem:[%s5050 + $0x8] sm:$0xff]
  %v5053 = vld [vmem:[%s5050 + $0x18] sm:$0xff]
  %v5054 = vld [vmem:[%s5050 + $0x20] sm:$0xff]
  %v5055 = vld [vmem:[%s5050 + $0x30] sm:$0xff]
  %v5056 = vld [vmem:[%s5050 + $0x38] sm:$0xff]
  %v5057 = vld [vmem:[%s5050 + $0x48] sm:$0xff]
  %v5058 = vld [vmem:[%s5050 + $0x50] sm:$0xff]
  %v5059 = vld [vmem:[%s5050 + $0x60] sm:$0xff]
  %v5060 = vld [vmem:[%s5050 + $0x68] sm:$0xff]
  %v5061 = vld [vmem:[%s5050 + $0x78] sm:$0xff]
  %v5062 = vld [vmem:[%s5050 + $0x80] sm:$0xff]
  %v5063 = vld [vmem:[%s5050 + $0x90] sm:$0xff]
  %v5064 = vld [vmem:[%s5050 + $0x98] sm:$0xff]
  %v5065 = vld [vmem:[%s5050 + $0xa8] sm:$0xff]
  %v5066 = vld [vmem:[%s5050 + $0xb0] sm:$0xff]
  %v5067 = vld [vmem:[%s5050 + $0xc0] sm:$0xff]
  %v5068 = vld [vmem:[%s5050 + $0xc8] sm:$0xff]
  %v5069 = vld [vmem:[%s5050 + $0xd8] sm:$0xff]
  %v5070 = vld [vmem:[%s5050 + $0xe0] sm:$0xff]
  %v5071 = vld [vmem:[%s5050 + $0xf0] sm:$0xff]
  %v5072 = vld [vmem:[%s5050 + $0xf8] sm:$0xff]
  %v5073 = vld [vmem:[%s5050 + $0x108] sm:$0xff]
  %v5074 = vld [vmem:[%s5050 + $0x110] sm:$0xff]
  %v5075 = vld [vmem:[%s5050 + $0x120] sm:$0xff]
  %v5076 = vld [vmem:[%s5050 + $0x128] sm:$0xff]
  %v5077 = vld [vmem:[%s5050 + $0x138] sm:$0xff]
  %v5078 = vld [vmem:[%s5050 + $0x140] sm:$0xff]
  %v5079 = vld [vmem:[%s5050 + $0x150] sm:$0xff]
  %v5080 = vld [vmem:[%s5050 + $0x158] sm:$0xff]
  %v5081 = vld [vmem:[%s5050 + $0x168] sm:$0xff]
  %v5082 = vld [vmem:[%s5050 + $0x170] sm:$0xff]
  %v5083 = vld [vmem:[%s5050 + $0x1b0] sm:$0xff]
  %v5084 = vld [vmem:[%s5050 + $0x1b8] sm:$0xff]
  %v5085 = vld [vmem:[%s5050 + $0x1c8] sm:$0xff]
  %v5086 = vld [vmem:[%s5050 + $0x1d0] sm:$0xff]
  %v5087 = vld [vmem:[%s5050 + $0x1e0] sm:$0xff]
  %v5088 = vld [vmem:[%s5050 + $0x1e8] sm:$0xff]
  %v5089 = vld [vmem:[%s5050 + $0x1f8] sm:$0xff]
  %v5090 = vld [vmem:[%s5050 + $0x200] sm:$0xff]
  %v5091 = vld [vmem:[%s5050 + $0x210] sm:$0xff]
  %v5092 = vld [vmem:[%s5050 + $0x218] sm:$0xff]
  %v5093 = vld [vmem:[%s5050 + $0x228] sm:$0xff]
  %v5094 = vld [vmem:[%s5050 + $0x230] sm:$0xff]
  %v5095 = vld [vmem:[%s5050 + $0x240] sm:$0xff]
  %v5096 = vld [vmem:[%s5050 + $0x248] sm:$0xff]
  %v5097 = vld [vmem:[%s5050 + $0x258] sm:$0xff]
  %v5098 = vld [vmem:[%s5050 + $0x260] sm:$0xff]
  %v5099 = vld [vmem:[%s5050 + $0x270] sm:$0xff]
  %v5100 = vld [vmem:[%s5050 + $0x278] sm:$0xff]
  %v5101 = vld [vmem:[%s5050 + $0x288] sm:$0xff]
  %v5102 = vld [vmem:[%s5050 + $0x290] sm:$0xff]
  %v5103 = vld [vmem:[%s5050 + $0x2a0] sm:$0xff]
  %v5104 = vld [vmem:[%s5050 + $0x2a8] sm:$0xff]
  %v5105 = vld [vmem:[%s5050 + $0x2b8] sm:$0xff]
  %v5106 = vld [vmem:[%s5050 + $0x2c0] sm:$0xff]
  %v5107 = vld [vmem:[%s5050 + $0x2d0] sm:$0xff]
  %v5108 = vld [vmem:[%s5050 + $0x2d8] sm:$0xff]
  %v5109 = vld [vmem:[%s5050 + $0x2e8] sm:$0xff]
  %v5110 = vld [vmem:[%s5050 + $0x2f0] sm:$0xff]
  %v5111 = vld [vmem:[%s5050 + $0x300] sm:$0xff]
  %v5112 = vld [vmem:[%s5050 + $0x308] sm:$0xff]
  %v5113 = vld [vmem:[%s5050 + $0x318] sm:$0xff]
  %v5114 = vld [vmem:[%s5050 + $0x320] sm:$0xff]
  %v5115 = vld [vmem:[%s5050 + $0x1] sm:$0xff]
  %v5116 = vld [vmem:[%s5050 + $0x9] sm:$0xff]
  %v5117 = vld [vmem:[%s5050 + $0x19] sm:$0xff]
  %v5118 = vld [vmem:[%s5050 + $0x21] sm:$0xff]
  %v5119 = vld [vmem:[%s5050 + $0x31] sm:$0xff]
  %v5120 = vld [vmem:[%s5050 + $0x39] sm:$0xff]
  %v5121 = vld [vmem:[%s5050 + $0x49] sm:$0xff]
  %v5122 = vld [vmem:[%s5050 + $0x51] sm:$0xff]
  %v5123 = vld [vmem:[%s5050 + $0x61] sm:$0xff]
  %v5124 = vld [vmem:[%s5050 + $0x69] sm:$0xff]
  %v5125 = vld [vmem:[%s5050 + $0x79] sm:$0xff]
  %v5126 = vld [vmem:[%s5050 + $0x81] sm:$0xff]
  %v5127 = vld [vmem:[%s5050 + $0x91] sm:$0xff]
  %v5128 = vld [vmem:[%s5050 + $0x99] sm:$0xff]
  %v5129 = vld [vmem:[%s5050 + $0xa9] sm:$0xff]
  %v5130 = vld [vmem:[%s5050 + $0xb1] sm:$0xff]
  %v5131 = vld [vmem:[%s5050 + $0xc1] sm:$0xff]
  %v5132 = vld [vmem:[%s5050 + $0xc9] sm:$0xff]
  %v5133 = vld [vmem:[%s5050 + $0xd9] sm:$0xff]
  %v5134 = vld [vmem:[%s5050 + $0xe1] sm:$0xff]
  %v5135 = vld [vmem:[%s5050 + $0xf1] sm:$0xff]
  %v5136 = vld [vmem:[%s5050 + $0xf9] sm:$0xff]
  %v5137 = vld [vmem:[%s5050 + $0x109] sm:$0xff]
  %v5138 = vld [vmem:[%s5050 + $0x111] sm:$0xff]
  %v5139 = vld [vmem:[%s5050 + $0x121] sm:$0xff]
  %v5140 = vld [vmem:[%s5050 + $0x129] sm:$0xff]
  %v5141 = vld [vmem:[%s5050 + $0x139] sm:$0xff]
  %v5142 = vld [vmem:[%s5050 + $0x141] sm:$0xff]
  %v5143 = vld [vmem:[%s5050 + $0x151] sm:$0xff]
  %v5144 = vld [vmem:[%s5050 + $0x159] sm:$0xff]
  %v5145 = vld [vmem:[%s5050 + $0x169] sm:$0xff]
  %v5146 = vld [vmem:[%s5050 + $0x171] sm:$0xff]
  %v5147 = vld [vmem:[%s5050 + $0x1b1] sm:$0xff]
  %v5148 = vld [vmem:[%s5050 + $0x1b9] sm:$0xff]
  %v5149 = vld [vmem:[%s5050 + $0x1c9] sm:$0xff]
  %v5150 = vld [vmem:[%s5050 + $0x1d1] sm:$0xff]
  %v5151 = vld [vmem:[%s5050 + $0x1e1] sm:$0xff]
  %v5152 = vld [vmem:[%s5050 + $0x1e9] sm:$0xff]
  %v5153 = vld [vmem:[%s5050 + $0x1f9] sm:$0xff]
  %v5154 = vld [vmem:[%s5050 + $0x201] sm:$0xff]
  %v5155 = vld [vmem:[%s5050 + $0x211] sm:$0xff]
  %v5156 = vld [vmem:[%s5050 + $0x219] sm:$0xff]
  %v5157 = vld [vmem:[%s5050 + $0x229] sm:$0xff]
  %v5158 = vld [vmem:[%s5050 + $0x231] sm:$0xff]
  %v5159 = vld [vmem:[%s5050 + $0x241] sm:$0xff]
  %v5160 = vld [vmem:[%s5050 + $0x249] sm:$0xff]
  %v5161 = vld [vmem:[%s5050 + $0x259] sm:$0xff]
  %v5162 = vld [vmem:[%s5050 + $0x261] sm:$0xff]
  %v5163 = vld [vmem:[%s5050 + $0x271] sm:$0xff]
  %v5164 = vld [vmem:[%s5050 + $0x279] sm:$0xff]
  %v5165 = vld [vmem:[%s5050 + $0x289] sm:$0xff]
  %v5166 = vld [vmem:[%s5050 + $0x291] sm:$0xff]
  %v5167 = vld [vmem:[%s5050 + $0x2a1] sm:$0xff]
  %v5168 = vld [vmem:[%s5050 + $0x2a9] sm:$0xff]
  %v5169 = vld [vmem:[%s5050 + $0x2b9] sm:$0xff]
  %v5170 = vld [vmem:[%s5050 + $0x2c1] sm:$0xff]
  %v5171 = vld [vmem:[%s5050 + $0x2d1] sm:$0xff]
  %v5172 = vld [vmem:[%s5050 + $0x2d9] sm:$0xff]
  %v5173 = vld [vmem:[%s5050 + $0x2e9] sm:$0xff]
  %v5174 = vld [vmem:[%s5050 + $0x2f1] sm:$0xff]
  %v5175 = vld [vmem:[%s5050 + $0x301] sm:$0xff]
  %v5176 = vld [vmem:[%s5050 + $0x309] sm:$0xff]
  %v5177 = vld [vmem:[%s5050 + $0x319] sm:$0xff]
  %v5178 = vld [vmem:[%s5050 + $0x321] sm:$0xff]
  %v5179 = vld [vmem:[%s5050 + $0x2] sm:$0xff]
  %v5180 = vld [vmem:[%s5050 + $0xa] sm:$0xff]
  %v5181 = vld [vmem:[%s5050 + $0x1a] sm:$0xff]
  %v5182 = vld [vmem:[%s5050 + $0x22] sm:$0xff]
  %v5183 = vld [vmem:[%s5050 + $0x32] sm:$0xff]
  %v5184 = vld [vmem:[%s5050 + $0x3a] sm:$0xff]
  %v5185 = vld [vmem:[%s5050 + $0x4a] sm:$0xff]
  %v5186 = vld [vmem:[%s5050 + $0x52] sm:$0xff]
  %v5187 = vld [vmem:[%s5050 + $0x62] sm:$0xff]
  %v5188 = vld [vmem:[%s5050 + $0x6a] sm:$0xff]
  %v5189 = vld [vmem:[%s5050 + $0x7a] sm:$0xff]
  %v5190 = vld [vmem:[%s5050 + $0x82] sm:$0xff]
  %v5191 = vld [vmem:[%s5050 + $0x92] sm:$0xff]
  %v5192 = vld [vmem:[%s5050 + $0x9a] sm:$0xff]
  %v5193 = vld [vmem:[%s5050 + $0xaa] sm:$0xff]
  %v5194 = vld [vmem:[%s5050 + $0xb2] sm:$0xff]
  %v5195 = vld [vmem:[%s5050 + $0xc2] sm:$0xff]
  %v5196 = vld [vmem:[%s5050 + $0xca] sm:$0xff]
  %v5197 = vld [vmem:[%s5050 + $0xda] sm:$0xff]
  %v5198 = vld [vmem:[%s5050 + $0xe2] sm:$0xff]
  %v5199 = vld [vmem:[%s5050 + $0xf2] sm:$0xff]
  %v5200 = vld [vmem:[%s5050 + $0xfa] sm:$0xff]
  %v5201 = vld [vmem:[%s5050 + $0x10a] sm:$0xff]
  %v5202 = vld [vmem:[%s5050 + $0x112] sm:$0xff]
  %v5203 = vld [vmem:[%s5050 + $0x122] sm:$0xff]
  %v5204 = vld [vmem:[%s5050 + $0x12a] sm:$0xff]
  %v5205 = vld [vmem:[%s5050 + $0x13a] sm:$0xff]
  %v5206 = vld [vmem:[%s5050 + $0x142] sm:$0xff]
  %v5207 = vld [vmem:[%s5050 + $0x152] sm:$0xff]
  %v5208 = vld [vmem:[%s5050 + $0x15a] sm:$0xff]
  %v5209 = vld [vmem:[%s5050 + $0x16a] sm:$0xff]
  %v5210 = vld [vmem:[%s5050 + $0x172] sm:$0xff]
  %v5211 = vld [vmem:[%s5050 + $0x1b2] sm:$0xff]
  %v5212 = vld [vmem:[%s5050 + $0x1ba] sm:$0xff]
  %v5213 = vld [vmem:[%s5050 + $0x1ca] sm:$0xff]
  %v5214 = vld [vmem:[%s5050 + $0x1d2] sm:$0xff]
  %v5215 = vld [vmem:[%s5050 + $0x1e2] sm:$0xff]
  %v5216 = vld [vmem:[%s5050 + $0x1ea] sm:$0xff]
  %v5217 = vld [vmem:[%s5050 + $0x1fa] sm:$0xff]
  %v5218 = vld [vmem:[%s5050 + $0x202] sm:$0xff]
  %v5219 = vld [vmem:[%s5050 + $0x212] sm:$0xff]
  %v5220 = vld [vmem:[%s5050 + $0x21a] sm:$0xff]
  %v5221 = vld [vmem:[%s5050 + $0x22a] sm:$0xff]
  %v5222 = vld [vmem:[%s5050 + $0x232] sm:$0xff]
  %v5223 = vld [vmem:[%s5050 + $0x242] sm:$0xff]
  %v5224 = vld [vmem:[%s5050 + $0x24a] sm:$0xff]
  %v5225 = vld [vmem:[%s5050 + $0x25a] sm:$0xff]
  %v5226 = vld [vmem:[%s5050 + $0x262] sm:$0xff]
  %v5227 = vld [vmem:[%s5050 + $0x272] sm:$0xff]
  %v5228 = vld [vmem:[%s5050 + $0x27a] sm:$0xff]
  %v5229 = vld [vmem:[%s5050 + $0x28a] sm:$0xff]
  %v5230 = vld [vmem:[%s5050 + $0x292] sm:$0xff]
  %v5231 = vld [vmem:[%s5050 + $0x2a2] sm:$0xff]
  %v5232 = vld [vmem:[%s5050 + $0x2aa] sm:$0xff]
  %v5233 = vld [vmem:[%s5050 + $0x2ba] sm:$0xff]
  %v5234 = vld [vmem:[%s5050 + $0x2c2] sm:$0xff]
  %v5235 = vld [vmem:[%s5050 + $0x2d2] sm:$0xff]
  %v5236 = vld [vmem:[%s5050 + $0x2da] sm:$0xff]
  %v5237 = vld [vmem:[%s5050 + $0x2ea] sm:$0xff]
  %v5238 = vld [vmem:[%s5050 + $0x2f2] sm:$0xff]
  %v5239 = vld [vmem:[%s5050 + $0x302] sm:$0xff]
  %v5240 = vld [vmem:[%s5050 + $0x30a] sm:$0xff]
  %v5241 = vld [vmem:[%s5050 + $0x31a] sm:$0xff]
  %v5242 = vld [vmem:[%s5050 + $0x322] sm:$0xff]
  %5307 = vrot.lane.b32.xlu0 %v4730, 8
  %v5308 = vpop.permute.xlu0 %5307
  %5309 = vrot.lane.b32.xlu0 %v4731, 8
  %v5310 = vpop.permute.xlu0 %5309
  %5311 = vrot.lane.b32.xlu0 %v4732, 8
  %v5312 = vpop.permute.xlu0 %5311
  %5313 = vrot.lane.b32.xlu0 %v4733, 8
  %v5314 = vpop.permute.xlu0 %5313
  %5315 = vrot.lane.b32.xlu0 %v4734, 8
  %v5316 = vpop.permute.xlu0 %5315
  %5317 = vrot.lane.b32.xlu0 %v4735, 8
  %v5318 = vpop.permute.xlu0 %5317
  %5319 = vrot.lane.b32.xlu0 %v4736, 8
  %v5320 = vpop.permute.xlu0 %5319
  %5321 = vrot.lane.b32.xlu0 %v4737, 8
  %v5322 = vpop.permute.xlu0 %5321
  %5323 = vrot.lane.b32.xlu0 %v4738, 8
  %v5324 = vpop.permute.xlu0 %5323
  %5325 = vrot.lane.b32.xlu0 %v4739, 8
  %v5326 = vpop.permute.xlu0 %5325
  %5327 = vrot.lane.b32.xlu0 %v4740, 8
  %v5328 = vpop.permute.xlu0 %5327
  %5329 = vrot.lane.b32.xlu0 %v4741, 8
  %v5330 = vpop.permute.xlu0 %5329
  %5331 = vrot.lane.b32.xlu0 %v4742, 8
  %v5332 = vpop.permute.xlu0 %5331
  %5333 = vrot.lane.b32.xlu0 %v4743, 8
  %v5334 = vpop.permute.xlu0 %5333
  %5335 = vrot.lane.b32.xlu0 %v4744, 8
  %v5336 = vpop.permute.xlu0 %5335
  %5337 = vrot.lane.b32.xlu0 %v4745, 8
  %v5338 = vpop.permute.xlu0 %5337
  %5339 = vrot.lane.b32.xlu0 %v4746, 8
  %v5340 = vpop.permute.xlu0 %5339
  %5341 = vrot.lane.b32.xlu0 %v4747, 8
  %v5342 = vpop.permute.xlu0 %5341
  %5343 = vrot.lane.b32.xlu0 %v4748, 8
  %v5344 = vpop.permute.xlu0 %5343
  %5345 = vrot.lane.b32.xlu0 %v4749, 8
  %v5346 = vpop.permute.xlu0 %5345
  %5347 = vrot.lane.b32.xlu0 %v4750, 8
  %v5348 = vpop.permute.xlu0 %5347
  %5349 = vrot.lane.b32.xlu0 %v4751, 8
  %v5350 = vpop.permute.xlu0 %5349
  %5351 = vrot.lane.b32.xlu0 %v4752, 8
  %v5352 = vpop.permute.xlu0 %5351
  %5353 = vrot.lane.b32.xlu0 %v4753, 8
  %v5354 = vpop.permute.xlu0 %5353
  %5355 = vrot.lane.b32.xlu0 %v4754, 8
  %v5356 = vpop.permute.xlu0 %5355
  %5357 = vrot.lane.b32.xlu0 %v4755, 8
  %v5358 = vpop.permute.xlu0 %5357
  %5359 = vrot.lane.b32.xlu0 %v4756, 8
  %v5360 = vpop.permute.xlu0 %5359
  %5361 = vrot.lane.b32.xlu0 %v4757, 8
  %v5362 = vpop.permute.xlu0 %5361
  %5363 = vrot.lane.b32.xlu0 %v4758, 8
  %v5364 = vpop.permute.xlu0 %5363
  %5365 = vrot.lane.b32.xlu0 %v4759, 8
  %v5366 = vpop.permute.xlu0 %5365
  %5367 = vrot.lane.b32.xlu0 %v4760, 8
  %v5368 = vpop.permute.xlu0 %5367
  %5369 = vrot.lane.b32.xlu0 %v4761, 8
  %v5370 = vpop.permute.xlu0 %5369
  %5371 = vrot.lane.b32.xlu0 %v4762, 8
  %v5372 = vpop.permute.xlu0 %5371
  %5373 = vrot.lane.b32.xlu0 %v4763, 8
  %v5374 = vpop.permute.xlu0 %5373
  %5375 = vrot.lane.b32.xlu0 %v4764, 8
  %v5376 = vpop.permute.xlu0 %5375
  %5377 = vrot.lane.b32.xlu0 %v4765, 8
  %v5378 = vpop.permute.xlu0 %5377
  %5379 = vrot.lane.b32.xlu0 %v4766, 8
  %v5380 = vpop.permute.xlu0 %5379
  %5381 = vrot.lane.b32.xlu0 %v4767, 8
  %v5382 = vpop.permute.xlu0 %5381
  %5383 = vrot.lane.b32.xlu0 %v4768, 8
  %v5384 = vpop.permute.xlu0 %5383
  %5385 = vrot.lane.b32.xlu0 %v4769, 8
  %v5386 = vpop.permute.xlu0 %5385
  %5387 = vrot.lane.b32.xlu0 %v4770, 8
  %v5388 = vpop.permute.xlu0 %5387
  %5389 = vrot.lane.b32.xlu0 %v4771, 8
  %v5390 = vpop.permute.xlu0 %5389
  %5391 = vrot.lane.b32.xlu0 %v4772, 8
  %v5392 = vpop.permute.xlu0 %5391
  %5393 = vrot.lane.b32.xlu0 %v4773, 8
  %v5394 = vpop.permute.xlu0 %5393
  %5395 = vrot.lane.b32.xlu0 %v4774, 8
  %v5396 = vpop.permute.xlu0 %5395
  %5397 = vrot.lane.b32.xlu0 %v4775, 8
  %v5398 = vpop.permute.xlu0 %5397
  %5399 = vrot.lane.b32.xlu0 %v4776, 8
  %v5400 = vpop.permute.xlu0 %5399
  %5401 = vrot.lane.b32.xlu0 %v4777, 8
  %v5402 = vpop.permute.xlu0 %5401
  %5403 = vrot.lane.b32.xlu0 %v4778, 8
  %v5404 = vpop.permute.xlu0 %5403
  %5405 = vrot.lane.b32.xlu0 %v4779, 8
  %v5406 = vpop.permute.xlu0 %5405
  %5407 = vrot.lane.b32.xlu0 %v4780, 8
  %v5408 = vpop.permute.xlu0 %5407
  %5409 = vrot.lane.b32.xlu0 %v4781, 8
  %v5410 = vpop.permute.xlu0 %5409
  %5411 = vrot.lane.b32.xlu0 %v4782, 8
  %v5412 = vpop.permute.xlu0 %5411
  %5413 = vrot.lane.b32.xlu0 %v4783, 8
  %v5414 = vpop.permute.xlu0 %5413
  %5415 = vrot.lane.b32.xlu0 %v4784, 8
  %v5416 = vpop.permute.xlu0 %5415
  %5417 = vrot.lane.b32.xlu0 %v4785, 8
  %v5418 = vpop.permute.xlu0 %5417
  %5419 = vrot.lane.b32.xlu0 %v4786, 8
  %v5420 = vpop.permute.xlu0 %5419
  %5421 = vrot.lane.b32.xlu0 %v4787, 8
  %v5422 = vpop.permute.xlu0 %5421
  %5423 = vrot.lane.b32.xlu0 %v4788, 8
  %v5424 = vpop.permute.xlu0 %5423
  %5425 = vrot.lane.b32.xlu0 %v4789, 8
  %v5426 = vpop.permute.xlu0 %5425
  %5427 = vrot.lane.b32.xlu0 %v4790, 8
  %v5428 = vpop.permute.xlu0 %5427
  %5429 = vrot.lane.b32.xlu0 %v4791, 8
  %v5430 = vpop.permute.xlu0 %5429
  %5431 = vrot.lane.b32.xlu0 %v4792, 8
  %v5432 = vpop.permute.xlu0 %5431
  %5433 = vrot.lane.b32.xlu0 %v4793, 8
  %v5434 = vpop.permute.xlu0 %5433
  %5563 = vrot.lane.b32.xlu0 %v4794, 16
  %v5564 = vpop.permute.xlu0 %5563
  %5565 = vrot.lane.b32.xlu0 %v4795, 16
  %v5566 = vpop.permute.xlu0 %5565
  %5567 = vrot.lane.b32.xlu0 %v4796, 16
  %v5568 = vpop.permute.xlu0 %5567
  %5569 = vrot.lane.b32.xlu0 %v4797, 16
  %v5570 = vpop.permute.xlu0 %5569
  %5571 = vrot.lane.b32.xlu0 %v4798, 16
  %v5572 = vpop.permute.xlu0 %5571
  %5573 = vrot.lane.b32.xlu0 %v4799, 16
  %v5574 = vpop.permute.xlu0 %5573
  %5575 = vrot.lane.b32.xlu0 %v4800, 16
  %v5576 = vpop.permute.xlu0 %5575
  %5577 = vrot.lane.b32.xlu0 %v4801, 16
  %v5578 = vpop.permute.xlu0 %5577
  %5579 = vrot.lane.b32.xlu0 %v4802, 16
  %v5580 = vpop.permute.xlu0 %5579
  %5581 = vrot.lane.b32.xlu0 %v4803, 16
  %v5582 = vpop.permute.xlu0 %5581
  %5583 = vrot.lane.b32.xlu0 %v4804, 16
  %v5584 = vpop.permute.xlu0 %5583
  %5585 = vrot.lane.b32.xlu0 %v4805, 16
  %v5586 = vpop.permute.xlu0 %5585
  %5587 = vrot.lane.b32.xlu0 %v4806, 16
  %v5588 = vpop.permute.xlu0 %5587
  %5589 = vrot.lane.b32.xlu0 %v4807, 16
  %v5590 = vpop.permute.xlu0 %5589
  %5591 = vrot.lane.b32.xlu0 %v4808, 16
  %v5592 = vpop.permute.xlu0 %5591
  %5593 = vrot.lane.b32.xlu0 %v4809, 16
  %v5594 = vpop.permute.xlu0 %5593
  %5595 = vrot.lane.b32.xlu0 %v4810, 16
  %v5596 = vpop.permute.xlu0 %5595
  %5597 = vrot.lane.b32.xlu0 %v4811, 16
  %v5598 = vpop.permute.xlu0 %5597
  %5599 = vrot.lane.b32.xlu0 %v4812, 16
  %v5600 = vpop.permute.xlu0 %5599
  %5601 = vrot.lane.b32.xlu0 %v4813, 16
  %v5602 = vpop.permute.xlu0 %5601
  %5603 = vrot.lane.b32.xlu0 %v4814, 16
  %v5604 = vpop.permute.xlu0 %5603
  %5605 = vrot.lane.b32.xlu0 %v4815, 16
  %v5606 = vpop.permute.xlu0 %5605
  %5607 = vrot.lane.b32.xlu0 %v4816, 16
  %v5608 = vpop.permute.xlu0 %5607
  %5609 = vrot.lane.b32.xlu0 %v4817, 16
  %v5610 = vpop.permute.xlu0 %5609
  %5611 = vrot.lane.b32.xlu0 %v4818, 16
  %v5612 = vpop.permute.xlu0 %5611
  %5613 = vrot.lane.b32.xlu0 %v4819, 16
  %v5614 = vpop.permute.xlu0 %5613
  %5615 = vrot.lane.b32.xlu0 %v4820, 16
  %v5616 = vpop.permute.xlu0 %5615
  %5617 = vrot.lane.b32.xlu0 %v4821, 16
  %v5618 = vpop.permute.xlu0 %5617
  %5619 = vrot.lane.b32.xlu0 %v4822, 16
  %v5620 = vpop.permute.xlu0 %5619
  %5621 = vrot.lane.b32.xlu0 %v4823, 16
  %v5622 = vpop.permute.xlu0 %5621
  %5623 = vrot.lane.b32.xlu0 %v4824, 16
  %v5624 = vpop.permute.xlu0 %5623
  %5625 = vrot.lane.b32.xlu0 %v4825, 16
  %v5626 = vpop.permute.xlu0 %5625
  %5627 = vrot.lane.b32.xlu0 %v4826, 16
  %v5628 = vpop.permute.xlu0 %5627
  %5629 = vrot.lane.b32.xlu0 %v4827, 16
  %v5630 = vpop.permute.xlu0 %5629
  %5631 = vrot.lane.b32.xlu0 %v4828, 16
  %v5632 = vpop.permute.xlu0 %5631
  %5633 = vrot.lane.b32.xlu0 %v4829, 16
  %v5634 = vpop.permute.xlu0 %5633
  %5635 = vrot.lane.b32.xlu0 %v4830, 16
  %v5636 = vpop.permute.xlu0 %5635
  %5637 = vrot.lane.b32.xlu0 %v4831, 16
  %v5638 = vpop.permute.xlu0 %5637
  %5639 = vrot.lane.b32.xlu0 %v4832, 16
  %v5640 = vpop.permute.xlu0 %5639
  %5641 = vrot.lane.b32.xlu0 %v4833, 16
  %v5642 = vpop.permute.xlu0 %5641
  %5643 = vrot.lane.b32.xlu0 %v4834, 16
  %v5644 = vpop.permute.xlu0 %5643
  %5645 = vrot.lane.b32.xlu0 %v4835, 16
  %v5646 = vpop.permute.xlu0 %5645
  %5647 = vrot.lane.b32.xlu0 %v4836, 16
  %v5648 = vpop.permute.xlu0 %5647
  %5649 = vrot.lane.b32.xlu0 %v4837, 16
  %v5650 = vpop.permute.xlu0 %5649
  %5651 = vrot.lane.b32.xlu0 %v4838, 16
  %v5652 = vpop.permute.xlu0 %5651
  %5653 = vrot.lane.b32.xlu0 %v4839, 16
  %v5654 = vpop.permute.xlu0 %5653
  %5655 = vrot.lane.b32.xlu0 %v4840, 16
  %v5656 = vpop.permute.xlu0 %5655
  %5657 = vrot.lane.b32.xlu0 %v4841, 16
  %v5658 = vpop.permute.xlu0 %5657
  %5659 = vrot.lane.b32.xlu0 %v4842, 16
  %v5660 = vpop.permute.xlu0 %5659
  %5661 = vrot.lane.b32.xlu0 %v4843, 16
  %v5662 = vpop.permute.xlu0 %5661
  %5663 = vrot.lane.b32.xlu0 %v4844, 16
  %v5664 = vpop.permute.xlu0 %5663
  %5665 = vrot.lane.b32.xlu0 %v4845, 16
  %v5666 = vpop.permute.xlu0 %5665
  %5667 = vrot.lane.b32.xlu0 %v4846, 16
  %v5668 = vpop.permute.xlu0 %5667
  %5669 = vrot.lane.b32.xlu0 %v4847, 16
  %v5670 = vpop.permute.xlu0 %5669
  %5671 = vrot.lane.b32.xlu0 %v4848, 16
  %v5672 = vpop.permute.xlu0 %5671
  %5673 = vrot.lane.b32.xlu0 %v4849, 16
  %v5674 = vpop.permute.xlu0 %5673
  %5675 = vrot.lane.b32.xlu0 %v4850, 16
  %v5676 = vpop.permute.xlu0 %5675
  %5677 = vrot.lane.b32.xlu0 %v4851, 16
  %v5678 = vpop.permute.xlu0 %5677
  %5679 = vrot.lane.b32.xlu0 %v4852, 16
  %v5680 = vpop.permute.xlu0 %5679
  %5681 = vrot.lane.b32.xlu0 %v4853, 16
  %v5682 = vpop.permute.xlu0 %5681
  %5683 = vrot.lane.b32.xlu0 %v4854, 16
  %v5684 = vpop.permute.xlu0 %5683
  %5685 = vrot.lane.b32.xlu0 %v4855, 16
  %v5686 = vpop.permute.xlu0 %5685
  %5687 = vrot.lane.b32.xlu0 %v4856, 16
  %v5688 = vpop.permute.xlu0 %5687
  %5689 = vrot.lane.b32.xlu0 %v4857, 16
  %v5690 = vpop.permute.xlu0 %5689
  %5819 = vrot.lane.b32.xlu0 %v4858, 24
  %v5820 = vpop.permute.xlu0 %5819
  %5821 = vrot.lane.b32.xlu0 %v4859, 24
  %v5822 = vpop.permute.xlu0 %5821
  %5823 = vrot.lane.b32.xlu0 %v4860, 24
  %v5824 = vpop.permute.xlu0 %5823
  %5825 = vrot.lane.b32.xlu0 %v4861, 24
  %v5826 = vpop.permute.xlu0 %5825
  %5827 = vrot.lane.b32.xlu0 %v4862, 24
  %v5828 = vpop.permute.xlu0 %5827
  %5829 = vrot.lane.b32.xlu0 %v4863, 24
  %v5830 = vpop.permute.xlu0 %5829
  %5831 = vrot.lane.b32.xlu0 %v4864, 24
  %v5832 = vpop.permute.xlu0 %5831
  %5833 = vrot.lane.b32.xlu0 %v4865, 24
  %v5834 = vpop.permute.xlu0 %5833
  %5835 = vrot.lane.b32.xlu0 %v4866, 24
  %v5836 = vpop.permute.xlu0 %5835
  %5837 = vrot.lane.b32.xlu0 %v4867, 24
  %v5838 = vpop.permute.xlu0 %5837
  %5839 = vrot.lane.b32.xlu0 %v4868, 24
  %v5840 = vpop.permute.xlu0 %5839
  %5841 = vrot.lane.b32.xlu0 %v4869, 24
  %v5842 = vpop.permute.xlu0 %5841
  %5843 = vrot.lane.b32.xlu0 %v4870, 24
  %v5844 = vpop.permute.xlu0 %5843
  %5845 = vrot.lane.b32.xlu0 %v4871, 24
  %v5846 = vpop.permute.xlu0 %5845
  %5847 = vrot.lane.b32.xlu0 %v4872, 24
  %v5848 = vpop.permute.xlu0 %5847
  %5849 = vrot.lane.b32.xlu0 %v4873, 24
  %v5850 = vpop.permute.xlu0 %5849
  %5851 = vrot.lane.b32.xlu0 %v4874, 24
  %v5852 = vpop.permute.xlu0 %5851
  %5853 = vrot.lane.b32.xlu0 %v4875, 24
  %v5854 = vpop.permute.xlu0 %5853
  %5855 = vrot.lane.b32.xlu0 %v4876, 24
  %v5856 = vpop.permute.xlu0 %5855
  %5857 = vrot.lane.b32.xlu0 %v4877, 24
  %v5858 = vpop.permute.xlu0 %5857
  %5859 = vrot.lane.b32.xlu0 %v4878, 24
  %v5860 = vpop.permute.xlu0 %5859
  %5861 = vrot.lane.b32.xlu0 %v4879, 24
  %v5862 = vpop.permute.xlu0 %5861
  %5863 = vrot.lane.b32.xlu0 %v4880, 24
  %v5864 = vpop.permute.xlu0 %5863
  %5865 = vrot.lane.b32.xlu0 %v4881, 24
  %v5866 = vpop.permute.xlu0 %5865
  %5867 = vrot.lane.b32.xlu0 %v4882, 24
  %v5868 = vpop.permute.xlu0 %5867
  %5869 = vrot.lane.b32.xlu0 %v4883, 24
  %v5870 = vpop.permute.xlu0 %5869
  %5871 = vrot.lane.b32.xlu0 %v4884, 24
  %v5872 = vpop.permute.xlu0 %5871
  %5873 = vrot.lane.b32.xlu0 %v4885, 24
  %v5874 = vpop.permute.xlu0 %5873
  %5875 = vrot.lane.b32.xlu0 %v4886, 24
  %v5876 = vpop.permute.xlu0 %5875
  %5877 = vrot.lane.b32.xlu0 %v4887, 24
  %v5878 = vpop.permute.xlu0 %5877
  %5879 = vrot.lane.b32.xlu0 %v4888, 24
  %v5880 = vpop.permute.xlu0 %5879
  %5881 = vrot.lane.b32.xlu0 %v4889, 24
  %v5882 = vpop.permute.xlu0 %5881
  %5883 = vrot.lane.b32.xlu0 %v4890, 24
  %v5884 = vpop.permute.xlu0 %5883
  %5885 = vrot.lane.b32.xlu0 %v4891, 24
  %v5886 = vpop.permute.xlu0 %5885
  %5887 = vrot.lane.b32.xlu0 %v4892, 24
  %v5888 = vpop.permute.xlu0 %5887
  %5889 = vrot.lane.b32.xlu0 %v4893, 24
  %v5890 = vpop.permute.xlu0 %5889
  %5891 = vrot.lane.b32.xlu0 %v4894, 24
  %v5892 = vpop.permute.xlu0 %5891
  %5893 = vrot.lane.b32.xlu0 %v4895, 24
  %v5894 = vpop.permute.xlu0 %5893
  %5895 = vrot.lane.b32.xlu0 %v4896, 24
  %v5896 = vpop.permute.xlu0 %5895
  %5897 = vrot.lane.b32.xlu0 %v4897, 24
  %v5898 = vpop.permute.xlu0 %5897
  %5899 = vrot.lane.b32.xlu0 %v4898, 24
  %v5900 = vpop.permute.xlu0 %5899
  %5901 = vrot.lane.b32.xlu0 %v4899, 24
  %v5902 = vpop.permute.xlu0 %5901
  %5903 = vrot.lane.b32.xlu0 %v4900, 24
  %v5904 = vpop.permute.xlu0 %5903
  %5905 = vrot.lane.b32.xlu0 %v4901, 24
  %v5906 = vpop.permute.xlu0 %5905
  %5907 = vrot.lane.b32.xlu0 %v4902, 24
  %v5908 = vpop.permute.xlu0 %5907
  %5909 = vrot.lane.b32.xlu0 %v4903, 24
  %v5910 = vpop.permute.xlu0 %5909
  %5911 = vrot.lane.b32.xlu0 %v4904, 24
  %v5912 = vpop.permute.xlu0 %5911
  %5913 = vrot.lane.b32.xlu0 %v4905, 24
  %v5914 = vpop.permute.xlu0 %5913
  %5915 = vrot.lane.b32.xlu0 %v4906, 24
  %v5916 = vpop.permute.xlu0 %5915
  %5917 = vrot.lane.b32.xlu0 %v4907, 24
  %v5918 = vpop.permute.xlu0 %5917
  %5919 = vrot.lane.b32.xlu0 %v4908, 24
  %v5920 = vpop.permute.xlu0 %5919
  %5921 = vrot.lane.b32.xlu0 %v4909, 24
  %v5922 = vpop.permute.xlu0 %5921
  %5923 = vrot.lane.b32.xlu0 %v4910, 24
  %v5924 = vpop.permute.xlu0 %5923
  %5925 = vrot.lane.b32.xlu0 %v4911, 24
  %v5926 = vpop.permute.xlu0 %5925
  %5927 = vrot.lane.b32.xlu0 %v4912, 24
  %v5928 = vpop.permute.xlu0 %5927
  %5929 = vrot.lane.b32.xlu0 %v4913, 24
  %v5930 = vpop.permute.xlu0 %5929
  %5931 = vrot.lane.b32.xlu0 %v4914, 24
  %v5932 = vpop.permute.xlu0 %5931
  %5933 = vrot.lane.b32.xlu0 %v4915, 24
  %v5934 = vpop.permute.xlu0 %5933
  %5935 = vrot.lane.b32.xlu0 %v4916, 24
  %v5936 = vpop.permute.xlu0 %5935
  %5937 = vrot.lane.b32.xlu0 %v4917, 24
  %v5938 = vpop.permute.xlu0 %5937
  %5939 = vrot.lane.b32.xlu0 %v4918, 24
  %v5940 = vpop.permute.xlu0 %5939
  %5941 = vrot.lane.b32.xlu0 %v4919, 24
  %v5942 = vpop.permute.xlu0 %5941
  %5943 = vrot.lane.b32.xlu0 %v4920, 24
  %v5944 = vpop.permute.xlu0 %5943
  %5945 = vrot.lane.b32.xlu0 %v4921, 24
  %v5946 = vpop.permute.xlu0 %5945
  %6075 = vrot.lane.b32.xlu0 %v4922, 32
  %v6076 = vpop.permute.xlu0 %6075
  %6077 = vrot.lane.b32.xlu0 %v4923, 32
  %v6078 = vpop.permute.xlu0 %6077
  %6079 = vrot.lane.b32.xlu0 %v4924, 32
  %v6080 = vpop.permute.xlu0 %6079
  %6081 = vrot.lane.b32.xlu0 %v4925, 32
  %v6082 = vpop.permute.xlu0 %6081
  %6083 = vrot.lane.b32.xlu0 %v4926, 32
  %v6084 = vpop.permute.xlu0 %6083
  %6085 = vrot.lane.b32.xlu0 %v4927, 32
  %v6086 = vpop.permute.xlu0 %6085
  %6087 = vrot.lane.b32.xlu0 %v4928, 32
  %v6088 = vpop.permute.xlu0 %6087
  %6089 = vrot.lane.b32.xlu0 %v4929, 32
  %v6090 = vpop.permute.xlu0 %6089
  %6091 = vrot.lane.b32.xlu0 %v4930, 32
  %v6092 = vpop.permute.xlu0 %6091
  %6093 = vrot.lane.b32.xlu0 %v4931, 32
  %v6094 = vpop.permute.xlu0 %6093
  %6095 = vrot.lane.b32.xlu0 %v4932, 32
  %v6096 = vpop.permute.xlu0 %6095
  %6097 = vrot.lane.b32.xlu0 %v4933, 32
  %v6098 = vpop.permute.xlu0 %6097
  %6099 = vrot.lane.b32.xlu0 %v4934, 32
  %v6100 = vpop.permute.xlu0 %6099
  %6101 = vrot.lane.b32.xlu0 %v4935, 32
  %v6102 = vpop.permute.xlu0 %6101
  %6103 = vrot.lane.b32.xlu0 %v4936, 32
  %v6104 = vpop.permute.xlu0 %6103
  %6105 = vrot.lane.b32.xlu0 %v4937, 32
  %v6106 = vpop.permute.xlu0 %6105
  %6107 = vrot.lane.b32.xlu0 %v4938, 32
  %v6108 = vpop.permute.xlu0 %6107
  %6109 = vrot.lane.b32.xlu0 %v4939, 32
  %v6110 = vpop.permute.xlu0 %6109
  %6111 = vrot.lane.b32.xlu0 %v4940, 32
  %v6112 = vpop.permute.xlu0 %6111
  %6113 = vrot.lane.b32.xlu0 %v4941, 32
  %v6114 = vpop.permute.xlu0 %6113
  %6115 = vrot.lane.b32.xlu0 %v4942, 32
  %v6116 = vpop.permute.xlu0 %6115
  %6117 = vrot.lane.b32.xlu0 %v4943, 32
  %v6118 = vpop.permute.xlu0 %6117
  %6119 = vrot.lane.b32.xlu0 %v4944, 32
  %v6120 = vpop.permute.xlu0 %6119
  %6121 = vrot.lane.b32.xlu0 %v4945, 32
  %v6122 = vpop.permute.xlu0 %6121
  %6123 = vrot.lane.b32.xlu0 %v4946, 32
  %v6124 = vpop.permute.xlu0 %6123
  %6125 = vrot.lane.b32.xlu0 %v4947, 32
  %v6126 = vpop.permute.xlu0 %6125
  %6127 = vrot.lane.b32.xlu0 %v4948, 32
  %v6128 = vpop.permute.xlu0 %6127
  %6129 = vrot.lane.b32.xlu0 %v4949, 32
  %v6130 = vpop.permute.xlu0 %6129
  %6131 = vrot.lane.b32.xlu0 %v4950, 32
  %v6132 = vpop.permute.xlu0 %6131
  %6133 = vrot.lane.b32.xlu0 %v4951, 32
  %v6134 = vpop.permute.xlu0 %6133
  %6135 = vrot.lane.b32.xlu0 %v4952, 32
  %v6136 = vpop.permute.xlu0 %6135
  %6137 = vrot.lane.b32.xlu0 %v4953, 32
  %v6138 = vpop.permute.xlu0 %6137
  %6139 = vrot.lane.b32.xlu0 %v4954, 32
  %v6140 = vpop.permute.xlu0 %6139
  %6141 = vrot.lane.b32.xlu0 %v4955, 32
  %v6142 = vpop.permute.xlu0 %6141
  %6143 = vrot.lane.b32.xlu0 %v4956, 32
  %v6144 = vpop.permute.xlu0 %6143
  %6145 = vrot.lane.b32.xlu0 %v4957, 32
  %v6146 = vpop.permute.xlu0 %6145
  %6147 = vrot.lane.b32.xlu0 %v4958, 32
  %v6148 = vpop.permute.xlu0 %6147
  %6149 = vrot.lane.b32.xlu0 %v4959, 32
  %v6150 = vpop.permute.xlu0 %6149
  %6151 = vrot.lane.b32.xlu0 %v4960, 32
  %v6152 = vpop.permute.xlu0 %6151
  %6153 = vrot.lane.b32.xlu0 %v4961, 32
  %v6154 = vpop.permute.xlu0 %6153
  %6155 = vrot.lane.b32.xlu0 %v4962, 32
  %v6156 = vpop.permute.xlu0 %6155
  %6157 = vrot.lane.b32.xlu0 %v4963, 32
  %v6158 = vpop.permute.xlu0 %6157
  %6159 = vrot.lane.b32.xlu0 %v4964, 32
  %v6160 = vpop.permute.xlu0 %6159
  %6161 = vrot.lane.b32.xlu0 %v4965, 32
  %v6162 = vpop.permute.xlu0 %6161
  %6163 = vrot.lane.b32.xlu0 %v4966, 32
  %v6164 = vpop.permute.xlu0 %6163
  %6165 = vrot.lane.b32.xlu0 %v4967, 32
  %v6166 = vpop.permute.xlu0 %6165
  %6167 = vrot.lane.b32.xlu0 %v4968, 32
  %v6168 = vpop.permute.xlu0 %6167
  %6169 = vrot.lane.b32.xlu0 %v4969, 32
  %v6170 = vpop.permute.xlu0 %6169
  %6171 = vrot.lane.b32.xlu0 %v4970, 32
  %v6172 = vpop.permute.xlu0 %6171
  %6173 = vrot.lane.b32.xlu0 %v4971, 32
  %v6174 = vpop.permute.xlu0 %6173
  %6175 = vrot.lane.b32.xlu0 %v4972, 32
  %v6176 = vpop.permute.xlu0 %6175
  %6177 = vrot.lane.b32.xlu0 %v4973, 32
  %v6178 = vpop.permute.xlu0 %6177
  %6179 = vrot.lane.b32.xlu0 %v4974, 32
  %v6180 = vpop.permute.xlu0 %6179
  %6181 = vrot.lane.b32.xlu0 %v4975, 32
  %v6182 = vpop.permute.xlu0 %6181
  %6183 = vrot.lane.b32.xlu0 %v4976, 32
  %v6184 = vpop.permute.xlu0 %6183
  %6185 = vrot.lane.b32.xlu0 %v4977, 32
  %v6186 = vpop.permute.xlu0 %6185
  %6187 = vrot.lane.b32.xlu0 %v4978, 32
  %v6188 = vpop.permute.xlu0 %6187
  %6189 = vrot.lane.b32.xlu0 %v4979, 32
  %v6190 = vpop.permute.xlu0 %6189
  %6191 = vrot.lane.b32.xlu0 %v4980, 32
  %v6192 = vpop.permute.xlu0 %6191
  %6193 = vrot.lane.b32.xlu0 %v4981, 32
  %v6194 = vpop.permute.xlu0 %6193
  %6195 = vrot.lane.b32.xlu0 %v4982, 32
  %v6196 = vpop.permute.xlu0 %6195
  %6197 = vrot.lane.b32.xlu0 %v4983, 32
  %v6198 = vpop.permute.xlu0 %6197
  %6199 = vrot.lane.b32.xlu0 %v4984, 32
  %v6200 = vpop.permute.xlu0 %6199
  %6201 = vrot.lane.b32.xlu0 %v4985, 32
  %v6202 = vpop.permute.xlu0 %6201
  %6331 = vrot.lane.b32.xlu0 %v4986, 40
  %v6332 = vpop.permute.xlu0 %6331
  %6333 = vrot.lane.b32.xlu0 %v4987, 40
  %v6334 = vpop.permute.xlu0 %6333
  %6335 = vrot.lane.b32.xlu0 %v4988, 40
  %v6336 = vpop.permute.xlu0 %6335
  %6337 = vrot.lane.b32.xlu0 %v4989, 40
  %v6338 = vpop.permute.xlu0 %6337
  %6339 = vrot.lane.b32.xlu0 %v4990, 40
  %v6340 = vpop.permute.xlu0 %6339
  %6341 = vrot.lane.b32.xlu0 %v4991, 40
  %v6342 = vpop.permute.xlu0 %6341
  %6343 = vrot.lane.b32.xlu0 %v4992, 40
  %v6344 = vpop.permute.xlu0 %6343
  %6345 = vrot.lane.b32.xlu0 %v4993, 40
  %v6346 = vpop.permute.xlu0 %6345
  %6347 = vrot.lane.b32.xlu0 %v4994, 40
  %v6348 = vpop.permute.xlu0 %6347
  %6349 = vrot.lane.b32.xlu0 %v4995, 40
  %v6350 = vpop.permute.xlu0 %6349
  %6351 = vrot.lane.b32.xlu0 %v4996, 40
  %v6352 = vpop.permute.xlu0 %6351
  %6353 = vrot.lane.b32.xlu0 %v4997, 40
  %v6354 = vpop.permute.xlu0 %6353
  %6355 = vrot.lane.b32.xlu0 %v4998, 40
  %v6356 = vpop.permute.xlu0 %6355
  %6357 = vrot.lane.b32.xlu0 %v4999, 40
  %v6358 = vpop.permute.xlu0 %6357
  %6359 = vrot.lane.b32.xlu0 %v5000, 40
  %v6360 = vpop.permute.xlu0 %6359
  %6361 = vrot.lane.b32.xlu0 %v5001, 40
  %v6362 = vpop.permute.xlu0 %6361
  %6363 = vrot.lane.b32.xlu0 %v5002, 40
  %v6364 = vpop.permute.xlu0 %6363
  %6365 = vrot.lane.b32.xlu0 %v5003, 40
  %v6366 = vpop.permute.xlu0 %6365
  %6367 = vrot.lane.b32.xlu0 %v5004, 40
  %v6368 = vpop.permute.xlu0 %6367
  %6369 = vrot.lane.b32.xlu0 %v5005, 40
  %v6370 = vpop.permute.xlu0 %6369
  %6371 = vrot.lane.b32.xlu0 %v5006, 40
  %v6372 = vpop.permute.xlu0 %6371
  %6373 = vrot.lane.b32.xlu0 %v5007, 40
  %v6374 = vpop.permute.xlu0 %6373
  %6375 = vrot.lane.b32.xlu0 %v5008, 40
  %v6376 = vpop.permute.xlu0 %6375
  %6377 = vrot.lane.b32.xlu0 %v5009, 40
  %v6378 = vpop.permute.xlu0 %6377
  %6379 = vrot.lane.b32.xlu0 %v5010, 40
  %v6380 = vpop.permute.xlu0 %6379
  %6381 = vrot.lane.b32.xlu0 %v5011, 40
  %v6382 = vpop.permute.xlu0 %6381
  %6383 = vrot.lane.b32.xlu0 %v5012, 40
  %v6384 = vpop.permute.xlu0 %6383
  %6385 = vrot.lane.b32.xlu0 %v5013, 40
  %v6386 = vpop.permute.xlu0 %6385
  %6387 = vrot.lane.b32.xlu0 %v5014, 40
  %v6388 = vpop.permute.xlu0 %6387
  %6389 = vrot.lane.b32.xlu0 %v5015, 40
  %v6390 = vpop.permute.xlu0 %6389
  %6391 = vrot.lane.b32.xlu0 %v5016, 40
  %v6392 = vpop.permute.xlu0 %6391
  %6393 = vrot.lane.b32.xlu0 %v5017, 40
  %v6394 = vpop.permute.xlu0 %6393
  %6395 = vrot.lane.b32.xlu0 %v5018, 40
  %v6396 = vpop.permute.xlu0 %6395
  %6397 = vrot.lane.b32.xlu0 %v5019, 40
  %v6398 = vpop.permute.xlu0 %6397
  %6399 = vrot.lane.b32.xlu0 %v5020, 40
  %v6400 = vpop.permute.xlu0 %6399
  %6401 = vrot.lane.b32.xlu0 %v5021, 40
  %v6402 = vpop.permute.xlu0 %6401
  %6403 = vrot.lane.b32.xlu0 %v5022, 40
  %v6404 = vpop.permute.xlu0 %6403
  %6405 = vrot.lane.b32.xlu0 %v5023, 40
  %v6406 = vpop.permute.xlu0 %6405
  %6407 = vrot.lane.b32.xlu0 %v5024, 40
  %v6408 = vpop.permute.xlu0 %6407
  %6409 = vrot.lane.b32.xlu0 %v5025, 40
  %v6410 = vpop.permute.xlu0 %6409
  %6411 = vrot.lane.b32.xlu0 %v5026, 40
  %v6412 = vpop.permute.xlu0 %6411
  %6413 = vrot.lane.b32.xlu0 %v5027, 40
  %v6414 = vpop.permute.xlu0 %6413
  %6415 = vrot.lane.b32.xlu0 %v5028, 40
  %v6416 = vpop.permute.xlu0 %6415
  %6417 = vrot.lane.b32.xlu0 %v5029, 40
  %v6418 = vpop.permute.xlu0 %6417
  %6419 = vrot.lane.b32.xlu0 %v5030, 40
  %v6420 = vpop.permute.xlu0 %6419
  %6421 = vrot.lane.b32.xlu0 %v5031, 40
  %v6422 = vpop.permute.xlu0 %6421
  %6423 = vrot.lane.b32.xlu0 %v5032, 40
  %v6424 = vpop.permute.xlu0 %6423
  %6425 = vrot.lane.b32.xlu0 %v5033, 40
  %v6426 = vpop.permute.xlu0 %6425
  %6427 = vrot.lane.b32.xlu0 %v5034, 40
  %v6428 = vpop.permute.xlu0 %6427
  %6429 = vrot.lane.b32.xlu0 %v5035, 40
  %v6430 = vpop.permute.xlu0 %6429
  %6431 = vrot.lane.b32.xlu0 %v5036, 40
  %v6432 = vpop.permute.xlu0 %6431
  %6433 = vrot.lane.b32.xlu0 %v5037, 40
  %v6434 = vpop.permute.xlu0 %6433
  %6435 = vrot.lane.b32.xlu0 %v5038, 40
  %v6436 = vpop.permute.xlu0 %6435
  %6437 = vrot.lane.b32.xlu0 %v5039, 40
  %v6438 = vpop.permute.xlu0 %6437
  %6439 = vrot.lane.b32.xlu0 %v5040, 40
  %v6440 = vpop.permute.xlu0 %6439
  %6441 = vrot.lane.b32.xlu0 %v5041, 40
  %v6442 = vpop.permute.xlu0 %6441
  %6443 = vrot.lane.b32.xlu0 %v5042, 40
  %v6444 = vpop.permute.xlu0 %6443
  %6445 = vrot.lane.b32.xlu0 %v5043, 40
  %v6446 = vpop.permute.xlu0 %6445
  %6447 = vrot.lane.b32.xlu0 %v5044, 40
  %v6448 = vpop.permute.xlu0 %6447
  %6449 = vrot.lane.b32.xlu0 %v5045, 40
  %v6450 = vpop.permute.xlu0 %6449
  %6451 = vrot.lane.b32.xlu0 %v5046, 40
  %v6452 = vpop.permute.xlu0 %6451
  %6453 = vrot.lane.b32.xlu0 %v5047, 40
  %v6454 = vpop.permute.xlu0 %6453
  %6455 = vrot.lane.b32.xlu0 %v5048, 40
  %v6456 = vpop.permute.xlu0 %6455
  %6457 = vrot.lane.b32.xlu0 %v5049, 40
  %v6458 = vpop.permute.xlu0 %6457
  %6587 = vrot.lane.b32.xlu0 %v5051, 48
  %v6588 = vpop.permute.xlu0 %6587
  %6589 = vrot.lane.b32.xlu0 %v5052, 48
  %v6590 = vpop.permute.xlu0 %6589
  %6591 = vrot.lane.b32.xlu0 %v5053, 48
  %v6592 = vpop.permute.xlu0 %6591
  %6593 = vrot.lane.b32.xlu0 %v5054, 48
  %v6594 = vpop.permute.xlu0 %6593
  %6595 = vrot.lane.b32.xlu0 %v5055, 48
  %v6596 = vpop.permute.xlu0 %6595
  %6597 = vrot.lane.b32.xlu0 %v5056, 48
  %v6598 = vpop.permute.xlu0 %6597
  %6599 = vrot.lane.b32.xlu0 %v5057, 48
  %v6600 = vpop.permute.xlu0 %6599
  %6601 = vrot.lane.b32.xlu0 %v5058, 48
  %v6602 = vpop.permute.xlu0 %6601
  %6603 = vrot.lane.b32.xlu0 %v5059, 48
  %v6604 = vpop.permute.xlu0 %6603
  %6605 = vrot.lane.b32.xlu0 %v5060, 48
  %v6606 = vpop.permute.xlu0 %6605
  %6607 = vrot.lane.b32.xlu0 %v5061, 48
  %v6608 = vpop.permute.xlu0 %6607
  %6609 = vrot.lane.b32.xlu0 %v5062, 48
  %v6610 = vpop.permute.xlu0 %6609
  %6611 = vrot.lane.b32.xlu0 %v5063, 48
  %v6612 = vpop.permute.xlu0 %6611
  %6613 = vrot.lane.b32.xlu0 %v5064, 48
  %v6614 = vpop.permute.xlu0 %6613
  %6615 = vrot.lane.b32.xlu0 %v5065, 48
  %v6616 = vpop.permute.xlu0 %6615
  %6617 = vrot.lane.b32.xlu0 %v5066, 48
  %v6618 = vpop.permute.xlu0 %6617
  %6619 = vrot.lane.b32.xlu0 %v5067, 48
  %v6620 = vpop.permute.xlu0 %6619
  %6621 = vrot.lane.b32.xlu0 %v5068, 48
  %v6622 = vpop.permute.xlu0 %6621
  %6623 = vrot.lane.b32.xlu0 %v5069, 48
  %v6624 = vpop.permute.xlu0 %6623
  %6625 = vrot.lane.b32.xlu0 %v5070, 48
  %v6626 = vpop.permute.xlu0 %6625
  %6627 = vrot.lane.b32.xlu0 %v5071, 48
  %v6628 = vpop.permute.xlu0 %6627
  %6629 = vrot.lane.b32.xlu0 %v5072, 48
  %v6630 = vpop.permute.xlu0 %6629
  %6631 = vrot.lane.b32.xlu0 %v5073, 48
  %v6632 = vpop.permute.xlu0 %6631
  %6633 = vrot.lane.b32.xlu0 %v5074, 48
  %v6634 = vpop.permute.xlu0 %6633
  %6635 = vrot.lane.b32.xlu0 %v5075, 48
  %v6636 = vpop.permute.xlu0 %6635
  %6637 = vrot.lane.b32.xlu0 %v5076, 48
  %v6638 = vpop.permute.xlu0 %6637
  %6639 = vrot.lane.b32.xlu0 %v5077, 48
  %v6640 = vpop.permute.xlu0 %6639
  %6641 = vrot.lane.b32.xlu0 %v5078, 48
  %v6642 = vpop.permute.xlu0 %6641
  %6643 = vrot.lane.b32.xlu0 %v5079, 48
  %v6644 = vpop.permute.xlu0 %6643
  %6645 = vrot.lane.b32.xlu0 %v5080, 48
  %v6646 = vpop.permute.xlu0 %6645
  %6647 = vrot.lane.b32.xlu0 %v5081, 48
  %v6648 = vpop.permute.xlu0 %6647
  %6649 = vrot.lane.b32.xlu0 %v5082, 48
  %v6650 = vpop.permute.xlu0 %6649
  %6651 = vrot.lane.b32.xlu0 %v5083, 48
  %v6652 = vpop.permute.xlu0 %6651
  %6653 = vrot.lane.b32.xlu0 %v5084, 48
  %v6654 = vpop.permute.xlu0 %6653
  %6655 = vrot.lane.b32.xlu0 %v5085, 48
  %v6656 = vpop.permute.xlu0 %6655
  %6657 = vrot.lane.b32.xlu0 %v5086, 48
  %v6658 = vpop.permute.xlu0 %6657
  %6659 = vrot.lane.b32.xlu0 %v5087, 48
  %v6660 = vpop.permute.xlu0 %6659
  %6661 = vrot.lane.b32.xlu0 %v5088, 48
  %v6662 = vpop.permute.xlu0 %6661
  %6663 = vrot.lane.b32.xlu0 %v5089, 48
  %v6664 = vpop.permute.xlu0 %6663
  %6665 = vrot.lane.b32.xlu0 %v5090, 48
  %v6666 = vpop.permute.xlu0 %6665
  %6667 = vrot.lane.b32.xlu0 %v5091, 48
  %v6668 = vpop.permute.xlu0 %6667
  %6669 = vrot.lane.b32.xlu0 %v5092, 48
  %v6670 = vpop.permute.xlu0 %6669
  %6671 = vrot.lane.b32.xlu0 %v5093, 48
  %v6672 = vpop.permute.xlu0 %6671
  %6673 = vrot.lane.b32.xlu0 %v5094, 48
  %v6674 = vpop.permute.xlu0 %6673
  %6675 = vrot.lane.b32.xlu0 %v5095, 48
  %v6676 = vpop.permute.xlu0 %6675
  %6677 = vrot.lane.b32.xlu0 %v5096, 48
  %v6678 = vpop.permute.xlu0 %6677
  %6679 = vrot.lane.b32.xlu0 %v5097, 48
  %v6680 = vpop.permute.xlu0 %6679
  %6681 = vrot.lane.b32.xlu0 %v5098, 48
  %v6682 = vpop.permute.xlu0 %6681
  %6683 = vrot.lane.b32.xlu0 %v5099, 48
  %v6684 = vpop.permute.xlu0 %6683
  %6685 = vrot.lane.b32.xlu0 %v5100, 48
  %v6686 = vpop.permute.xlu0 %6685
  %6687 = vrot.lane.b32.xlu0 %v5101, 48
  %v6688 = vpop.permute.xlu0 %6687
  %6689 = vrot.lane.b32.xlu0 %v5102, 48
  %v6690 = vpop.permute.xlu0 %6689
  %6691 = vrot.lane.b32.xlu0 %v5103, 48
  %v6692 = vpop.permute.xlu0 %6691
  %6693 = vrot.lane.b32.xlu0 %v5104, 48
  %v6694 = vpop.permute.xlu0 %6693
  %6695 = vrot.lane.b32.xlu0 %v5105, 48
  %v6696 = vpop.permute.xlu0 %6695
  %6697 = vrot.lane.b32.xlu0 %v5106, 48
  %v6698 = vpop.permute.xlu0 %6697
  %6699 = vrot.lane.b32.xlu0 %v5107, 48
  %v6700 = vpop.permute.xlu0 %6699
  %6701 = vrot.lane.b32.xlu0 %v5108, 48
  %v6702 = vpop.permute.xlu0 %6701
  %6703 = vrot.lane.b32.xlu0 %v5109, 48
  %v6704 = vpop.permute.xlu0 %6703
  %6705 = vrot.lane.b32.xlu0 %v5110, 48
  %v6706 = vpop.permute.xlu0 %6705
  %6707 = vrot.lane.b32.xlu0 %v5111, 48
  %v6708 = vpop.permute.xlu0 %6707
  %6709 = vrot.lane.b32.xlu0 %v5112, 48
  %v6710 = vpop.permute.xlu0 %6709
  %6711 = vrot.lane.b32.xlu0 %v5113, 48
  %v6712 = vpop.permute.xlu0 %6711
  %6713 = vrot.lane.b32.xlu0 %v5114, 48
  %v6714 = vpop.permute.xlu0 %6713
  %6843 = vrot.lane.b32.xlu0 %v5115, 56
  %v6844 = vpop.permute.xlu0 %6843
  %6845 = vrot.lane.b32.xlu0 %v5116, 56
  %v6846 = vpop.permute.xlu0 %6845
  %6847 = vrot.lane.b32.xlu0 %v5117, 56
  %v6848 = vpop.permute.xlu0 %6847
  %6849 = vrot.lane.b32.xlu0 %v5118, 56
  %v6850 = vpop.permute.xlu0 %6849
  %6851 = vrot.lane.b32.xlu0 %v5119, 56
  %v6852 = vpop.permute.xlu0 %6851
  %6853 = vrot.lane.b32.xlu0 %v5120, 56
  %v6854 = vpop.permute.xlu0 %6853
  %6855 = vrot.lane.b32.xlu0 %v5121, 56
  %v6856 = vpop.permute.xlu0 %6855
  %6857 = vrot.lane.b32.xlu0 %v5122, 56
  %v6858 = vpop.permute.xlu0 %6857
  %6859 = vrot.lane.b32.xlu0 %v5123, 56
  %v6860 = vpop.permute.xlu0 %6859
  %6861 = vrot.lane.b32.xlu0 %v5124, 56
  %v6862 = vpop.permute.xlu0 %6861
  %6863 = vrot.lane.b32.xlu0 %v5125, 56
  %v6864 = vpop.permute.xlu0 %6863
  %6865 = vrot.lane.b32.xlu0 %v5126, 56
  %v6866 = vpop.permute.xlu0 %6865
  %6867 = vrot.lane.b32.xlu0 %v5127, 56
  %v6868 = vpop.permute.xlu0 %6867
  %6869 = vrot.lane.b32.xlu0 %v5128, 56
  %v6870 = vpop.permute.xlu0 %6869
  %6871 = vrot.lane.b32.xlu0 %v5129, 56
  %v6872 = vpop.permute.xlu0 %6871
  %6873 = vrot.lane.b32.xlu0 %v5130, 56
  %v6874 = vpop.permute.xlu0 %6873
  %6875 = vrot.lane.b32.xlu0 %v5131, 56
  %v6876 = vpop.permute.xlu0 %6875
  %6877 = vrot.lane.b32.xlu0 %v5132, 56
  %v6878 = vpop.permute.xlu0 %6877
  %6879 = vrot.lane.b32.xlu0 %v5133, 56
  %v6880 = vpop.permute.xlu0 %6879
  %6881 = vrot.lane.b32.xlu0 %v5134, 56
  %v6882 = vpop.permute.xlu0 %6881
  %6883 = vrot.lane.b32.xlu0 %v5135, 56
  %v6884 = vpop.permute.xlu0 %6883
  %6885 = vrot.lane.b32.xlu0 %v5136, 56
  %v6886 = vpop.permute.xlu0 %6885
  %6887 = vrot.lane.b32.xlu0 %v5137, 56
  %v6888 = vpop.permute.xlu0 %6887
  %6889 = vrot.lane.b32.xlu0 %v5138, 56
  %v6890 = vpop.permute.xlu0 %6889
  %6891 = vrot.lane.b32.xlu0 %v5139, 56
  %v6892 = vpop.permute.xlu0 %6891
  %6893 = vrot.lane.b32.xlu0 %v5140, 56
  %v6894 = vpop.permute.xlu0 %6893
  %6895 = vrot.lane.b32.xlu0 %v5141, 56
  %v6896 = vpop.permute.xlu0 %6895
  %6897 = vrot.lane.b32.xlu0 %v5142, 56
  %v6898 = vpop.permute.xlu0 %6897
  %6899 = vrot.lane.b32.xlu0 %v5143, 56
  %v6900 = vpop.permute.xlu0 %6899
  %6901 = vrot.lane.b32.xlu0 %v5144, 56
  %v6902 = vpop.permute.xlu0 %6901
  %6903 = vrot.lane.b32.xlu0 %v5145, 56
  %v6904 = vpop.permute.xlu0 %6903
  %6905 = vrot.lane.b32.xlu0 %v5146, 56
  %v6906 = vpop.permute.xlu0 %6905
  %6907 = vrot.lane.b32.xlu0 %v5147, 56
  %v6908 = vpop.permute.xlu0 %6907
  %6909 = vrot.lane.b32.xlu0 %v5148, 56
  %v6910 = vpop.permute.xlu0 %6909
  %6911 = vrot.lane.b32.xlu0 %v5149, 56
  %v6912 = vpop.permute.xlu0 %6911
  %6913 = vrot.lane.b32.xlu0 %v5150, 56
  %v6914 = vpop.permute.xlu0 %6913
  %6915 = vrot.lane.b32.xlu0 %v5151, 56
  %v6916 = vpop.permute.xlu0 %6915
  %6917 = vrot.lane.b32.xlu0 %v5152, 56
  %v6918 = vpop.permute.xlu0 %6917
  %6919 = vrot.lane.b32.xlu0 %v5153, 56
  %v6920 = vpop.permute.xlu0 %6919
  %6921 = vrot.lane.b32.xlu0 %v5154, 56
  %v6922 = vpop.permute.xlu0 %6921
  %6923 = vrot.lane.b32.xlu0 %v5155, 56
  %v6924 = vpop.permute.xlu0 %6923
  %6925 = vrot.lane.b32.xlu0 %v5156, 56
  %v6926 = vpop.permute.xlu0 %6925
  %6927 = vrot.lane.b32.xlu0 %v5157, 56
  %v6928 = vpop.permute.xlu0 %6927
  %6929 = vrot.lane.b32.xlu0 %v5158, 56
  %v6930 = vpop.permute.xlu0 %6929
  %6931 = vrot.lane.b32.xlu0 %v5159, 56
  %v6932 = vpop.permute.xlu0 %6931
  %6933 = vrot.lane.b32.xlu0 %v5160, 56
  %v6934 = vpop.permute.xlu0 %6933
  %6935 = vrot.lane.b32.xlu0 %v5161, 56
  %v6936 = vpop.permute.xlu0 %6935
  %6937 = vrot.lane.b32.xlu0 %v5162, 56
  %v6938 = vpop.permute.xlu0 %6937
  %6939 = vrot.lane.b32.xlu0 %v5163, 56
  %v6940 = vpop.permute.xlu0 %6939
  %6941 = vrot.lane.b32.xlu0 %v5164, 56
  %v6942 = vpop.permute.xlu0 %6941
  %6943 = vrot.lane.b32.xlu0 %v5165, 56
  %v6944 = vpop.permute.xlu0 %6943
  %6945 = vrot.lane.b32.xlu0 %v5166, 56
  %v6946 = vpop.permute.xlu0 %6945
  %6947 = vrot.lane.b32.xlu0 %v5167, 56
  %v6948 = vpop.permute.xlu0 %6947
  %6949 = vrot.lane.b32.xlu0 %v5168, 56
  %v6950 = vpop.permute.xlu0 %6949
  %6951 = vrot.lane.b32.xlu0 %v5169, 56
  %v6952 = vpop.permute.xlu0 %6951
  %6953 = vrot.lane.b32.xlu0 %v5170, 56
  %v6954 = vpop.permute.xlu0 %6953
  %6955 = vrot.lane.b32.xlu0 %v5171, 56
  %v6956 = vpop.permute.xlu0 %6955
  %6957 = vrot.lane.b32.xlu0 %v5172, 56
  %v6958 = vpop.permute.xlu0 %6957
  %6959 = vrot.lane.b32.xlu0 %v5173, 56
  %v6960 = vpop.permute.xlu0 %6959
  %6961 = vrot.lane.b32.xlu0 %v5174, 56
  %v6962 = vpop.permute.xlu0 %6961
  %6963 = vrot.lane.b32.xlu0 %v5175, 56
  %v6964 = vpop.permute.xlu0 %6963
  %6965 = vrot.lane.b32.xlu0 %v5176, 56
  %v6966 = vpop.permute.xlu0 %6965
  %6967 = vrot.lane.b32.xlu0 %v5177, 56
  %v6968 = vpop.permute.xlu0 %6967
  %6969 = vrot.lane.b32.xlu0 %v5178, 56
  %v6970 = vpop.permute.xlu0 %6969
  %7099 = vrot.lane.b32.xlu0 %v5179, 64
  %v7100 = vpop.permute.xlu0 %7099
  %7101 = vrot.lane.b32.xlu0 %v5180, 64
  %v7102 = vpop.permute.xlu0 %7101
  %7103 = vrot.lane.b32.xlu0 %v5181, 64
  %v7104 = vpop.permute.xlu0 %7103
  %7105 = vrot.lane.b32.xlu0 %v5182, 64
  %v7106 = vpop.permute.xlu0 %7105
  %7107 = vrot.lane.b32.xlu0 %v5183, 64
  %v7108 = vpop.permute.xlu0 %7107
  %7109 = vrot.lane.b32.xlu0 %v5184, 64
  %v7110 = vpop.permute.xlu0 %7109
  %7111 = vrot.lane.b32.xlu0 %v5185, 64
  %v7112 = vpop.permute.xlu0 %7111
  %7113 = vrot.lane.b32.xlu0 %v5186, 64
  %v7114 = vpop.permute.xlu0 %7113
  %7115 = vrot.lane.b32.xlu0 %v5187, 64
  %v7116 = vpop.permute.xlu0 %7115
  %7117 = vrot.lane.b32.xlu0 %v5188, 64
  %v7118 = vpop.permute.xlu0 %7117
  %7119 = vrot.lane.b32.xlu0 %v5189, 64
  %v7120 = vpop.permute.xlu0 %7119
  %7121 = vrot.lane.b32.xlu0 %v5190, 64
  %v7122 = vpop.permute.xlu0 %7121
  %7123 = vrot.lane.b32.xlu0 %v5191, 64
  %v7124 = vpop.permute.xlu0 %7123
  %7125 = vrot.lane.b32.xlu0 %v5192, 64
  %v7126 = vpop.permute.xlu0 %7125
  %7127 = vrot.lane.b32.xlu0 %v5193, 64
  %v7128 = vpop.permute.xlu0 %7127
  %7129 = vrot.lane.b32.xlu0 %v5194, 64
  %v7130 = vpop.permute.xlu0 %7129
  %7131 = vrot.lane.b32.xlu0 %v5195, 64
  %v7132 = vpop.permute.xlu0 %7131
  %7133 = vrot.lane.b32.xlu0 %v5196, 64
  %v7134 = vpop.permute.xlu0 %7133
  %7135 = vrot.lane.b32.xlu0 %v5197, 64
  %v7136 = vpop.permute.xlu0 %7135
  %7137 = vrot.lane.b32.xlu0 %v5198, 64
  %v7138 = vpop.permute.xlu0 %7137
  %7139 = vrot.lane.b32.xlu0 %v5199, 64
  %v7140 = vpop.permute.xlu0 %7139
  %7141 = vrot.lane.b32.xlu0 %v5200, 64
  %v7142 = vpop.permute.xlu0 %7141
  %7143 = vrot.lane.b32.xlu0 %v5201, 64
  %v7144 = vpop.permute.xlu0 %7143
  %7145 = vrot.lane.b32.xlu0 %v5202, 64
  %v7146 = vpop.permute.xlu0 %7145
  %7147 = vrot.lane.b32.xlu0 %v5203, 64
  %v7148 = vpop.permute.xlu0 %7147
  %7149 = vrot.lane.b32.xlu0 %v5204, 64
  %v7150 = vpop.permute.xlu0 %7149
  %7151 = vrot.lane.b32.xlu0 %v5205, 64
  %v7152 = vpop.permute.xlu0 %7151
  %7153 = vrot.lane.b32.xlu0 %v5206, 64
  %v7154 = vpop.permute.xlu0 %7153
  %7155 = vrot.lane.b32.xlu0 %v5207, 64
  %v7156 = vpop.permute.xlu0 %7155
  %7157 = vrot.lane.b32.xlu0 %v5208, 64
  %v7158 = vpop.permute.xlu0 %7157
  %7159 = vrot.lane.b32.xlu0 %v5209, 64
  %v7160 = vpop.permute.xlu0 %7159
  %7161 = vrot.lane.b32.xlu0 %v5210, 64
  %v7162 = vpop.permute.xlu0 %7161
  %7163 = vrot.lane.b32.xlu0 %v5211, 64
  %v7164 = vpop.permute.xlu0 %7163
  %7165 = vrot.lane.b32.xlu0 %v5212, 64
  %v7166 = vpop.permute.xlu0 %7165
  %7167 = vrot.lane.b32.xlu0 %v5213, 64
  %v7168 = vpop.permute.xlu0 %7167
  %7169 = vrot.lane.b32.xlu0 %v5214, 64
  %v7170 = vpop.permute.xlu0 %7169
  %7171 = vrot.lane.b32.xlu0 %v5215, 64
  %v7172 = vpop.permute.xlu0 %7171
  %7173 = vrot.lane.b32.xlu0 %v5216, 64
  %v7174 = vpop.permute.xlu0 %7173
  %7175 = vrot.lane.b32.xlu0 %v5217, 64
  %v7176 = vpop.permute.xlu0 %7175
  %7177 = vrot.lane.b32.xlu0 %v5218, 64
  %v7178 = vpop.permute.xlu0 %7177
  %7179 = vrot.lane.b32.xlu0 %v5219, 64
  %v7180 = vpop.permute.xlu0 %7179
  %7181 = vrot.lane.b32.xlu0 %v5220, 64
  %v7182 = vpop.permute.xlu0 %7181
  %7183 = vrot.lane.b32.xlu0 %v5221, 64
  %v7184 = vpop.permute.xlu0 %7183
  %7185 = vrot.lane.b32.xlu0 %v5222, 64
  %v7186 = vpop.permute.xlu0 %7185
  %7187 = vrot.lane.b32.xlu0 %v5223, 64
  %v7188 = vpop.permute.xlu0 %7187
  %7189 = vrot.lane.b32.xlu0 %v5224, 64
  %v7190 = vpop.permute.xlu0 %7189
  %7191 = vrot.lane.b32.xlu0 %v5225, 64
  %v7192 = vpop.permute.xlu0 %7191
  %7193 = vrot.lane.b32.xlu0 %v5226, 64
  %v7194 = vpop.permute.xlu0 %7193
  %7195 = vrot.lane.b32.xlu0 %v5227, 64
  %v7196 = vpop.permute.xlu0 %7195
  %7197 = vrot.lane.b32.xlu0 %v5228, 64
  %v7198 = vpop.permute.xlu0 %7197
  %7199 = vrot.lane.b32.xlu0 %v5229, 64
  %v7200 = vpop.permute.xlu0 %7199
  %7201 = vrot.lane.b32.xlu0 %v5230, 64
  %v7202 = vpop.permute.xlu0 %7201
  %7203 = vrot.lane.b32.xlu0 %v5231, 64
  %v7204 = vpop.permute.xlu0 %7203
  %7205 = vrot.lane.b32.xlu0 %v5232, 64
  %v7206 = vpop.permute.xlu0 %7205
  %7207 = vrot.lane.b32.xlu0 %v5233, 64
  %v7208 = vpop.permute.xlu0 %7207
  %7209 = vrot.lane.b32.xlu0 %v5234, 64
  %v7210 = vpop.permute.xlu0 %7209
  %7211 = vrot.lane.b32.xlu0 %v5235, 64
  %v7212 = vpop.permute.xlu0 %7211
  %7213 = vrot.lane.b32.xlu0 %v5236, 64
  %v7214 = vpop.permute.xlu0 %7213
  %7215 = vrot.lane.b32.xlu0 %v5237, 64
  %v7216 = vpop.permute.xlu0 %7215
  %7217 = vrot.lane.b32.xlu0 %v5238, 64
  %v7218 = vpop.permute.xlu0 %7217
  %7219 = vrot.lane.b32.xlu0 %v5239, 64
  %v7220 = vpop.permute.xlu0 %7219
  %7221 = vrot.lane.b32.xlu0 %v5240, 64
  %v7222 = vpop.permute.xlu0 %7221
  %7223 = vrot.lane.b32.xlu0 %v5241, 64
  %v7224 = vpop.permute.xlu0 %7223
  %7225 = vrot.lane.b32.xlu0 %v5242, 64
  %v7226 = vpop.permute.xlu0 %7225
  %v7291 = vsel %vm90, %v4666, %v5308
  %v7292 = vsel %vm90, %v4667, %v5310
  %v7293 = vsel %vm90, %v4668, %v5312
  %v7294 = vsel %vm90, %v4669, %v5314
  %v7295 = vsel %vm90, %v4670, %v5316
  %v7296 = vsel %vm90, %v4671, %v5318
  %v7297 = vsel %vm90, %v4672, %v5320
  %v7298 = vsel %vm90, %v4673, %v5322
  %v7299 = vsel %vm90, %v4674, %v5324
  %v7300 = vsel %vm90, %v4675, %v5326
  %v7301 = vsel %vm90, %v4676, %v5328
  %v7302 = vsel %vm90, %v4677, %v5330
  %v7303 = vsel %vm90, %v4678, %v5332
  %v7304 = vsel %vm90, %v4679, %v5334
  %v7305 = vsel %vm90, %v4680, %v5336
  %v7306 = vsel %vm90, %v4681, %v5338
  %v7307 = vsel %vm90, %v4682, %v5340
  %v7308 = vsel %vm90, %v4683, %v5342
  %v7309 = vsel %vm90, %v4684, %v5344
  %v7310 = vsel %vm90, %v4685, %v5346
  %v7311 = vsel %vm90, %v4686, %v5348
  %v7312 = vsel %vm90, %v4687, %v5350
  %v7313 = vsel %vm90, %v4688, %v5352
  %v7314 = vsel %vm90, %v4689, %v5354
  %v7315 = vsel %vm90, %v4690, %v5356
  %v7316 = vsel %vm90, %v4691, %v5358
  %v7317 = vsel %vm90, %v4692, %v5360
  %v7318 = vsel %vm90, %v4693, %v5362
  %v7319 = vsel %vm90, %v4694, %v5364
  %v7320 = vsel %vm90, %v4695, %v5366
  %v7321 = vsel %vm90, %v4696, %v5368
  %v7322 = vsel %vm90, %v4697, %v5370
  %v7323 = vsel %vm90, %v4698, %v5372
  %v7324 = vsel %vm90, %v4699, %v5374
  %v7325 = vsel %vm90, %v4700, %v5376
  %v7326 = vsel %vm90, %v4701, %v5378
  %v7327 = vsel %vm90, %v4702, %v5380
  %v7328 = vsel %vm90, %v4703, %v5382
  %v7329 = vsel %vm90, %v4704, %v5384
  %v7330 = vsel %vm90, %v4705, %v5386
  %v7331 = vsel %vm90, %v4706, %v5388
  %v7332 = vsel %vm90, %v4707, %v5390
  %v7333 = vsel %vm90, %v4708, %v5392
  %v7334 = vsel %vm90, %v4709, %v5394
  %v7335 = vsel %vm90, %v4710, %v5396
  %v7336 = vsel %vm90, %v4711, %v5398
  %v7337 = vsel %vm90, %v4712, %v5400
  %v7338 = vsel %vm90, %v4713, %v5402
  %v7339 = vsel %vm90, %v4714, %v5404
  %v7340 = vsel %vm90, %v4715, %v5406
  %v7341 = vsel %vm90, %v4716, %v5408
  %v7342 = vsel %vm90, %v4717, %v5410
  %v7343 = vsel %vm90, %v4718, %v5412
  %v7344 = vsel %vm90, %v4719, %v5414
  %v7345 = vsel %vm90, %v4720, %v5416
  %v7346 = vsel %vm90, %v4721, %v5418
  %v7347 = vsel %vm90, %v4722, %v5420
  %v7348 = vsel %vm90, %v4723, %v5422
  %v7349 = vsel %vm90, %v4724, %v5424
  %v7350 = vsel %vm90, %v4725, %v5426
  %v7351 = vsel %vm90, %v4726, %v5428
  %v7352 = vsel %vm90, %v4727, %v5430
  %v7353 = vsel %vm90, %v4728, %v5432
  %v7354 = vsel %vm90, %v4729, %v5434
  %v7355 = vsel %vm2954, %v7291, %v5564
  %v7356 = vsel %vm2954, %v7292, %v5566
  %v7357 = vsel %vm2954, %v7293, %v5568
  %v7358 = vsel %vm2954, %v7294, %v5570
  %v7359 = vsel %vm2954, %v7295, %v5572
  %v7360 = vsel %vm2954, %v7296, %v5574
  %v7361 = vsel %vm2954, %v7297, %v5576
  %v7362 = vsel %vm2954, %v7298, %v5578
  %v7363 = vsel %vm2954, %v7299, %v5580
  %v7364 = vsel %vm2954, %v7300, %v5582
  %v7365 = vsel %vm2954, %v7301, %v5584
  %v7366 = vsel %vm2954, %v7302, %v5586
  %v7367 = vsel %vm2954, %v7303, %v5588
  %v7368 = vsel %vm2954, %v7304, %v5590
  %v7369 = vsel %vm2954, %v7305, %v5592
  %v7370 = vsel %vm2954, %v7306, %v5594
  %v7371 = vsel %vm2954, %v7307, %v5596
  %v7372 = vsel %vm2954, %v7308, %v5598
  %v7373 = vsel %vm2954, %v7309, %v5600
  %v7374 = vsel %vm2954, %v7310, %v5602
  %v7375 = vsel %vm2954, %v7311, %v5604
  %v7376 = vsel %vm2954, %v7312, %v5606
  %v7377 = vsel %vm2954, %v7313, %v5608
  %v7378 = vsel %vm2954, %v7314, %v5610
  %v7379 = vsel %vm2954, %v7315, %v5612
  %v7380 = vsel %vm2954, %v7316, %v5614
  %v7381 = vsel %vm2954, %v7317, %v5616
  %v7382 = vsel %vm2954, %v7318, %v5618
  %v7383 = vsel %vm2954, %v7319, %v5620
  %v7384 = vsel %vm2954, %v7320, %v5622
  %v7385 = vsel %vm2954, %v7321, %v5624
  %v7386 = vsel %vm2954, %v7322, %v5626
  %v7387 = vsel %vm2954, %v7323, %v5628
  %v7388 = vsel %vm2954, %v7324, %v5630
  %v7389 = vsel %vm2954, %v7325, %v5632
  %v7390 = vsel %vm2954, %v7326, %v5634
  %v7391 = vsel %vm2954, %v7327, %v5636
  %v7392 = vsel %vm2954, %v7328, %v5638
  %v7393 = vsel %vm2954, %v7329, %v5640
  %v7394 = vsel %vm2954, %v7330, %v5642
  %v7395 = vsel %vm2954, %v7331, %v5644
  %v7396 = vsel %vm2954, %v7332, %v5646
  %v7397 = vsel %vm2954, %v7333, %v5648
  %v7398 = vsel %vm2954, %v7334, %v5650
  %v7399 = vsel %vm2954, %v7335, %v5652
  %v7400 = vsel %vm2954, %v7336, %v5654
  %v7401 = vsel %vm2954, %v7337, %v5656
  %v7402 = vsel %vm2954, %v7338, %v5658
  %v7403 = vsel %vm2954, %v7339, %v5660
  %v7404 = vsel %vm2954, %v7340, %v5662
  %v7405 = vsel %vm2954, %v7341, %v5664
  %v7406 = vsel %vm2954, %v7342, %v5666
  %v7407 = vsel %vm2954, %v7343, %v5668
  %v7408 = vsel %vm2954, %v7344, %v5670
  %v7409 = vsel %vm2954, %v7345, %v5672
  %v7410 = vsel %vm2954, %v7346, %v5674
  %v7411 = vsel %vm2954, %v7347, %v5676
  %v7412 = vsel %vm2954, %v7348, %v5678
  %v7413 = vsel %vm2954, %v7349, %v5680
  %v7414 = vsel %vm2954, %v7350, %v5682
  %v7415 = vsel %vm2954, %v7351, %v5684
  %v7416 = vsel %vm2954, %v7352, %v5686
  %v7417 = vsel %vm2954, %v7353, %v5688
  %v7418 = vsel %vm2954, %v7354, %v5690
  %v7419 = vsel %vm3019, %v7355, %v5820
  %v7420 = vsel %vm3019, %v7356, %v5822
  %v7421 = vsel %vm3019, %v7357, %v5824
  %v7422 = vsel %vm3019, %v7358, %v5826
  %v7423 = vsel %vm3019, %v7359, %v5828
  %v7424 = vsel %vm3019, %v7360, %v5830
  %v7425 = vsel %vm3019, %v7361, %v5832
  %v7426 = vsel %vm3019, %v7362, %v5834
  %v7427 = vsel %vm3019, %v7363, %v5836
  %v7428 = vsel %vm3019, %v7364, %v5838
  %v7429 = vsel %vm3019, %v7365, %v5840
  %v7430 = vsel %vm3019, %v7366, %v5842
  %v7431 = vsel %vm3019, %v7367, %v5844
  %v7432 = vsel %vm3019, %v7368, %v5846
  %v7433 = vsel %vm3019, %v7369, %v5848
  %v7434 = vsel %vm3019, %v7370, %v5850
  %v7435 = vsel %vm3019, %v7371, %v5852
  %v7436 = vsel %vm3019, %v7372, %v5854
  %v7437 = vsel %vm3019, %v7373, %v5856
  %v7438 = vsel %vm3019, %v7374, %v5858
  %v7439 = vsel %vm3019, %v7375, %v5860
  %v7440 = vsel %vm3019, %v7376, %v5862
  %v7441 = vsel %vm3019, %v7377, %v5864
  %v7442 = vsel %vm3019, %v7378, %v5866
  %v7443 = vsel %vm3019, %v7379, %v5868
  %v7444 = vsel %vm3019, %v7380, %v5870
  %v7445 = vsel %vm3019, %v7381, %v5872
  %v7446 = vsel %vm3019, %v7382, %v5874
  %v7447 = vsel %vm3019, %v7383, %v5876
  %v7448 = vsel %vm3019, %v7384, %v5878
  %v7449 = vsel %vm3019, %v7385, %v5880
  %v7450 = vsel %vm3019, %v7386, %v5882
  %v7451 = vsel %vm3019, %v7387, %v5884
  %v7452 = vsel %vm3019, %v7388, %v5886
  %v7453 = vsel %vm3019, %v7389, %v5888
  %v7454 = vsel %vm3019, %v7390, %v5890
  %v7455 = vsel %vm3019, %v7391, %v5892
  %v7456 = vsel %vm3019, %v7392, %v5894
  %v7457 = vsel %vm3019, %v7393, %v5896
  %v7458 = vsel %vm3019, %v7394, %v5898
  %v7459 = vsel %vm3019, %v7395, %v5900
  %v7460 = vsel %vm3019, %v7396, %v5902
  %v7461 = vsel %vm3019, %v7397, %v5904
  %v7462 = vsel %vm3019, %v7398, %v5906
  %v7463 = vsel %vm3019, %v7399, %v5908
  %v7464 = vsel %vm3019, %v7400, %v5910
  %v7465 = vsel %vm3019, %v7401, %v5912
  %v7466 = vsel %vm3019, %v7402, %v5914
  %v7467 = vsel %vm3019, %v7403, %v5916
  %v7468 = vsel %vm3019, %v7404, %v5918
  %v7469 = vsel %vm3019, %v7405, %v5920
  %v7470 = vsel %vm3019, %v7406, %v5922
  %v7471 = vsel %vm3019, %v7407, %v5924
  %v7472 = vsel %vm3019, %v7408, %v5926
  %v7473 = vsel %vm3019, %v7409, %v5928
  %v7474 = vsel %vm3019, %v7410, %v5930
  %v7475 = vsel %vm3019, %v7411, %v5932
  %v7476 = vsel %vm3019, %v7412, %v5934
  %v7477 = vsel %vm3019, %v7413, %v5936
  %v7478 = vsel %vm3019, %v7414, %v5938
  %v7479 = vsel %vm3019, %v7415, %v5940
  %v7480 = vsel %vm3019, %v7416, %v5942
  %v7481 = vsel %vm3019, %v7417, %v5944
  %v7482 = vsel %vm3019, %v7418, %v5946
  %v7483 = vsel %vm3084, %v7419, %v6076
  %v7484 = vsel %vm3084, %v7420, %v6078
  %v7485 = vsel %vm3084, %v7421, %v6080
  %v7486 = vsel %vm3084, %v7422, %v6082
  %v7487 = vsel %vm3084, %v7423, %v6084
  %v7488 = vsel %vm3084, %v7424, %v6086
  %v7489 = vsel %vm3084, %v7425, %v6088
  %v7490 = vsel %vm3084, %v7426, %v6090
  %v7491 = vsel %vm3084, %v7427, %v6092
  %v7492 = vsel %vm3084, %v7428, %v6094
  %v7493 = vsel %vm3084, %v7429, %v6096
  %v7494 = vsel %vm3084, %v7430, %v6098
  %v7495 = vsel %vm3084, %v7431, %v6100
  %v7496 = vsel %vm3084, %v7432, %v6102
  %v7497 = vsel %vm3084, %v7433, %v6104
  %v7498 = vsel %vm3084, %v7434, %v6106
  %v7499 = vsel %vm3084, %v7435, %v6108
  %v7500 = vsel %vm3084, %v7436, %v6110
  %v7501 = vsel %vm3084, %v7437, %v6112
  %v7502 = vsel %vm3084, %v7438, %v6114
  %v7503 = vsel %vm3084, %v7439, %v6116
  %v7504 = vsel %vm3084, %v7440, %v6118
  %v7505 = vsel %vm3084, %v7441, %v6120
  %v7506 = vsel %vm3084, %v7442, %v6122
  %v7507 = vsel %vm3084, %v7443, %v6124
  %v7508 = vsel %vm3084, %v7444, %v6126
  %v7509 = vsel %vm3084, %v7445, %v6128
  %v7510 = vsel %vm3084, %v7446, %v6130
  %v7511 = vsel %vm3084, %v7447, %v6132
  %v7512 = vsel %vm3084, %v7448, %v6134
  %v7513 = vsel %vm3084, %v7449, %v6136
  %v7514 = vsel %vm3084, %v7450, %v6138
  %v7515 = vsel %vm3084, %v7451, %v6140
  %v7516 = vsel %vm3084, %v7452, %v6142
  %v7517 = vsel %vm3084, %v7453, %v6144
  %v7518 = vsel %vm3084, %v7454, %v6146
  %v7519 = vsel %vm3084, %v7455, %v6148
  %v7520 = vsel %vm3084, %v7456, %v6150
  %v7521 = vsel %vm3084, %v7457, %v6152
  %v7522 = vsel %vm3084, %v7458, %v6154
  %v7523 = vsel %vm3084, %v7459, %v6156
  %v7524 = vsel %vm3084, %v7460, %v6158
  %v7525 = vsel %vm3084, %v7461, %v6160
  %v7526 = vsel %vm3084, %v7462, %v6162
  %v7527 = vsel %vm3084, %v7463, %v6164
  %v7528 = vsel %vm3084, %v7464, %v6166
  %v7529 = vsel %vm3084, %v7465, %v6168
  %v7530 = vsel %vm3084, %v7466, %v6170
  %v7531 = vsel %vm3084, %v7467, %v6172
  %v7532 = vsel %vm3084, %v7468, %v6174
  %v7533 = vsel %vm3084, %v7469, %v6176
  %v7534 = vsel %vm3084, %v7470, %v6178
  %v7535 = vsel %vm3084, %v7471, %v6180
  %v7536 = vsel %vm3084, %v7472, %v6182
  %v7537 = vsel %vm3084, %v7473, %v6184
  %v7538 = vsel %vm3084, %v7474, %v6186
  %v7539 = vsel %vm3084, %v7475, %v6188
  %v7540 = vsel %vm3084, %v7476, %v6190
  %v7541 = vsel %vm3084, %v7477, %v6192
  %v7542 = vsel %vm3084, %v7478, %v6194
  %v7543 = vsel %vm3084, %v7479, %v6196
  %v7544 = vsel %vm3084, %v7480, %v6198
  %v7545 = vsel %vm3084, %v7481, %v6200
  %v7546 = vsel %vm3084, %v7482, %v6202
  %v7547 = vsel %vm3149, %v7483, %v6332
  %v7548 = vsel %vm3149, %v7484, %v6334
  %v7549 = vsel %vm3149, %v7485, %v6336
  %v7550 = vsel %vm3149, %v7486, %v6338
  %v7551 = vsel %vm3149, %v7487, %v6340
  %v7552 = vsel %vm3149, %v7488, %v6342
  %v7553 = vsel %vm3149, %v7489, %v6344
  %v7554 = vsel %vm3149, %v7490, %v6346
  %v7555 = vsel %vm3149, %v7491, %v6348
  %v7556 = vsel %vm3149, %v7492, %v6350
  %v7557 = vsel %vm3149, %v7493, %v6352
  %v7558 = vsel %vm3149, %v7494, %v6354
  %v7559 = vsel %vm3149, %v7495, %v6356
  %v7560 = vsel %vm3149, %v7496, %v6358
  %v7561 = vsel %vm3149, %v7497, %v6360
  %v7562 = vsel %vm3149, %v7498, %v6362
  %v7563 = vsel %vm3149, %v7499, %v6364
  %v7564 = vsel %vm3149, %v7500, %v6366
  %v7565 = vsel %vm3149, %v7501, %v6368
  %v7566 = vsel %vm3149, %v7502, %v6370
  %v7567 = vsel %vm3149, %v7503, %v6372
  %v7568 = vsel %vm3149, %v7504, %v6374
  %v7569 = vsel %vm3149, %v7505, %v6376
  %v7570 = vsel %vm3149, %v7506, %v6378
  %v7571 = vsel %vm3149, %v7507, %v6380
  %v7572 = vsel %vm3149, %v7508, %v6382
  %v7573 = vsel %vm3149, %v7509, %v6384
  %v7574 = vsel %vm3149, %v7510, %v6386
  %v7575 = vsel %vm3149, %v7511, %v6388
  %v7576 = vsel %vm3149, %v7512, %v6390
  %v7577 = vsel %vm3149, %v7513, %v6392
  %v7578 = vsel %vm3149, %v7514, %v6394
  %v7579 = vsel %vm3149, %v7515, %v6396
  %v7580 = vsel %vm3149, %v7516, %v6398
  %v7581 = vsel %vm3149, %v7517, %v6400
  %v7582 = vsel %vm3149, %v7518, %v6402
  %v7583 = vsel %vm3149, %v7519, %v6404
  %v7584 = vsel %vm3149, %v7520, %v6406
  %v7585 = vsel %vm3149, %v7521, %v6408
  %v7586 = vsel %vm3149, %v7522, %v6410
  %v7587 = vsel %vm3149, %v7523, %v6412
  %v7588 = vsel %vm3149, %v7524, %v6414
  %v7589 = vsel %vm3149, %v7525, %v6416
  %v7590 = vsel %vm3149, %v7526, %v6418
  %v7591 = vsel %vm3149, %v7527, %v6420
  %v7592 = vsel %vm3149, %v7528, %v6422
  %v7593 = vsel %vm3149, %v7529, %v6424
  %v7594 = vsel %vm3149, %v7530, %v6426
  %v7595 = vsel %vm3149, %v7531, %v6428
  %v7596 = vsel %vm3149, %v7532, %v6430
  %v7597 = vsel %vm3149, %v7533, %v6432
  %v7598 = vsel %vm3149, %v7534, %v6434
  %v7599 = vsel %vm3149, %v7535, %v6436
  %v7600 = vsel %vm3149, %v7536, %v6438
  %v7601 = vsel %vm3149, %v7537, %v6440
  %v7602 = vsel %vm3149, %v7538, %v6442
  %v7603 = vsel %vm3149, %v7539, %v6444
  %v7604 = vsel %vm3149, %v7540, %v6446
  %v7605 = vsel %vm3149, %v7541, %v6448
  %v7606 = vsel %vm3149, %v7542, %v6450
  %v7607 = vsel %vm3149, %v7543, %v6452
  %v7608 = vsel %vm3149, %v7544, %v6454
  %v7609 = vsel %vm3149, %v7545, %v6456
  %v7610 = vsel %vm3149, %v7546, %v6458
  %v7611 = vsel %vm3214, %v7547, %v6588
  %v7612 = vsel %vm3214, %v7548, %v6590
  %v7613 = vsel %vm3214, %v7549, %v6592
  %v7614 = vsel %vm3214, %v7550, %v6594
  %v7615 = vsel %vm3214, %v7551, %v6596
  %v7616 = vsel %vm3214, %v7552, %v6598
  %v7617 = vsel %vm3214, %v7553, %v6600
  %v7618 = vsel %vm3214, %v7554, %v6602
  %v7619 = vsel %vm3214, %v7555, %v6604
  %v7620 = vsel %vm3214, %v7556, %v6606
  %v7621 = vsel %vm3214, %v7557, %v6608
  %v7622 = vsel %vm3214, %v7558, %v6610
  %v7623 = vsel %vm3214, %v7559, %v6612
  %v7624 = vsel %vm3214, %v7560, %v6614
  %v7625 = vsel %vm3214, %v7561, %v6616
  %v7626 = vsel %vm3214, %v7562, %v6618
  %v7627 = vsel %vm3214, %v7563, %v6620
  %v7628 = vsel %vm3214, %v7564, %v6622
  %v7629 = vsel %vm3214, %v7565, %v6624
  %v7630 = vsel %vm3214, %v7566, %v6626
  %v7631 = vsel %vm3214, %v7567, %v6628
  %v7632 = vsel %vm3214, %v7568, %v6630
  %v7633 = vsel %vm3214, %v7569, %v6632
  %v7634 = vsel %vm3214, %v7570, %v6634
  %v7635 = vsel %vm3214, %v7571, %v6636
  %v7636 = vsel %vm3214, %v7572, %v6638
  %v7637 = vsel %vm3214, %v7573, %v6640
  %v7638 = vsel %vm3214, %v7574, %v6642
  %v7639 = vsel %vm3214, %v7575, %v6644
  %v7640 = vsel %vm3214, %v7576, %v6646
  %v7641 = vsel %vm3214, %v7577, %v6648
  %v7642 = vsel %vm3214, %v7578, %v6650
  %v7643 = vsel %vm3214, %v7579, %v6652
  %v7644 = vsel %vm3214, %v7580, %v6654
  %v7645 = vsel %vm3214, %v7581, %v6656
  %v7646 = vsel %vm3214, %v7582, %v6658
  %v7647 = vsel %vm3214, %v7583, %v6660
  %v7648 = vsel %vm3214, %v7584, %v6662
  %v7649 = vsel %vm3214, %v7585, %v6664
  %v7650 = vsel %vm3214, %v7586, %v6666
  %v7651 = vsel %vm3214, %v7587, %v6668
  %v7652 = vsel %vm3214, %v7588, %v6670
  %v7653 = vsel %vm3214, %v7589, %v6672
  %v7654 = vsel %vm3214, %v7590, %v6674
  %v7655 = vsel %vm3214, %v7591, %v6676
  %v7656 = vsel %vm3214, %v7592, %v6678
  %v7657 = vsel %vm3214, %v7593, %v6680
  %v7658 = vsel %vm3214, %v7594, %v6682
  %v7659 = vsel %vm3214, %v7595, %v6684
  %v7660 = vsel %vm3214, %v7596, %v6686
  %v7661 = vsel %vm3214, %v7597, %v6688
  %v7662 = vsel %vm3214, %v7598, %v6690
  %v7663 = vsel %vm3214, %v7599, %v6692
  %v7664 = vsel %vm3214, %v7600, %v6694
  %v7665 = vsel %vm3214, %v7601, %v6696
  %v7666 = vsel %vm3214, %v7602, %v6698
  %v7667 = vsel %vm3214, %v7603, %v6700
  %v7668 = vsel %vm3214, %v7604, %v6702
  %v7669 = vsel %vm3214, %v7605, %v6704
  %v7670 = vsel %vm3214, %v7606, %v6706
  %v7671 = vsel %vm3214, %v7607, %v6708
  %v7672 = vsel %vm3214, %v7608, %v6710
  %v7673 = vsel %vm3214, %v7609, %v6712
  %v7674 = vsel %vm3214, %v7610, %v6714
  %v7675 = vsel %vm3279, %v7611, %v6844
  %v7676 = vsel %vm3279, %v7612, %v6846
  %v7677 = vsel %vm3279, %v7613, %v6848
  %v7678 = vsel %vm3279, %v7614, %v6850
  %v7679 = vsel %vm3279, %v7615, %v6852
  %v7680 = vsel %vm3279, %v7616, %v6854
  %v7681 = vsel %vm3279, %v7617, %v6856
  %v7682 = vsel %vm3279, %v7618, %v6858
  %v7683 = vsel %vm3279, %v7619, %v6860
  %v7684 = vsel %vm3279, %v7620, %v6862
  %v7685 = vsel %vm3279, %v7621, %v6864
  %v7686 = vsel %vm3279, %v7622, %v6866
  %v7687 = vsel %vm3279, %v7623, %v6868
  %v7688 = vsel %vm3279, %v7624, %v6870
  %v7689 = vsel %vm3279, %v7625, %v6872
  %v7690 = vsel %vm3279, %v7626, %v6874
  %v7691 = vsel %vm3279, %v7627, %v6876
  %v7692 = vsel %vm3279, %v7628, %v6878
  %v7693 = vsel %vm3279, %v7629, %v6880
  %v7694 = vsel %vm3279, %v7630, %v6882
  %v7695 = vsel %vm3279, %v7631, %v6884
  %v7696 = vsel %vm3279, %v7632, %v6886
  %v7697 = vsel %vm3279, %v7633, %v6888
  %v7698 = vsel %vm3279, %v7634, %v6890
  %v7699 = vsel %vm3279, %v7635, %v6892
  %v7700 = vsel %vm3279, %v7636, %v6894
  %v7701 = vsel %vm3279, %v7637, %v6896
  %v7702 = vsel %vm3279, %v7638, %v6898
  %v7703 = vsel %vm3279, %v7639, %v6900
  %v7704 = vsel %vm3279, %v7640, %v6902
  %v7705 = vsel %vm3279, %v7641, %v6904
  %v7706 = vsel %vm3279, %v7642, %v6906
  %v7707 = vsel %vm3279, %v7643, %v6908
  %v7708 = vsel %vm3279, %v7644, %v6910
  %v7709 = vsel %vm3279, %v7645, %v6912
  %v7710 = vsel %vm3279, %v7646, %v6914
  %v7711 = vsel %vm3279, %v7647, %v6916
  %v7712 = vsel %vm3279, %v7648, %v6918
  %v7713 = vsel %vm3279, %v7649, %v6920
  %v7714 = vsel %vm3279, %v7650, %v6922
  %v7715 = vsel %vm3279, %v7651, %v6924
  %v7716 = vsel %vm3279, %v7652, %v6926
  %v7717 = vsel %vm3279, %v7653, %v6928
  %v7718 = vsel %vm3279, %v7654, %v6930
  %v7719 = vsel %vm3279, %v7655, %v6932
  %v7720 = vsel %vm3279, %v7656, %v6934
  %v7721 = vsel %vm3279, %v7657, %v6936
  %v7722 = vsel %vm3279, %v7658, %v6938
  %v7723 = vsel %vm3279, %v7659, %v6940
  %v7724 = vsel %vm3279, %v7660, %v6942
  %v7725 = vsel %vm3279, %v7661, %v6944
  %v7726 = vsel %vm3279, %v7662, %v6946
  %v7727 = vsel %vm3279, %v7663, %v6948
  %v7728 = vsel %vm3279, %v7664, %v6950
  %v7729 = vsel %vm3279, %v7665, %v6952
  %v7730 = vsel %vm3279, %v7666, %v6954
  %v7731 = vsel %vm3279, %v7667, %v6956
  %v7732 = vsel %vm3279, %v7668, %v6958
  %v7733 = vsel %vm3279, %v7669, %v6960
  %v7734 = vsel %vm3279, %v7670, %v6962
  %v7735 = vsel %vm3279, %v7671, %v6964
  %v7736 = vsel %vm3279, %v7672, %v6966
  %v7737 = vsel %vm3279, %v7673, %v6968
  %v7738 = vsel %vm3279, %v7674, %v6970
  %v7739 = vsel %vm3344, %v7675, %v7100
  %v7740 = vsel %vm3344, %v7676, %v7102
  %v7741 = vsel %vm3344, %v7677, %v7104
  %v7742 = vsel %vm3344, %v7678, %v7106
  %v7743 = vsel %vm3344, %v7679, %v7108
  %v7744 = vsel %vm3344, %v7680, %v7110
  %v7745 = vsel %vm3344, %v7681, %v7112
  %v7746 = vsel %vm3344, %v7682, %v7114
  %v7747 = vsel %vm3344, %v7683, %v7116
  %v7748 = vsel %vm3344, %v7684, %v7118
  %v7749 = vsel %vm3344, %v7685, %v7120
  %v7750 = vsel %vm3344, %v7686, %v7122
  %v7751 = vsel %vm3344, %v7687, %v7124
  %v7752 = vsel %vm3344, %v7688, %v7126
  %v7753 = vsel %vm3344, %v7689, %v7128
  %v7754 = vsel %vm3344, %v7690, %v7130
  %v7755 = vsel %vm3344, %v7691, %v7132
  %v7756 = vsel %vm3344, %v7692, %v7134
  %v7757 = vsel %vm3344, %v7693, %v7136
  %v7758 = vsel %vm3344, %v7694, %v7138
  %v7759 = vsel %vm3344, %v7695, %v7140
  %v7760 = vsel %vm3344, %v7696, %v7142
  %v7761 = vsel %vm3344, %v7697, %v7144
  %v7762 = vsel %vm3344, %v7698, %v7146
  %v7763 = vsel %vm3344, %v7699, %v7148
  %v7764 = vsel %vm3344, %v7700, %v7150
  %v7765 = vsel %vm3344, %v7701, %v7152
  %v7766 = vsel %vm3344, %v7702, %v7154
  %v7767 = vsel %vm3344, %v7703, %v7156
  %v7768 = vsel %vm3344, %v7704, %v7158
  %v7769 = vsel %vm3344, %v7705, %v7160
  %v7770 = vsel %vm3344, %v7706, %v7162
  %v7771 = vsel %vm3344, %v7707, %v7164
  %v7772 = vsel %vm3344, %v7708, %v7166
  %v7773 = vsel %vm3344, %v7709, %v7168
  %v7774 = vsel %vm3344, %v7710, %v7170
  %v7775 = vsel %vm3344, %v7711, %v7172
  %v7776 = vsel %vm3344, %v7712, %v7174
  %v7777 = vsel %vm3344, %v7713, %v7176
  %v7778 = vsel %vm3344, %v7714, %v7178
  %v7779 = vsel %vm3344, %v7715, %v7180
  %v7780 = vsel %vm3344, %v7716, %v7182
  %v7781 = vsel %vm3344, %v7717, %v7184
  %v7782 = vsel %vm3344, %v7718, %v7186
  %v7783 = vsel %vm3344, %v7719, %v7188
  %v7784 = vsel %vm3344, %v7720, %v7190
  %v7785 = vsel %vm3344, %v7721, %v7192
  %v7786 = vsel %vm3344, %v7722, %v7194
  %v7787 = vsel %vm3344, %v7723, %v7196
  %v7788 = vsel %vm3344, %v7724, %v7198
  %v7789 = vsel %vm3344, %v7725, %v7200
  %v7790 = vsel %vm3344, %v7726, %v7202
  %v7791 = vsel %vm3344, %v7727, %v7204
  %v7792 = vsel %vm3344, %v7728, %v7206
  %v7793 = vsel %vm3344, %v7729, %v7208
  %v7794 = vsel %vm3344, %v7730, %v7210
  %v7795 = vsel %vm3344, %v7731, %v7212
  %v7796 = vsel %vm3344, %v7732, %v7214
  %v7797 = vsel %vm3344, %v7733, %v7216
  %v7798 = vsel %vm3344, %v7734, %v7218
  %v7799 = vsel %vm3344, %v7735, %v7220
  %v7800 = vsel %vm3344, %v7736, %v7222
  %v7801 = vsel %vm3344, %v7737, %v7224
  %v7802 = vsel %vm3344, %v7738, %v7226
  %v7803 = vld [vmem:[%s2] sm:$0xff]
  %v7804 = vld [vmem:[%s2 + $0x8] sm:$0xff]
  %v7805 = vld [vmem:[%s2 + $0x10] sm:$0xff]
  %v7806 = vld [vmem:[%s2 + $0x18] sm:$0xff]
  %v7807 = vld [vmem:[%s2 + $0x20] sm:$0xff]
  %v7808 = vld [vmem:[%s2 + $0x28] sm:$0xff]
  %v7809 = vld [vmem:[%s2 + $0x30] sm:$0xff]
  %v7810 = vld [vmem:[%s2 + $0x38] sm:$0xff]
  %v7811 = vld [vmem:[%s2 + $0x40] sm:$0xff]
  %v7813 = vsel %vm3418, %v7739, 0
  %v7816 = vsel %vm3418, %v7740, 0
  %v7819 = vsel %vm3418, %v7741, 0
  %v7822 = vsel %vm3418, %v7742, 0
  %v7825 = vsel %vm3418, %v7743, 0
  %v7828 = vsel %vm3418, %v7744, 0
  %v7831 = vsel %vm3418, %v7745, 0
  %v7834 = vsel %vm3418, %v7746, 0
  %v7837 = vsel %vm3418, %v7747, 0
  %v7840 = vsel %vm3418, %v7748, 0
  %v7843 = vsel %vm3418, %v7749, 0
  %v7846 = vsel %vm3418, %v7750, 0
  %v7849 = vsel %vm3418, %v7751, 0
  %v7852 = vsel %vm3418, %v7752, 0
  %v7855 = vsel %vm3418, %v7753, 0
  %v7858 = vsel %vm3418, %v7754, 0
  %v7861 = vsel %vm3418, %v7755, 0
  %v7864 = vsel %vm3418, %v7756, 0
  %v7867 = vsel %vm3418, %v7757, 0
  %v7870 = vsel %vm3418, %v7758, 0
  %v7873 = vsel %vm3418, %v7759, 0
  %v7876 = vsel %vm3418, %v7760, 0
  %v7879 = vsel %vm3418, %v7761, 0
  %v7882 = vsel %vm3418, %v7762, 0
  %v7885 = vsel %vm3418, %v7763, 0
  %v7888 = vsel %vm3418, %v7764, 0
  %v7891 = vsel %vm3418, %v7765, 0
  %v7894 = vsel %vm3418, %v7766, 0
  %v7897 = vsel %vm3418, %v7767, 0
  %v7900 = vsel %vm3418, %v7768, 0
  %v7903 = vsel %vm3418, %v7769, 0
  %v7906 = vsel %vm3418, %v7770, 0
  %v7909 = vsel %vm3418, %v7771, 0
  %v7912 = vsel %vm3418, %v7772, 0
  %v7915 = vsel %vm3418, %v7773, 0
  %v7918 = vsel %vm3418, %v7774, 0
  %v7921 = vsel %vm3418, %v7775, 0
  %v7924 = vsel %vm3418, %v7776, 0
  %v7927 = vsel %vm3418, %v7777, 0
  %v7930 = vsel %vm3418, %v7778, 0
  %v7933 = vsel %vm3418, %v7779, 0
  %v7936 = vsel %vm3418, %v7780, 0
  %v7939 = vsel %vm3418, %v7781, 0
  %v7942 = vsel %vm3418, %v7782, 0
  %v7945 = vsel %vm3418, %v7783, 0
  %v7948 = vsel %vm3418, %v7784, 0
  %v7951 = vsel %vm3418, %v7785, 0
  %v7954 = vsel %vm3418, %v7786, 0
  %v7957 = vsel %vm3418, %v7787, 0
  %v7960 = vsel %vm3418, %v7788, 0
  %v7963 = vsel %vm3418, %v7789, 0
  %v7966 = vsel %vm3418, %v7790, 0
  %v7969 = vsel %vm3418, %v7791, 0
  %v7972 = vsel %vm3418, %v7792, 0
  %v7975 = vsel %vm3418, %v7793, 0
  %v7978 = vsel %vm3418, %v7794, 0
  %v7981 = vsel %vm3418, %v7795, 0
  %v7984 = vsel %vm3418, %v7796, 0
  %v7987 = vsel %vm3418, %v7797, 0
  %v7990 = vsel %vm3418, %v7798, 0
  %v7993 = vsel %vm3418, %v7799, 0
  %v7996 = vsel %vm3418, %v7800, 0
  %v7999 = vsel %vm3418, %v7801, 0
  %v8002 = vsel %vm3418, %v7802, 0
  %8004 = vmatpush.msra.mxu0 0.0
  %8005 = vmatpush.msra.mxu0 0.0
  %8006 = vmatpush.msra.mxu0 0.0
  %8007 = vmatpush.msra.mxu0 0.0
  %8008 = vmatpush.msra.mxu0 0.0
  %8009 = vmatpush.msra.mxu0 0.0
  %8010 = vmatpush.msra.mxu0 0.0
  %8011 = vmatpush.msra.mxu0 %v7811
  %8012 = vmatpush.msra.mxu0 %v7810
  %8013 = vmatpush.msra.mxu0 %v7809
  %8014 = vmatpush.msra.mxu0 %v7808
  %8015 = vmatpush.msra.mxu0 %v7807
  %8016 = vmatpush.msra.mxu0 %v7806
  %8017 = vmatpush.msra.mxu0 %v7805
  %8018 = vmatpush.msra.mxu0 %v7804
  %8019 = vmatpush.msra.mxu0 %v7803
  %8020 = vmatmul.f32.gmra.mxu0 %v7813
  %v8021 = vpop.f32.mrf.mxu0
  %v8022 = vadd.f32 0.0, %v8021
  %8023 = vmatmul.f32.gmra.mxu0 %v7816
  %v8024 = vpop.f32.mrf.mxu0
  %v8025 = vadd.f32 0.0, %v8024
  %8026 = vmatmul.f32.gmra.mxu0 %v7819
  %v8027 = vpop.f32.mrf.mxu0
  %v8028 = vadd.f32 0.0, %v8027
  %8029 = vmatmul.f32.gmra.mxu0 %v7822
  %v8030 = vpop.f32.mrf.mxu0
  %v8031 = vadd.f32 0.0, %v8030
  %8032 = vmatmul.f32.gmra.mxu0 %v7825
  %v8033 = vpop.f32.mrf.mxu0
  %v8034 = vadd.f32 0.0, %v8033
  %8035 = vmatmul.f32.gmra.mxu0 %v7828
  %v8036 = vpop.f32.mrf.mxu0
  %v8037 = vadd.f32 0.0, %v8036
  %8038 = vmatmul.f32.gmra.mxu0 %v7831
  %v8039 = vpop.f32.mrf.mxu0
  %v8040 = vadd.f32 0.0, %v8039
  %8041 = vmatmul.f32.gmra.mxu0 %v7834
  %v8042 = vpop.f32.mrf.mxu0
  %v8043 = vadd.f32 0.0, %v8042
  %8044 = vmatmul.f32.gmra.mxu0 %v7837
  %v8045 = vpop.f32.mrf.mxu0
  %v8046 = vadd.f32 0.0, %v8045
  %8047 = vmatmul.f32.gmra.mxu0 %v7840
  %v8048 = vpop.f32.mrf.mxu0
  %v8049 = vadd.f32 0.0, %v8048
  %8050 = vmatmul.f32.gmra.mxu0 %v7843
  %v8051 = vpop.f32.mrf.mxu0
  %v8052 = vadd.f32 0.0, %v8051
  %8053 = vmatmul.f32.gmra.mxu0 %v7846
  %v8054 = vpop.f32.mrf.mxu0
  %v8055 = vadd.f32 0.0, %v8054
  %8056 = vmatmul.f32.gmra.mxu0 %v7849
  %v8057 = vpop.f32.mrf.mxu0
  %v8058 = vadd.f32 0.0, %v8057
  %8059 = vmatmul.f32.gmra.mxu0 %v7852
  %v8060 = vpop.f32.mrf.mxu0
  %v8061 = vadd.f32 0.0, %v8060
  %8062 = vmatmul.f32.gmra.mxu0 %v7855
  %v8063 = vpop.f32.mrf.mxu0
  %v8064 = vadd.f32 0.0, %v8063
  %8065 = vmatmul.f32.gmra.mxu0 %v7858
  %v8066 = vpop.f32.mrf.mxu0
  %v8067 = vadd.f32 0.0, %v8066
  %8068 = vmatmul.f32.gmra.mxu0 %v7861
  %v8069 = vpop.f32.mrf.mxu0
  %v8070 = vadd.f32 0.0, %v8069
  %8071 = vmatmul.f32.gmra.mxu0 %v7864
  %v8072 = vpop.f32.mrf.mxu0
  %v8073 = vadd.f32 0.0, %v8072
  %8074 = vmatmul.f32.gmra.mxu0 %v7867
  %v8075 = vpop.f32.mrf.mxu0
  %v8076 = vadd.f32 0.0, %v8075
  %8077 = vmatmul.f32.gmra.mxu0 %v7870
  %v8078 = vpop.f32.mrf.mxu0
  %v8079 = vadd.f32 0.0, %v8078
  %8080 = vmatmul.f32.gmra.mxu0 %v7873
  %v8081 = vpop.f32.mrf.mxu0
  %v8082 = vadd.f32 0.0, %v8081
  %8083 = vmatmul.f32.gmra.mxu0 %v7876
  %v8084 = vpop.f32.mrf.mxu0
  %v8085 = vadd.f32 0.0, %v8084
  %8086 = vmatmul.f32.gmra.mxu0 %v7879
  %v8087 = vpop.f32.mrf.mxu0
  %v8088 = vadd.f32 0.0, %v8087
  %8089 = vmatmul.f32.gmra.mxu0 %v7882
  %v8090 = vpop.f32.mrf.mxu0
  %v8091 = vadd.f32 0.0, %v8090
  %8092 = vmatmul.f32.gmra.mxu0 %v7885
  %v8093 = vpop.f32.mrf.mxu0
  %v8094 = vadd.f32 0.0, %v8093
  %8095 = vmatmul.f32.gmra.mxu0 %v7888
  %v8096 = vpop.f32.mrf.mxu0
  %v8097 = vadd.f32 0.0, %v8096
  %8098 = vmatmul.f32.gmra.mxu0 %v7891
  %v8099 = vpop.f32.mrf.mxu0
  %v8100 = vadd.f32 0.0, %v8099
  %8101 = vmatmul.f32.gmra.mxu0 %v7894
  %v8102 = vpop.f32.mrf.mxu0
  %v8103 = vadd.f32 0.0, %v8102
  %8104 = vmatmul.f32.gmra.mxu0 %v7897
  %v8105 = vpop.f32.mrf.mxu0
  %v8106 = vadd.f32 0.0, %v8105
  %8107 = vmatmul.f32.gmra.mxu0 %v7900
  %v8108 = vpop.f32.mrf.mxu0
  %v8109 = vadd.f32 0.0, %v8108
  %8110 = vmatmul.f32.gmra.mxu0 %v7903
  %v8111 = vpop.f32.mrf.mxu0
  %v8112 = vadd.f32 0.0, %v8111
  %8113 = vmatmul.f32.gmra.mxu0 %v7906
  %v8114 = vpop.f32.mrf.mxu0
  %v8115 = vadd.f32 0.0, %v8114
  %8116 = vmatmul.f32.gmra.mxu0 %v7909
  %v8117 = vpop.f32.mrf.mxu0
  %v8118 = vadd.f32 0.0, %v8117
  %8119 = vmatmul.f32.gmra.mxu0 %v7912
  %v8120 = vpop.f32.mrf.mxu0
  %v8121 = vadd.f32 0.0, %v8120
  %8122 = vmatmul.f32.gmra.mxu0 %v7915
  %v8123 = vpop.f32.mrf.mxu0
  %v8124 = vadd.f32 0.0, %v8123
  %8125 = vmatmul.f32.gmra.mxu0 %v7918
  %v8126 = vpop.f32.mrf.mxu0
  %v8127 = vadd.f32 0.0, %v8126
  %8128 = vmatmul.f32.gmra.mxu0 %v7921
  %v8129 = vpop.f32.mrf.mxu0
  %v8130 = vadd.f32 0.0, %v8129
  %8131 = vmatmul.f32.gmra.mxu0 %v7924
  %v8132 = vpop.f32.mrf.mxu0
  %v8133 = vadd.f32 0.0, %v8132
  %8134 = vmatmul.f32.gmra.mxu0 %v7927
  %v8135 = vpop.f32.mrf.mxu0
  %v8136 = vadd.f32 0.0, %v8135
  %8137 = vmatmul.f32.gmra.mxu0 %v7930
  %v8138 = vpop.f32.mrf.mxu0
  %v8139 = vadd.f32 0.0, %v8138
  %8140 = vmatmul.f32.gmra.mxu0 %v7933
  %v8141 = vpop.f32.mrf.mxu0
  %v8142 = vadd.f32 0.0, %v8141
  %8143 = vmatmul.f32.gmra.mxu0 %v7936
  %v8144 = vpop.f32.mrf.mxu0
  %v8145 = vadd.f32 0.0, %v8144
  %8146 = vmatmul.f32.gmra.mxu0 %v7939
  %v8147 = vpop.f32.mrf.mxu0
  %v8148 = vadd.f32 0.0, %v8147
  %8149 = vmatmul.f32.gmra.mxu0 %v7942
  %v8150 = vpop.f32.mrf.mxu0
  %v8151 = vadd.f32 0.0, %v8150
  %8152 = vmatmul.f32.gmra.mxu0 %v7945
  %v8153 = vpop.f32.mrf.mxu0
  %v8154 = vadd.f32 0.0, %v8153
  %8155 = vmatmul.f32.gmra.mxu0 %v7948
  %v8156 = vpop.f32.mrf.mxu0
  %v8157 = vadd.f32 0.0, %v8156
  %8158 = vmatmul.f32.gmra.mxu0 %v7951
  %v8159 = vpop.f32.mrf.mxu0
  %v8160 = vadd.f32 0.0, %v8159
  %8161 = vmatmul.f32.gmra.mxu0 %v7954
  %v8162 = vpop.f32.mrf.mxu0
  %v8163 = vadd.f32 0.0, %v8162
  %8164 = vmatmul.f32.gmra.mxu0 %v7957
  %v8165 = vpop.f32.mrf.mxu0
  %v8166 = vadd.f32 0.0, %v8165
  %8167 = vmatmul.f32.gmra.mxu0 %v7960
  %v8168 = vpop.f32.mrf.mxu0
  %v8169 = vadd.f32 0.0, %v8168
  %8170 = vmatmul.f32.gmra.mxu0 %v7963
  %v8171 = vpop.f32.mrf.mxu0
  %v8172 = vadd.f32 0.0, %v8171
  %8173 = vmatmul.f32.gmra.mxu0 %v7966
  %v8174 = vpop.f32.mrf.mxu0
  %v8175 = vadd.f32 0.0, %v8174
  %8176 = vmatmul.f32.gmra.mxu0 %v7969
  %v8177 = vpop.f32.mrf.mxu0
  %v8178 = vadd.f32 0.0, %v8177
  %8179 = vmatmul.f32.gmra.mxu0 %v7972
  %v8180 = vpop.f32.mrf.mxu0
  %v8181 = vadd.f32 0.0, %v8180
  %8182 = vmatmul.f32.gmra.mxu0 %v7975
  %v8183 = vpop.f32.mrf.mxu0
  %v8184 = vadd.f32 0.0, %v8183
  %8185 = vmatmul.f32.gmra.mxu0 %v7978
  %v8186 = vpop.f32.mrf.mxu0
  %v8187 = vadd.f32 0.0, %v8186
  %8188 = vmatmul.f32.gmra.mxu0 %v7981
  %v8189 = vpop.f32.mrf.mxu0
  %v8190 = vadd.f32 0.0, %v8189
  %8191 = vmatmul.f32.gmra.mxu0 %v7984
  %v8192 = vpop.f32.mrf.mxu0
  %v8193 = vadd.f32 0.0, %v8192
  %8194 = vmatmul.f32.gmra.mxu0 %v7987
  %v8195 = vpop.f32.mrf.mxu0
  %v8196 = vadd.f32 0.0, %v8195
  %8197 = vmatmul.f32.gmra.mxu0 %v7990
  %v8198 = vpop.f32.mrf.mxu0
  %v8199 = vadd.f32 0.0, %v8198
  %8200 = vmatmul.f32.gmra.mxu0 %v7993
  %v8201 = vpop.f32.mrf.mxu0
  %v8202 = vadd.f32 0.0, %v8201
  %8203 = vmatmul.f32.gmra.mxu0 %v7996
  %v8204 = vpop.f32.mrf.mxu0
  %v8205 = vadd.f32 0.0, %v8204
  %8206 = vmatmul.f32.gmra.mxu0 %v7999
  %v8207 = vpop.f32.mrf.mxu0
  %v8208 = vadd.f32 0.0, %v8207
  %8209 = vmatmul.f32.gmra.mxu0 %v8002
  %v8210 = vpop.f32.mrf.mxu0
  %v8211 = vadd.f32 0.0, %v8210
  %8212 = vdwg.mxu0
  %v8213 = vsel %vm90, %v8022, 0.0
  %v8214 = vsel %vm90, %v8025, 0.0
  %v8215 = vadd.f32 %v8213, %v8214
  %v8216 = vsel %vm90, %v8028, 0.0
  %v8217 = vadd.f32 %v8215, %v8216
  %v8218 = vsel %vm90, %v8031, 0.0
  %v8219 = vadd.f32 %v8217, %v8218
  %v8220 = vsel %vm90, %v8034, 0.0
  %v8221 = vadd.f32 %v8219, %v8220
  %v8222 = vsel %vm90, %v8037, 0.0
  %v8223 = vadd.f32 %v8221, %v8222
  %v8224 = vsel %vm90, %v8040, 0.0
  %v8225 = vadd.f32 %v8223, %v8224
  %v8226 = vsel %vm90, %v8043, 0.0
  %v8227 = vadd.f32 %v8225, %v8226
  %v8228 = vsel %vm90, %v8046, 0.0
  %v8229 = vadd.f32 %v8227, %v8228
  %v8230 = vsel %vm90, %v8049, 0.0
  %v8231 = vadd.f32 %v8229, %v8230
  %v8232 = vsel %vm90, %v8052, 0.0
  %v8233 = vadd.f32 %v8231, %v8232
  %v8234 = vsel %vm90, %v8055, 0.0
  %v8235 = vadd.f32 %v8233, %v8234
  %v8236 = vsel %vm90, %v8058, 0.0
  %v8237 = vadd.f32 %v8235, %v8236
  %v8238 = vsel %vm90, %v8061, 0.0
  %v8239 = vadd.f32 %v8237, %v8238
  %v8240 = vsel %vm90, %v8064, 0.0
  %v8241 = vadd.f32 %v8239, %v8240
  %v8242 = vsel %vm90, %v8067, 0.0
  %v8243 = vadd.f32 %v8241, %v8242
  %v8244 = vsel %vm90, %v8070, 0.0
  %v8245 = vadd.f32 %v8243, %v8244
  %v8246 = vsel %vm90, %v8073, 0.0
  %v8247 = vadd.f32 %v8245, %v8246
  %v8248 = vsel %vm90, %v8076, 0.0
  %v8249 = vadd.f32 %v8247, %v8248
  %v8250 = vsel %vm90, %v8079, 0.0
  %v8251 = vadd.f32 %v8249, %v8250
  %v8252 = vsel %vm90, %v8082, 0.0
  %v8253 = vadd.f32 %v8251, %v8252
  %v8254 = vsel %vm90, %v8085, 0.0
  %v8255 = vadd.f32 %v8253, %v8254
  %v8256 = vsel %vm90, %v8088, 0.0
  %v8257 = vadd.f32 %v8255, %v8256
  %v8258 = vsel %vm90, %v8091, 0.0
  %v8259 = vadd.f32 %v8257, %v8258
  %v8260 = vsel %vm90, %v8094, 0.0
  %v8261 = vadd.f32 %v8259, %v8260
  %v8262 = vsel %vm90, %v8097, 0.0
  %v8263 = vadd.f32 %v8261, %v8262
  %v8264 = vsel %vm90, %v8100, 0.0
  %v8265 = vadd.f32 %v8263, %v8264
  %v8266 = vsel %vm90, %v8103, 0.0
  %v8267 = vadd.f32 %v8265, %v8266
  %v8268 = vsel %vm90, %v8106, 0.0
  %v8269 = vadd.f32 %v8267, %v8268
  %v8270 = vsel %vm90, %v8109, 0.0
  %v8271 = vadd.f32 %v8269, %v8270
  %v8272 = vsel %vm90, %v8112, 0.0
  %v8273 = vadd.f32 %v8271, %v8272
  %v8274 = vsel %vm90, %v8115, 0.0
  %v8275 = vadd.f32 %v8273, %v8274
  %v8276 = vsel %vm90, %v8118, 0.0
  %v8277 = vadd.f32 %v8275, %v8276
  %v8278 = vsel %vm90, %v8121, 0.0
  %v8279 = vadd.f32 %v8277, %v8278
  %v8280 = vsel %vm90, %v8124, 0.0
  %v8281 = vadd.f32 %v8279, %v8280
  %v8282 = vsel %vm90, %v8127, 0.0
  %v8283 = vadd.f32 %v8281, %v8282
  %v8284 = vsel %vm90, %v8130, 0.0
  %v8285 = vadd.f32 %v8283, %v8284
  %v8286 = vsel %vm90, %v8133, 0.0
  %v8287 = vadd.f32 %v8285, %v8286
  %v8288 = vsel %vm90, %v8136, 0.0
  %v8289 = vadd.f32 %v8287, %v8288
  %v8290 = vsel %vm90, %v8139, 0.0
  %v8291 = vadd.f32 %v8289, %v8290
  %v8292 = vsel %vm90, %v8142, 0.0
  %v8293 = vadd.f32 %v8291, %v8292
  %v8294 = vsel %vm90, %v8145, 0.0
  %v8295 = vadd.f32 %v8293, %v8294
  %v8296 = vsel %vm90, %v8148, 0.0
  %v8297 = vadd.f32 %v8295, %v8296
  %v8298 = vsel %vm90, %v8151, 0.0
  %v8299 = vadd.f32 %v8297, %v8298
  %v8300 = vsel %vm90, %v8154, 0.0
  %v8301 = vadd.f32 %v8299, %v8300
  %v8302 = vsel %vm90, %v8157, 0.0
  %v8303 = vadd.f32 %v8301, %v8302
  %v8304 = vsel %vm90, %v8160, 0.0
  %v8305 = vadd.f32 %v8303, %v8304
  %v8306 = vsel %vm90, %v8163, 0.0
  %v8307 = vadd.f32 %v8305, %v8306
  %v8308 = vsel %vm90, %v8166, 0.0
  %v8309 = vadd.f32 %v8307, %v8308
  %v8310 = vsel %vm90, %v8169, 0.0
  %v8311 = vadd.f32 %v8309, %v8310
  %v8312 = vsel %vm90, %v8172, 0.0
  %v8313 = vadd.f32 %v8311, %v8312
  %v8314 = vsel %vm90, %v8175, 0.0
  %v8315 = vadd.f32 %v8313, %v8314
  %v8316 = vsel %vm90, %v8178, 0.0
  %v8317 = vadd.f32 %v8315, %v8316
  %v8318 = vsel %vm90, %v8181, 0.0
  %v8319 = vadd.f32 %v8317, %v8318
  %v8320 = vsel %vm90, %v8184, 0.0
  %v8321 = vadd.f32 %v8319, %v8320
  %v8322 = vsel %vm90, %v8187, 0.0
  %v8323 = vadd.f32 %v8321, %v8322
  %v8324 = vsel %vm90, %v8190, 0.0
  %v8325 = vadd.f32 %v8323, %v8324
  %v8326 = vsel %vm90, %v8193, 0.0
  %v8327 = vadd.f32 %v8325, %v8326
  %v8328 = vsel %vm90, %v8196, 0.0
  %v8329 = vadd.f32 %v8327, %v8328
  %v8330 = vsel %vm90, %v8199, 0.0
  %v8331 = vadd.f32 %v8329, %v8330
  %v8332 = vsel %vm90, %v8202, 0.0
  %v8333 = vadd.f32 %v8331, %v8332
  %v8334 = vsel %vm90, %v8205, 0.0
  %v8335 = vadd.f32 %v8333, %v8334
  %v8336 = vsel %vm90, %v8208, 0.0
  %v8337 = vadd.f32 %v8335, %v8336
  %v8338 = vsel %vm90, %v8211, 0.0
  %v8339 = vadd.f32 %v8337, %v8338
  %v8340 = vrot.slane %v8339, 4
  %v8341 = vadd.f32 %v8339, %v8340
  %v8342 = vrot.slane %v8341, 2
  %v8343 = vadd.f32 %v8341, %v8342
  %v8344 = vrot.slane %v8343, 1
  %v8345 = vadd.f32 %v8343, %v8344
  %v8346 = vmul.f32 %v8022, %v8022
  %v8347 = vmul.f32 %v8025, %v8025
  %v8348 = vmul.f32 %v8028, %v8028
  %v8349 = vmul.f32 %v8031, %v8031
  %v8350 = vmul.f32 %v8034, %v8034
  %v8351 = vmul.f32 %v8037, %v8037
  %v8352 = vmul.f32 %v8040, %v8040
  %v8353 = vmul.f32 %v8043, %v8043
  %v8354 = vmul.f32 %v8046, %v8046
  %v8355 = vmul.f32 %v8049, %v8049
  %v8356 = vmul.f32 %v8052, %v8052
  %v8357 = vmul.f32 %v8055, %v8055
  %v8358 = vmul.f32 %v8058, %v8058
  %v8359 = vmul.f32 %v8061, %v8061
  %v8360 = vmul.f32 %v8064, %v8064
  %v8361 = vmul.f32 %v8067, %v8067
  %v8362 = vmul.f32 %v8070, %v8070
  %v8363 = vmul.f32 %v8073, %v8073
  %v8364 = vmul.f32 %v8076, %v8076
  %v8365 = vmul.f32 %v8079, %v8079
  %v8366 = vmul.f32 %v8082, %v8082
  %v8367 = vmul.f32 %v8085, %v8085
  %v8368 = vmul.f32 %v8088, %v8088
  %v8369 = vmul.f32 %v8091, %v8091
  %v8370 = vmul.f32 %v8094, %v8094
  %v8371 = vmul.f32 %v8097, %v8097
  %v8372 = vmul.f32 %v8100, %v8100
  %v8373 = vmul.f32 %v8103, %v8103
  %v8374 = vmul.f32 %v8106, %v8106
  %v8375 = vmul.f32 %v8109, %v8109
  %v8376 = vmul.f32 %v8112, %v8112
  %v8377 = vmul.f32 %v8115, %v8115
  %v8378 = vmul.f32 %v8118, %v8118
  %v8379 = vmul.f32 %v8121, %v8121
  %v8380 = vmul.f32 %v8124, %v8124
  %v8381 = vmul.f32 %v8127, %v8127
  %v8382 = vmul.f32 %v8130, %v8130
  %v8383 = vmul.f32 %v8133, %v8133
  %v8384 = vmul.f32 %v8136, %v8136
  %v8385 = vmul.f32 %v8139, %v8139
  %v8386 = vmul.f32 %v8142, %v8142
  %v8387 = vmul.f32 %v8145, %v8145
  %v8388 = vmul.f32 %v8148, %v8148
  %v8389 = vmul.f32 %v8151, %v8151
  %v8390 = vmul.f32 %v8154, %v8154
  %v8391 = vmul.f32 %v8157, %v8157
  %v8392 = vmul.f32 %v8160, %v8160
  %v8393 = vmul.f32 %v8163, %v8163
  %v8394 = vmul.f32 %v8166, %v8166
  %v8395 = vmul.f32 %v8169, %v8169
  %v8396 = vmul.f32 %v8172, %v8172
  %v8397 = vmul.f32 %v8175, %v8175
  %v8398 = vmul.f32 %v8178, %v8178
  %v8399 = vmul.f32 %v8181, %v8181
  %v8400 = vmul.f32 %v8184, %v8184
  %v8401 = vmul.f32 %v8187, %v8187
  %v8402 = vmul.f32 %v8190, %v8190
  %v8403 = vmul.f32 %v8193, %v8193
  %v8404 = vmul.f32 %v8196, %v8196
  %v8405 = vmul.f32 %v8199, %v8199
  %v8406 = vmul.f32 %v8202, %v8202
  %v8407 = vmul.f32 %v8205, %v8205
  %v8408 = vmul.f32 %v8208, %v8208
  %v8409 = vmul.f32 %v8211, %v8211
  %v8410 = vsel %vm90, %v8346, 0.0
  %v8411 = vsel %vm90, %v8347, 0.0
  %v8412 = vadd.f32 %v8410, %v8411
  %v8413 = vsel %vm90, %v8348, 0.0
  %v8414 = vadd.f32 %v8412, %v8413
  %v8415 = vsel %vm90, %v8349, 0.0
  %v8416 = vadd.f32 %v8414, %v8415
  %v8417 = vsel %vm90, %v8350, 0.0
  %v8418 = vadd.f32 %v8416, %v8417
  %v8419 = vsel %vm90, %v8351, 0.0
  %v8420 = vadd.f32 %v8418, %v8419
  %v8421 = vsel %vm90, %v8352, 0.0
  %v8422 = vadd.f32 %v8420, %v8421
  %v8423 = vsel %vm90, %v8353, 0.0
  %v8424 = vadd.f32 %v8422, %v8423
  %v8425 = vsel %vm90, %v8354, 0.0
  %v8426 = vadd.f32 %v8424, %v8425
  %v8427 = vsel %vm90, %v8355, 0.0
  %v8428 = vadd.f32 %v8426, %v8427
  %v8429 = vsel %vm90, %v8356, 0.0
  %v8430 = vadd.f32 %v8428, %v8429
  %v8431 = vsel %vm90, %v8357, 0.0
  %v8432 = vadd.f32 %v8430, %v8431
  %v8433 = vsel %vm90, %v8358, 0.0
  %v8434 = vadd.f32 %v8432, %v8433
  %v8435 = vsel %vm90, %v8359, 0.0
  %v8436 = vadd.f32 %v8434, %v8435
  %v8437 = vsel %vm90, %v8360, 0.0
  %v8438 = vadd.f32 %v8436, %v8437
  %v8439 = vsel %vm90, %v8361, 0.0
  %v8440 = vadd.f32 %v8438, %v8439
  %v8441 = vsel %vm90, %v8362, 0.0
  %v8442 = vadd.f32 %v8440, %v8441
  %v8443 = vsel %vm90, %v8363, 0.0
  %v8444 = vadd.f32 %v8442, %v8443
  %v8445 = vsel %vm90, %v8364, 0.0
  %v8446 = vadd.f32 %v8444, %v8445
  %v8447 = vsel %vm90, %v8365, 0.0
  %v8448 = vadd.f32 %v8446, %v8447
  %v8449 = vsel %vm90, %v8366, 0.0
  %v8450 = vadd.f32 %v8448, %v8449
  %v8451 = vsel %vm90, %v8367, 0.0
  %v8452 = vadd.f32 %v8450, %v8451
  %v8453 = vsel %vm90, %v8368, 0.0
  %v8454 = vadd.f32 %v8452, %v8453
  %v8455 = vsel %vm90, %v8369, 0.0
  %v8456 = vadd.f32 %v8454, %v8455
  %v8457 = vsel %vm90, %v8370, 0.0
  %v8458 = vadd.f32 %v8456, %v8457
  %v8459 = vsel %vm90, %v8371, 0.0
  %v8460 = vadd.f32 %v8458, %v8459
  %v8461 = vsel %vm90, %v8372, 0.0
  %v8462 = vadd.f32 %v8460, %v8461
  %v8463 = vsel %vm90, %v8373, 0.0
  %v8464 = vadd.f32 %v8462, %v8463
  %v8465 = vsel %vm90, %v8374, 0.0
  %v8466 = vadd.f32 %v8464, %v8465
  %v8467 = vsel %vm90, %v8375, 0.0
  %v8468 = vadd.f32 %v8466, %v8467
  %v8469 = vsel %vm90, %v8376, 0.0
  %v8470 = vadd.f32 %v8468, %v8469
  %v8471 = vsel %vm90, %v8377, 0.0
  %v8472 = vadd.f32 %v8470, %v8471
  %v8473 = vsel %vm90, %v8378, 0.0
  %v8474 = vadd.f32 %v8472, %v8473
  %v8475 = vsel %vm90, %v8379, 0.0
  %v8476 = vadd.f32 %v8474, %v8475
  %v8477 = vsel %vm90, %v8380, 0.0
  %v8478 = vadd.f32 %v8476, %v8477
  %v8479 = vsel %vm90, %v8381, 0.0
  %v8480 = vadd.f32 %v8478, %v8479
  %v8481 = vsel %vm90, %v8382, 0.0
  %v8482 = vadd.f32 %v8480, %v8481
  %v8483 = vsel %vm90, %v8383, 0.0
  %v8484 = vadd.f32 %v8482, %v8483
  %v8485 = vsel %vm90, %v8384, 0.0
  %v8486 = vadd.f32 %v8484, %v8485
  %v8487 = vsel %vm90, %v8385, 0.0
  %v8488 = vadd.f32 %v8486, %v8487
  %v8489 = vsel %vm90, %v8386, 0.0
  %v8490 = vadd.f32 %v8488, %v8489
  %v8491 = vsel %vm90, %v8387, 0.0
  %v8492 = vadd.f32 %v8490, %v8491
  %v8493 = vsel %vm90, %v8388, 0.0
  %v8494 = vadd.f32 %v8492, %v8493
  %v8495 = vsel %vm90, %v8389, 0.0
  %v8496 = vadd.f32 %v8494, %v8495
  %v8497 = vsel %vm90, %v8390, 0.0
  %v8498 = vadd.f32 %v8496, %v8497
  %v8499 = vsel %vm90, %v8391, 0.0
  %v8500 = vadd.f32 %v8498, %v8499
  %v8501 = vsel %vm90, %v8392, 0.0
  %v8502 = vadd.f32 %v8500, %v8501
  %v8503 = vsel %vm90, %v8393, 0.0
  %v8504 = vadd.f32 %v8502, %v8503
  %v8505 = vsel %vm90, %v8394, 0.0
  %v8506 = vadd.f32 %v8504, %v8505
  %v8507 = vsel %vm90, %v8395, 0.0
  %v8508 = vadd.f32 %v8506, %v8507
  %v8509 = vsel %vm90, %v8396, 0.0
  %v8510 = vadd.f32 %v8508, %v8509
  %v8511 = vsel %vm90, %v8397, 0.0
  %v8512 = vadd.f32 %v8510, %v8511
  %v8513 = vsel %vm90, %v8398, 0.0
  %v8514 = vadd.f32 %v8512, %v8513
  %v8515 = vsel %vm90, %v8399, 0.0
  %v8516 = vadd.f32 %v8514, %v8515
  %v8517 = vsel %vm90, %v8400, 0.0
  %v8518 = vadd.f32 %v8516, %v8517
  %v8519 = vsel %vm90, %v8401, 0.0
  %v8520 = vadd.f32 %v8518, %v8519
  %v8521 = vsel %vm90, %v8402, 0.0
  %v8522 = vadd.f32 %v8520, %v8521
  %v8523 = vsel %vm90, %v8403, 0.0
  %v8524 = vadd.f32 %v8522, %v8523
  %v8525 = vsel %vm90, %v8404, 0.0
  %v8526 = vadd.f32 %v8524, %v8525
  %v8527 = vsel %vm90, %v8405, 0.0
  %v8528 = vadd.f32 %v8526, %v8527
  %v8529 = vsel %vm90, %v8406, 0.0
  %v8530 = vadd.f32 %v8528, %v8529
  %v8531 = vsel %vm90, %v8407, 0.0
  %v8532 = vadd.f32 %v8530, %v8531
  %v8533 = vsel %vm90, %v8408, 0.0
  %v8534 = vadd.f32 %v8532, %v8533
  %v8535 = vsel %vm90, %v8409, 0.0
  %v8536 = vadd.f32 %v8534, %v8535
  %v8537 = vrot.slane %v8536, 4
  %v8538 = vadd.f32 %v8536, %v8537
  %v8539 = vrot.slane %v8538, 2
  %v8540 = vadd.f32 %v8538, %v8539
  %v8541 = vrot.slane %v8540, 1
  %v8542 = vadd.f32 %v8540, %v8541
  %v8543 = vmul.f32 %v8345, 0.001953125
  %v8544 = vmul.f32 %v8542, 0.001953125
  %v8545 = vmul.f32 %v8543, %v8543
  %v8546 = vsub.f32 %v8544, %v8545
  %v8547 = vsub.f32 %v8022, %v8543
  %v8548 = vsub.f32 %v8025, %v8543
  %v8549 = vsub.f32 %v8028, %v8543
  %v8550 = vsub.f32 %v8031, %v8543
  %v8551 = vsub.f32 %v8034, %v8543
  %v8552 = vsub.f32 %v8037, %v8543
  %v8553 = vsub.f32 %v8040, %v8543
  %v8554 = vsub.f32 %v8043, %v8543
  %v8555 = vsub.f32 %v8046, %v8543
  %v8556 = vsub.f32 %v8049, %v8543
  %v8557 = vsub.f32 %v8052, %v8543
  %v8558 = vsub.f32 %v8055, %v8543
  %v8559 = vsub.f32 %v8058, %v8543
  %v8560 = vsub.f32 %v8061, %v8543
  %v8561 = vsub.f32 %v8064, %v8543
  %v8562 = vsub.f32 %v8067, %v8543
  %v8563 = vsub.f32 %v8070, %v8543
  %v8564 = vsub.f32 %v8073, %v8543
  %v8565 = vsub.f32 %v8076, %v8543
  %v8566 = vsub.f32 %v8079, %v8543
  %v8567 = vsub.f32 %v8082, %v8543
  %v8568 = vsub.f32 %v8085, %v8543
  %v8569 = vsub.f32 %v8088, %v8543
  %v8570 = vsub.f32 %v8091, %v8543
  %v8571 = vsub.f32 %v8094, %v8543
  %v8572 = vsub.f32 %v8097, %v8543
  %v8573 = vsub.f32 %v8100, %v8543
  %v8574 = vsub.f32 %v8103, %v8543
  %v8575 = vsub.f32 %v8106, %v8543
  %v8576 = vsub.f32 %v8109, %v8543
  %v8577 = vsub.f32 %v8112, %v8543
  %v8578 = vsub.f32 %v8115, %v8543
  %v8579 = vsub.f32 %v8118, %v8543
  %v8580 = vsub.f32 %v8121, %v8543
  %v8581 = vsub.f32 %v8124, %v8543
  %v8582 = vsub.f32 %v8127, %v8543
  %v8583 = vsub.f32 %v8130, %v8543
  %v8584 = vsub.f32 %v8133, %v8543
  %v8585 = vsub.f32 %v8136, %v8543
  %v8586 = vsub.f32 %v8139, %v8543
  %v8587 = vsub.f32 %v8142, %v8543
  %v8588 = vsub.f32 %v8145, %v8543
  %v8589 = vsub.f32 %v8148, %v8543
  %v8590 = vsub.f32 %v8151, %v8543
  %v8591 = vsub.f32 %v8154, %v8543
  %v8592 = vsub.f32 %v8157, %v8543
  %v8593 = vsub.f32 %v8160, %v8543
  %v8594 = vsub.f32 %v8163, %v8543
  %v8595 = vsub.f32 %v8166, %v8543
  %v8596 = vsub.f32 %v8169, %v8543
  %v8597 = vsub.f32 %v8172, %v8543
  %v8598 = vsub.f32 %v8175, %v8543
  %v8599 = vsub.f32 %v8178, %v8543
  %v8600 = vsub.f32 %v8181, %v8543
  %v8601 = vsub.f32 %v8184, %v8543
  %v8602 = vsub.f32 %v8187, %v8543
  %v8603 = vsub.f32 %v8190, %v8543
  %v8604 = vsub.f32 %v8193, %v8543
  %v8605 = vsub.f32 %v8196, %v8543
  %v8606 = vsub.f32 %v8199, %v8543
  %v8607 = vsub.f32 %v8202, %v8543
  %v8608 = vsub.f32 %v8205, %v8543
  %v8609 = vsub.f32 %v8208, %v8543
  %v8610 = vsub.f32 %v8211, %v8543
  %v8611 = vadd.f32 %v8546, 1e-05
  %v8612 = vrsqrt.pop %v8611
  %v8613 = vmul.f32 %v8612, %v8611
  %v8614 = vmul.f32 %v8613, %v8612
  %v8615 = vmul.f32 0.5, %v8614
  %v8616 = vsub.f32 1.5, %v8615
  %v8617 = vmul.f32 %v8612, %v8616
  %vm8618 = vweird.f32 %v8611
  %vm8619 = vweird.f32 %v8612
  %vm8620 = vmor %vm8618, %vm8619
  %v8621 = vsel %vm8620, %v8612, %v8617
  %v8622 = vmul.f32 %v8547, %v8621
  %v8623 = vmul.f32 %v8548, %v8621
  %v8624 = vmul.f32 %v8549, %v8621
  %v8625 = vmul.f32 %v8550, %v8621
  %v8626 = vmul.f32 %v8551, %v8621
  %v8627 = vmul.f32 %v8552, %v8621
  %v8628 = vmul.f32 %v8553, %v8621
  %v8629 = vmul.f32 %v8554, %v8621
  %v8630 = vmul.f32 %v8555, %v8621
  %v8631 = vmul.f32 %v8556, %v8621
  %v8632 = vmul.f32 %v8557, %v8621
  %v8633 = vmul.f32 %v8558, %v8621
  %v8634 = vmul.f32 %v8559, %v8621
  %v8635 = vmul.f32 %v8560, %v8621
  %v8636 = vmul.f32 %v8561, %v8621
  %v8637 = vmul.f32 %v8562, %v8621
  %v8638 = vmul.f32 %v8563, %v8621
  %v8639 = vmul.f32 %v8564, %v8621
  %v8640 = vmul.f32 %v8565, %v8621
  %v8641 = vmul.f32 %v8566, %v8621
  %v8642 = vmul.f32 %v8567, %v8621
  %v8643 = vmul.f32 %v8568, %v8621
  %v8644 = vmul.f32 %v8569, %v8621
  %v8645 = vmul.f32 %v8570, %v8621
  %v8646 = vmul.f32 %v8571, %v8621
  %v8647 = vmul.f32 %v8572, %v8621
  %v8648 = vmul.f32 %v8573, %v8621
  %v8649 = vmul.f32 %v8574, %v8621
  %v8650 = vmul.f32 %v8575, %v8621
  %v8651 = vmul.f32 %v8576, %v8621
  %v8652 = vmul.f32 %v8577, %v8621
  %v8653 = vmul.f32 %v8578, %v8621
  %v8654 = vmul.f32 %v8579, %v8621
  %v8655 = vmul.f32 %v8580, %v8621
  %v8656 = vmul.f32 %v8581, %v8621
  %v8657 = vmul.f32 %v8582, %v8621
  %v8658 = vmul.f32 %v8583, %v8621
  %v8659 = vmul.f32 %v8584, %v8621
  %v8660 = vmul.f32 %v8585, %v8621
  %v8661 = vmul.f32 %v8586, %v8621
  %v8662 = vmul.f32 %v8587, %v8621
  %v8663 = vmul.f32 %v8588, %v8621
  %v8664 = vmul.f32 %v8589, %v8621
  %v8665 = vmul.f32 %v8590, %v8621
  %v8666 = vmul.f32 %v8591, %v8621
  %v8667 = vmul.f32 %v8592, %v8621
  %v8668 = vmul.f32 %v8593, %v8621
  %v8669 = vmul.f32 %v8594, %v8621
  %v8670 = vmul.f32 %v8595, %v8621
  %v8671 = vmul.f32 %v8596, %v8621
  %v8672 = vmul.f32 %v8597, %v8621
  %v8673 = vmul.f32 %v8598, %v8621
  %v8674 = vmul.f32 %v8599, %v8621
  %v8675 = vmul.f32 %v8600, %v8621
  %v8676 = vmul.f32 %v8601, %v8621
  %v8677 = vmul.f32 %v8602, %v8621
  %v8678 = vmul.f32 %v8603, %v8621
  %v8679 = vmul.f32 %v8604, %v8621
  %v8680 = vmul.f32 %v8605, %v8621
  %v8681 = vmul.f32 %v8606, %v8621
  %v8682 = vmul.f32 %v8607, %v8621
  %v8683 = vmul.f32 %v8608, %v8621
  %v8684 = vmul.f32 %v8609, %v8621
  %v8685 = vmul.f32 %v8610, %v8621
  %v8686 = vld [vmem:[%s5] sm:$0x1]
  %v8688 = vperm.slane %v8686, 0
  %v8690 = vmul.f32 %v8622, %v8688
  %v8691 = vmul.f32 %v8623, %v8688
  %v8692 = vmul.f32 %v8624, %v8688
  %v8693 = vmul.f32 %v8625, %v8688
  %v8694 = vmul.f32 %v8626, %v8688
  %v8695 = vmul.f32 %v8627, %v8688
  %v8696 = vmul.f32 %v8628, %v8688
  %v8697 = vmul.f32 %v8629, %v8688
  %v8698 = vmul.f32 %v8630, %v8688
  %v8699 = vmul.f32 %v8631, %v8688
  %v8700 = vmul.f32 %v8632, %v8688
  %v8701 = vmul.f32 %v8633, %v8688
  %v8702 = vmul.f32 %v8634, %v8688
  %v8703 = vmul.f32 %v8635, %v8688
  %v8704 = vmul.f32 %v8636, %v8688
  %v8705 = vmul.f32 %v8637, %v8688
  %v8706 = vmul.f32 %v8638, %v8688
  %v8707 = vmul.f32 %v8639, %v8688
  %v8708 = vmul.f32 %v8640, %v8688
  %v8709 = vmul.f32 %v8641, %v8688
  %v8710 = vmul.f32 %v8642, %v8688
  %v8711 = vmul.f32 %v8643, %v8688
  %v8712 = vmul.f32 %v8644, %v8688
  %v8713 = vmul.f32 %v8645, %v8688
  %v8714 = vmul.f32 %v8646, %v8688
  %v8715 = vmul.f32 %v8647, %v8688
  %v8716 = vmul.f32 %v8648, %v8688
  %v8717 = vmul.f32 %v8649, %v8688
  %v8718 = vmul.f32 %v8650, %v8688
  %v8719 = vmul.f32 %v8651, %v8688
  %v8720 = vmul.f32 %v8652, %v8688
  %v8721 = vmul.f32 %v8653, %v8688
  %v8722 = vmul.f32 %v8654, %v8688
  %v8723 = vmul.f32 %v8655, %v8688
  %v8724 = vmul.f32 %v8656, %v8688
  %v8725 = vmul.f32 %v8657, %v8688
  %v8726 = vmul.f32 %v8658, %v8688
  %v8727 = vmul.f32 %v8659, %v8688
  %v8728 = vmul.f32 %v8660, %v8688
  %v8729 = vmul.f32 %v8661, %v8688
  %v8730 = vmul.f32 %v8662, %v8688
  %v8731 = vmul.f32 %v8663, %v8688
  %v8732 = vmul.f32 %v8664, %v8688
  %v8733 = vmul.f32 %v8665, %v8688
  %v8734 = vmul.f32 %v8666, %v8688
  %v8735 = vmul.f32 %v8667, %v8688
  %v8736 = vmul.f32 %v8668, %v8688
  %v8737 = vmul.f32 %v8669, %v8688
  %v8738 = vmul.f32 %v8670, %v8688
  %v8739 = vmul.f32 %v8671, %v8688
  %v8740 = vmul.f32 %v8672, %v8688
  %v8741 = vmul.f32 %v8673, %v8688
  %v8742 = vmul.f32 %v8674, %v8688
  %v8743 = vmul.f32 %v8675, %v8688
  %v8744 = vmul.f32 %v8676, %v8688
  %v8745 = vmul.f32 %v8677, %v8688
  %v8746 = vmul.f32 %v8678, %v8688
  %v8747 = vmul.f32 %v8679, %v8688
  %v8748 = vmul.f32 %v8680, %v8688
  %v8749 = vmul.f32 %v8681, %v8688
  %v8750 = vmul.f32 %v8682, %v8688
  %v8751 = vmul.f32 %v8683, %v8688
  %v8752 = vmul.f32 %v8684, %v8688
  %v8753 = vmul.f32 %v8685, %v8688
  %v8754 = vld [vmem:[%s6] sm:$0x1]
  %v8756 = vperm.slane %v8754, 0
  %v8758 = vadd.f32 %v8690, %v8756
  %v8759 = vadd.f32 %v8691, %v8756
  %v8760 = vadd.f32 %v8692, %v8756
  %v8761 = vadd.f32 %v8693, %v8756
  %v8762 = vadd.f32 %v8694, %v8756
  %v8763 = vadd.f32 %v8695, %v8756
  %v8764 = vadd.f32 %v8696, %v8756
  %v8765 = vadd.f32 %v8697, %v8756
  %v8766 = vadd.f32 %v8698, %v8756
  %v8767 = vadd.f32 %v8699, %v8756
  %v8768 = vadd.f32 %v8700, %v8756
  %v8769 = vadd.f32 %v8701, %v8756
  %v8770 = vadd.f32 %v8702, %v8756
  %v8771 = vadd.f32 %v8703, %v8756
  %v8772 = vadd.f32 %v8704, %v8756
  %v8773 = vadd.f32 %v8705, %v8756
  %v8774 = vadd.f32 %v8706, %v8756
  %v8775 = vadd.f32 %v8707, %v8756
  %v8776 = vadd.f32 %v8708, %v8756
  %v8777 = vadd.f32 %v8709, %v8756
  %v8778 = vadd.f32 %v8710, %v8756
  %v8779 = vadd.f32 %v8711, %v8756
  %v8780 = vadd.f32 %v8712, %v8756
  %v8781 = vadd.f32 %v8713, %v8756
  %v8782 = vadd.f32 %v8714, %v8756
  %v8783 = vadd.f32 %v8715, %v8756
  %v8784 = vadd.f32 %v8716, %v8756
  %v8785 = vadd.f32 %v8717, %v8756
  %v8786 = vadd.f32 %v8718, %v8756
  %v8787 = vadd.f32 %v8719, %v8756
  %v8788 = vadd.f32 %v8720, %v8756
  %v8789 = vadd.f32 %v8721, %v8756
  %v8790 = vadd.f32 %v8722, %v8756
  %v8791 = vadd.f32 %v8723, %v8756
  %v8792 = vadd.f32 %v8724, %v8756
  %v8793 = vadd.f32 %v8725, %v8756
  %v8794 = vadd.f32 %v8726, %v8756
  %v8795 = vadd.f32 %v8727, %v8756
  %v8796 = vadd.f32 %v8728, %v8756
  %v8797 = vadd.f32 %v8729, %v8756
  %v8798 = vadd.f32 %v8730, %v8756
  %v8799 = vadd.f32 %v8731, %v8756
  %v8800 = vadd.f32 %v8732, %v8756
  %v8801 = vadd.f32 %v8733, %v8756
  %v8802 = vadd.f32 %v8734, %v8756
  %v8803 = vadd.f32 %v8735, %v8756
  %v8804 = vadd.f32 %v8736, %v8756
  %v8805 = vadd.f32 %v8737, %v8756
  %v8806 = vadd.f32 %v8738, %v8756
  %v8807 = vadd.f32 %v8739, %v8756
  %v8808 = vadd.f32 %v8740, %v8756
  %v8809 = vadd.f32 %v8741, %v8756
  %v8810 = vadd.f32 %v8742, %v8756
  %v8811 = vadd.f32 %v8743, %v8756
  %v8812 = vadd.f32 %v8744, %v8756
  %v8813 = vadd.f32 %v8745, %v8756
  %v8814 = vadd.f32 %v8746, %v8756
  %v8815 = vadd.f32 %v8747, %v8756
  %v8816 = vadd.f32 %v8748, %v8756
  %v8817 = vadd.f32 %v8749, %v8756
  %v8818 = vadd.f32 %v8750, %v8756
  %v8819 = vadd.f32 %v8751, %v8756
  %v8820 = vadd.f32 %v8752, %v8756
  %v8821 = vadd.f32 %v8753, %v8756
  %v8822 = vadd.f32 %v8758, %v26
  %v8823 = vadd.f32 %v8759, %v27
  %v8824 = vadd.f32 %v8760, %v28
  %v8825 = vadd.f32 %v8761, %v29
  %v8826 = vadd.f32 %v8762, %v30
  %v8827 = vadd.f32 %v8763, %v31
  %v8828 = vadd.f32 %v8764, %v32
  %v8829 = vadd.f32 %v8765, %v33
  %v8830 = vadd.f32 %v8766, %v34
  %v8831 = vadd.f32 %v8767, %v35
  %v8832 = vadd.f32 %v8768, %v36
  %v8833 = vadd.f32 %v8769, %v37
  %v8834 = vadd.f32 %v8770, %v38
  %v8835 = vadd.f32 %v8771, %v39
  %v8836 = vadd.f32 %v8772, %v40
  %v8837 = vadd.f32 %v8773, %v41
  %v8838 = vadd.f32 %v8774, %v42
  %v8839 = vadd.f32 %v8775, %v43
  %v8840 = vadd.f32 %v8776, %v44
  %v8841 = vadd.f32 %v8777, %v45
  %v8842 = vadd.f32 %v8778, %v46
  %v8843 = vadd.f32 %v8779, %v47
  %v8844 = vadd.f32 %v8780, %v48
  %v8845 = vadd.f32 %v8781, %v49
  %v8846 = vadd.f32 %v8782, %v50
  %v8847 = vadd.f32 %v8783, %v51
  %v8848 = vadd.f32 %v8784, %v52
  %v8849 = vadd.f32 %v8785, %v53
  %v8850 = vadd.f32 %v8786, %v54
  %v8851 = vadd.f32 %v8787, %v55
  %v8852 = vadd.f32 %v8788, %v56
  %v8853 = vadd.f32 %v8789, %v57
  %v8854 = vadd.f32 %v8790, %v58
  %v8855 = vadd.f32 %v8791, %v59
  %v8856 = vadd.f32 %v8792, %v60
  %v8857 = vadd.f32 %v8793, %v61
  %v8858 = vadd.f32 %v8794, %v62
  %v8859 = vadd.f32 %v8795, %v63
  %v8860 = vadd.f32 %v8796, %v64
  %v8861 = vadd.f32 %v8797, %v65
  %v8862 = vadd.f32 %v8798, %v66
  %v8863 = vadd.f32 %v8799, %v67
  %v8864 = vadd.f32 %v8800, %v68
  %v8865 = vadd.f32 %v8801, %v69
  %v8866 = vadd.f32 %v8802, %v70
  %v8867 = vadd.f32 %v8803, %v71
  %v8868 = vadd.f32 %v8804, %v72
  %v8869 = vadd.f32 %v8805, %v73
  %v8870 = vadd.f32 %v8806, %v74
  %v8871 = vadd.f32 %v8807, %v75
  %v8872 = vadd.f32 %v8808, %v76
  %v8873 = vadd.f32 %v8809, %v77
  %v8874 = vadd.f32 %v8810, %v78
  %v8875 = vadd.f32 %v8811, %v79
  %v8876 = vadd.f32 %v8812, %v80
  %v8877 = vadd.f32 %v8813, %v81
  %v8878 = vadd.f32 %v8814, %v82
  %v8879 = vadd.f32 %v8815, %v83
  %v8880 = vadd.f32 %v8816, %v84
  %v8881 = vadd.f32 %v8817, %v85
  %v8882 = vadd.f32 %v8818, %v86
  %v8883 = vadd.f32 %v8819, %v87
  %v8884 = vadd.f32 %v8820, %v88
  %v8885 = vadd.f32 %v8821, %v89
  %v8886 = vmax.f32 %v8822, 0.0
  %v8887 = vmax.f32 %v8823, 0.0
  %v8888 = vmax.f32 %v8824, 0.0
  %v8889 = vmax.f32 %v8825, 0.0
  %v8890 = vmax.f32 %v8826, 0.0
  %v8891 = vmax.f32 %v8827, 0.0
  %v8892 = vmax.f32 %v8828, 0.0
  %v8893 = vmax.f32 %v8829, 0.0
  %v8894 = vmax.f32 %v8830, 0.0
  %v8895 = vmax.f32 %v8831, 0.0
  %v8896 = vmax.f32 %v8832, 0.0
  %v8897 = vmax.f32 %v8833, 0.0
  %v8898 = vmax.f32 %v8834, 0.0
  %v8899 = vmax.f32 %v8835, 0.0
  %v8900 = vmax.f32 %v8836, 0.0
  %v8901 = vmax.f32 %v8837, 0.0
  %v8902 = vmax.f32 %v8838, 0.0
  %v8903 = vmax.f32 %v8839, 0.0
  %v8904 = vmax.f32 %v8840, 0.0
  %v8905 = vmax.f32 %v8841, 0.0
  %v8906 = vmax.f32 %v8842, 0.0
  %v8907 = vmax.f32 %v8843, 0.0
  %v8908 = vmax.f32 %v8844, 0.0
  %v8909 = vmax.f32 %v8845, 0.0
  %v8910 = vmax.f32 %v8846, 0.0
  %v8911 = vmax.f32 %v8847, 0.0
  %v8912 = vmax.f32 %v8848, 0.0
  %v8913 = vmax.f32 %v8849, 0.0
  %v8914 = vmax.f32 %v8850, 0.0
  %v8915 = vmax.f32 %v8851, 0.0
  %v8916 = vmax.f32 %v8852, 0.0
  %v8917 = vmax.f32 %v8853, 0.0
  %v8918 = vmax.f32 %v8854, 0.0
  %v8919 = vmax.f32 %v8855, 0.0
  %v8920 = vmax.f32 %v8856, 0.0
  %v8921 = vmax.f32 %v8857, 0.0
  %v8922 = vmax.f32 %v8858, 0.0
  %v8923 = vmax.f32 %v8859, 0.0
  %v8924 = vmax.f32 %v8860, 0.0
  %v8925 = vmax.f32 %v8861, 0.0
  %v8926 = vmax.f32 %v8862, 0.0
  %v8927 = vmax.f32 %v8863, 0.0
  %v8928 = vmax.f32 %v8864, 0.0
  %v8929 = vmax.f32 %v8865, 0.0
  %v8930 = vmax.f32 %v8866, 0.0
  %v8931 = vmax.f32 %v8867, 0.0
  %v8932 = vmax.f32 %v8868, 0.0
  %v8933 = vmax.f32 %v8869, 0.0
  %v8934 = vmax.f32 %v8870, 0.0
  %v8935 = vmax.f32 %v8871, 0.0
  %v8936 = vmax.f32 %v8872, 0.0
  %v8937 = vmax.f32 %v8873, 0.0
  %v8938 = vmax.f32 %v8874, 0.0
  %v8939 = vmax.f32 %v8875, 0.0
  %v8940 = vmax.f32 %v8876, 0.0
  %v8941 = vmax.f32 %v8877, 0.0
  %v8942 = vmax.f32 %v8878, 0.0
  %v8943 = vmax.f32 %v8879, 0.0
  %v8944 = vmax.f32 %v8880, 0.0
  %v8945 = vmax.f32 %v8881, 0.0
  %v8946 = vmax.f32 %v8882, 0.0
  %v8947 = vmax.f32 %v8883, 0.0
  %v8948 = vmax.f32 %v8884, 0.0
  %v8949 = vmax.f32 %v8885, 0.0
  %8950 = vst.msk [vmem:[%s7] sm:$0xff] %vm90, %v8886
  %8951 = vst.msk [vmem:[%s7 + $0x8] sm:$0xff] %vm90, %v8887
  %8952 = vst.msk [vmem:[%s7 + $0x10] sm:$0xff] %vm90, %v8888
  %8953 = vst.msk [vmem:[%s7 + $0x18] sm:$0xff] %vm90, %v8889
  %8954 = vst.msk [vmem:[%s7 + $0x20] sm:$0xff] %vm90, %v8890
  %8955 = vst.msk [vmem:[%s7 + $0x28] sm:$0xff] %vm90, %v8891
  %8956 = vst.msk [vmem:[%s7 + $0x30] sm:$0xff] %vm90, %v8892
  %8957 = vst.msk [vmem:[%s7 + $0x38] sm:$0xff] %vm90, %v8893
  %8958 = vst.msk [vmem:[%s7 + $0x40] sm:$0xff] %vm90, %v8894
  %8959 = vst.msk [vmem:[%s7 + $0x48] sm:$0xff] %vm90, %v8895
  %8960 = vst.msk [vmem:[%s7 + $0x50] sm:$0xff] %vm90, %v8896
  %8961 = vst.msk [vmem:[%s7 + $0x58] sm:$0xff] %vm90, %v8897
  %8962 = vst.msk [vmem:[%s7 + $0x60] sm:$0xff] %vm90, %v8898
  %8963 = vst.msk [vmem:[%s7 + $0x68] sm:$0xff] %vm90, %v8899
  %8964 = vst.msk [vmem:[%s7 + $0x70] sm:$0xff] %vm90, %v8900
  %8965 = vst.msk [vmem:[%s7 + $0x78] sm:$0xff] %vm90, %v8901
  %8966 = vst.msk [vmem:[%s7 + $0x80] sm:$0xff] %vm90, %v8902
  %8967 = vst.msk [vmem:[%s7 + $0x88] sm:$0xff] %vm90, %v8903
  %8968 = vst.msk [vmem:[%s7 + $0x90] sm:$0xff] %vm90, %v8904
  %8969 = vst.msk [vmem:[%s7 + $0x98] sm:$0xff] %vm90, %v8905
  %8970 = vst.msk [vmem:[%s7 + $0xa0] sm:$0xff] %vm90, %v8906
  %8971 = vst.msk [vmem:[%s7 + $0xa8] sm:$0xff] %vm90, %v8907
  %8972 = vst.msk [vmem:[%s7 + $0xb0] sm:$0xff] %vm90, %v8908
  %8973 = vst.msk [vmem:[%s7 + $0xb8] sm:$0xff] %vm90, %v8909
  %8974 = vst.msk [vmem:[%s7 + $0xc0] sm:$0xff] %vm90, %v8910
  %8975 = vst.msk [vmem:[%s7 + $0xc8] sm:$0xff] %vm90, %v8911
  %8976 = vst.msk [vmem:[%s7 + $0xd0] sm:$0xff] %vm90, %v8912
  %8977 = vst.msk [vmem:[%s7 + $0xd8] sm:$0xff] %vm90, %v8913
  %8978 = vst.msk [vmem:[%s7 + $0xe0] sm:$0xff] %vm90, %v8914
  %8979 = vst.msk [vmem:[%s7 + $0xe8] sm:$0xff] %vm90, %v8915
  %8980 = vst.msk [vmem:[%s7 + $0xf0] sm:$0xff] %vm90, %v8916
  %8981 = vst.msk [vmem:[%s7 + $0xf8] sm:$0xff] %vm90, %v8917
  %8982 = vst.msk [vmem:[%s7 + $0x100] sm:$0xff] %vm90, %v8918
  %8983 = vst.msk [vmem:[%s7 + $0x108] sm:$0xff] %vm90, %v8919
  %8984 = vst.msk [vmem:[%s7 + $0x110] sm:$0xff] %vm90, %v8920
  %8985 = vst.msk [vmem:[%s7 + $0x118] sm:$0xff] %vm90, %v8921
  %8986 = vst.msk [vmem:[%s7 + $0x120] sm:$0xff] %vm90, %v8922
  %8987 = vst.msk [vmem:[%s7 + $0x128] sm:$0xff] %vm90, %v8923
  %8988 = vst.msk [vmem:[%s7 + $0x130] sm:$0xff] %vm90, %v8924
  %8989 = vst.msk [vmem:[%s7 + $0x138] sm:$0xff] %vm90, %v8925
  %8990 = vst.msk [vmem:[%s7 + $0x140] sm:$0xff] %vm90, %v8926
  %8991 = vst.msk [vmem:[%s7 + $0x148] sm:$0xff] %vm90, %v8927
  %8992 = vst.msk [vmem:[%s7 + $0x150] sm:$0xff] %vm90, %v8928
  %8993 = vst.msk [vmem:[%s7 + $0x158] sm:$0xff] %vm90, %v8929
  %8994 = vst.msk [vmem:[%s7 + $0x160] sm:$0xff] %vm90, %v8930
  %8995 = vst.msk [vmem:[%s7 + $0x168] sm:$0xff] %vm90, %v8931
  %8996 = vst.msk [vmem:[%s7 + $0x170] sm:$0xff] %vm90, %v8932
  %8997 = vst.msk [vmem:[%s7 + $0x178] sm:$0xff] %vm90, %v8933
  %8998 = vst.msk [vmem:[%s7 + $0x180] sm:$0xff] %vm90, %v8934
  %8999 = vst.msk [vmem:[%s7 + $0x188] sm:$0xff] %vm90, %v8935
  %9000 = vst.msk [vmem:[%s7 + $0x190] sm:$0xff] %vm90, %v8936
  %9001 = vst.msk [vmem:[%s7 + $0x198] sm:$0xff] %vm90, %v8937
  %9002 = vst.msk [vmem:[%s7 + $0x1a0] sm:$0xff] %vm90, %v8938
  %9003 = vst.msk [vmem:[%s7 + $0x1a8] sm:$0xff] %vm90, %v8939
  %9004 = vst.msk [vmem:[%s7 + $0x1b0] sm:$0xff] %vm90, %v8940
  %9005 = vst.msk [vmem:[%s7 + $0x1b8] sm:$0xff] %vm90, %v8941
  %9006 = vst.msk [vmem:[%s7 + $0x1c0] sm:$0xff] %vm90, %v8942
  %9007 = vst.msk [vmem:[%s7 + $0x1c8] sm:$0xff] %vm90, %v8943
  %9008 = vst.msk [vmem:[%s7 + $0x1d0] sm:$0xff] %vm90, %v8944
  %9009 = vst.msk [vmem:[%s7 + $0x1d8] sm:$0xff] %vm90, %v8945
  %9010 = vst.msk [vmem:[%s7 + $0x1e0] sm:$0xff] %vm90, %v8946
  %9011 = vst.msk [vmem:[%s7 + $0x1e8] sm:$0xff] %vm90, %v8947
  %9012 = vst.msk [vmem:[%s7 + $0x1f0] sm:$0xff] %vm90, %v8948
  %9013 = vst.msk [vmem:[%s7 + $0x1f8] sm:$0xff] %vm90, %v8949
  // Predicated region
  $region30: #{residual_forward.1} parent=0 // pred_check
    _
  $region31: #{residual_forward.1} parent=0 // pred_check_branch
    %9015 = sbr.rel (0) target = $region33
  $region32: #{residual_forward.1} parent=0 // pred_region
    _
  $region33: #{residual_forward.1} parent=0 // pred_fallthru
    _
  // Predicated region
  $region34: #{residual_forward.1} parent=0 // pred_check
    _
  $region35: #{residual_forward.1} parent=0 // pred_check_branch
    %9017 = sbr.rel (0) target = $region37
  $region36: #{residual_forward.1} parent=0 // pred_region
    _
  $region37: #{residual_forward.1} parent=0 // pred_fallthru
    _

</llo_original>
